<compile_context>
chip_gen: v7x
topology: tpu7x:2x2x1
jax: 0.10.0
libtpu: 0.0.40
codegen_flags: <defaults>
</compile_context>

<pallas_src>
import jax
import jax.numpy as jnp
import numpy as np
from jax import lax
from jax.experimental import pallas as pl
from jax.experimental.pallas import tpu as pltpu

LANE = 128
_VMEM_LIMIT = 32 * 1024 * 1024  # safe on v5e/v6e/v7x
_PREC = lax.Precision.HIGHEST


def _round_up(x, m):
    return (x + m - 1) // m * m


def _fold_bn(gamma, beta, mean, var, eps):
    s = gamma * lax.rsqrt(var + eps)
    return s, beta - mean * s


# --------------------------------------------------------------------------
# Kernel 1: expansion (1x1 conv + BN + ReLU) fused with both DepthSepConv
# branches (depthwise K x K + BN + ReLU + pointwise 1x1 + BN) and the channel
# concat.  One grid step per batch element (grid axis marked "parallel").
# --------------------------------------------------------------------------
def _make_encoder_conv_kernel(H, W, Cin, Chp, Ctrp, PAD):
    HW = H * W
    Hp, Wp = H + 2 * PAD, W + 2 * PAD

    def kernel(x_ref, w1_ref, b1_ref, wdw3_ref, bdw3_ref, wdw5_ref, bdw5_ref,
               wpl_ref, wpr_ref, bcat_ref, o_ref, hpad_ref):
        # ---- expansion: 1x1 conv (BN folded into weights) + ReLU ----------
        # (HW, Cin) @ (Cin, Chp) -> (HW, Chp); reshape is layout-free (W%8==0)
        x2 = x_ref[0].reshape(HW, Cin).astype(jnp.float32)
        h = jnp.dot(x2, w1_ref[...],
                    preferred_element_type=jnp.float32, precision=_PREC)
        h = jnp.maximum(h + b1_ref[...], 0.0)

        # ---- zero spatial halo in VMEM (replaces wrapper-side jnp.pad) ----
        hpad_ref[...] = jnp.zeros((Hp, Wp, Chp), jnp.float32)
        hpad_ref[PAD:PAD + H, PAD:PAD + W, :] = h.reshape(H, W, Chp)

        # ---- depthwise conv (+ folded BN) + ReLU, stride 1 ----------------
        def depthwise(K, w_ref, b_ref):
            pad = (K - 1) // 2
            off = PAD - pad
            acc = jnp.zeros((H, W, Chp), jnp.float32)
            for kh in range(K):
                for kw in range(K):
                    patch = hpad_ref[off + kh:off + kh + H,
                                     off + kw:off + kw + W, :]
                    acc = acc + patch * w_ref[kh:kh + 1, kw:kw + 1, :]
            return jnp.maximum(acc + b_ref[...].reshape(1, 1, Chp), 0.0)

        hl = depthwise(3, wdw3_ref, bdw3_ref)   # left branch
        hr = depthwise(5, wdw5_ref, bdw5_ref)   # right branch

        # ---- pointwise 1x1 convs (+ folded BN2); left weights occupy trace
        #      lanes [0:Cout], right weights lanes [Cout:2*Cout] -> the sum of
        #      the two matmuls IS the channel concat, stored lane-dense. ------
        out = jnp.dot(hl.reshape(HW, Chp), wpl_ref[...],
                      preferred_element_type=jnp.float32, precision=_PREC)
        out = out + jnp.dot(hr.reshape(HW, Chp), wpr_ref[...],
                            preferred_element_type=jnp.float32, precision=_PREC)
        out = out + bcat_ref[...]
        o_ref[...] = out.reshape(1, H, W, Ctrp)

    return kernel


def _encoder_conv_call(x, w1f, b1f, wdw3f, bdw3f, wdw5f, bdw5f,
                       wpw3f, wpw5f, bcat):
    N, H, W, Cin = x.shape
    Chp = w1f.shape[1]
    Ctrp = wpw3f.shape[1]
    PAD = 2  # max of the two branch paddings (5x5 branch)

    kernel = _make_encoder_conv_kernel(H, W, Cin, Chp, Ctrp, PAD)

    # Constant-index parameter blocks: their block index never changes across
    # grid steps, so the pipeline does not re-DMA them per batch element.
    def cspec(arr):
        nd = arr.ndim
        return pl.BlockSpec(arr.shape, lambda n, _nd=nd: (0,) * _nd)

    return pl.pallas_call(
        kernel,
        out_shape=jax.ShapeDtypeStruct((N, H, W, Ctrp), jnp.float32),
        grid=(N,),
        in_specs=[
            pl.BlockSpec((1, H, W, Cin), lambda n: (n, 0, 0, 0)),
            cspec(w1f), cspec(b1f),
            cspec(wdw3f), cspec(bdw3f),
            cspec(wdw5f), cspec(bdw5f),
            cspec(wpw3f), cspec(wpw5f), cspec(bcat),
        ],
        out_specs=pl.BlockSpec((1, H, W, Ctrp), lambda n: (n, 0, 0, 0)),
        scratch_shapes=[pltpu.VMEM((H + 2 * PAD, W + 2 * PAD, Chp),
                                   jnp.float32)],
        compiler_params=pltpu.CompilerParams(
            dimension_semantics=("parallel",),
            vmem_limit_bytes=_VMEM_LIMIT),
    )(x, w1f, b1f, wdw3f, bdw3f, wdw5f, bdw5f, wpw3f, wpw5f, bcat)


# --------------------------------------------------------------------------
# Kernel 2: MaxPool2d(2, stride=2) with PyTorch-style flattened indices.
# The even/odd column phase has been folded into the lane axis by the wrapper
# (free reshape), so the window reduction is aligned lane slicing only.
# --------------------------------------------------------------------------
def _make_pool_kernel(TR, W2, C, W):
    def kernel(t_ref, o_ref, i_ref):
        r = pl.program_id(1)
        t = t_ref[0].reshape(TR, 2, W2, 2 * C)      # split outer row dim: free
        row0 = t[:, 0]                              # (TR, W2, 2C) even rows
        row1 = t[:, 1]                              # odd rows
        a00, a01 = row0[:, :, :C], row0[:, :, C:]   # (even col, odd col)
        a10, a11 = row1[:, :, :C], row1[:, :, C:]

        ii = lax.broadcasted_iota(jnp.int32, (TR, W2, C), 0)
        jj = lax.broadcasted_iota(jnp.int32, (TR, W2, C), 1)
        base = (2 * (r * TR + ii)) * W + 2 * jj     # PyTorch flat idx = h*W + w

        best, bidx = a00, base
        for cand, off in ((a01, 1), (a10, W), (a11, W + 1)):
            take = cand > best                      # first-max-wins tie-break
            best = jnp.where(take, cand, best)
            bidx = jnp.where(take, base + off, bidx)

        o_ref[0] = best
        i_ref[0] = bidx

    return kernel


def _pool_call(trace_p):
    N, H, W, C = trace_p.shape
    H2, W2 = H // 2, W // 2
    # free (row-major) reshape: fold even/odd column phase into the lane axis
    t = trace_p.reshape(N, H, W2, 2 * C)
    TR = next(d for d in (8, 4, 2, 1) if H2 % d == 0)   # pooled rows per step

    kernel = _make_pool_kernel(TR, W2, C, W)
    pooled, idx = pl.pallas_call(
        kernel,
        out_shape=(jax.ShapeDtypeStruct((N, H2, W2, C), jnp.float32),
                   jax.ShapeDtypeStruct((N, H2, W2, C), jnp.int32)),
        grid=(N, H2 // TR),
        in_specs=[pl.BlockSpec((1, 2 * TR, W2, 2 * C),
                               lambda n, r: (n, r, 0, 0))],
        out_specs=(pl.BlockSpec((1, TR, W2, C), lambda n, r: (n, r, 0, 0)),
                   pl.BlockSpec((1, TR, W2, C), lambda n, r: (n, r, 0, 0))),
        compiler_params=pltpu.CompilerParams(
            dimension_semantics=("parallel", "parallel"),
            vmem_limit_bytes=_VMEM_LIMIT),
    )(t)
    return pooled, idx


# --------------------------------------------------------------------------
# Wrapper: NCHW boundary, BN folding, lane padding, calls the two kernels.
# --------------------------------------------------------------------------
def encoder_block_forward(x_nchw, params, eps=1e-5):
    N, Cin, H, W = x_nchw.shape
    assert H % 2 == 0 and W % 2 == 0 and W % 8 == 0
    hid = params['w1'].shape[1]
    Chp = _round_up(hid, LANE)      # hidden channels, lane-padded
    Ctr = 2 * Cin                   # real trace channels (left || right)
    Ctrp = _round_up(Ctr, LANE)     # trace channels, lane-padded

    x = jnp.transpose(x_nchw, (0, 2, 3, 1)).astype(jnp.float32)   # NHWC

    # --- fold inference-mode BN into conv weights/biases, pad to 128 lanes ---
    s1, t1 = _fold_bn(eps=eps, **params['bn1'])
    w1f = jnp.zeros((Cin, Chp), jnp.float32).at[:, :hid].set(
        params['w1'] * s1[None, :])
    b1f = jnp.zeros((1, Chp), jnp.float32).at[0, :hid].set(
        params['b1'] * s1 + t1)

    def fold_branch(wdw, bdw, bn_a, wpw, bpw, bn_b, K, col_off):
        sa, ta = _fold_bn(eps=eps, **bn_a)
        sb, tb = _fold_bn(eps=eps, **bn_b)
        wdwf = jnp.zeros((K, K, Chp), jnp.float32).at[:, :, :hid].set(
            wdw * sa[None, None, :])
        bdwf = jnp.zeros((1, Chp), jnp.float32).at[0, :hid].set(bdw * sa + ta)
        wpwf = jnp.zeros((Chp, Ctrp), jnp.float32).at[
            :hid, col_off:col_off + Cin].set(wpw * sb[None, :])
        bpwf = jnp.zeros((Ctrp,), jnp.float32).at[
            col_off:col_off + Cin].set(bpw * sb + tb)
        return wdwf, bdwf, wpwf, bpwf

    wdw3f, bdw3f, wpw3f, bpw3f = fold_branch(
        params['wdw3'], params['bdw3'], params['bn3a'],
        params['wpw3'], params['bpw3'], params['bn3b'], 3, 0)
    wdw5f, bdw5f, wpw5f, bpw5f = fold_branch(
        params['wdw5'], params['bdw5'], params['bn5a'],
        params['wpw5'], params['bpw5'], params['bn5b'], 5, Cin)
    bcat = (bpw3f + bpw5f).reshape(1, Ctrp)   # disjoint lanes -> sum == concat

    trace_p = _encoder_conv_call(x, w1f, b1f, wdw3f, bdw3f, wdw5f, bdw5f,
                                 wpw3f, wpw5f, bcat)
    pooled_p, idx_p = _pool_call(trace_p)

    to_nchw = lambda a: jnp.transpose(a, (0, 3, 1, 2))
    trace = to_nchw(trace_p[..., :Ctr])
    pooled = to_nchw(pooled_p[..., :Ctr])
    idx = to_nchw(idx_p[..., :Ctr])
    return pooled, trace, idx


# --------------------------------------------------------------------------
# Pure-JAX reference (matches the PyTorch module in eval() mode).
# --------------------------------------------------------------------------
def _maxpool2x2_with_indices_ref(t_nhwc):
    N, H, W, C = t_nhwc.shape
    H2, W2 = H // 2, W // 2
    t = t_nhwc.reshape(N, H2, 2, W2, 2, C)
    ii = lax.broadcasted_iota(jnp.int32, (N, H2, W2, C), 1)
    jj = lax.broadcasted_iota(jnp.int32, (N, H2, W2, C), 2)
    base = (2 * ii) * W + 2 * jj
    cands = ((t[:, :, 0, :, 0, :], 0), (t[:, :, 0, :, 1, :], 1),
             (t[:, :, 1, :, 0, :], W), (t[:, :, 1, :, 1, :], W + 1))
    best, bidx = cands[0][0], base
    for cand, off in cands[1:]:
        take = cand > best
        best = jnp.where(take, cand, best)
        bidx = jnp.where(take, base + off, bidx)
    return best, bidx


def ref_forward(x_nchw, params, eps=1e-5):
    x = jnp.transpose(x_nchw, (0, 2, 3, 1)).astype(jnp.float32)
    hid = params['w1'].shape[1]
    Cin = x.shape[-1]
    dn = ('NHWC', 'HWIO', 'NHWC')

    def bn(y, p):
        return (y - p['mean']) / jnp.sqrt(p['var'] + eps) * p['gamma'] + p['beta']

    # expansion: 1x1 conv + BN + ReLU
    h = jnp.einsum('nhwc,cd->nhwd', x, params['w1'], precision=_PREC) + params['b1']
    h = jnp.maximum(bn(h, params['bn1']), 0.0)

    def branch(K, pad, wdw, bdw, bn_a, wpw, bpw, bn_b):
        kdw = wdw.reshape(K, K, 1, hid)
        y = lax.conv_general_dilated(h, kdw, (1, 1), [(pad, pad), (pad, pad)],
                                     dimension_numbers=dn,
                                     feature_group_count=hid,
                                     precision=_PREC) + bdw
        y = jnp.maximum(bn(y, bn_a), 0.0)
        kpw = wpw.reshape(1, 1, hid, Cin)
        z = lax.conv_general_dilated(y, kpw, (1, 1), [(0, 0), (0, 0)],
                                     dimension_numbers=dn, precision=_PREC) + bpw
        return bn(z, bn_b)

    left = branch(3, 1, params['wdw3'], params['bdw3'], params['bn3a'],
                  params['wpw3'], params['bpw3'], params['bn3b'])
    right = branch(5, 2, params['wdw5'], params['bdw5'], params['bn5a'],
                   params['wpw5'], params['bpw5'], params['bn5b'])
    trace = jnp.concatenate([left, right], axis=-1)
    pooled, idx = _maxpool2x2_with_indices_ref(trace)
    to_nchw = lambda a: jnp.transpose(a, (0, 3, 1, 2))
    return to_nchw(pooled), to_nchw(trace), to_nchw(idx)


# --------------------------------------------------------------------------
# Parameter init (JAX-friendly layouts; same math as the PyTorch module).
# --------------------------------------------------------------------------
def init_params(key, cin, expansion):
    hid = cin * expansion
    keys = iter(jax.random.split(key, 40))

    def nrm(shape, s=0.2):
        return s * jax.random.normal(next(keys), shape, jnp.float32)

    def bn_params(c):
        return dict(
            gamma=1.0 + 0.1 * jax.random.normal(next(keys), (c,), jnp.float32),
            beta=nrm((c,), 0.1),
            mean=nrm((c,), 0.1),
            var=0.5 + jnp.abs(jax.random.normal(next(keys), (c,), jnp.float32)))

    return dict(
        w1=nrm((cin, hid)), b1=nrm((hid,), 0.1), bn1=bn_params(hid),
        wdw3=nrm((3, 3, hid)), bdw3=nrm((hid,), 0.1), bn3a=bn_params(hid),
        wpw3=nrm((hid, cin)), bpw3=nrm((cin,), 0.1), bn3b=bn_params(cin),
        wdw5=nrm((5, 5, hid)), bdw5=nrm((hid,), 0.1), bn5a=bn_params(hid),
        wpw5=nrm((hid, cin)), bpw5=nrm((cin,), 0.1), bn5b=bn_params(cin),
    )


if __name__ == "__main__":
    key = jax.random.PRNGKey(0)
    kx, kp = jax.random.split(key)

    N, Cin, H, W = 2, 4, 16, 16
    expansion = 4

    x = jax.random.normal(kx, (N, Cin, H, W), jnp.float32)
    params = init_params(kp, Cin, expansion)

    pooled, trace, idx = jax.block_until_ready(encoder_block_forward(x, params))
    pooled_r, trace_r, idx_r = jax.block_until_ready(ref_forward(x, params))

    np.testing.assert_allclose(np.asarray(trace), np.asarray(trace_r),
                               rtol=1e-3, atol=1e-3)
    np.testing.assert_allclose(np.asarray(pooled), np.asarray(pooled_r),
                               rtol=1e-3, atol=1e-3)

    # Index check: re-pool the kernel's own trace with the reference pooling;
    # operating on identical values, the argmax indices must match exactly.
    trace_nhwc = jnp.transpose(trace, (0, 2, 3, 1))
    _, idx_chk = _maxpool2x2_with_indices_ref(trace_nhwc)
    idx_chk = jnp.transpose(idx_chk, (0, 3, 1, 2))
    assert np.array_equal(np.asarray(idx), np.asarray(idx_chk))

    print("KERNEL_OK")
</pallas_src>

<mosaic_0001>
module attributes {stable_mosaic.version = 11 : i64} {
  func.func @kernel(%arg0: i32, %arg1: memref<1x16x16x4xf32, #tpu.memory_space<vmem>>, %arg2: memref<4x128xf32, #tpu.memory_space<vmem>>, %arg3: memref<1x128xf32, #tpu.memory_space<vmem>>, %arg4: memref<3x3x128xf32, #tpu.memory_space<vmem>>, %arg5: memref<1x128xf32, #tpu.memory_space<vmem>>, %arg6: memref<5x5x128xf32, #tpu.memory_space<vmem>>, %arg7: memref<1x128xf32, #tpu.memory_space<vmem>>, %arg8: memref<128x128xf32, #tpu.memory_space<vmem>>, %arg9: memref<128x128xf32, #tpu.memory_space<vmem>>, %arg10: memref<1x128xf32, #tpu.memory_space<vmem>>, %arg11: memref<1x16x16x128xf32, #tpu.memory_space<vmem>>, %arg12: memref<20x20x128xf32, #tpu.memory_space<vmem>>) attributes {dimension_semantics = [#tpu.dimension_semantics<parallel>], iteration_bounds = array<i64: 2>, scalar_prefetch = 0 : i64, scratch_operands = 1 : i64, tpu.core_type = #tpu.core_type<tc>, window_params = [{transform_indices = @transform_0, window_bounds = array<i64: 1, 16, 16, 4>}, {pipeline_mode = #tpu.pipeline_mode<synchronous>, transform_indices = @transform_1, window_bounds = array<i64: 4, 128>}, {pipeline_mode = #tpu.pipeline_mode<synchronous>, transform_indices = @transform_2, window_bounds = array<i64: 1, 128>}, {pipeline_mode = #tpu.pipeline_mode<synchronous>, transform_indices = @transform_3, window_bounds = array<i64: 3, 3, 128>}, {pipeline_mode = #tpu.pipeline_mode<synchronous>, transform_indices = @transform_4, window_bounds = array<i64: 1, 128>}, {pipeline_mode = #tpu.pipeline_mode<synchronous>, transform_indices = @transform_5, window_bounds = array<i64: 5, 5, 128>}, {pipeline_mode = #tpu.pipeline_mode<synchronous>, transform_indices = @transform_6, window_bounds = array<i64: 1, 128>}, {pipeline_mode = #tpu.pipeline_mode<synchronous>, transform_indices = @transform_7, window_bounds = array<i64: 128, 128>}, {pipeline_mode = #tpu.pipeline_mode<synchronous>, transform_indices = @transform_8, window_bounds = array<i64: 128, 128>}, {pipeline_mode = #tpu.pipeline_mode<synchronous>, transform_indices = @transform_9, window_bounds = array<i64: 1, 128>}, {transform_indices = @transform_10, window_bounds = array<i64: 1, 16, 16, 128>}]} {
    %c0 = arith.constant 0 : index
    %c0_0 = arith.constant 0 : index
    %c0_1 = arith.constant 0 : index
    %c0_2 = arith.constant 0 : index
    %0 = vector.load %arg1[%c0, %c0_0, %c0_1, %c0_2] : memref<1x16x16x4xf32, #tpu.memory_space<vmem>>, vector<1x16x16x4xf32>
    %1 = vector.shape_cast %0 : vector<1x16x16x4xf32> to vector<16x16x4xf32>
    %2 = vector.shape_cast %1 : vector<16x16x4xf32> to vector<256x4xf32>
    %c0_3 = arith.constant 0 : index
    %c0_4 = arith.constant 0 : index
    %3 = vector.load %arg2[%c0_3, %c0_4] : memref<4x128xf32, #tpu.memory_space<vmem>>, vector<4x128xf32>
    %cst = arith.constant dense<0.000000e+00> : vector<256x128xf32>
    %4 = tpu.matmul %2, %3, %cst {dimension_numbers = #tpu.dot_dimension_numbers<[1], [0], [0], [1], [0, 0, 1, 1], [], []>, precision = #tpu.contract_precision<fp32>} : vector<256x4xf32>, vector<4x128xf32>, vector<256x128xf32> -> vector<256x128xf32>
    %c0_5 = arith.constant 0 : index
    %c0_6 = arith.constant 0 : index
    %5 = vector.load %arg3[%c0_5, %c0_6] : memref<1x128xf32, #tpu.memory_space<vmem>>, vector<1x128xf32>
    %6 = vector.broadcast %5 : vector<1x128xf32> to vector<256x128xf32>
    %7 = arith.addf %4, %6 : vector<256x128xf32>
    %cst_7 = arith.constant 0.000000e+00 : f32
    %8 = vector.broadcast %cst_7 : f32 to vector<256x128xf32>
    %9 = arith.maximumf %7, %8 : vector<256x128xf32>
    %cst_8 = arith.constant 0.000000e+00 : f32
    %10 = vector.broadcast %cst_8 : f32 to vector<20x20x128xf32>
    %c0_9 = arith.constant 0 : index
    %c0_10 = arith.constant 0 : index
    %c0_11 = arith.constant 0 : index
    %11 = vector.load %arg12[%c0_9, %c0_10, %c0_11] : memref<20x20x128xf32, #tpu.memory_space<vmem>>, vector<20x20x128xf32>
    tpu.vector_store %arg12[%c0_9, %c0_10, %c0_11], %10 {strides = array<i32>} : memref<20x20x128xf32, #tpu.memory_space<vmem>>, vector<20x20x128xf32>,
    %12 = vector.shape_cast %9 : vector<256x128xf32> to vector<16x16x128xf32>
    %c2 = arith.constant 2 : index
    %c2_12 = arith.constant 2 : index
    %c0_13 = arith.constant 0 : index
    %13 = vector.load %arg12[%c2, %c2_12, %c0_13] : memref<20x20x128xf32, #tpu.memory_space<vmem>>, vector<16x16x128xf32>
    tpu.vector_store %arg12[%c2, %c2_12, %c0_13], %12 {strides = array<i32>} : memref<20x20x128xf32, #tpu.memory_space<vmem>>, vector<16x16x128xf32>,
    %cst_14 = arith.constant 0.000000e+00 : f32
    %14 = vector.broadcast %cst_14 : f32 to vector<16x16x128xf32>
    %c1 = arith.constant 1 : index
    %c1_15 = arith.constant 1 : index
    %c0_16 = arith.constant 0 : index
    %15 = vector.load %arg12[%c1, %c1_15, %c0_16] : memref<20x20x128xf32, #tpu.memory_space<vmem>>, vector<16x16x128xf32>
    %c0_17 = arith.constant 0 : index
    %c0_18 = arith.constant 0 : index
    %c0_19 = arith.constant 0 : index
    %16 = vector.load %arg4[%c0_17, %c0_18, %c0_19] : memref<3x3x128xf32, #tpu.memory_space<vmem>>, vector<1x1x128xf32>
    %17 = vector.broadcast %16 : vector<1x1x128xf32> to vector<16x16x128xf32>
    %18 = arith.mulf %15, %17 : vector<16x16x128xf32>
    %19 = arith.addf %14, %18 : vector<16x16x128xf32>
    %c1_20 = arith.constant 1 : index
    %c2_21 = arith.constant 2 : index
    %c0_22 = arith.constant 0 : index
    %20 = vector.load %arg12[%c1_20, %c2_21, %c0_22] : memref<20x20x128xf32, #tpu.memory_space<vmem>>, vector<16x16x128xf32>
    %c0_23 = arith.constant 0 : index
    %c1_24 = arith.constant 1 : index
    %c0_25 = arith.constant 0 : index
    %21 = vector.load %arg4[%c0_23, %c1_24, %c0_25] : memref<3x3x128xf32, #tpu.memory_space<vmem>>, vector<1x1x128xf32>
    %22 = vector.broadcast %21 : vector<1x1x128xf32> to vector<16x16x128xf32>
    %23 = arith.mulf %20, %22 : vector<16x16x128xf32>
    %24 = arith.addf %19, %23 : vector<16x16x128xf32>
    %c1_26 = arith.constant 1 : index
    %c3 = arith.constant 3 : index
    %c0_27 = arith.constant 0 : index
    %25 = vector.load %arg12[%c1_26, %c3, %c0_27] : memref<20x20x128xf32, #tpu.memory_space<vmem>>, vector<16x16x128xf32>
    %c0_28 = arith.constant 0 : index
    %c2_29 = arith.constant 2 : index
    %c0_30 = arith.constant 0 : index
    %26 = vector.load %arg4[%c0_28, %c2_29, %c0_30] : memref<3x3x128xf32, #tpu.memory_space<vmem>>, vector<1x1x128xf32>
    %27 = vector.broadcast %26 : vector<1x1x128xf32> to vector<16x16x128xf32>
    %28 = arith.mulf %25, %27 : vector<16x16x128xf32>
    %29 = arith.addf %24, %28 : vector<16x16x128xf32>
    %c2_31 = arith.constant 2 : index
    %c1_32 = arith.constant 1 : index
    %c0_33 = arith.constant 0 : index
    %30 = vector.load %arg12[%c2_31, %c1_32, %c0_33] : memref<20x20x128xf32, #tpu.memory_space<vmem>>, vector<16x16x128xf32>
    %c1_34 = arith.constant 1 : index
    %c0_35 = arith.constant 0 : index
    %c0_36 = arith.constant 0 : index
    %31 = vector.load %arg4[%c1_34, %c0_35, %c0_36] : memref<3x3x128xf32, #tpu.memory_space<vmem>>, vector<1x1x128xf32>
    %32 = vector.broadcast %31 : vector<1x1x128xf32> to vector<16x16x128xf32>
    %33 = arith.mulf %30, %32 : vector<16x16x128xf32>
    %34 = arith.addf %29, %33 : vector<16x16x128xf32>
    %c2_37 = arith.constant 2 : index
    %c2_38 = arith.constant 2 : index
    %c0_39 = arith.constant 0 : index
    %35 = vector.load %arg12[%c2_37, %c2_38, %c0_39] : memref<20x20x128xf32, #tpu.memory_space<vmem>>, vector<16x16x128xf32>
    %c1_40 = arith.constant 1 : index
    %c1_41 = arith.constant 1 : index
    %c0_42 = arith.constant 0 : index
    %36 = vector.load %arg4[%c1_40, %c1_41, %c0_42] : memref<3x3x128xf32, #tpu.memory_space<vmem>>, vector<1x1x128xf32>
    %37 = vector.broadcast %36 : vector<1x1x128xf32> to vector<16x16x128xf32>
    %38 = arith.mulf %35, %37 : vector<16x16x128xf32>
    %39 = arith.addf %34, %38 : vector<16x16x128xf32>
    %c2_43 = arith.constant 2 : index
    %c3_44 = arith.constant 3 : index
    %c0_45 = arith.constant 0 : index
    %40 = vector.load %arg12[%c2_43, %c3_44, %c0_45] : memref<20x20x128xf32, #tpu.memory_space<vmem>>, vector<16x16x128xf32>
    %c1_46 = arith.constant 1 : index
    %c2_47 = arith.constant 2 : index
    %c0_48 = arith.constant 0 : index
    %41 = vector.load %arg4[%c1_46, %c2_47, %c0_48] : memref<3x3x128xf32, #tpu.memory_space<vmem>>, vector<1x1x128xf32>
    %42 = vector.broadcast %41 : vector<1x1x128xf32> to vector<16x16x128xf32>
    %43 = arith.mulf %40, %42 : vector<16x16x128xf32>
    %44 = arith.addf %39, %43 : vector<16x16x128xf32>
    %c3_49 = arith.constant 3 : index
    %c1_50 = arith.constant 1 : index
    %c0_51 = arith.constant 0 : index
    %45 = vector.load %arg12[%c3_49, %c1_50, %c0_51] : memref<20x20x128xf32, #tpu.memory_space<vmem>>, vector<16x16x128xf32>
    %c2_52 = arith.constant 2 : index
    %c0_53 = arith.constant 0 : index
    %c0_54 = arith.constant 0 : index
    %46 = vector.load %arg4[%c2_52, %c0_53, %c0_54] : memref<3x3x128xf32, #tpu.memory_space<vmem>>, vector<1x1x128xf32>
    %47 = vector.broadcast %46 : vector<1x1x128xf32> to vector<16x16x128xf32>
    %48 = arith.mulf %45, %47 : vector<16x16x128xf32>
    %49 = arith.addf %44, %48 : vector<16x16x128xf32>
    %c3_55 = arith.constant 3 : index
    %c2_56 = arith.constant 2 : index
    %c0_57 = arith.constant 0 : index
    %50 = vector.load %arg12[%c3_55, %c2_56, %c0_57] : memref<20x20x128xf32, #tpu.memory_space<vmem>>, vector<16x16x128xf32>
    %c2_58 = arith.constant 2 : index
    %c1_59 = arith.constant 1 : index
    %c0_60 = arith.constant 0 : index
    %51 = vector.load %arg4[%c2_58, %c1_59, %c0_60] : memref<3x3x128xf32, #tpu.memory_space<vmem>>, vector<1x1x128xf32>
    %52 = vector.broadcast %51 : vector<1x1x128xf32> to vector<16x16x128xf32>
    %53 = arith.mulf %50, %52 : vector<16x16x128xf32>
    %54 = arith.addf %49, %53 : vector<16x16x128xf32>
    %c3_61 = arith.constant 3 : index
    %c3_62 = arith.constant 3 : index
    %c0_63 = arith.constant 0 : index
    %55 = vector.load %arg12[%c3_61, %c3_62, %c0_63] : memref<20x20x128xf32, #tpu.memory_space<vmem>>, vector<16x16x128xf32>
    %c2_64 = arith.constant 2 : index
    %c2_65 = arith.constant 2 : index
    %c0_66 = arith.constant 0 : index
    %56 = vector.load %arg4[%c2_64, %c2_65, %c0_66] : memref<3x3x128xf32, #tpu.memory_space<vmem>>, vector<1x1x128xf32>
    %57 = vector.broadcast %56 : vector<1x1x128xf32> to vector<16x16x128xf32>
    %58 = arith.mulf %55, %57 : vector<16x16x128xf32>
    %59 = arith.addf %54, %58 : vector<16x16x128xf32>
    %c0_67 = arith.constant 0 : index
    %c0_68 = arith.constant 0 : index
    %60 = vector.load %arg5[%c0_67, %c0_68] : memref<1x128xf32, #tpu.memory_space<vmem>>, vector<1x128xf32>
    %61 = vector.shape_cast %60 : vector<1x128xf32> to vector<1x1x128xf32>
    %62 = vector.broadcast %61 : vector<1x1x128xf32> to vector<16x16x128xf32>
    %63 = arith.addf %59, %62 : vector<16x16x128xf32>
    %cst_69 = arith.constant 0.000000e+00 : f32
    %64 = vector.broadcast %cst_69 : f32 to vector<16x16x128xf32>
    %65 = arith.maximumf %63, %64 : vector<16x16x128xf32>
    %cst_70 = arith.constant 0.000000e+00 : f32
    %66 = vector.broadcast %cst_70 : f32 to vector<16x16x128xf32>
    %c0_71 = arith.constant 0 : index
    %c0_72 = arith.constant 0 : index
    %c0_73 = arith.constant 0 : index
    %67 = vector.load %arg12[%c0_71, %c0_72, %c0_73] : memref<20x20x128xf32, #tpu.memory_space<vmem>>, vector<16x16x128xf32>
    %c0_74 = arith.constant 0 : index
    %c0_75 = arith.constant 0 : index
    %c0_76 = arith.constant 0 : index
    %68 = vector.load %arg6[%c0_74, %c0_75, %c0_76] : memref<5x5x128xf32, #tpu.memory_space<vmem>>, vector<1x1x128xf32>
    %69 = vector.broadcast %68 : vector<1x1x128xf32> to vector<16x16x128xf32>
    %70 = arith.mulf %67, %69 : vector<16x16x128xf32>
    %71 = arith.addf %66, %70 : vector<16x16x128xf32>
    %c0_77 = arith.constant 0 : index
    %c1_78 = arith.constant 1 : index
    %c0_79 = arith.constant 0 : index
    %72 = vector.load %arg12[%c0_77, %c1_78, %c0_79] : memref<20x20x128xf32, #tpu.memory_space<vmem>>, vector<16x16x128xf32>
    %c0_80 = arith.constant 0 : index
    %c1_81 = arith.constant 1 : index
    %c0_82 = arith.constant 0 : index
    %73 = vector.load %arg6[%c0_80, %c1_81, %c0_82] : memref<5x5x128xf32, #tpu.memory_space<vmem>>, vector<1x1x128xf32>
    %74 = vector.broadcast %73 : vector<1x1x128xf32> to vector<16x16x128xf32>
    %75 = arith.mulf %72, %74 : vector<16x16x128xf32>
    %76 = arith.addf %71, %75 : vector<16x16x128xf32>
    %c0_83 = arith.constant 0 : index
    %c2_84 = arith.constant 2 : index
    %c0_85 = arith.constant 0 : index
    %77 = vector.load %arg12[%c0_83, %c2_84, %c0_85] : memref<20x20x128xf32, #tpu.memory_space<vmem>>, vector<16x16x128xf32>
    %c0_86 = arith.constant 0 : index
    %c2_87 = arith.constant 2 : index
    %c0_88 = arith.constant 0 : index
    %78 = vector.load %arg6[%c0_86, %c2_87, %c0_88] : memref<5x5x128xf32, #tpu.memory_space<vmem>>, vector<1x1x128xf32>
    %79 = vector.broadcast %78 : vector<1x1x128xf32> to vector<16x16x128xf32>
    %80 = arith.mulf %77, %79 : vector<16x16x128xf32>
    %81 = arith.addf %76, %80 : vector<16x16x128xf32>
    %c0_89 = arith.constant 0 : index
    %c3_90 = arith.constant 3 : index
    %c0_91 = arith.constant 0 : index
    %82 = vector.load %arg12[%c0_89, %c3_90, %c0_91] : memref<20x20x128xf32, #tpu.memory_space<vmem>>, vector<16x16x128xf32>
    %c0_92 = arith.constant 0 : index
    %c3_93 = arith.constant 3 : index
    %c0_94 = arith.constant 0 : index
    %83 = vector.load %arg6[%c0_92, %c3_93, %c0_94] : memref<5x5x128xf32, #tpu.memory_space<vmem>>, vector<1x1x128xf32>
    %84 = vector.broadcast %83 : vector<1x1x128xf32> to vector<16x16x128xf32>
    %85 = arith.mulf %82, %84 : vector<16x16x128xf32>
    %86 = arith.addf %81, %85 : vector<16x16x128xf32>
    %c0_95 = arith.constant 0 : index
    %c4 = arith.constant 4 : index
    %c0_96 = arith.constant 0 : index
    %87 = vector.load %arg12[%c0_95, %c4, %c0_96] : memref<20x20x128xf32, #tpu.memory_space<vmem>>, vector<16x16x128xf32>
    %c0_97 = arith.constant 0 : index
    %c4_98 = arith.constant 4 : index
    %c0_99 = arith.constant 0 : index
    %88 = vector.load %arg6[%c0_97, %c4_98, %c0_99] : memref<5x5x128xf32, #tpu.memory_space<vmem>>, vector<1x1x128xf32>
    %89 = vector.broadcast %88 : vector<1x1x128xf32> to vector<16x16x128xf32>
    %90 = arith.mulf %87, %89 : vector<16x16x128xf32>
    %91 = arith.addf %86, %90 : vector<16x16x128xf32>
    %c1_100 = arith.constant 1 : index
    %c0_101 = arith.constant 0 : index
    %c0_102 = arith.constant 0 : index
    %92 = vector.load %arg12[%c1_100, %c0_101, %c0_102] : memref<20x20x128xf32, #tpu.memory_space<vmem>>, vector<16x16x128xf32>
    %c1_103 = arith.constant 1 : index
    %c0_104 = arith.constant 0 : index
    %c0_105 = arith.constant 0 : index
    %93 = vector.load %arg6[%c1_103, %c0_104, %c0_105] : memref<5x5x128xf32, #tpu.memory_space<vmem>>, vector<1x1x128xf32>
    %94 = vector.broadcast %93 : vector<1x1x128xf32> to vector<16x16x128xf32>
    %95 = arith.mulf %92, %94 : vector<16x16x128xf32>
    %96 = arith.addf %91, %95 : vector<16x16x128xf32>
    %c1_106 = arith.constant 1 : index
    %c1_107 = arith.constant 1 : index
    %c0_108 = arith.constant 0 : index
    %97 = vector.load %arg12[%c1_106, %c1_107, %c0_108] : memref<20x20x128xf32, #tpu.memory_space<vmem>>, vector<16x16x128xf32>
    %c1_109 = arith.constant 1 : index
    %c1_110 = arith.constant 1 : index
    %c0_111 = arith.constant 0 : index
    %98 = vector.load %arg6[%c1_109, %c1_110, %c0_111] : memref<5x5x128xf32, #tpu.memory_space<vmem>>, vector<1x1x128xf32>
    %99 = vector.broadcast %98 : vector<1x1x128xf32> to vector<16x16x128xf32>
    %100 = arith.mulf %97, %99 : vector<16x16x128xf32>
    %101 = arith.addf %96, %100 : vector<16x16x128xf32>
    %c1_112 = arith.constant 1 : index
    %c2_113 = arith.constant 2 : index
    %c0_114 = arith.constant 0 : index
    %102 = vector.load %arg12[%c1_112, %c2_113, %c0_114] : memref<20x20x128xf32, #tpu.memory_space<vmem>>, vector<16x16x128xf32>
    %c1_115 = arith.constant 1 : index
    %c2_116 = arith.constant 2 : index
    %c0_117 = arith.constant 0 : index
    %103 = vector.load %arg6[%c1_115, %c2_116, %c0_117] : memref<5x5x128xf32, #tpu.memory_space<vmem>>, vector<1x1x128xf32>
    %104 = vector.broadcast %103 : vector<1x1x128xf32> to vector<16x16x128xf32>
    %105 = arith.mulf %102, %104 : vector<16x16x128xf32>
    %106 = arith.addf %101, %105 : vector<16x16x128xf32>
    %c1_118 = arith.constant 1 : index
    %c3_119 = arith.constant 3 : index
    %c0_120 = arith.constant 0 : index
    %107 = vector.load %arg12[%c1_118, %c3_119, %c0_120] : memref<20x20x128xf32, #tpu.memory_space<vmem>>, vector<16x16x128xf32>
    %c1_121 = arith.constant 1 : index
    %c3_122 = arith.constant 3 : index
    %c0_123 = arith.constant 0 : index
    %108 = vector.load %arg6[%c1_121, %c3_122, %c0_123] : memref<5x5x128xf32, #tpu.memory_space<vmem>>, vector<1x1x128xf32>
    %109 = vector.broadcast %108 : vector<1x1x128xf32> to vector<16x16x128xf32>
    %110 = arith.mulf %107, %109 : vector<16x16x128xf32>
    %111 = arith.addf %106, %110 : vector<16x16x128xf32>
    %c1_124 = arith.constant 1 : index
    %c4_125 = arith.constant 4 : index
    %c0_126 = arith.constant 0 : index
    %112 = vector.load %arg12[%c1_124, %c4_125, %c0_126] : memref<20x20x128xf32, #tpu.memory_space<vmem>>, vector<16x16x128xf32>
    %c1_127 = arith.constant 1 : index
    %c4_128 = arith.constant 4 : index
    %c0_129 = arith.constant 0 : index
    %113 = vector.load %arg6[%c1_127, %c4_128, %c0_129] : memref<5x5x128xf32, #tpu.memory_space<vmem>>, vector<1x1x128xf32>
    %114 = vector.broadcast %113 : vector<1x1x128xf32> to vector<16x16x128xf32>
    %115 = arith.mulf %112, %114 : vector<16x16x128xf32>
    %116 = arith.addf %111, %115 : vector<16x16x128xf32>
    %c2_130 = arith.constant 2 : index
    %c0_131 = arith.constant 0 : index
    %c0_132 = arith.constant 0 : index
    %117 = vector.load %arg12[%c2_130, %c0_131, %c0_132] : memref<20x20x128xf32, #tpu.memory_space<vmem>>, vector<16x16x128xf32>
    %c2_133 = arith.constant 2 : index
    %c0_134 = arith.constant 0 : index
    %c0_135 = arith.constant 0 : index
    %118 = vector.load %arg6[%c2_133, %c0_134, %c0_135] : memref<5x5x128xf32, #tpu.memory_space<vmem>>, vector<1x1x128xf32>
    %119 = vector.broadcast %118 : vector<1x1x128xf32> to vector<16x16x128xf32>
    %120 = arith.mulf %117, %119 : vector<16x16x128xf32>
    %121 = arith.addf %116, %120 : vector<16x16x128xf32>
    %c2_136 = arith.constant 2 : index
    %c1_137 = arith.constant 1 : index
    %c0_138 = arith.constant 0 : index
    %122 = vector.load %arg12[%c2_136, %c1_137, %c0_138] : memref<20x20x128xf32, #tpu.memory_space<vmem>>, vector<16x16x128xf32>
    %c2_139 = arith.constant 2 : index
    %c1_140 = arith.constant 1 : index
    %c0_141 = arith.constant 0 : index
    %123 = vector.load %arg6[%c2_139, %c1_140, %c0_141] : memref<5x5x128xf32, #tpu.memory_space<vmem>>, vector<1x1x128xf32>
    %124 = vector.broadcast %123 : vector<1x1x128xf32> to vector<16x16x128xf32>
    %125 = arith.mulf %122, %124 : vector<16x16x128xf32>
    %126 = arith.addf %121, %125 : vector<16x16x128xf32>
    %c2_142 = arith.constant 2 : index
    %c2_143 = arith.constant 2 : index
    %c0_144 = arith.constant 0 : index
    %127 = vector.load %arg12[%c2_142, %c2_143, %c0_144] : memref<20x20x128xf32, #tpu.memory_space<vmem>>, vector<16x16x128xf32>
    %c2_145 = arith.constant 2 : index
    %c2_146 = arith.constant 2 : index
    %c0_147 = arith.constant 0 : index
    %128 = vector.load %arg6[%c2_145, %c2_146, %c0_147] : memref<5x5x128xf32, #tpu.memory_space<vmem>>, vector<1x1x128xf32>
    %129 = vector.broadcast %128 : vector<1x1x128xf32> to vector<16x16x128xf32>
    %130 = arith.mulf %127, %129 : vector<16x16x128xf32>
    %131 = arith.addf %126, %130 : vector<16x16x128xf32>
    %c2_148 = arith.constant 2 : index
    %c3_149 = arith.constant 3 : index
    %c0_150 = arith.constant 0 : index
    %132 = vector.load %arg12[%c2_148, %c3_149, %c0_150] : memref<20x20x128xf32, #tpu.memory_space<vmem>>, vector<16x16x128xf32>
    %c2_151 = arith.constant 2 : index
    %c3_152 = arith.constant 3 : index
    %c0_153 = arith.constant 0 : index
    %133 = vector.load %arg6[%c2_151, %c3_152, %c0_153] : memref<5x5x128xf32, #tpu.memory_space<vmem>>, vector<1x1x128xf32>
    %134 = vector.broadcast %133 : vector<1x1x128xf32> to vector<16x16x128xf32>
    %135 = arith.mulf %132, %134 : vector<16x16x128xf32>
    %136 = arith.addf %131, %135 : vector<16x16x128xf32>
    %c2_154 = arith.constant 2 : index
    %c4_155 = arith.constant 4 : index
    %c0_156 = arith.constant 0 : index
    %137 = vector.load %arg12[%c2_154, %c4_155, %c0_156] : memref<20x20x128xf32, #tpu.memory_space<vmem>>, vector<16x16x128xf32>
    %c2_157 = arith.constant 2 : index
    %c4_158 = arith.constant 4 : index
    %c0_159 = arith.constant 0 : index
    %138 = vector.load %arg6[%c2_157, %c4_158, %c0_159] : memref<5x5x128xf32, #tpu.memory_space<vmem>>, vector<1x1x128xf32>
    %139 = vector.broadcast %138 : vector<1x1x128xf32> to vector<16x16x128xf32>
    %140 = arith.mulf %137, %139 : vector<16x16x128xf32>
    %141 = arith.addf %136, %140 : vector<16x16x128xf32>
    %c3_160 = arith.constant 3 : index
    %c0_161 = arith.constant 0 : index
    %c0_162 = arith.constant 0 : index
    %142 = vector.load %arg12[%c3_160, %c0_161, %c0_162] : memref<20x20x128xf32, #tpu.memory_space<vmem>>, vector<16x16x128xf32>
    %c3_163 = arith.constant 3 : index
    %c0_164 = arith.constant 0 : index
    %c0_165 = arith.constant 0 : index
    %143 = vector.load %arg6[%c3_163, %c0_164, %c0_165] : memref<5x5x128xf32, #tpu.memory_space<vmem>>, vector<1x1x128xf32>
    %144 = vector.broadcast %143 : vector<1x1x128xf32> to vector<16x16x128xf32>
    %145 = arith.mulf %142, %144 : vector<16x16x128xf32>
    %146 = arith.addf %141, %145 : vector<16x16x128xf32>
    %c3_166 = arith.constant 3 : index
    %c1_167 = arith.constant 1 : index
    %c0_168 = arith.constant 0 : index
    %147 = vector.load %arg12[%c3_166, %c1_167, %c0_168] : memref<20x20x128xf32, #tpu.memory_space<vmem>>, vector<16x16x128xf32>
    %c3_169 = arith.constant 3 : index
    %c1_170 = arith.constant 1 : index
    %c0_171 = arith.constant 0 : index
    %148 = vector.load %arg6[%c3_169, %c1_170, %c0_171] : memref<5x5x128xf32, #tpu.memory_space<vmem>>, vector<1x1x128xf32>
    %149 = vector.broadcast %148 : vector<1x1x128xf32> to vector<16x16x128xf32>
    %150 = arith.mulf %147, %149 : vector<16x16x128xf32>
    %151 = arith.addf %146, %150 : vector<16x16x128xf32>
    %c3_172 = arith.constant 3 : index
    %c2_173 = arith.constant 2 : index
    %c0_174 = arith.constant 0 : index
    %152 = vector.load %arg12[%c3_172, %c2_173, %c0_174] : memref<20x20x128xf32, #tpu.memory_space<vmem>>, vector<16x16x128xf32>
    %c3_175 = arith.constant 3 : index
    %c2_176 = arith.constant 2 : index
    %c0_177 = arith.constant 0 : index
    %153 = vector.load %arg6[%c3_175, %c2_176, %c0_177] : memref<5x5x128xf32, #tpu.memory_space<vmem>>, vector<1x1x128xf32>
    %154 = vector.broadcast %153 : vector<1x1x128xf32> to vector<16x16x128xf32>
    %155 = arith.mulf %152, %154 : vector<16x16x128xf32>
    %156 = arith.addf %151, %155 : vector<16x16x128xf32>
    %c3_178 = arith.constant 3 : index
    %c3_179 = arith.constant 3 : index
    %c0_180 = arith.constant 0 : index
    %157 = vector.load %arg12[%c3_178, %c3_179, %c0_180] : memref<20x20x128xf32, #tpu.memory_space<vmem>>, vector<16x16x128xf32>
    %c3_181 = arith.constant 3 : index
    %c3_182 = arith.constant 3 : index
    %c0_183 = arith.constant 0 : index
    %158 = vector.load %arg6[%c3_181, %c3_182, %c0_183] : memref<5x5x128xf32, #tpu.memory_space<vmem>>, vector<1x1x128xf32>
    %159 = vector.broadcast %158 : vector<1x1x128xf32> to vector<16x16x128xf32>
    %160 = arith.mulf %157, %159 : vector<16x16x128xf32>
    %161 = arith.addf %156, %160 : vector<16x16x128xf32>
    %c3_184 = arith.constant 3 : index
    %c4_185 = arith.constant 4 : index
    %c0_186 = arith.constant 0 : index
    %162 = vector.load %arg12[%c3_184, %c4_185, %c0_186] : memref<20x20x128xf32, #tpu.memory_space<vmem>>, vector<16x16x128xf32>
    %c3_187 = arith.constant 3 : index
    %c4_188 = arith.constant 4 : index
    %c0_189 = arith.constant 0 : index
    %163 = vector.load %arg6[%c3_187, %c4_188, %c0_189] : memref<5x5x128xf32, #tpu.memory_space<vmem>>, vector<1x1x128xf32>
    %164 = vector.broadcast %163 : vector<1x1x128xf32> to vector<16x16x128xf32>
    %165 = arith.mulf %162, %164 : vector<16x16x128xf32>
    %166 = arith.addf %161, %165 : vector<16x16x128xf32>
    %c4_190 = arith.constant 4 : index
    %c0_191 = arith.constant 0 : index
    %c0_192 = arith.constant 0 : index
    %167 = vector.load %arg12[%c4_190, %c0_191, %c0_192] : memref<20x20x128xf32, #tpu.memory_space<vmem>>, vector<16x16x128xf32>
    %c4_193 = arith.constant 4 : index
    %c0_194 = arith.constant 0 : index
    %c0_195 = arith.constant 0 : index
    %168 = vector.load %arg6[%c4_193, %c0_194, %c0_195] : memref<5x5x128xf32, #tpu.memory_space<vmem>>, vector<1x1x128xf32>
    %169 = vector.broadcast %168 : vector<1x1x128xf32> to vector<16x16x128xf32>
    %170 = arith.mulf %167, %169 : vector<16x16x128xf32>
    %171 = arith.addf %166, %170 : vector<16x16x128xf32>
    %c4_196 = arith.constant 4 : index
    %c1_197 = arith.constant 1 : index
    %c0_198 = arith.constant 0 : index
    %172 = vector.load %arg12[%c4_196, %c1_197, %c0_198] : memref<20x20x128xf32, #tpu.memory_space<vmem>>, vector<16x16x128xf32>
    %c4_199 = arith.constant 4 : index
    %c1_200 = arith.constant 1 : index
    %c0_201 = arith.constant 0 : index
    %173 = vector.load %arg6[%c4_199, %c1_200, %c0_201] : memref<5x5x128xf32, #tpu.memory_space<vmem>>, vector<1x1x128xf32>
    %174 = vector.broadcast %173 : vector<1x1x128xf32> to vector<16x16x128xf32>
    %175 = arith.mulf %172, %174 : vector<16x16x128xf32>
    %176 = arith.addf %171, %175 : vector<16x16x128xf32>
    %c4_202 = arith.constant 4 : index
    %c2_203 = arith.constant 2 : index
    %c0_204 = arith.constant 0 : index
    %177 = vector.load %arg12[%c4_202, %c2_203, %c0_204] : memref<20x20x128xf32, #tpu.memory_space<vmem>>, vector<16x16x128xf32>
    %c4_205 = arith.constant 4 : index
    %c2_206 = arith.constant 2 : index
    %c0_207 = arith.constant 0 : index
    %178 = vector.load %arg6[%c4_205, %c2_206, %c0_207] : memref<5x5x128xf32, #tpu.memory_space<vmem>>, vector<1x1x128xf32>
    %179 = vector.broadcast %178 : vector<1x1x128xf32> to vector<16x16x128xf32>
    %180 = arith.mulf %177, %179 : vector<16x16x128xf32>
    %181 = arith.addf %176, %180 : vector<16x16x128xf32>
    %c4_208 = arith.constant 4 : index
    %c3_209 = arith.constant 3 : index
    %c0_210 = arith.constant 0 : index
    %182 = vector.load %arg12[%c4_208, %c3_209, %c0_210] : memref<20x20x128xf32, #tpu.memory_space<vmem>>, vector<16x16x128xf32>
    %c4_211 = arith.constant 4 : index
    %c3_212 = arith.constant 3 : index
    %c0_213 = arith.constant 0 : index
    %183 = vector.load %arg6[%c4_211, %c3_212, %c0_213] : memref<5x5x128xf32, #tpu.memory_space<vmem>>, vector<1x1x128xf32>
    %184 = vector.broadcast %183 : vector<1x1x128xf32> to vector<16x16x128xf32>
    %185 = arith.mulf %182, %184 : vector<16x16x128xf32>
    %186 = arith.addf %181, %185 : vector<16x16x128xf32>
    %c4_214 = arith.constant 4 : index
    %c4_215 = arith.constant 4 : index
    %c0_216 = arith.constant 0 : index
    %187 = vector.load %arg12[%c4_214, %c4_215, %c0_216] : memref<20x20x128xf32, #tpu.memory_space<vmem>>, vector<16x16x128xf32>
    %c4_217 = arith.constant 4 : index
    %c4_218 = arith.constant 4 : index
    %c0_219 = arith.constant 0 : index
    %188 = vector.load %arg6[%c4_217, %c4_218, %c0_219] : memref<5x5x128xf32, #tpu.memory_space<vmem>>, vector<1x1x128xf32>
    %189 = vector.broadcast %188 : vector<1x1x128xf32> to vector<16x16x128xf32>
    %190 = arith.mulf %187, %189 : vector<16x16x128xf32>
    %191 = arith.addf %186, %190 : vector<16x16x128xf32>
    %c0_220 = arith.constant 0 : index
    %c0_221 = arith.constant 0 : index
    %192 = vector.load %arg7[%c0_220, %c0_221] : memref<1x128xf32, #tpu.memory_space<vmem>>, vector<1x128xf32>
    %193 = vector.shape_cast %192 : vector<1x128xf32> to vector<1x1x128xf32>
    %194 = vector.broadcast %193 : vector<1x1x128xf32> to vector<16x16x128xf32>
    %195 = arith.addf %191, %194 : vector<16x16x128xf32>
    %cst_222 = arith.constant 0.000000e+00 : f32
    %196 = vector.broadcast %cst_222 : f32 to vector<16x16x128xf32>
    %197 = arith.maximumf %195, %196 : vector<16x16x128xf32>
    %198 = vector.shape_cast %65 : vector<16x16x128xf32> to vector<256x128xf32>
    %c0_223 = arith.constant 0 : index
    %c0_224 = arith.constant 0 : index
    %199 = vector.load %arg8[%c0_223, %c0_224] : memref<128x128xf32, #tpu.memory_space<vmem>>, vector<128x128xf32>
    %cst_225 = arith.constant dense<0.000000e+00> : vector<256x128xf32>
    %200 = tpu.matmul %198, %199, %cst_225 {dimension_numbers = #tpu.dot_dimension_numbers<[1], [0], [0], [1], [0, 0, 1, 1], [], []>, precision = #tpu.contract_precision<fp32>} : vector<256x128xf32>, vector<128x128xf32>, vector<256x128xf32> -> vector<256x128xf32>
    %201 = vector.shape_cast %197 : vector<16x16x128xf32> to vector<256x128xf32>
    %c0_226 = arith.constant 0 : index
    %c0_227 = arith.constant 0 : index
    %202 = vector.load %arg9[%c0_226, %c0_227] : memref<128x128xf32, #tpu.memory_space<vmem>>, vector<128x128xf32>
    %cst_228 = arith.constant dense<0.000000e+00> : vector<256x128xf32>
    %203 = tpu.matmul %201, %202, %cst_228 {dimension_numbers = #tpu.dot_dimension_numbers<[1], [0], [0], [1], [0, 0, 1, 1], [], []>, precision = #tpu.contract_precision<fp32>} : vector<256x128xf32>, vector<128x128xf32>, vector<256x128xf32> -> vector<256x128xf32>
    %204 = arith.addf %200, %203 : vector<256x128xf32>
    %c0_229 = arith.constant 0 : index
    %c0_230 = arith.constant 0 : index
    %205 = vector.load %arg10[%c0_229, %c0_230] : memref<1x128xf32, #tpu.memory_space<vmem>>, vector<1x128xf32>
    %206 = vector.broadcast %205 : vector<1x128xf32> to vector<256x128xf32>
    %207 = arith.addf %204, %206 : vector<256x128xf32>
    %208 = vector.shape_cast %207 : vector<256x128xf32> to vector<1x16x16x128xf32>
    %c0_231 = arith.constant 0 : index
    %c0_232 = arith.constant 0 : index
    %c0_233 = arith.constant 0 : index
    %c0_234 = arith.constant 0 : index
    %209 = vector.load %arg11[%c0_231, %c0_232, %c0_233, %c0_234] : memref<1x16x16x128xf32, #tpu.memory_space<vmem>>, vector<1x16x16x128xf32>
    tpu.vector_store %arg11[%c0_231, %c0_232, %c0_233, %c0_234], %208 {strides = array<i32>} : memref<1x16x16x128xf32, #tpu.memory_space<vmem>>, vector<1x16x16x128xf32>,
    return
  }
  func.func @transform_0(%arg0: i32) -> (i32, i32, i32, i32) {
    %c0_i32 = arith.constant 0 : i32
    %c0_i32_0 = arith.constant 0 : i32
    %c0_i32_1 = arith.constant 0 : i32
    %c0_i32_2 = arith.constant 0 : i32
    return %arg0, %c0_i32, %c0_i32_0, %c0_i32_1 : i32, i32, i32, i32
  }
  func.func @transform_1(%arg0: i32) -> (i32, i32) {
    %c0_i32 = arith.constant 0 : i32
    %c0_i32_0 = arith.constant 0 : i32
    %c0_i32_1 = arith.constant 0 : i32
    return %c0_i32, %c0_i32_0 : i32, i32
  }
  func.func @transform_2(%arg0: i32) -> (i32, i32) {
    %c0_i32 = arith.constant 0 : i32
    %c0_i32_0 = arith.constant 0 : i32
    %c0_i32_1 = arith.constant 0 : i32
    return %c0_i32, %c0_i32_0 : i32, i32
  }
  func.func @transform_3(%arg0: i32) -> (i32, i32, i32) {
    %c0_i32 = arith.constant 0 : i32
    %c0_i32_0 = arith.constant 0 : i32
    %c0_i32_1 = arith.constant 0 : i32
    %c0_i32_2 = arith.constant 0 : i32
    return %c0_i32, %c0_i32_0, %c0_i32_1 : i32, i32, i32
  }
  func.func @transform_4(%arg0: i32) -> (i32, i32) {
    %c0_i32 = arith.constant 0 : i32
    %c0_i32_0 = arith.constant 0 : i32
    %c0_i32_1 = arith.constant 0 : i32
    return %c0_i32, %c0_i32_0 : i32, i32
  }
  func.func @transform_5(%arg0: i32) -> (i32, i32, i32) {
    %c0_i32 = arith.constant 0 : i32
    %c0_i32_0 = arith.constant 0 : i32
    %c0_i32_1 = arith.constant 0 : i32
    %c0_i32_2 = arith.constant 0 : i32
    return %c0_i32, %c0_i32_0, %c0_i32_1 : i32, i32, i32
  }
  func.func @transform_6(%arg0: i32) -> (i32, i32) {
    %c0_i32 = arith.constant 0 : i32
    %c0_i32_0 = arith.constant 0 : i32
    %c0_i32_1 = arith.constant 0 : i32
    return %c0_i32, %c0_i32_0 : i32, i32
  }
  func.func @transform_7(%arg0: i32) -> (i32, i32) {
    %c0_i32 = arith.constant 0 : i32
    %c0_i32_0 = arith.constant 0 : i32
    %c0_i32_1 = arith.constant 0 : i32
    return %c0_i32, %c0_i32_0 : i32, i32
  }
  func.func @transform_8(%arg0: i32) -> (i32, i32) {
    %c0_i32 = arith.constant 0 : i32
    %c0_i32_0 = arith.constant 0 : i32
    %c0_i32_1 = arith.constant 0 : i32
    return %c0_i32, %c0_i32_0 : i32, i32
  }
  func.func @transform_9(%arg0: i32) -> (i32, i32) {
    %c0_i32 = arith.constant 0 : i32
    %c0_i32_0 = arith.constant 0 : i32
    %c0_i32_1 = arith.constant 0 : i32
    return %c0_i32, %c0_i32_0 : i32, i32
  }
  func.func @transform_10(%arg0: i32) -> (i32, i32, i32, i32) {
    %c0_i32 = arith.constant 0 : i32
    %c0_i32_0 = arith.constant 0 : i32
    %c0_i32_1 = arith.constant 0 : i32
    %c0_i32_2 = arith.constant 0 : i32
    return %arg0, %c0_i32, %c0_i32_0, %c0_i32_1 : i32, i32, i32, i32
  }
}

</mosaic_0001>

<llo_original>
// kernel: tpu_custom_call.1
$region0: #{tpu_custom_call.1}
  #allocation0 [shape = 'u32[]', space=smem, size = 0x4, offset = 0x4, fixed_abs, tag = 'smem constant byte address 0x4 - core index']
  #allocation1 [shape = 'u32[144,128]{1,0:T(1,128)}', space=vmem, size = 0x12000, scoped, tag = 'internal scratch']
  #allocation2 [shape = 'f32[20,20,128]{2,1,0:T(8,128)}', space=vmem, size = 0x3c000, scoped, tag = 'scratch operand']
  %s0 = inlined_call_operand.vmem [shape: f32[2,16,16,4], index: 0, kind: input, shape index: {}]
  %s1 = inlined_call_operand.vmem [shape: f32[4,128], index: 1, kind: input, shape index: {}]
  %s2 = inlined_call_operand.vmem [shape: f32[1,128], index: 2, kind: input, shape index: {}]
  %s3 = inlined_call_operand.vmem [shape: f32[3,3,128], index: 3, kind: input, shape index: {}]
  %s4 = inlined_call_operand.vmem [shape: f32[1,128], index: 4, kind: input, shape index: {}]
  %s5 = inlined_call_operand.vmem [shape: f32[5,5,128], index: 5, kind: input, shape index: {}]
  %s6 = inlined_call_operand.vmem [shape: f32[1,128], index: 6, kind: input, shape index: {}]
  %s7 = inlined_call_operand.vmem [shape: f32[128,128], index: 7, kind: input, shape index: {}]
  %s8 = inlined_call_operand.vmem [shape: f32[128,128], index: 8, kind: input, shape index: {}]
  %s9 = inlined_call_operand.vmem [shape: f32[1,128], index: 9, kind: input, shape index: {}]
  %s10 = inlined_call_operand.hbm [shape: f32[2,16,16,128], index: 10, kind: output, shape index: {}]
  %s11 = sld [smem:[#allocation0]]
  $region73: #{tpu_custom_call.1} parent=0
    _
  %s13 = ssub.s32 1, %s11
  %s14 = scalar_select 0, %s13, %s11
  $region1: #{tpu_custom_call.1} parent=0
    #allocation3 [shape = 'u8[262144]{0}', space=vmem, size = 0x40000, scoped, tag = 'output window, operand 0']
    #allocation4 [shape = 's32[2]{0}', space=sflag, size = 0x8, scoped, tag = 'scoped memory for tpu_custom_call.1']
    %15 = vsyncpa [#allocation4], 0
    %s16 = scalar_lea.sflag [#allocation4], 1
    %17 = vsyncpa %s16, 0
    loop: start=0, step=1, limit=4
    $region2: #{tpu_custom_call.1} parent=1 // loop_pre_header
      _
    $region3: #{tpu_custom_call.1} parent=1 // loop_header
      %s19 = sphi 0, %s23
      %p20 = scmp.ge.s32.totalorder %s19, 4
      %s29 = sphi 0, %s31
      %s32 = sphi 0, %s29
      %s33 = sphi 0, %s32
      %s49 = sphi 0, %s33
      %s53 = sphi 0, %s53
      %s55 = sphi 0, %s53
      %s56 = sphi 0, %s55
      %s70 = sphi 0, %s56
      %s74 = sphi 0, %s74
      %s76 = sphi 0, %s74
      %s77 = sphi 0, %s76
      %s91 = sphi 0, %s77
      %s95 = sphi 0, %s95
      %s97 = sphi 0, %s95
      %s98 = sphi 0, %s97
      %s112 = sphi 0, %s98
      %s116 = sphi 0, %s116
      %s118 = sphi 0, %s116
      %s119 = sphi 0, %s118
      %s133 = sphi 0, %s119
      %s137 = sphi 0, %s137
      %s139 = sphi 0, %s137
      %s140 = sphi 0, %s139
      %s154 = sphi 0, %s140
      %s158 = sphi 0, %s158
      %s160 = sphi 0, %s158
      %s161 = sphi 0, %s160
      %s175 = sphi 0, %s161
      %s179 = sphi 0, %s179
      %s181 = sphi 0, %s179
      %s182 = sphi 0, %s181
      %s196 = sphi 0, %s182
      %s200 = sphi 0, %s200
      %s202 = sphi 0, %s200
      %s203 = sphi 0, %s202
      %s217 = sphi 0, %s203
      %s221 = sphi 0, %s221
      %s223 = sphi 0, %s221
      %s224 = sphi 0, %s223
      %s238 = sphi 0, %s224
      %s244 = sphi 0, %s246
      %s247 = sphi 0, %s244
      %s248 = sphi 0, %s247
      %s264 = sphi 0, %s248
    $region4: #{tpu_custom_call.1} parent=1 // loop_header_branch
      %22 = sbr.rel (%p20) target = $region8
    $region5: #{tpu_custom_call.1} parent=1 // loop_body
      %s24 = ssub.s32 %s19, 1
      %s25 = ssub.s32 %s19, 2
      %s26 = sadd.s32 %s19, 1
      %s27 = ssub.s32 %s19, %s26
      %p28 = scmp.eq.s32.totalorder %s27, 0
      %s30 = sadd.s32 %s29, 1
      %s31 = scalar_select %p28, %s29, %s30
      %p34 = pneg %p28
      %p35 = scmp.eq.s32.totalorder %s19, 1
      %p36 = por %p34, %p35
      %p37 = scmp.ne.s32.totalorder %s29, %s32
      %p38 = scmp.eq.s32.totalorder %s19, 0
      %p39 = por %p37, %p38
      %p40 = scmp.ne.s32.totalorder %s29, %s32
      %p41 = scmp.eq.s32.totalorder %s24, 1
      %p42 = por %p40, %p41
      %p43 = scmp.ne.s32.totalorder %s32, %s33
      %p44 = scmp.eq.s32.totalorder %s24, 0
      %p45 = por %p43, %p44
      %p46 = scmp.ne.s32.totalorder %s32, %s33
      %p47 = scmp.eq.s32.totalorder %s25, 1
      %p48 = por %p46, %p47
      %p50 = scmp.ne.s32.totalorder %s33, %s49
      %p51 = scmp.eq.s32.totalorder %s25, 0
      %p52 = por %p50, %p51
      %s54 = sadd.s32 %s53, 1
      %p57 = scmp.eq.s32.totalorder %s19, 1
      %p58 = scmp.ne.s32.totalorder %s53, %s55
      %p59 = scmp.eq.s32.totalorder %s19, 0
      %p60 = por %p58, %p59
      %p61 = scmp.ne.s32.totalorder %s53, %s55
      %p62 = scmp.eq.s32.totalorder %s24, 1
      %p63 = por %p61, %p62
      %p64 = scmp.ne.s32.totalorder %s55, %s56
      %p65 = scmp.eq.s32.totalorder %s24, 0
      %p66 = por %p64, %p65
      %p67 = scmp.ne.s32.totalorder %s55, %s56
      %p68 = scmp.eq.s32.totalorder %s25, 1
      %p69 = por %p67, %p68
      %p71 = scmp.ne.s32.totalorder %s56, %s70
      %p72 = scmp.eq.s32.totalorder %s25, 0
      %p73 = por %p71, %p72
      %s75 = sadd.s32 %s74, 1
      %p78 = scmp.eq.s32.totalorder %s19, 1
      %p79 = scmp.ne.s32.totalorder %s74, %s76
      %p80 = scmp.eq.s32.totalorder %s19, 0
      %p81 = por %p79, %p80
      %p82 = scmp.ne.s32.totalorder %s74, %s76
      %p83 = scmp.eq.s32.totalorder %s24, 1
      %p84 = por %p82, %p83
      %p85 = scmp.ne.s32.totalorder %s76, %s77
      %p86 = scmp.eq.s32.totalorder %s24, 0
      %p87 = por %p85, %p86
      %p88 = scmp.ne.s32.totalorder %s76, %s77
      %p89 = scmp.eq.s32.totalorder %s25, 1
      %p90 = por %p88, %p89
      %p92 = scmp.ne.s32.totalorder %s77, %s91
      %p93 = scmp.eq.s32.totalorder %s25, 0
      %p94 = por %p92, %p93
      %s96 = sadd.s32 %s95, 1
      %p99 = scmp.eq.s32.totalorder %s19, 1
      %p100 = scmp.ne.s32.totalorder %s95, %s97
      %p101 = scmp.eq.s32.totalorder %s19, 0
      %p102 = por %p100, %p101
      %p103 = scmp.ne.s32.totalorder %s95, %s97
      %p104 = scmp.eq.s32.totalorder %s24, 1
      %p105 = por %p103, %p104
      %p106 = scmp.ne.s32.totalorder %s97, %s98
      %p107 = scmp.eq.s32.totalorder %s24, 0
      %p108 = por %p106, %p107
      %p109 = scmp.ne.s32.totalorder %s97, %s98
      %p110 = scmp.eq.s32.totalorder %s25, 1
      %p111 = por %p109, %p110
      %p113 = scmp.ne.s32.totalorder %s98, %s112
      %p114 = scmp.eq.s32.totalorder %s25, 0
      %p115 = por %p113, %p114
      %s117 = sadd.s32 %s116, 1
      %p120 = scmp.eq.s32.totalorder %s19, 1
      %p121 = scmp.ne.s32.totalorder %s116, %s118
      %p122 = scmp.eq.s32.totalorder %s19, 0
      %p123 = por %p121, %p122
      %p124 = scmp.ne.s32.totalorder %s116, %s118
      %p125 = scmp.eq.s32.totalorder %s24, 1
      %p126 = por %p124, %p125
      %p127 = scmp.ne.s32.totalorder %s118, %s119
      %p128 = scmp.eq.s32.totalorder %s24, 0
      %p129 = por %p127, %p128
      %p130 = scmp.ne.s32.totalorder %s118, %s119
      %p131 = scmp.eq.s32.totalorder %s25, 1
      %p132 = por %p130, %p131
      %p134 = scmp.ne.s32.totalorder %s119, %s133
      %p135 = scmp.eq.s32.totalorder %s25, 0
      %p136 = por %p134, %p135
      %s138 = sadd.s32 %s137, 1
      %p141 = scmp.eq.s32.totalorder %s19, 1
      %p142 = scmp.ne.s32.totalorder %s137, %s139
      %p143 = scmp.eq.s32.totalorder %s19, 0
      %p144 = por %p142, %p143
      %p145 = scmp.ne.s32.totalorder %s137, %s139
      %p146 = scmp.eq.s32.totalorder %s24, 1
      %p147 = por %p145, %p146
      %p148 = scmp.ne.s32.totalorder %s139, %s140
      %p149 = scmp.eq.s32.totalorder %s24, 0
      %p150 = por %p148, %p149
      %p151 = scmp.ne.s32.totalorder %s139, %s140
      %p152 = scmp.eq.s32.totalorder %s25, 1
      %p153 = por %p151, %p152
      %p155 = scmp.ne.s32.totalorder %s140, %s154
      %p156 = scmp.eq.s32.totalorder %s25, 0
      %p157 = por %p155, %p156
      %s159 = sadd.s32 %s158, 1
      %p162 = scmp.eq.s32.totalorder %s19, 1
      %p163 = scmp.ne.s32.totalorder %s158, %s160
      %p164 = scmp.eq.s32.totalorder %s19, 0
      %p165 = por %p163, %p164
      %p166 = scmp.ne.s32.totalorder %s158, %s160
      %p167 = scmp.eq.s32.totalorder %s24, 1
      %p168 = por %p166, %p167
      %p169 = scmp.ne.s32.totalorder %s160, %s161
      %p170 = scmp.eq.s32.totalorder %s24, 0
      %p171 = por %p169, %p170
      %p172 = scmp.ne.s32.totalorder %s160, %s161
      %p173 = scmp.eq.s32.totalorder %s25, 1
      %p174 = por %p172, %p173
      %p176 = scmp.ne.s32.totalorder %s161, %s175
      %p177 = scmp.eq.s32.totalorder %s25, 0
      %p178 = por %p176, %p177
      %s180 = sadd.s32 %s179, 1
      %p183 = scmp.eq.s32.totalorder %s19, 1
      %p184 = scmp.ne.s32.totalorder %s179, %s181
      %p185 = scmp.eq.s32.totalorder %s19, 0
      %p186 = por %p184, %p185
      %p187 = scmp.ne.s32.totalorder %s179, %s181
      %p188 = scmp.eq.s32.totalorder %s24, 1
      %p189 = por %p187, %p188
      %p190 = scmp.ne.s32.totalorder %s181, %s182
      %p191 = scmp.eq.s32.totalorder %s24, 0
      %p192 = por %p190, %p191
      %p193 = scmp.ne.s32.totalorder %s181, %s182
      %p194 = scmp.eq.s32.totalorder %s25, 1
      %p195 = por %p193, %p194
      %p197 = scmp.ne.s32.totalorder %s182, %s196
      %p198 = scmp.eq.s32.totalorder %s25, 0
      %p199 = por %p197, %p198
      %s201 = sadd.s32 %s200, 1
      %p204 = scmp.eq.s32.totalorder %s19, 1
      %p205 = scmp.ne.s32.totalorder %s200, %s202
      %p206 = scmp.eq.s32.totalorder %s19, 0
      %p207 = por %p205, %p206
      %p208 = scmp.ne.s32.totalorder %s200, %s202
      %p209 = scmp.eq.s32.totalorder %s24, 1
      %p210 = por %p208, %p209
      %p211 = scmp.ne.s32.totalorder %s202, %s203
      %p212 = scmp.eq.s32.totalorder %s24, 0
      %p213 = por %p211, %p212
      %p214 = scmp.ne.s32.totalorder %s202, %s203
      %p215 = scmp.eq.s32.totalorder %s25, 1
      %p216 = por %p214, %p215
      %p218 = scmp.ne.s32.totalorder %s203, %s217
      %p219 = scmp.eq.s32.totalorder %s25, 0
      %p220 = por %p218, %p219
      %s222 = sadd.s32 %s221, 1
      %p225 = scmp.eq.s32.totalorder %s19, 1
      %p226 = scmp.ne.s32.totalorder %s221, %s223
      %p227 = scmp.eq.s32.totalorder %s19, 0
      %p228 = por %p226, %p227
      %p229 = scmp.ne.s32.totalorder %s221, %s223
      %p230 = scmp.eq.s32.totalorder %s24, 1
      %p231 = por %p229, %p230
      %p232 = scmp.ne.s32.totalorder %s223, %s224
      %p233 = scmp.eq.s32.totalorder %s24, 0
      %p234 = por %p232, %p233
      %p235 = scmp.ne.s32.totalorder %s223, %s224
      %p236 = scmp.eq.s32.totalorder %s25, 1
      %p237 = por %p235, %p236
      %p239 = scmp.ne.s32.totalorder %s224, %s238
      %p240 = scmp.eq.s32.totalorder %s25, 0
      %p241 = por %p239, %p240
      %s242 = ssub.s32 %s19, %s26
      %p243 = scmp.eq.s32.totalorder %s242, 0
      %s245 = sadd.s32 %s244, 1
      %s246 = scalar_select %p243, %s244, %s245
      %p249 = pneg %p243
      %p250 = scmp.eq.s32.totalorder %s19, 1
      %p251 = por %p249, %p250
      %p252 = scmp.ne.s32.totalorder %s244, %s247
      %p253 = scmp.eq.s32.totalorder %s19, 0
      %p254 = por %p252, %p253
      %p255 = scmp.ne.s32.totalorder %s244, %s247
      %p256 = scmp.eq.s32.totalorder %s24, 1
      %p257 = por %p255, %p256
      %p258 = scmp.ne.s32.totalorder %s247, %s248
      %p259 = scmp.eq.s32.totalorder %s24, 0
      %p260 = por %p258, %p259
      %p261 = scmp.ne.s32.totalorder %s247, %s248
      %p262 = scmp.eq.s32.totalorder %s25, 1
      %p263 = por %p261, %p262
      %p265 = scmp.ne.s32.totalorder %s248, %s264
      %p266 = scmp.eq.s32.totalorder %s25, 0
      %p267 = por %p265, %p266
      %p268 = scmp.le.s32.totalorder 1, %s19
      %p269 = scmp.lt.s32.totalorder %s19, 3
      %p270 = pnand %p268, %p269
      %p271 = pneg %p270
      // Predicated region
      $region9: #{tpu_custom_call.1} parent=5 // pred_check
        _
      $region10: #{tpu_custom_call.1} parent=5 // pred_check_branch
        %273 = sbr.rel (%p270) target = $region12
      $region11: #{tpu_custom_call.1} parent=5 // pred_region
        %s274 = ssub.s32 %s19, 1
        // Predicated region
        $region13: #{tpu_custom_call.1} parent=11 // pred_check
          %p275 = pneg %p66
        $region14: #{tpu_custom_call.1} parent=11 // pred_check_branch
          %277 = sbr.rel (%p275) target = $region16
        $region15: #{tpu_custom_call.1} parent=11 // pred_region
          _
        $region16: #{tpu_custom_call.1} parent=11 // pred_fallthru
          _
        // Predicated region
        $region17: #{tpu_custom_call.1} parent=11 // pred_check
          %p278 = pneg %p87
        $region18: #{tpu_custom_call.1} parent=11 // pred_check_branch
          %280 = sbr.rel (%p278) target = $region20
        $region19: #{tpu_custom_call.1} parent=11 // pred_region
          _
        $region20: #{tpu_custom_call.1} parent=11 // pred_fallthru
          _
        // Predicated region
        $region21: #{tpu_custom_call.1} parent=11 // pred_check
          %p281 = pneg %p108
        $region22: #{tpu_custom_call.1} parent=11 // pred_check_branch
          %283 = sbr.rel (%p281) target = $region24
        $region23: #{tpu_custom_call.1} parent=11 // pred_region
          _
        $region24: #{tpu_custom_call.1} parent=11 // pred_fallthru
          _
        // Predicated region
        $region25: #{tpu_custom_call.1} parent=11 // pred_check
          %p284 = pneg %p129
        $region26: #{tpu_custom_call.1} parent=11 // pred_check_branch
          %286 = sbr.rel (%p284) target = $region28
        $region27: #{tpu_custom_call.1} parent=11 // pred_region
          _
        $region28: #{tpu_custom_call.1} parent=11 // pred_fallthru
          _
        // Predicated region
        $region29: #{tpu_custom_call.1} parent=11 // pred_check
          %p287 = pneg %p150
        $region30: #{tpu_custom_call.1} parent=11 // pred_check_branch
          %289 = sbr.rel (%p287) target = $region32
        $region31: #{tpu_custom_call.1} parent=11 // pred_region
          _
        $region32: #{tpu_custom_call.1} parent=11 // pred_fallthru
          _
        // Predicated region
        $region33: #{tpu_custom_call.1} parent=11 // pred_check
          %p290 = pneg %p171
        $region34: #{tpu_custom_call.1} parent=11 // pred_check_branch
          %292 = sbr.rel (%p290) target = $region36
        $region35: #{tpu_custom_call.1} parent=11 // pred_region
          _
        $region36: #{tpu_custom_call.1} parent=11 // pred_fallthru
          _
        // Predicated region
        $region37: #{tpu_custom_call.1} parent=11 // pred_check
          %p293 = pneg %p192
        $region38: #{tpu_custom_call.1} parent=11 // pred_check_branch
          %295 = sbr.rel (%p293) target = $region40
        $region39: #{tpu_custom_call.1} parent=11 // pred_region
          _
        $region40: #{tpu_custom_call.1} parent=11 // pred_fallthru
          _
        // Predicated region
        $region41: #{tpu_custom_call.1} parent=11 // pred_check
          %p296 = pneg %p213
        $region42: #{tpu_custom_call.1} parent=11 // pred_check_branch
          %298 = sbr.rel (%p296) target = $region44
        $region43: #{tpu_custom_call.1} parent=11 // pred_region
          _
        $region44: #{tpu_custom_call.1} parent=11 // pred_fallthru
          _
        // Predicated region
        $region45: #{tpu_custom_call.1} parent=11 // pred_check
          %p299 = pneg %p234
        $region46: #{tpu_custom_call.1} parent=11 // pred_check_branch
          %301 = sbr.rel (%p299) target = $region48
        $region47: #{tpu_custom_call.1} parent=11 // pred_region
          _
        $region48: #{tpu_custom_call.1} parent=11 // pred_fallthru
          _
      $region12: #{tpu_custom_call.1} parent=5 // pred_fallthru
        _
      %p302 = scmp.lt.s32.totalorder %s19, 2
      // Predicated region
      $region49: #{tpu_custom_call.1} parent=5 // pred_check
        %p303 = pneg %p302
      $region50: #{tpu_custom_call.1} parent=5 // pred_check_branch
        %305 = sbr.rel (%p303) target = $region52
      $region51: #{tpu_custom_call.1} parent=5 // pred_region
        // Predicated region
        $region53: #{tpu_custom_call.1} parent=51 // pred_check
          %p306 = pneg %p39
        $region54: #{tpu_custom_call.1} parent=51 // pred_check_branch
          %308 = sbr.rel (%p306) target = $region56
        $region55: #{tpu_custom_call.1} parent=51 // pred_region
          %p309 = scmp.lt.s32.totalorder %s19, 1
          %s310 = scalar_select %p309, %s19, 1
          %s311 = smul.addr %s310, 32
          %s312 = smul.addr %s311, 8
          %s313 = scalar_lea.vmem %s0, %s312
        $region56: #{tpu_custom_call.1} parent=51 // pred_fallthru
          _
      $region52: #{tpu_custom_call.1} parent=5 // pred_fallthru
        _
      %p314 = scmp.le.s32.totalorder 1, %s19
      %p315 = scmp.lt.s32.totalorder %s19, 3
      %p316 = pnand %p314, %p315
      %p317 = pneg %p316
      // Predicated region
      $region57: #{tpu_custom_call.1} parent=5 // pred_check
        _
      $region58: #{tpu_custom_call.1} parent=5 // pred_check_branch
        %319 = sbr.rel (%p316) target = $region60
      $region59: #{tpu_custom_call.1} parent=5 // pred_region
        %s320 = ssub.s32 %s19, 1
        %p321 = scmp.lt.s32.totalorder %s24, 1
        %s322 = scalar_select %p321, %s24, 1
        %s323 = smul.addr %s322, 32
        %s324 = smul.addr %s323, 8
        %s325 = scalar_lea.vmem %s0, %s324
        %p326 = pneg %p45
        %p327 = pneg %p42
        %p328 = pneg %p66
        %p329 = pneg %p63
        %p330 = pneg %p87
        %p331 = pneg %p84
        %p332 = pneg %p108
        %p333 = pneg %p105
        %p334 = pneg %p129
        %p335 = pneg %p126
        %p336 = pneg %p150
        %p337 = pneg %p147
        %p338 = pneg %p171
        %p339 = pneg %p168
        %p340 = pneg %p192
        %p341 = pneg %p189
        %p342 = pneg %p213
        %p343 = pneg %p210
        %p344 = pneg %p234
        %p345 = pneg %p231
        %p346 = pneg %p260
        %p347 = pneg %p257
        %s348 = sand.u32 %s247, 1
        %s349 = scalar_lea.sflag [#allocation4], %s348
        %s350 = sand.u32 %s247, 1
        %s351 = smul.addr %s350, 256
        %s352 = scalar_lea.vmem [#allocation3], %s351
        %p353 = scmp.lt.s32.totalorder %s24, 1
        %s354 = scalar_select %p353, %s24, 1
        %s355 = smul.addr %s354, 32
        %s356 = smul.addr %s355, 8
        %s357 = scalar_lea.vmem %s0, %s356
        %v358 = vld [vmem:[%s357] sm:$0xff]
        %v359 = vld [vmem:[%s357 + $0x8] sm:$0xff]
        %v360 = vld [vmem:[%s357 + $0x10] sm:$0xff]
        %v361 = vld [vmem:[%s357 + $0x18] sm:$0xff]
        %v362 = vld [vmem:[%s357 + $0x20] sm:$0xff]
        %v363 = vld [vmem:[%s357 + $0x28] sm:$0xff]
        %v364 = vld [vmem:[%s357 + $0x30] sm:$0xff]
        %v365 = vld [vmem:[%s357 + $0x38] sm:$0xff]
        %v366 = vld [vmem:[%s357 + $0x40] sm:$0xff]
        %v367 = vld [vmem:[%s357 + $0x48] sm:$0xff]
        %v368 = vld [vmem:[%s357 + $0x50] sm:$0xff]
        %v369 = vld [vmem:[%s357 + $0x58] sm:$0xff]
        %v370 = vld [vmem:[%s357 + $0x60] sm:$0xff]
        %v371 = vld [vmem:[%s357 + $0x68] sm:$0xff]
        %v372 = vld [vmem:[%s357 + $0x70] sm:$0xff]
        %v373 = vld [vmem:[%s357 + $0x78] sm:$0xff]
        %v374 = vld [vmem:[%s357 + $0x80] sm:$0xff]
        %v375 = vld [vmem:[%s357 + $0x88] sm:$0xff]
        %v376 = vld [vmem:[%s357 + $0x90] sm:$0xff]
        %v377 = vld [vmem:[%s357 + $0x98] sm:$0xff]
        %v378 = vld [vmem:[%s357 + $0xa0] sm:$0xff]
        %v379 = vld [vmem:[%s357 + $0xa8] sm:$0xff]
        %v380 = vld [vmem:[%s357 + $0xb0] sm:$0xff]
        %v381 = vld [vmem:[%s357 + $0xb8] sm:$0xff]
        %v382 = vld [vmem:[%s357 + $0xc0] sm:$0xff]
        %v383 = vld [vmem:[%s357 + $0xc8] sm:$0xff]
        %v384 = vld [vmem:[%s357 + $0xd0] sm:$0xff]
        %v385 = vld [vmem:[%s357 + $0xd8] sm:$0xff]
        %v386 = vld [vmem:[%s357 + $0xe0] sm:$0xff]
        %v387 = vld [vmem:[%s357 + $0xe8] sm:$0xff]
        %v388 = vld [vmem:[%s357 + $0xf0] sm:$0xff]
        %v389 = vld [vmem:[%s357 + $0xf8] sm:$0xff]
        %v390 = vld [vmem:[%s1] sm:$0xf]
        %v391 = vld [vmem:[%s2] sm:$0x1]
        %v393 = vlaneseq
        %v394 = vshrl.u32 %v393, 7
        %v395 = vsub.s32 0, %v394
        %v396 = vrot.slane %v391, %v395
        %vm398 = vcmask 31744
        %v400 = vsel %vm398, %v358, 0
        %v403 = vsel %vm398, %v359, 0
        %v406 = vsel %vm398, %v360, 0
        %v409 = vsel %vm398, %v361, 0
        %v412 = vsel %vm398, %v362, 0
        %v415 = vsel %vm398, %v363, 0
        %v418 = vsel %vm398, %v364, 0
        %v421 = vsel %vm398, %v365, 0
        %v424 = vsel %vm398, %v366, 0
        %v427 = vsel %vm398, %v367, 0
        %v430 = vsel %vm398, %v368, 0
        %v433 = vsel %vm398, %v369, 0
        %v436 = vsel %vm398, %v370, 0
        %v439 = vsel %vm398, %v371, 0
        %v442 = vsel %vm398, %v372, 0
        %v445 = vsel %vm398, %v373, 0
        %v448 = vsel %vm398, %v374, 0
        %v451 = vsel %vm398, %v375, 0
        %v454 = vsel %vm398, %v376, 0
        %v457 = vsel %vm398, %v377, 0
        %v460 = vsel %vm398, %v378, 0
        %v463 = vsel %vm398, %v379, 0
        %v466 = vsel %vm398, %v380, 0
        %v469 = vsel %vm398, %v381, 0
        %v472 = vsel %vm398, %v382, 0
        %v475 = vsel %vm398, %v383, 0
        %v478 = vsel %vm398, %v384, 0
        %v481 = vsel %vm398, %v385, 0
        %v484 = vsel %vm398, %v386, 0
        %v487 = vsel %vm398, %v387, 0
        %v490 = vsel %vm398, %v388, 0
        %v493 = vsel %vm398, %v389, 0
        %vm495 = vcmask 1043456
        %v497 = vsel %vm495, %v390, 0
        %499 = vmatprep.subr.mxu0 0.0
        %v500 = vand.u32 %v497, 4294901760
        %501 = vmatpush1.msra.mxu0 %v500
        %502 = vmatprep.subr.mxu0 0.0
        %503 = vmatpush1.msra.mxu0 0.0
        %504 = vmatprep.subr.mxu0 0.0
        %505 = vmatpush1.msra.mxu0 0.0
        %506 = vmatprep.subr.mxu0 0.0
        %507 = vmatpush1.msra.mxu0 0.0
        %508 = vmatprep.subr.mxu0 0.0
        %509 = vmatpush1.msra.mxu0 0.0
        %510 = vmatprep.subr.mxu0 0.0
        %511 = vmatpush1.msra.mxu0 0.0
        %512 = vmatprep.subr.mxu0 0.0
        %513 = vmatpush1.msra.mxu0 0.0
        %514 = vmatprep.subr.mxu0 0.0
        %515 = vmatpush1.msra.mxu0 0.0
        %516 = vmatprep.subr.mxu0 0.0
        %517 = vmatpush1.msra.mxu0 0.0
        %518 = vmatprep.subr.mxu0 0.0
        %519 = vmatpush1.msra.mxu0 0.0
        %520 = vmatprep.subr.mxu0 0.0
        %521 = vmatpush1.msra.mxu0 0.0
        %522 = vmatprep.subr.mxu0 0.0
        %523 = vmatpush1.msra.mxu0 0.0
        %524 = vmatprep.subr.mxu0 0.0
        %525 = vmatpush1.msra.mxu0 0.0
        %526 = vmatprep.subr.mxu0 0.0
        %527 = vmatpush1.msra.mxu0 0.0
        %528 = vmatprep.subr.mxu0 0.0
        %529 = vmatpush1.msra.mxu0 0.0
        %530 = vmatprep.subr.mxu0 0.0
        %531 = vmatpush1.msra.mxu0 0.0
        %532 = vmatprep.subr.mxu0 0.0
        %533 = vmatpush1.msra.mxu0 0.0
        %534 = vmatprep.subr.mxu0 0.0
        %535 = vmatpush1.msra.mxu0 0.0
        %536 = vmatprep.subr.mxu0 0.0
        %537 = vmatpush1.msra.mxu0 0.0
        %538 = vmatprep.subr.mxu0 0.0
        %539 = vmatpush1.msra.mxu0 0.0
        %540 = vmatprep.subr.mxu0 0.0
        %541 = vmatpush1.msra.mxu0 0.0
        %542 = vmatprep.subr.mxu0 0.0
        %543 = vmatpush1.msra.mxu0 0.0
        %544 = vmatprep.subr.mxu0 0.0
        %545 = vmatpush1.msra.mxu0 0.0
        %546 = vmatprep.subr.mxu0 0.0
        %547 = vmatpush1.msra.mxu0 0.0
        %548 = vmatprep.subr.mxu0 0.0
        %549 = vmatpush1.msra.mxu0 0.0
        %550 = vmatprep.subr.mxu0 0.0
        %551 = vmatpush1.msra.mxu0 0.0
        %552 = vmatprep.subr.mxu0 0.0
        %553 = vmatpush1.msra.mxu0 0.0
        %554 = vmatprep.subr.mxu0 0.0
        %555 = vmatpush1.msra.mxu0 0.0
        %556 = vmatprep.subr.mxu0 0.0
        %557 = vmatpush1.msra.mxu0 0.0
        %558 = vmatprep.subr.mxu0 0.0
        %559 = vmatpush1.msra.mxu0 0.0
        %560 = vmatprep.subr.mxu0 0.0
        %561 = vmatpush1.msra.mxu0 0.0
        %562 = vmatprep.subr.mxu0 0.0
        %563 = vmatpush1.msra.mxu0 0.0
        %564 = vmatprep.mubr.f32.mxu0 0.0
        %v565 = vand.u32 %v400, 4294901760
        %v566 = vsub.f32 %v400, %v565
        %v567 = vand.u32 %v566, 4294901760
        %v568 = vsub.f32 %v566, %v567
        %v569 = vand.u32 %v568, 4294901760
        %570 = vmatmul.mubr.f32.gmra.mrb[0].mxu0 %v569
        %v571 = vpop.f32.mrb[0].mxu0
        %v572 = vadd.f32 %v396, %v571
        %v573 = vpop.f32.mrb[0].mxu0
        %574 = vmatprep.mubr.f32.mxu0 0.0
        %v575 = vand.u32 %v403, 4294901760
        %v576 = vsub.f32 %v403, %v575
        %v577 = vand.u32 %v576, 4294901760
        %v578 = vsub.f32 %v576, %v577
        %v579 = vand.u32 %v578, 4294901760
        %580 = vmatmul.mubr.f32.gmra.mrb[0].mxu0 %v579
        %v581 = vpop.f32.mrb[0].mxu0
        %v582 = vadd.f32 %v396, %v581
        %v583 = vpop.f32.mrb[0].mxu0
        %584 = vmatprep.mubr.f32.mxu0 0.0
        %v585 = vand.u32 %v406, 4294901760
        %v586 = vsub.f32 %v406, %v585
        %v587 = vand.u32 %v586, 4294901760
        %v588 = vsub.f32 %v586, %v587
        %v589 = vand.u32 %v588, 4294901760
        %590 = vmatmul.mubr.f32.gmra.mrb[0].mxu0 %v589
        %v591 = vpop.f32.mrb[0].mxu0
        %v592 = vadd.f32 %v396, %v591
        %v593 = vpop.f32.mrb[0].mxu0
        %594 = vmatprep.mubr.f32.mxu0 0.0
        %v595 = vand.u32 %v409, 4294901760
        %v596 = vsub.f32 %v409, %v595
        %v597 = vand.u32 %v596, 4294901760
        %v598 = vsub.f32 %v596, %v597
        %v599 = vand.u32 %v598, 4294901760
        %600 = vmatmul.mubr.f32.gmra.mrb[0].mxu0 %v599
        %v601 = vpop.f32.mrb[0].mxu0
        %v602 = vadd.f32 %v396, %v601
        %v603 = vpop.f32.mrb[0].mxu0
        %604 = vmatprep.mubr.f32.mxu0 0.0
        %v605 = vand.u32 %v412, 4294901760
        %v606 = vsub.f32 %v412, %v605
        %v607 = vand.u32 %v606, 4294901760
        %v608 = vsub.f32 %v606, %v607
        %v609 = vand.u32 %v608, 4294901760
        %610 = vmatmul.mubr.f32.gmra.mrb[0].mxu0 %v609
        %v611 = vpop.f32.mrb[0].mxu0
        %v612 = vadd.f32 %v396, %v611
        %v613 = vpop.f32.mrb[0].mxu0
        %614 = vmatprep.mubr.f32.mxu0 0.0
        %v615 = vand.u32 %v415, 4294901760
        %v616 = vsub.f32 %v415, %v615
        %v617 = vand.u32 %v616, 4294901760
        %v618 = vsub.f32 %v616, %v617
        %v619 = vand.u32 %v618, 4294901760
        %620 = vmatmul.mubr.f32.gmra.mrb[0].mxu0 %v619
        %v621 = vpop.f32.mrb[0].mxu0
        %v622 = vadd.f32 %v396, %v621
        %v623 = vpop.f32.mrb[0].mxu0
        %624 = vmatprep.mubr.f32.mxu0 0.0
        %v625 = vand.u32 %v418, 4294901760
        %v626 = vsub.f32 %v418, %v625
        %v627 = vand.u32 %v626, 4294901760
        %v628 = vsub.f32 %v626, %v627
        %v629 = vand.u32 %v628, 4294901760
        %630 = vmatmul.mubr.f32.gmra.mrb[0].mxu0 %v629
        %v631 = vpop.f32.mrb[0].mxu0
        %v632 = vadd.f32 %v396, %v631
        %v633 = vpop.f32.mrb[0].mxu0
        %634 = vmatprep.mubr.f32.mxu0 0.0
        %v635 = vand.u32 %v421, 4294901760
        %v636 = vsub.f32 %v421, %v635
        %v637 = vand.u32 %v636, 4294901760
        %v638 = vsub.f32 %v636, %v637
        %v639 = vand.u32 %v638, 4294901760
        %640 = vmatmul.mubr.f32.gmra.mrb[0].mxu0 %v639
        %v641 = vpop.f32.mrb[0].mxu0
        %v642 = vadd.f32 %v396, %v641
        %v643 = vpop.f32.mrb[0].mxu0
        %644 = vmatprep.mubr.f32.mxu0 0.0
        %v645 = vand.u32 %v424, 4294901760
        %v646 = vsub.f32 %v424, %v645
        %v647 = vand.u32 %v646, 4294901760
        %v648 = vsub.f32 %v646, %v647
        %v649 = vand.u32 %v648, 4294901760
        %650 = vmatmul.mubr.f32.gmra.mrb[0].mxu0 %v649
        %v651 = vpop.f32.mrb[0].mxu0
        %v652 = vadd.f32 %v396, %v651
        %v653 = vpop.f32.mrb[0].mxu0
        %654 = vmatprep.mubr.f32.mxu0 0.0
        %v655 = vand.u32 %v427, 4294901760
        %v656 = vsub.f32 %v427, %v655
        %v657 = vand.u32 %v656, 4294901760
        %v658 = vsub.f32 %v656, %v657
        %v659 = vand.u32 %v658, 4294901760
        %660 = vmatmul.mubr.f32.gmra.mrb[0].mxu0 %v659
        %v661 = vpop.f32.mrb[0].mxu0
        %v662 = vadd.f32 %v396, %v661
        %v663 = vpop.f32.mrb[0].mxu0
        %664 = vmatprep.mubr.f32.mxu0 0.0
        %v665 = vand.u32 %v430, 4294901760
        %v666 = vsub.f32 %v430, %v665
        %v667 = vand.u32 %v666, 4294901760
        %v668 = vsub.f32 %v666, %v667
        %v669 = vand.u32 %v668, 4294901760
        %670 = vmatmul.mubr.f32.gmra.mrb[0].mxu0 %v669
        %v671 = vpop.f32.mrb[0].mxu0
        %v672 = vadd.f32 %v396, %v671
        %v673 = vpop.f32.mrb[0].mxu0
        %674 = vmatprep.mubr.f32.mxu0 0.0
        %v675 = vand.u32 %v433, 4294901760
        %v676 = vsub.f32 %v433, %v675
        %v677 = vand.u32 %v676, 4294901760
        %v678 = vsub.f32 %v676, %v677
        %v679 = vand.u32 %v678, 4294901760
        %680 = vmatmul.mubr.f32.gmra.mrb[0].mxu0 %v679
        %v681 = vpop.f32.mrb[0].mxu0
        %v682 = vadd.f32 %v396, %v681
        %v683 = vpop.f32.mrb[0].mxu0
        %684 = vmatprep.mubr.f32.mxu0 0.0
        %v685 = vand.u32 %v436, 4294901760
        %v686 = vsub.f32 %v436, %v685
        %v687 = vand.u32 %v686, 4294901760
        %v688 = vsub.f32 %v686, %v687
        %v689 = vand.u32 %v688, 4294901760
        %690 = vmatmul.mubr.f32.gmra.mrb[0].mxu0 %v689
        %v691 = vpop.f32.mrb[0].mxu0
        %v692 = vadd.f32 %v396, %v691
        %v693 = vpop.f32.mrb[0].mxu0
        %694 = vmatprep.mubr.f32.mxu0 0.0
        %v695 = vand.u32 %v439, 4294901760
        %v696 = vsub.f32 %v439, %v695
        %v697 = vand.u32 %v696, 4294901760
        %v698 = vsub.f32 %v696, %v697
        %v699 = vand.u32 %v698, 4294901760
        %700 = vmatmul.mubr.f32.gmra.mrb[0].mxu0 %v699
        %v701 = vpop.f32.mrb[0].mxu0
        %v702 = vadd.f32 %v396, %v701
        %v703 = vpop.f32.mrb[0].mxu0
        %704 = vmatprep.mubr.f32.mxu0 0.0
        %v705 = vand.u32 %v442, 4294901760
        %v706 = vsub.f32 %v442, %v705
        %v707 = vand.u32 %v706, 4294901760
        %v708 = vsub.f32 %v706, %v707
        %v709 = vand.u32 %v708, 4294901760
        %710 = vmatmul.mubr.f32.gmra.mrb[0].mxu0 %v709
        %v711 = vpop.f32.mrb[0].mxu0
        %v712 = vadd.f32 %v396, %v711
        %v713 = vpop.f32.mrb[0].mxu0
        %714 = vmatprep.mubr.f32.mxu0 0.0
        %v715 = vand.u32 %v445, 4294901760
        %v716 = vsub.f32 %v445, %v715
        %v717 = vand.u32 %v716, 4294901760
        %v718 = vsub.f32 %v716, %v717
        %v719 = vand.u32 %v718, 4294901760
        %720 = vmatmul.mubr.f32.gmra.mrb[0].mxu0 %v719
        %v721 = vpop.f32.mrb[0].mxu0
        %v722 = vadd.f32 %v396, %v721
        %v723 = vpop.f32.mrb[0].mxu0
        %724 = vmatprep.mubr.f32.mxu0 0.0
        %v725 = vand.u32 %v448, 4294901760
        %v726 = vsub.f32 %v448, %v725
        %v727 = vand.u32 %v726, 4294901760
        %v728 = vsub.f32 %v726, %v727
        %v729 = vand.u32 %v728, 4294901760
        %730 = vmatmul.mubr.f32.gmra.mrb[0].mxu0 %v729
        %v731 = vpop.f32.mrb[0].mxu0
        %v732 = vadd.f32 %v396, %v731
        %v733 = vpop.f32.mrb[0].mxu0
        %734 = vmatprep.mubr.f32.mxu0 0.0
        %v735 = vand.u32 %v451, 4294901760
        %v736 = vsub.f32 %v451, %v735
        %v737 = vand.u32 %v736, 4294901760
        %v738 = vsub.f32 %v736, %v737
        %v739 = vand.u32 %v738, 4294901760
        %740 = vmatmul.mubr.f32.gmra.mrb[0].mxu0 %v739
        %v741 = vpop.f32.mrb[0].mxu0
        %v742 = vadd.f32 %v396, %v741
        %v743 = vpop.f32.mrb[0].mxu0
        %744 = vmatprep.mubr.f32.mxu0 0.0
        %v745 = vand.u32 %v454, 4294901760
        %v746 = vsub.f32 %v454, %v745
        %v747 = vand.u32 %v746, 4294901760
        %v748 = vsub.f32 %v746, %v747
        %v749 = vand.u32 %v748, 4294901760
        %750 = vmatmul.mubr.f32.gmra.mrb[0].mxu0 %v749
        %v751 = vpop.f32.mrb[0].mxu0
        %v752 = vadd.f32 %v396, %v751
        %v753 = vpop.f32.mrb[0].mxu0
        %754 = vmatprep.mubr.f32.mxu0 0.0
        %v755 = vand.u32 %v457, 4294901760
        %v756 = vsub.f32 %v457, %v755
        %v757 = vand.u32 %v756, 4294901760
        %v758 = vsub.f32 %v756, %v757
        %v759 = vand.u32 %v758, 4294901760
        %760 = vmatmul.mubr.f32.gmra.mrb[0].mxu0 %v759
        %v761 = vpop.f32.mrb[0].mxu0
        %v762 = vadd.f32 %v396, %v761
        %v763 = vpop.f32.mrb[0].mxu0
        %764 = vmatprep.mubr.f32.mxu0 0.0
        %v765 = vand.u32 %v460, 4294901760
        %v766 = vsub.f32 %v460, %v765
        %v767 = vand.u32 %v766, 4294901760
        %v768 = vsub.f32 %v766, %v767
        %v769 = vand.u32 %v768, 4294901760
        %770 = vmatmul.mubr.f32.gmra.mrb[0].mxu0 %v769
        %v771 = vpop.f32.mrb[0].mxu0
        %v772 = vadd.f32 %v396, %v771
        %v773 = vpop.f32.mrb[0].mxu0
        %774 = vmatprep.mubr.f32.mxu0 0.0
        %v775 = vand.u32 %v463, 4294901760
        %v776 = vsub.f32 %v463, %v775
        %v777 = vand.u32 %v776, 4294901760
        %v778 = vsub.f32 %v776, %v777
        %v779 = vand.u32 %v778, 4294901760
        %780 = vmatmul.mubr.f32.gmra.mrb[0].mxu0 %v779
        %v781 = vpop.f32.mrb[0].mxu0
        %v782 = vadd.f32 %v396, %v781
        %v783 = vpop.f32.mrb[0].mxu0
        %784 = vmatprep.mubr.f32.mxu0 0.0
        %v785 = vand.u32 %v466, 4294901760
        %v786 = vsub.f32 %v466, %v785
        %v787 = vand.u32 %v786, 4294901760
        %v788 = vsub.f32 %v786, %v787
        %v789 = vand.u32 %v788, 4294901760
        %790 = vmatmul.mubr.f32.gmra.mrb[0].mxu0 %v789
        %v791 = vpop.f32.mrb[0].mxu0
        %v792 = vadd.f32 %v396, %v791
        %v793 = vpop.f32.mrb[0].mxu0
        %794 = vmatprep.mubr.f32.mxu0 0.0
        %v795 = vand.u32 %v469, 4294901760
        %v796 = vsub.f32 %v469, %v795
        %v797 = vand.u32 %v796, 4294901760
        %v798 = vsub.f32 %v796, %v797
        %v799 = vand.u32 %v798, 4294901760
        %800 = vmatmul.mubr.f32.gmra.mrb[0].mxu0 %v799
        %v801 = vpop.f32.mrb[0].mxu0
        %v802 = vadd.f32 %v396, %v801
        %v803 = vpop.f32.mrb[0].mxu0
        %804 = vmatprep.mubr.f32.mxu0 0.0
        %v805 = vand.u32 %v472, 4294901760
        %v806 = vsub.f32 %v472, %v805
        %v807 = vand.u32 %v806, 4294901760
        %v808 = vsub.f32 %v806, %v807
        %v809 = vand.u32 %v808, 4294901760
        %810 = vmatmul.mubr.f32.gmra.mrb[0].mxu0 %v809
        %v811 = vpop.f32.mrb[0].mxu0
        %v812 = vadd.f32 %v396, %v811
        %v813 = vpop.f32.mrb[0].mxu0
        %814 = vmatprep.mubr.f32.mxu0 0.0
        %v815 = vand.u32 %v475, 4294901760
        %v816 = vsub.f32 %v475, %v815
        %v817 = vand.u32 %v816, 4294901760
        %v818 = vsub.f32 %v816, %v817
        %v819 = vand.u32 %v818, 4294901760
        %820 = vmatmul.mubr.f32.gmra.mrb[0].mxu0 %v819
        %v821 = vpop.f32.mrb[0].mxu0
        %v822 = vadd.f32 %v396, %v821
        %v823 = vpop.f32.mrb[0].mxu0
        %824 = vmatprep.mubr.f32.mxu0 0.0
        %v825 = vand.u32 %v478, 4294901760
        %v826 = vsub.f32 %v478, %v825
        %v827 = vand.u32 %v826, 4294901760
        %v828 = vsub.f32 %v826, %v827
        %v829 = vand.u32 %v828, 4294901760
        %830 = vmatmul.mubr.f32.gmra.mrb[0].mxu0 %v829
        %v831 = vpop.f32.mrb[0].mxu0
        %v832 = vadd.f32 %v396, %v831
        %v833 = vpop.f32.mrb[0].mxu0
        %834 = vmatprep.mubr.f32.mxu0 0.0
        %v835 = vand.u32 %v481, 4294901760
        %v836 = vsub.f32 %v481, %v835
        %v837 = vand.u32 %v836, 4294901760
        %v838 = vsub.f32 %v836, %v837
        %v839 = vand.u32 %v838, 4294901760
        %840 = vmatmul.mubr.f32.gmra.mrb[0].mxu0 %v839
        %v841 = vpop.f32.mrb[0].mxu0
        %v842 = vadd.f32 %v396, %v841
        %v843 = vpop.f32.mrb[0].mxu0
        %844 = vmatprep.mubr.f32.mxu0 0.0
        %v845 = vand.u32 %v484, 4294901760
        %v846 = vsub.f32 %v484, %v845
        %v847 = vand.u32 %v846, 4294901760
        %v848 = vsub.f32 %v846, %v847
        %v849 = vand.u32 %v848, 4294901760
        %850 = vmatmul.mubr.f32.gmra.mrb[0].mxu0 %v849
        %v851 = vpop.f32.mrb[0].mxu0
        %v852 = vadd.f32 %v396, %v851
        %v853 = vpop.f32.mrb[0].mxu0
        %854 = vmatprep.mubr.f32.mxu0 0.0
        %v855 = vand.u32 %v487, 4294901760
        %v856 = vsub.f32 %v487, %v855
        %v857 = vand.u32 %v856, 4294901760
        %v858 = vsub.f32 %v856, %v857
        %v859 = vand.u32 %v858, 4294901760
        %860 = vmatmul.mubr.f32.gmra.mrb[0].mxu0 %v859
        %v861 = vpop.f32.mrb[0].mxu0
        %v862 = vadd.f32 %v396, %v861
        %v863 = vpop.f32.mrb[0].mxu0
        %864 = vmatprep.mubr.f32.mxu0 0.0
        %v865 = vand.u32 %v490, 4294901760
        %v866 = vsub.f32 %v490, %v865
        %v867 = vand.u32 %v866, 4294901760
        %v868 = vsub.f32 %v866, %v867
        %v869 = vand.u32 %v868, 4294901760
        %870 = vmatmul.mubr.f32.gmra.mrb[0].mxu0 %v869
        %v871 = vpop.f32.mrb[0].mxu0
        %v872 = vadd.f32 %v396, %v871
        %v873 = vpop.f32.mrb[0].mxu0
        %874 = vmatprep.mubr.f32.mxu0 0.0
        %v875 = vand.u32 %v493, 4294901760
        %v876 = vsub.f32 %v493, %v875
        %v877 = vand.u32 %v876, 4294901760
        %v878 = vsub.f32 %v876, %v877
        %v879 = vand.u32 %v878, 4294901760
        %880 = vmatmul.mubr.f32.gmra.mrb[0].mxu0 %v879
        %v881 = vpop.f32.mrb[0].mxu0
        %v882 = vadd.f32 %v396, %v881
        %v883 = vpop.f32.mrb[0].mxu0
        %884 = vdwg.mxu0
        %885 = vmatprep.subr.mxu0 0.0
        %v886 = vand.u32 %v497, 4294901760
        %v887 = vsub.f32 %v497, %v886
        %v888 = vand.u32 %v887, 4294901760
        %v889 = vsub.f32 %v887, %v888
        %v890 = vand.u32 %v889, 4294901760
        %891 = vmatpush1.msra.mxu0 %v890
        %892 = vmatprep.subr.mxu0 0.0
        %893 = vmatpush1.msra.mxu0 0.0
        %894 = vmatprep.subr.mxu0 0.0
        %895 = vmatpush1.msra.mxu0 0.0
        %896 = vmatprep.subr.mxu0 0.0
        %897 = vmatpush1.msra.mxu0 0.0
        %898 = vmatprep.subr.mxu0 0.0
        %899 = vmatpush1.msra.mxu0 0.0
        %900 = vmatprep.subr.mxu0 0.0
        %901 = vmatpush1.msra.mxu0 0.0
        %902 = vmatprep.subr.mxu0 0.0
        %903 = vmatpush1.msra.mxu0 0.0
        %904 = vmatprep.subr.mxu0 0.0
        %905 = vmatpush1.msra.mxu0 0.0
        %906 = vmatprep.subr.mxu0 0.0
        %907 = vmatpush1.msra.mxu0 0.0
        %908 = vmatprep.subr.mxu0 0.0
        %909 = vmatpush1.msra.mxu0 0.0
        %910 = vmatprep.subr.mxu0 0.0
        %911 = vmatpush1.msra.mxu0 0.0
        %912 = vmatprep.subr.mxu0 0.0
        %913 = vmatpush1.msra.mxu0 0.0
        %914 = vmatprep.subr.mxu0 0.0
        %915 = vmatpush1.msra.mxu0 0.0
        %916 = vmatprep.subr.mxu0 0.0
        %917 = vmatpush1.msra.mxu0 0.0
        %918 = vmatprep.subr.mxu0 0.0
        %919 = vmatpush1.msra.mxu0 0.0
        %920 = vmatprep.subr.mxu0 0.0
        %921 = vmatpush1.msra.mxu0 0.0
        %922 = vmatprep.subr.mxu0 0.0
        %923 = vmatpush1.msra.mxu0 0.0
        %924 = vmatprep.subr.mxu0 0.0
        %925 = vmatpush1.msra.mxu0 0.0
        %926 = vmatprep.subr.mxu0 0.0
        %927 = vmatpush1.msra.mxu0 0.0
        %928 = vmatprep.subr.mxu0 0.0
        %929 = vmatpush1.msra.mxu0 0.0
        %930 = vmatprep.subr.mxu0 0.0
        %931 = vmatpush1.msra.mxu0 0.0
        %932 = vmatprep.subr.mxu0 0.0
        %933 = vmatpush1.msra.mxu0 0.0
        %934 = vmatprep.subr.mxu0 0.0
        %935 = vmatpush1.msra.mxu0 0.0
        %936 = vmatprep.subr.mxu0 0.0
        %937 = vmatpush1.msra.mxu0 0.0
        %938 = vmatprep.subr.mxu0 0.0
        %939 = vmatpush1.msra.mxu0 0.0
        %940 = vmatprep.subr.mxu0 0.0
        %941 = vmatpush1.msra.mxu0 0.0
        %942 = vmatprep.subr.mxu0 0.0
        %943 = vmatpush1.msra.mxu0 0.0
        %944 = vmatprep.subr.mxu0 0.0
        %945 = vmatpush1.msra.mxu0 0.0
        %946 = vmatprep.subr.mxu0 0.0
        %947 = vmatpush1.msra.mxu0 0.0
        %948 = vmatprep.subr.mxu0 0.0
        %949 = vmatpush1.msra.mxu0 0.0
        %950 = vmatprep.subr.mxu0 0.0
        %951 = vmatpush1.msra.mxu0 0.0
        %952 = vmatprep.subr.mxu0 0.0
        %953 = vmatpush1.msra.mxu0 0.0
        %954 = vmatprep.mubr.f32.mxu0 0.0
        %v955 = vand.u32 %v400, 4294901760
        %956 = vmatmul.mubr.f32.gmra.mrb[0].mxu0 %v955
        %v957 = vpop.f32.mrb[0].mxu0
        %v958 = vadd.f32 %v572, %v957
        %v959 = vpop.f32.mrb[0].mxu0
        %960 = vmatprep.mubr.f32.mxu0 0.0
        %v961 = vand.u32 %v403, 4294901760
        %962 = vmatmul.mubr.f32.gmra.mrb[0].mxu0 %v961
        %v963 = vpop.f32.mrb[0].mxu0
        %v964 = vadd.f32 %v582, %v963
        %v965 = vpop.f32.mrb[0].mxu0
        %966 = vmatprep.mubr.f32.mxu0 0.0
        %v967 = vand.u32 %v406, 4294901760
        %968 = vmatmul.mubr.f32.gmra.mrb[0].mxu0 %v967
        %v969 = vpop.f32.mrb[0].mxu0
        %v970 = vadd.f32 %v592, %v969
        %v971 = vpop.f32.mrb[0].mxu0
        %972 = vmatprep.mubr.f32.mxu0 0.0
        %v973 = vand.u32 %v409, 4294901760
        %974 = vmatmul.mubr.f32.gmra.mrb[0].mxu0 %v973
        %v975 = vpop.f32.mrb[0].mxu0
        %v976 = vadd.f32 %v602, %v975
        %v977 = vpop.f32.mrb[0].mxu0
        %978 = vmatprep.mubr.f32.mxu0 0.0
        %v979 = vand.u32 %v412, 4294901760
        %980 = vmatmul.mubr.f32.gmra.mrb[0].mxu0 %v979
        %v981 = vpop.f32.mrb[0].mxu0
        %v982 = vadd.f32 %v612, %v981
        %v983 = vpop.f32.mrb[0].mxu0
        %984 = vmatprep.mubr.f32.mxu0 0.0
        %v985 = vand.u32 %v415, 4294901760
        %986 = vmatmul.mubr.f32.gmra.mrb[0].mxu0 %v985
        %v987 = vpop.f32.mrb[0].mxu0
        %v988 = vadd.f32 %v622, %v987
        %v989 = vpop.f32.mrb[0].mxu0
        %990 = vmatprep.mubr.f32.mxu0 0.0
        %v991 = vand.u32 %v418, 4294901760
        %992 = vmatmul.mubr.f32.gmra.mrb[0].mxu0 %v991
        %v993 = vpop.f32.mrb[0].mxu0
        %v994 = vadd.f32 %v632, %v993
        %v995 = vpop.f32.mrb[0].mxu0
        %996 = vmatprep.mubr.f32.mxu0 0.0
        %v997 = vand.u32 %v421, 4294901760
        %998 = vmatmul.mubr.f32.gmra.mrb[0].mxu0 %v997
        %v999 = vpop.f32.mrb[0].mxu0
        %v1000 = vadd.f32 %v642, %v999
        %v1001 = vpop.f32.mrb[0].mxu0
        %1002 = vmatprep.mubr.f32.mxu0 0.0
        %v1003 = vand.u32 %v424, 4294901760
        %1004 = vmatmul.mubr.f32.gmra.mrb[0].mxu0 %v1003
        %v1005 = vpop.f32.mrb[0].mxu0
        %v1006 = vadd.f32 %v652, %v1005
        %v1007 = vpop.f32.mrb[0].mxu0
        %1008 = vmatprep.mubr.f32.mxu0 0.0
        %v1009 = vand.u32 %v427, 4294901760
        %1010 = vmatmul.mubr.f32.gmra.mrb[0].mxu0 %v1009
        %v1011 = vpop.f32.mrb[0].mxu0
        %v1012 = vadd.f32 %v662, %v1011
        %v1013 = vpop.f32.mrb[0].mxu0
        %1014 = vmatprep.mubr.f32.mxu0 0.0
        %v1015 = vand.u32 %v430, 4294901760
        %1016 = vmatmul.mubr.f32.gmra.mrb[0].mxu0 %v1015
        %v1017 = vpop.f32.mrb[0].mxu0
        %v1018 = vadd.f32 %v672, %v1017
        %v1019 = vpop.f32.mrb[0].mxu0
        %1020 = vmatprep.mubr.f32.mxu0 0.0
        %v1021 = vand.u32 %v433, 4294901760
        %1022 = vmatmul.mubr.f32.gmra.mrb[0].mxu0 %v1021
        %v1023 = vpop.f32.mrb[0].mxu0
        %v1024 = vadd.f32 %v682, %v1023
        %v1025 = vpop.f32.mrb[0].mxu0
        %1026 = vmatprep.mubr.f32.mxu0 0.0
        %v1027 = vand.u32 %v436, 4294901760
        %1028 = vmatmul.mubr.f32.gmra.mrb[0].mxu0 %v1027
        %v1029 = vpop.f32.mrb[0].mxu0
        %v1030 = vadd.f32 %v692, %v1029
        %v1031 = vpop.f32.mrb[0].mxu0
        %1032 = vmatprep.mubr.f32.mxu0 0.0
        %v1033 = vand.u32 %v439, 4294901760
        %1034 = vmatmul.mubr.f32.gmra.mrb[0].mxu0 %v1033
        %v1035 = vpop.f32.mrb[0].mxu0
        %v1036 = vadd.f32 %v702, %v1035
        %v1037 = vpop.f32.mrb[0].mxu0
        %1038 = vmatprep.mubr.f32.mxu0 0.0
        %v1039 = vand.u32 %v442, 4294901760
        %1040 = vmatmul.mubr.f32.gmra.mrb[0].mxu0 %v1039
        %v1041 = vpop.f32.mrb[0].mxu0
        %v1042 = vadd.f32 %v712, %v1041
        %v1043 = vpop.f32.mrb[0].mxu0
        %1044 = vmatprep.mubr.f32.mxu0 0.0
        %v1045 = vand.u32 %v445, 4294901760
        %1046 = vmatmul.mubr.f32.gmra.mrb[0].mxu0 %v1045
        %v1047 = vpop.f32.mrb[0].mxu0
        %v1048 = vadd.f32 %v722, %v1047
        %v1049 = vpop.f32.mrb[0].mxu0
        %1050 = vmatprep.mubr.f32.mxu0 0.0
        %v1051 = vand.u32 %v448, 4294901760
        %1052 = vmatmul.mubr.f32.gmra.mrb[0].mxu0 %v1051
        %v1053 = vpop.f32.mrb[0].mxu0
        %v1054 = vadd.f32 %v732, %v1053
        %v1055 = vpop.f32.mrb[0].mxu0
        %1056 = vmatprep.mubr.f32.mxu0 0.0
        %v1057 = vand.u32 %v451, 4294901760
        %1058 = vmatmul.mubr.f32.gmra.mrb[0].mxu0 %v1057
        %v1059 = vpop.f32.mrb[0].mxu0
        %v1060 = vadd.f32 %v742, %v1059
        %v1061 = vpop.f32.mrb[0].mxu0
        %1062 = vmatprep.mubr.f32.mxu0 0.0
        %v1063 = vand.u32 %v454, 4294901760
        %1064 = vmatmul.mubr.f32.gmra.mrb[0].mxu0 %v1063
        %v1065 = vpop.f32.mrb[0].mxu0
        %v1066 = vadd.f32 %v752, %v1065
        %v1067 = vpop.f32.mrb[0].mxu0
        %1068 = vmatprep.mubr.f32.mxu0 0.0
        %v1069 = vand.u32 %v457, 4294901760
        %1070 = vmatmul.mubr.f32.gmra.mrb[0].mxu0 %v1069
        %v1071 = vpop.f32.mrb[0].mxu0
        %v1072 = vadd.f32 %v762, %v1071
        %v1073 = vpop.f32.mrb[0].mxu0
        %1074 = vmatprep.mubr.f32.mxu0 0.0
        %v1075 = vand.u32 %v460, 4294901760
        %1076 = vmatmul.mubr.f32.gmra.mrb[0].mxu0 %v1075
        %v1077 = vpop.f32.mrb[0].mxu0
        %v1078 = vadd.f32 %v772, %v1077
        %v1079 = vpop.f32.mrb[0].mxu0
        %1080 = vmatprep.mubr.f32.mxu0 0.0
        %v1081 = vand.u32 %v463, 4294901760
        %1082 = vmatmul.mubr.f32.gmra.mrb[0].mxu0 %v1081
        %v1083 = vpop.f32.mrb[0].mxu0
        %v1084 = vadd.f32 %v782, %v1083
        %v1085 = vpop.f32.mrb[0].mxu0
        %1086 = vmatprep.mubr.f32.mxu0 0.0
        %v1087 = vand.u32 %v466, 4294901760
        %1088 = vmatmul.mubr.f32.gmra.mrb[0].mxu0 %v1087
        %v1089 = vpop.f32.mrb[0].mxu0
        %v1090 = vadd.f32 %v792, %v1089
        %v1091 = vpop.f32.mrb[0].mxu0
        %1092 = vmatprep.mubr.f32.mxu0 0.0
        %v1093 = vand.u32 %v469, 4294901760
        %1094 = vmatmul.mubr.f32.gmra.mrb[0].mxu0 %v1093
        %v1095 = vpop.f32.mrb[0].mxu0
        %v1096 = vadd.f32 %v802, %v1095
        %v1097 = vpop.f32.mrb[0].mxu0
        %1098 = vmatprep.mubr.f32.mxu0 0.0
        %v1099 = vand.u32 %v472, 4294901760
        %1100 = vmatmul.mubr.f32.gmra.mrb[0].mxu0 %v1099
        %v1101 = vpop.f32.mrb[0].mxu0
        %v1102 = vadd.f32 %v812, %v1101
        %v1103 = vpop.f32.mrb[0].mxu0
        %1104 = vmatprep.mubr.f32.mxu0 0.0
        %v1105 = vand.u32 %v475, 4294901760
        %1106 = vmatmul.mubr.f32.gmra.mrb[0].mxu0 %v1105
        %v1107 = vpop.f32.mrb[0].mxu0
        %v1108 = vadd.f32 %v822, %v1107
        %v1109 = vpop.f32.mrb[0].mxu0
        %1110 = vmatprep.mubr.f32.mxu0 0.0
        %v1111 = vand.u32 %v478, 4294901760
        %1112 = vmatmul.mubr.f32.gmra.mrb[0].mxu0 %v1111
        %v1113 = vpop.f32.mrb[0].mxu0
        %v1114 = vadd.f32 %v832, %v1113
        %v1115 = vpop.f32.mrb[0].mxu0
        %1116 = vmatprep.mubr.f32.mxu0 0.0
        %v1117 = vand.u32 %v481, 4294901760
        %1118 = vmatmul.mubr.f32.gmra.mrb[0].mxu0 %v1117
        %v1119 = vpop.f32.mrb[0].mxu0
        %v1120 = vadd.f32 %v842, %v1119
        %v1121 = vpop.f32.mrb[0].mxu0
        %1122 = vmatprep.mubr.f32.mxu0 0.0
        %v1123 = vand.u32 %v484, 4294901760
        %1124 = vmatmul.mubr.f32.gmra.mrb[0].mxu0 %v1123
        %v1125 = vpop.f32.mrb[0].mxu0
        %v1126 = vadd.f32 %v852, %v1125
        %v1127 = vpop.f32.mrb[0].mxu0
        %1128 = vmatprep.mubr.f32.mxu0 0.0
        %v1129 = vand.u32 %v487, 4294901760
        %1130 = vmatmul.mubr.f32.gmra.mrb[0].mxu0 %v1129
        %v1131 = vpop.f32.mrb[0].mxu0
        %v1132 = vadd.f32 %v862, %v1131
        %v1133 = vpop.f32.mrb[0].mxu0
        %1134 = vmatprep.mubr.f32.mxu0 0.0
        %v1135 = vand.u32 %v490, 4294901760
        %1136 = vmatmul.mubr.f32.gmra.mrb[0].mxu0 %v1135
        %v1137 = vpop.f32.mrb[0].mxu0
        %v1138 = vadd.f32 %v872, %v1137
        %v1139 = vpop.f32.mrb[0].mxu0
        %1140 = vmatprep.mubr.f32.mxu0 0.0
        %v1141 = vand.u32 %v493, 4294901760
        %1142 = vmatmul.mubr.f32.gmra.mrb[0].mxu0 %v1141
        %v1143 = vpop.f32.mrb[0].mxu0
        %v1144 = vadd.f32 %v882, %v1143
        %v1145 = vpop.f32.mrb[0].mxu0
        %1146 = vdwg.mxu0
        %1147 = vmatprep.subr.mxu0 0.0
        %v1148 = vand.u32 %v497, 4294901760
        %v1149 = vsub.f32 %v497, %v1148
        %1150 = vmatpush1.msra.mxu0 %v1149
        %1151 = vmatprep.subr.mxu0 0.0
        %1152 = vmatpush1.msra.mxu0 0.0
        %1153 = vmatprep.subr.mxu0 0.0
        %1154 = vmatpush1.msra.mxu0 0.0
        %1155 = vmatprep.subr.mxu0 0.0
        %1156 = vmatpush1.msra.mxu0 0.0
        %1157 = vmatprep.subr.mxu0 0.0
        %1158 = vmatpush1.msra.mxu0 0.0
        %1159 = vmatprep.subr.mxu0 0.0
        %1160 = vmatpush1.msra.mxu0 0.0
        %1161 = vmatprep.subr.mxu0 0.0
        %1162 = vmatpush1.msra.mxu0 0.0
        %1163 = vmatprep.subr.mxu0 0.0
        %1164 = vmatpush1.msra.mxu0 0.0
        %1165 = vmatprep.subr.mxu0 0.0
        %1166 = vmatpush1.msra.mxu0 0.0
        %1167 = vmatprep.subr.mxu0 0.0
        %1168 = vmatpush1.msra.mxu0 0.0
        %1169 = vmatprep.subr.mxu0 0.0
        %1170 = vmatpush1.msra.mxu0 0.0
        %1171 = vmatprep.subr.mxu0 0.0
        %1172 = vmatpush1.msra.mxu0 0.0
        %1173 = vmatprep.subr.mxu0 0.0
        %1174 = vmatpush1.msra.mxu0 0.0
        %1175 = vmatprep.subr.mxu0 0.0
        %1176 = vmatpush1.msra.mxu0 0.0
        %1177 = vmatprep.subr.mxu0 0.0
        %1178 = vmatpush1.msra.mxu0 0.0
        %1179 = vmatprep.subr.mxu0 0.0
        %1180 = vmatpush1.msra.mxu0 0.0
        %1181 = vmatprep.subr.mxu0 0.0
        %1182 = vmatpush1.msra.mxu0 0.0
        %1183 = vmatprep.subr.mxu0 0.0
        %1184 = vmatpush1.msra.mxu0 0.0
        %1185 = vmatprep.subr.mxu0 0.0
        %1186 = vmatpush1.msra.mxu0 0.0
        %1187 = vmatprep.subr.mxu0 0.0
        %1188 = vmatpush1.msra.mxu0 0.0
        %1189 = vmatprep.subr.mxu0 0.0
        %1190 = vmatpush1.msra.mxu0 0.0
        %1191 = vmatprep.subr.mxu0 0.0
        %1192 = vmatpush1.msra.mxu0 0.0
        %1193 = vmatprep.subr.mxu0 0.0
        %1194 = vmatpush1.msra.mxu0 0.0
        %1195 = vmatprep.subr.mxu0 0.0
        %1196 = vmatpush1.msra.mxu0 0.0
        %1197 = vmatprep.subr.mxu0 0.0
        %1198 = vmatpush1.msra.mxu0 0.0
        %1199 = vmatprep.subr.mxu0 0.0
        %1200 = vmatpush1.msra.mxu0 0.0
        %1201 = vmatprep.subr.mxu0 0.0
        %1202 = vmatpush1.msra.mxu0 0.0
        %1203 = vmatprep.subr.mxu0 0.0
        %1204 = vmatpush1.msra.mxu0 0.0
        %1205 = vmatprep.subr.mxu0 0.0
        %1206 = vmatpush1.msra.mxu0 0.0
        %1207 = vmatprep.subr.mxu0 0.0
        %1208 = vmatpush1.msra.mxu0 0.0
        %1209 = vmatprep.subr.mxu0 0.0
        %1210 = vmatpush1.msra.mxu0 0.0
        %1211 = vmatprep.subr.mxu0 0.0
        %1212 = vmatpush1.msra.mxu0 0.0
        %1213 = vmatprep.mubr.f32.mxu0 0.0
        %v1214 = vand.u32 %v400, 4294901760
        %v1215 = vsub.f32 %v400, %v1214
        %1216 = vmatmul.mubr.f32.gmra.mrb[0].mxu0 %v1215
        %v1217 = vpop.f32.mrb[0].mxu0
        %v1218 = vadd.f32 %v958, %v1217
        %v1219 = vpop.f32.mrb[0].mxu0
        %1220 = vmatprep.mubr.f32.mxu0 0.0
        %v1221 = vand.u32 %v403, 4294901760
        %v1222 = vsub.f32 %v403, %v1221
        %1223 = vmatmul.mubr.f32.gmra.mrb[0].mxu0 %v1222
        %v1224 = vpop.f32.mrb[0].mxu0
        %v1225 = vadd.f32 %v964, %v1224
        %v1226 = vpop.f32.mrb[0].mxu0
        %1227 = vmatprep.mubr.f32.mxu0 0.0
        %v1228 = vand.u32 %v406, 4294901760
        %v1229 = vsub.f32 %v406, %v1228
        %1230 = vmatmul.mubr.f32.gmra.mrb[0].mxu0 %v1229
        %v1231 = vpop.f32.mrb[0].mxu0
        %v1232 = vadd.f32 %v970, %v1231
        %v1233 = vpop.f32.mrb[0].mxu0
        %1234 = vmatprep.mubr.f32.mxu0 0.0
        %v1235 = vand.u32 %v409, 4294901760
        %v1236 = vsub.f32 %v409, %v1235
        %1237 = vmatmul.mubr.f32.gmra.mrb[0].mxu0 %v1236
        %v1238 = vpop.f32.mrb[0].mxu0
        %v1239 = vadd.f32 %v976, %v1238
        %v1240 = vpop.f32.mrb[0].mxu0
        %1241 = vmatprep.mubr.f32.mxu0 0.0
        %v1242 = vand.u32 %v412, 4294901760
        %v1243 = vsub.f32 %v412, %v1242
        %1244 = vmatmul.mubr.f32.gmra.mrb[0].mxu0 %v1243
        %v1245 = vpop.f32.mrb[0].mxu0
        %v1246 = vadd.f32 %v982, %v1245
        %v1247 = vpop.f32.mrb[0].mxu0
        %1248 = vmatprep.mubr.f32.mxu0 0.0
        %v1249 = vand.u32 %v415, 4294901760
        %v1250 = vsub.f32 %v415, %v1249
        %1251 = vmatmul.mubr.f32.gmra.mrb[0].mxu0 %v1250
        %v1252 = vpop.f32.mrb[0].mxu0
        %v1253 = vadd.f32 %v988, %v1252
        %v1254 = vpop.f32.mrb[0].mxu0
        %1255 = vmatprep.mubr.f32.mxu0 0.0
        %v1256 = vand.u32 %v418, 4294901760
        %v1257 = vsub.f32 %v418, %v1256
        %1258 = vmatmul.mubr.f32.gmra.mrb[0].mxu0 %v1257
        %v1259 = vpop.f32.mrb[0].mxu0
        %v1260 = vadd.f32 %v994, %v1259
        %v1261 = vpop.f32.mrb[0].mxu0
        %1262 = vmatprep.mubr.f32.mxu0 0.0
        %v1263 = vand.u32 %v421, 4294901760
        %v1264 = vsub.f32 %v421, %v1263
        %1265 = vmatmul.mubr.f32.gmra.mrb[0].mxu0 %v1264
        %v1266 = vpop.f32.mrb[0].mxu0
        %v1267 = vadd.f32 %v1000, %v1266
        %v1268 = vpop.f32.mrb[0].mxu0
        %1269 = vmatprep.mubr.f32.mxu0 0.0
        %v1270 = vand.u32 %v424, 4294901760
        %v1271 = vsub.f32 %v424, %v1270
        %1272 = vmatmul.mubr.f32.gmra.mrb[0].mxu0 %v1271
        %v1273 = vpop.f32.mrb[0].mxu0
        %v1274 = vadd.f32 %v1006, %v1273
        %v1275 = vpop.f32.mrb[0].mxu0
        %1276 = vmatprep.mubr.f32.mxu0 0.0
        %v1277 = vand.u32 %v427, 4294901760
        %v1278 = vsub.f32 %v427, %v1277
        %1279 = vmatmul.mubr.f32.gmra.mrb[0].mxu0 %v1278
        %v1280 = vpop.f32.mrb[0].mxu0
        %v1281 = vadd.f32 %v1012, %v1280
        %v1282 = vpop.f32.mrb[0].mxu0
        %1283 = vmatprep.mubr.f32.mxu0 0.0
        %v1284 = vand.u32 %v430, 4294901760
        %v1285 = vsub.f32 %v430, %v1284
        %1286 = vmatmul.mubr.f32.gmra.mrb[0].mxu0 %v1285
        %v1287 = vpop.f32.mrb[0].mxu0
        %v1288 = vadd.f32 %v1018, %v1287
        %v1289 = vpop.f32.mrb[0].mxu0
        %1290 = vmatprep.mubr.f32.mxu0 0.0
        %v1291 = vand.u32 %v433, 4294901760
        %v1292 = vsub.f32 %v433, %v1291
        %1293 = vmatmul.mubr.f32.gmra.mrb[0].mxu0 %v1292
        %v1294 = vpop.f32.mrb[0].mxu0
        %v1295 = vadd.f32 %v1024, %v1294
        %v1296 = vpop.f32.mrb[0].mxu0
        %1297 = vmatprep.mubr.f32.mxu0 0.0
        %v1298 = vand.u32 %v436, 4294901760
        %v1299 = vsub.f32 %v436, %v1298
        %1300 = vmatmul.mubr.f32.gmra.mrb[0].mxu0 %v1299
        %v1301 = vpop.f32.mrb[0].mxu0
        %v1302 = vadd.f32 %v1030, %v1301
        %v1303 = vpop.f32.mrb[0].mxu0
        %1304 = vmatprep.mubr.f32.mxu0 0.0
        %v1305 = vand.u32 %v439, 4294901760
        %v1306 = vsub.f32 %v439, %v1305
        %1307 = vmatmul.mubr.f32.gmra.mrb[0].mxu0 %v1306
        %v1308 = vpop.f32.mrb[0].mxu0
        %v1309 = vadd.f32 %v1036, %v1308
        %v1310 = vpop.f32.mrb[0].mxu0
        %1311 = vmatprep.mubr.f32.mxu0 0.0
        %v1312 = vand.u32 %v442, 4294901760
        %v1313 = vsub.f32 %v442, %v1312
        %1314 = vmatmul.mubr.f32.gmra.mrb[0].mxu0 %v1313
        %v1315 = vpop.f32.mrb[0].mxu0
        %v1316 = vadd.f32 %v1042, %v1315
        %v1317 = vpop.f32.mrb[0].mxu0
        %1318 = vmatprep.mubr.f32.mxu0 0.0
        %v1319 = vand.u32 %v445, 4294901760
        %v1320 = vsub.f32 %v445, %v1319
        %1321 = vmatmul.mubr.f32.gmra.mrb[0].mxu0 %v1320
        %v1322 = vpop.f32.mrb[0].mxu0
        %v1323 = vadd.f32 %v1048, %v1322
        %v1324 = vpop.f32.mrb[0].mxu0
        %1325 = vmatprep.mubr.f32.mxu0 0.0
        %v1326 = vand.u32 %v448, 4294901760
        %v1327 = vsub.f32 %v448, %v1326
        %1328 = vmatmul.mubr.f32.gmra.mrb[0].mxu0 %v1327
        %v1329 = vpop.f32.mrb[0].mxu0
        %v1330 = vadd.f32 %v1054, %v1329
        %v1331 = vpop.f32.mrb[0].mxu0
        %1332 = vmatprep.mubr.f32.mxu0 0.0
        %v1333 = vand.u32 %v451, 4294901760
        %v1334 = vsub.f32 %v451, %v1333
        %1335 = vmatmul.mubr.f32.gmra.mrb[0].mxu0 %v1334
        %v1336 = vpop.f32.mrb[0].mxu0
        %v1337 = vadd.f32 %v1060, %v1336
        %v1338 = vpop.f32.mrb[0].mxu0
        %1339 = vmatprep.mubr.f32.mxu0 0.0
        %v1340 = vand.u32 %v454, 4294901760
        %v1341 = vsub.f32 %v454, %v1340
        %1342 = vmatmul.mubr.f32.gmra.mrb[0].mxu0 %v1341
        %v1343 = vpop.f32.mrb[0].mxu0
        %v1344 = vadd.f32 %v1066, %v1343
        %v1345 = vpop.f32.mrb[0].mxu0
        %1346 = vmatprep.mubr.f32.mxu0 0.0
        %v1347 = vand.u32 %v457, 4294901760
        %v1348 = vsub.f32 %v457, %v1347
        %1349 = vmatmul.mubr.f32.gmra.mrb[0].mxu0 %v1348
        %v1350 = vpop.f32.mrb[0].mxu0
        %v1351 = vadd.f32 %v1072, %v1350
        %v1352 = vpop.f32.mrb[0].mxu0
        %1353 = vmatprep.mubr.f32.mxu0 0.0
        %v1354 = vand.u32 %v460, 4294901760
        %v1355 = vsub.f32 %v460, %v1354
        %1356 = vmatmul.mubr.f32.gmra.mrb[0].mxu0 %v1355
        %v1357 = vpop.f32.mrb[0].mxu0
        %v1358 = vadd.f32 %v1078, %v1357
        %v1359 = vpop.f32.mrb[0].mxu0
        %1360 = vmatprep.mubr.f32.mxu0 0.0
        %v1361 = vand.u32 %v463, 4294901760
        %v1362 = vsub.f32 %v463, %v1361
        %1363 = vmatmul.mubr.f32.gmra.mrb[0].mxu0 %v1362
        %v1364 = vpop.f32.mrb[0].mxu0
        %v1365 = vadd.f32 %v1084, %v1364
        %v1366 = vpop.f32.mrb[0].mxu0
        %1367 = vmatprep.mubr.f32.mxu0 0.0
        %v1368 = vand.u32 %v466, 4294901760
        %v1369 = vsub.f32 %v466, %v1368
        %1370 = vmatmul.mubr.f32.gmra.mrb[0].mxu0 %v1369
        %v1371 = vpop.f32.mrb[0].mxu0
        %v1372 = vadd.f32 %v1090, %v1371
        %v1373 = vpop.f32.mrb[0].mxu0
        %1374 = vmatprep.mubr.f32.mxu0 0.0
        %v1375 = vand.u32 %v469, 4294901760
        %v1376 = vsub.f32 %v469, %v1375
        %1377 = vmatmul.mubr.f32.gmra.mrb[0].mxu0 %v1376
        %v1378 = vpop.f32.mrb[0].mxu0
        %v1379 = vadd.f32 %v1096, %v1378
        %v1380 = vpop.f32.mrb[0].mxu0
        %1381 = vmatprep.mubr.f32.mxu0 0.0
        %v1382 = vand.u32 %v472, 4294901760
        %v1383 = vsub.f32 %v472, %v1382
        %1384 = vmatmul.mubr.f32.gmra.mrb[0].mxu0 %v1383
        %v1385 = vpop.f32.mrb[0].mxu0
        %v1386 = vadd.f32 %v1102, %v1385
        %v1387 = vpop.f32.mrb[0].mxu0
        %1388 = vmatprep.mubr.f32.mxu0 0.0
        %v1389 = vand.u32 %v475, 4294901760
        %v1390 = vsub.f32 %v475, %v1389
        %1391 = vmatmul.mubr.f32.gmra.mrb[0].mxu0 %v1390
        %v1392 = vpop.f32.mrb[0].mxu0
        %v1393 = vadd.f32 %v1108, %v1392
        %v1394 = vpop.f32.mrb[0].mxu0
        %1395 = vmatprep.mubr.f32.mxu0 0.0
        %v1396 = vand.u32 %v478, 4294901760
        %v1397 = vsub.f32 %v478, %v1396
        %1398 = vmatmul.mubr.f32.gmra.mrb[0].mxu0 %v1397
        %v1399 = vpop.f32.mrb[0].mxu0
        %v1400 = vadd.f32 %v1114, %v1399
        %v1401 = vpop.f32.mrb[0].mxu0
        %1402 = vmatprep.mubr.f32.mxu0 0.0
        %v1403 = vand.u32 %v481, 4294901760
        %v1404 = vsub.f32 %v481, %v1403
        %1405 = vmatmul.mubr.f32.gmra.mrb[0].mxu0 %v1404
        %v1406 = vpop.f32.mrb[0].mxu0
        %v1407 = vadd.f32 %v1120, %v1406
        %v1408 = vpop.f32.mrb[0].mxu0
        %1409 = vmatprep.mubr.f32.mxu0 0.0
        %v1410 = vand.u32 %v484, 4294901760
        %v1411 = vsub.f32 %v484, %v1410
        %1412 = vmatmul.mubr.f32.gmra.mrb[0].mxu0 %v1411
        %v1413 = vpop.f32.mrb[0].mxu0
        %v1414 = vadd.f32 %v1126, %v1413
        %v1415 = vpop.f32.mrb[0].mxu0
        %1416 = vmatprep.mubr.f32.mxu0 0.0
        %v1417 = vand.u32 %v487, 4294901760
        %v1418 = vsub.f32 %v487, %v1417
        %1419 = vmatmul.mubr.f32.gmra.mrb[0].mxu0 %v1418
        %v1420 = vpop.f32.mrb[0].mxu0
        %v1421 = vadd.f32 %v1132, %v1420
        %v1422 = vpop.f32.mrb[0].mxu0
        %1423 = vmatprep.mubr.f32.mxu0 0.0
        %v1424 = vand.u32 %v490, 4294901760
        %v1425 = vsub.f32 %v490, %v1424
        %1426 = vmatmul.mubr.f32.gmra.mrb[0].mxu0 %v1425
        %v1427 = vpop.f32.mrb[0].mxu0
        %v1428 = vadd.f32 %v1138, %v1427
        %v1429 = vpop.f32.mrb[0].mxu0
        %1430 = vmatprep.mubr.f32.mxu0 0.0
        %v1431 = vand.u32 %v493, 4294901760
        %v1432 = vsub.f32 %v493, %v1431
        %1433 = vmatmul.mubr.f32.gmra.mrb[0].mxu0 %v1432
        %v1434 = vpop.f32.mrb[0].mxu0
        %v1435 = vadd.f32 %v1144, %v1434
        %v1436 = vpop.f32.mrb[0].mxu0
        %1437 = vdwg.mxu0
        %1438 = vmatprep.subr.mxu0 0.0
        %v1439 = vand.u32 %v497, 4294901760
        %1440 = vmatpush1.msra.mxu0 %v1439
        %1441 = vmatprep.subr.mxu0 0.0
        %1442 = vmatpush1.msra.mxu0 0.0
        %1443 = vmatprep.subr.mxu0 0.0
        %1444 = vmatpush1.msra.mxu0 0.0
        %1445 = vmatprep.subr.mxu0 0.0
        %1446 = vmatpush1.msra.mxu0 0.0
        %1447 = vmatprep.subr.mxu0 0.0
        %1448 = vmatpush1.msra.mxu0 0.0
        %1449 = vmatprep.subr.mxu0 0.0
        %1450 = vmatpush1.msra.mxu0 0.0
        %1451 = vmatprep.subr.mxu0 0.0
        %1452 = vmatpush1.msra.mxu0 0.0
        %1453 = vmatprep.subr.mxu0 0.0
        %1454 = vmatpush1.msra.mxu0 0.0
        %1455 = vmatprep.subr.mxu0 0.0
        %1456 = vmatpush1.msra.mxu0 0.0
        %1457 = vmatprep.subr.mxu0 0.0
        %1458 = vmatpush1.msra.mxu0 0.0
        %1459 = vmatprep.subr.mxu0 0.0
        %1460 = vmatpush1.msra.mxu0 0.0
        %1461 = vmatprep.subr.mxu0 0.0
        %1462 = vmatpush1.msra.mxu0 0.0
        %1463 = vmatprep.subr.mxu0 0.0
        %1464 = vmatpush1.msra.mxu0 0.0
        %1465 = vmatprep.subr.mxu0 0.0
        %1466 = vmatpush1.msra.mxu0 0.0
        %1467 = vmatprep.subr.mxu0 0.0
        %1468 = vmatpush1.msra.mxu0 0.0
        %1469 = vmatprep.subr.mxu0 0.0
        %1470 = vmatpush1.msra.mxu0 0.0
        %1471 = vmatprep.subr.mxu0 0.0
        %1472 = vmatpush1.msra.mxu0 0.0
        %1473 = vmatprep.subr.mxu0 0.0
        %1474 = vmatpush1.msra.mxu0 0.0
        %1475 = vmatprep.subr.mxu0 0.0
        %1476 = vmatpush1.msra.mxu0 0.0
        %1477 = vmatprep.subr.mxu0 0.0
        %1478 = vmatpush1.msra.mxu0 0.0
        %1479 = vmatprep.subr.mxu0 0.0
        %1480 = vmatpush1.msra.mxu0 0.0
        %1481 = vmatprep.subr.mxu0 0.0
        %1482 = vmatpush1.msra.mxu0 0.0
        %1483 = vmatprep.subr.mxu0 0.0
        %1484 = vmatpush1.msra.mxu0 0.0
        %1485 = vmatprep.subr.mxu0 0.0
        %1486 = vmatpush1.msra.mxu0 0.0
        %1487 = vmatprep.subr.mxu0 0.0
        %1488 = vmatpush1.msra.mxu0 0.0
        %1489 = vmatprep.subr.mxu0 0.0
        %1490 = vmatpush1.msra.mxu0 0.0
        %1491 = vmatprep.subr.mxu0 0.0
        %1492 = vmatpush1.msra.mxu0 0.0
        %1493 = vmatprep.subr.mxu0 0.0
        %1494 = vmatpush1.msra.mxu0 0.0
        %1495 = vmatprep.subr.mxu0 0.0
        %1496 = vmatpush1.msra.mxu0 0.0
        %1497 = vmatprep.subr.mxu0 0.0
        %1498 = vmatpush1.msra.mxu0 0.0
        %1499 = vmatprep.subr.mxu0 0.0
        %1500 = vmatpush1.msra.mxu0 0.0
        %1501 = vmatprep.subr.mxu0 0.0
        %1502 = vmatpush1.msra.mxu0 0.0
        %1503 = vmatprep.mubr.f32.mxu0 0.0
        %v1504 = vand.u32 %v400, 4294901760
        %v1505 = vsub.f32 %v400, %v1504
        %v1506 = vand.u32 %v1505, 4294901760
        %1507 = vmatmul.mubr.f32.gmra.mrb[0].mxu0 %v1506
        %v1508 = vpop.f32.mrb[0].mxu0
        %v1509 = vadd.f32 %v1218, %v1508
        %v1510 = vpop.f32.mrb[0].mxu0
        %1511 = vmatprep.mubr.f32.mxu0 0.0
        %v1512 = vand.u32 %v403, 4294901760
        %v1513 = vsub.f32 %v403, %v1512
        %v1514 = vand.u32 %v1513, 4294901760
        %1515 = vmatmul.mubr.f32.gmra.mrb[0].mxu0 %v1514
        %v1516 = vpop.f32.mrb[0].mxu0
        %v1517 = vadd.f32 %v1225, %v1516
        %v1518 = vpop.f32.mrb[0].mxu0
        %1519 = vmatprep.mubr.f32.mxu0 0.0
        %v1520 = vand.u32 %v406, 4294901760
        %v1521 = vsub.f32 %v406, %v1520
        %v1522 = vand.u32 %v1521, 4294901760
        %1523 = vmatmul.mubr.f32.gmra.mrb[0].mxu0 %v1522
        %v1524 = vpop.f32.mrb[0].mxu0
        %v1525 = vadd.f32 %v1232, %v1524
        %v1526 = vpop.f32.mrb[0].mxu0
        %1527 = vmatprep.mubr.f32.mxu0 0.0
        %v1528 = vand.u32 %v409, 4294901760
        %v1529 = vsub.f32 %v409, %v1528
        %v1530 = vand.u32 %v1529, 4294901760
        %1531 = vmatmul.mubr.f32.gmra.mrb[0].mxu0 %v1530
        %v1532 = vpop.f32.mrb[0].mxu0
        %v1533 = vadd.f32 %v1239, %v1532
        %v1534 = vpop.f32.mrb[0].mxu0
        %1535 = vmatprep.mubr.f32.mxu0 0.0
        %v1536 = vand.u32 %v412, 4294901760
        %v1537 = vsub.f32 %v412, %v1536
        %v1538 = vand.u32 %v1537, 4294901760
        %1539 = vmatmul.mubr.f32.gmra.mrb[0].mxu0 %v1538
        %v1540 = vpop.f32.mrb[0].mxu0
        %v1541 = vadd.f32 %v1246, %v1540
        %v1542 = vpop.f32.mrb[0].mxu0
        %1543 = vmatprep.mubr.f32.mxu0 0.0
        %v1544 = vand.u32 %v415, 4294901760
        %v1545 = vsub.f32 %v415, %v1544
        %v1546 = vand.u32 %v1545, 4294901760
        %1547 = vmatmul.mubr.f32.gmra.mrb[0].mxu0 %v1546
        %v1548 = vpop.f32.mrb[0].mxu0
        %v1549 = vadd.f32 %v1253, %v1548
        %v1550 = vpop.f32.mrb[0].mxu0
        %1551 = vmatprep.mubr.f32.mxu0 0.0
        %v1552 = vand.u32 %v418, 4294901760
        %v1553 = vsub.f32 %v418, %v1552
        %v1554 = vand.u32 %v1553, 4294901760
        %1555 = vmatmul.mubr.f32.gmra.mrb[0].mxu0 %v1554
        %v1556 = vpop.f32.mrb[0].mxu0
        %v1557 = vadd.f32 %v1260, %v1556
        %v1558 = vpop.f32.mrb[0].mxu0
        %1559 = vmatprep.mubr.f32.mxu0 0.0
        %v1560 = vand.u32 %v421, 4294901760
        %v1561 = vsub.f32 %v421, %v1560
        %v1562 = vand.u32 %v1561, 4294901760
        %1563 = vmatmul.mubr.f32.gmra.mrb[0].mxu0 %v1562
        %v1564 = vpop.f32.mrb[0].mxu0
        %v1565 = vadd.f32 %v1267, %v1564
        %v1566 = vpop.f32.mrb[0].mxu0
        %1567 = vmatprep.mubr.f32.mxu0 0.0
        %v1568 = vand.u32 %v424, 4294901760
        %v1569 = vsub.f32 %v424, %v1568
        %v1570 = vand.u32 %v1569, 4294901760
        %1571 = vmatmul.mubr.f32.gmra.mrb[0].mxu0 %v1570
        %v1572 = vpop.f32.mrb[0].mxu0
        %v1573 = vadd.f32 %v1274, %v1572
        %v1574 = vpop.f32.mrb[0].mxu0
        %1575 = vmatprep.mubr.f32.mxu0 0.0
        %v1576 = vand.u32 %v427, 4294901760
        %v1577 = vsub.f32 %v427, %v1576
        %v1578 = vand.u32 %v1577, 4294901760
        %1579 = vmatmul.mubr.f32.gmra.mrb[0].mxu0 %v1578
        %v1580 = vpop.f32.mrb[0].mxu0
        %v1581 = vadd.f32 %v1281, %v1580
        %v1582 = vpop.f32.mrb[0].mxu0
        %1583 = vmatprep.mubr.f32.mxu0 0.0
        %v1584 = vand.u32 %v430, 4294901760
        %v1585 = vsub.f32 %v430, %v1584
        %v1586 = vand.u32 %v1585, 4294901760
        %1587 = vmatmul.mubr.f32.gmra.mrb[0].mxu0 %v1586
        %v1588 = vpop.f32.mrb[0].mxu0
        %v1589 = vadd.f32 %v1288, %v1588
        %v1590 = vpop.f32.mrb[0].mxu0
        %1591 = vmatprep.mubr.f32.mxu0 0.0
        %v1592 = vand.u32 %v433, 4294901760
        %v1593 = vsub.f32 %v433, %v1592
        %v1594 = vand.u32 %v1593, 4294901760
        %1595 = vmatmul.mubr.f32.gmra.mrb[0].mxu0 %v1594
        %v1596 = vpop.f32.mrb[0].mxu0
        %v1597 = vadd.f32 %v1295, %v1596
        %v1598 = vpop.f32.mrb[0].mxu0
        %1599 = vmatprep.mubr.f32.mxu0 0.0
        %v1600 = vand.u32 %v436, 4294901760
        %v1601 = vsub.f32 %v436, %v1600
        %v1602 = vand.u32 %v1601, 4294901760
        %1603 = vmatmul.mubr.f32.gmra.mrb[0].mxu0 %v1602
        %v1604 = vpop.f32.mrb[0].mxu0
        %v1605 = vadd.f32 %v1302, %v1604
        %v1606 = vpop.f32.mrb[0].mxu0
        %1607 = vmatprep.mubr.f32.mxu0 0.0
        %v1608 = vand.u32 %v439, 4294901760
        %v1609 = vsub.f32 %v439, %v1608
        %v1610 = vand.u32 %v1609, 4294901760
        %1611 = vmatmul.mubr.f32.gmra.mrb[0].mxu0 %v1610
        %v1612 = vpop.f32.mrb[0].mxu0
        %v1613 = vadd.f32 %v1309, %v1612
        %v1614 = vpop.f32.mrb[0].mxu0
        %1615 = vmatprep.mubr.f32.mxu0 0.0
        %v1616 = vand.u32 %v442, 4294901760
        %v1617 = vsub.f32 %v442, %v1616
        %v1618 = vand.u32 %v1617, 4294901760
        %1619 = vmatmul.mubr.f32.gmra.mrb[0].mxu0 %v1618
        %v1620 = vpop.f32.mrb[0].mxu0
        %v1621 = vadd.f32 %v1316, %v1620
        %v1622 = vpop.f32.mrb[0].mxu0
        %1623 = vmatprep.mubr.f32.mxu0 0.0
        %v1624 = vand.u32 %v445, 4294901760
        %v1625 = vsub.f32 %v445, %v1624
        %v1626 = vand.u32 %v1625, 4294901760
        %1627 = vmatmul.mubr.f32.gmra.mrb[0].mxu0 %v1626
        %v1628 = vpop.f32.mrb[0].mxu0
        %v1629 = vadd.f32 %v1323, %v1628
        %v1630 = vpop.f32.mrb[0].mxu0
        %1631 = vmatprep.mubr.f32.mxu0 0.0
        %v1632 = vand.u32 %v448, 4294901760
        %v1633 = vsub.f32 %v448, %v1632
        %v1634 = vand.u32 %v1633, 4294901760
        %1635 = vmatmul.mubr.f32.gmra.mrb[0].mxu0 %v1634
        %v1636 = vpop.f32.mrb[0].mxu0
        %v1637 = vadd.f32 %v1330, %v1636
        %v1638 = vpop.f32.mrb[0].mxu0
        %1639 = vmatprep.mubr.f32.mxu0 0.0
        %v1640 = vand.u32 %v451, 4294901760
        %v1641 = vsub.f32 %v451, %v1640
        %v1642 = vand.u32 %v1641, 4294901760
        %1643 = vmatmul.mubr.f32.gmra.mrb[0].mxu0 %v1642
        %v1644 = vpop.f32.mrb[0].mxu0
        %v1645 = vadd.f32 %v1337, %v1644
        %v1646 = vpop.f32.mrb[0].mxu0
        %1647 = vmatprep.mubr.f32.mxu0 0.0
        %v1648 = vand.u32 %v454, 4294901760
        %v1649 = vsub.f32 %v454, %v1648
        %v1650 = vand.u32 %v1649, 4294901760
        %1651 = vmatmul.mubr.f32.gmra.mrb[0].mxu0 %v1650
        %v1652 = vpop.f32.mrb[0].mxu0
        %v1653 = vadd.f32 %v1344, %v1652
        %v1654 = vpop.f32.mrb[0].mxu0
        %1655 = vmatprep.mubr.f32.mxu0 0.0
        %v1656 = vand.u32 %v457, 4294901760
        %v1657 = vsub.f32 %v457, %v1656
        %v1658 = vand.u32 %v1657, 4294901760
        %1659 = vmatmul.mubr.f32.gmra.mrb[0].mxu0 %v1658
        %v1660 = vpop.f32.mrb[0].mxu0
        %v1661 = vadd.f32 %v1351, %v1660
        %v1662 = vpop.f32.mrb[0].mxu0
        %1663 = vmatprep.mubr.f32.mxu0 0.0
        %v1664 = vand.u32 %v460, 4294901760
        %v1665 = vsub.f32 %v460, %v1664
        %v1666 = vand.u32 %v1665, 4294901760
        %1667 = vmatmul.mubr.f32.gmra.mrb[0].mxu0 %v1666
        %v1668 = vpop.f32.mrb[0].mxu0
        %v1669 = vadd.f32 %v1358, %v1668
        %v1670 = vpop.f32.mrb[0].mxu0
        %1671 = vmatprep.mubr.f32.mxu0 0.0
        %v1672 = vand.u32 %v463, 4294901760
        %v1673 = vsub.f32 %v463, %v1672
        %v1674 = vand.u32 %v1673, 4294901760
        %1675 = vmatmul.mubr.f32.gmra.mrb[0].mxu0 %v1674
        %v1676 = vpop.f32.mrb[0].mxu0
        %v1677 = vadd.f32 %v1365, %v1676
        %v1678 = vpop.f32.mrb[0].mxu0
        %1679 = vmatprep.mubr.f32.mxu0 0.0
        %v1680 = vand.u32 %v466, 4294901760
        %v1681 = vsub.f32 %v466, %v1680
        %v1682 = vand.u32 %v1681, 4294901760
        %1683 = vmatmul.mubr.f32.gmra.mrb[0].mxu0 %v1682
        %v1684 = vpop.f32.mrb[0].mxu0
        %v1685 = vadd.f32 %v1372, %v1684
        %v1686 = vpop.f32.mrb[0].mxu0
        %1687 = vmatprep.mubr.f32.mxu0 0.0
        %v1688 = vand.u32 %v469, 4294901760
        %v1689 = vsub.f32 %v469, %v1688
        %v1690 = vand.u32 %v1689, 4294901760
        %1691 = vmatmul.mubr.f32.gmra.mrb[0].mxu0 %v1690
        %v1692 = vpop.f32.mrb[0].mxu0
        %v1693 = vadd.f32 %v1379, %v1692
        %v1694 = vpop.f32.mrb[0].mxu0
        %1695 = vmatprep.mubr.f32.mxu0 0.0
        %v1696 = vand.u32 %v472, 4294901760
        %v1697 = vsub.f32 %v472, %v1696
        %v1698 = vand.u32 %v1697, 4294901760
        %1699 = vmatmul.mubr.f32.gmra.mrb[0].mxu0 %v1698
        %v1700 = vpop.f32.mrb[0].mxu0
        %v1701 = vadd.f32 %v1386, %v1700
        %v1702 = vpop.f32.mrb[0].mxu0
        %1703 = vmatprep.mubr.f32.mxu0 0.0
        %v1704 = vand.u32 %v475, 4294901760
        %v1705 = vsub.f32 %v475, %v1704
        %v1706 = vand.u32 %v1705, 4294901760
        %1707 = vmatmul.mubr.f32.gmra.mrb[0].mxu0 %v1706
        %v1708 = vpop.f32.mrb[0].mxu0
        %v1709 = vadd.f32 %v1393, %v1708
        %v1710 = vpop.f32.mrb[0].mxu0
        %1711 = vmatprep.mubr.f32.mxu0 0.0
        %v1712 = vand.u32 %v478, 4294901760
        %v1713 = vsub.f32 %v478, %v1712
        %v1714 = vand.u32 %v1713, 4294901760
        %1715 = vmatmul.mubr.f32.gmra.mrb[0].mxu0 %v1714
        %v1716 = vpop.f32.mrb[0].mxu0
        %v1717 = vadd.f32 %v1400, %v1716
        %v1718 = vpop.f32.mrb[0].mxu0
        %1719 = vmatprep.mubr.f32.mxu0 0.0
        %v1720 = vand.u32 %v481, 4294901760
        %v1721 = vsub.f32 %v481, %v1720
        %v1722 = vand.u32 %v1721, 4294901760
        %1723 = vmatmul.mubr.f32.gmra.mrb[0].mxu0 %v1722
        %v1724 = vpop.f32.mrb[0].mxu0
        %v1725 = vadd.f32 %v1407, %v1724
        %v1726 = vpop.f32.mrb[0].mxu0
        %1727 = vmatprep.mubr.f32.mxu0 0.0
        %v1728 = vand.u32 %v484, 4294901760
        %v1729 = vsub.f32 %v484, %v1728
        %v1730 = vand.u32 %v1729, 4294901760
        %1731 = vmatmul.mubr.f32.gmra.mrb[0].mxu0 %v1730
        %v1732 = vpop.f32.mrb[0].mxu0
        %v1733 = vadd.f32 %v1414, %v1732
        %v1734 = vpop.f32.mrb[0].mxu0
        %1735 = vmatprep.mubr.f32.mxu0 0.0
        %v1736 = vand.u32 %v487, 4294901760
        %v1737 = vsub.f32 %v487, %v1736
        %v1738 = vand.u32 %v1737, 4294901760
        %1739 = vmatmul.mubr.f32.gmra.mrb[0].mxu0 %v1738
        %v1740 = vpop.f32.mrb[0].mxu0
        %v1741 = vadd.f32 %v1421, %v1740
        %v1742 = vpop.f32.mrb[0].mxu0
        %1743 = vmatprep.mubr.f32.mxu0 0.0
        %v1744 = vand.u32 %v490, 4294901760
        %v1745 = vsub.f32 %v490, %v1744
        %v1746 = vand.u32 %v1745, 4294901760
        %1747 = vmatmul.mubr.f32.gmra.mrb[0].mxu0 %v1746
        %v1748 = vpop.f32.mrb[0].mxu0
        %v1749 = vadd.f32 %v1428, %v1748
        %v1750 = vpop.f32.mrb[0].mxu0
        %1751 = vmatprep.mubr.f32.mxu0 0.0
        %v1752 = vand.u32 %v493, 4294901760
        %v1753 = vsub.f32 %v493, %v1752
        %v1754 = vand.u32 %v1753, 4294901760
        %1755 = vmatmul.mubr.f32.gmra.mrb[0].mxu0 %v1754
        %v1756 = vpop.f32.mrb[0].mxu0
        %v1757 = vadd.f32 %v1435, %v1756
        %v1758 = vpop.f32.mrb[0].mxu0
        %1759 = vdwg.mxu0
        %1760 = vmatprep.subr.mxu0 0.0
        %v1761 = vand.u32 %v497, 4294901760
        %v1762 = vsub.f32 %v497, %v1761
        %v1763 = vand.u32 %v1762, 4294901760
        %1764 = vmatpush1.msra.mxu0 %v1763
        %1765 = vmatprep.subr.mxu0 0.0
        %1766 = vmatpush1.msra.mxu0 0.0
        %1767 = vmatprep.subr.mxu0 0.0
        %1768 = vmatpush1.msra.mxu0 0.0
        %1769 = vmatprep.subr.mxu0 0.0
        %1770 = vmatpush1.msra.mxu0 0.0
        %1771 = vmatprep.subr.mxu0 0.0
        %1772 = vmatpush1.msra.mxu0 0.0
        %1773 = vmatprep.subr.mxu0 0.0
        %1774 = vmatpush1.msra.mxu0 0.0
        %1775 = vmatprep.subr.mxu0 0.0
        %1776 = vmatpush1.msra.mxu0 0.0
        %1777 = vmatprep.subr.mxu0 0.0
        %1778 = vmatpush1.msra.mxu0 0.0
        %1779 = vmatprep.subr.mxu0 0.0
        %1780 = vmatpush1.msra.mxu0 0.0
        %1781 = vmatprep.subr.mxu0 0.0
        %1782 = vmatpush1.msra.mxu0 0.0
        %1783 = vmatprep.subr.mxu0 0.0
        %1784 = vmatpush1.msra.mxu0 0.0
        %1785 = vmatprep.subr.mxu0 0.0
        %1786 = vmatpush1.msra.mxu0 0.0
        %1787 = vmatprep.subr.mxu0 0.0
        %1788 = vmatpush1.msra.mxu0 0.0
        %1789 = vmatprep.subr.mxu0 0.0
        %1790 = vmatpush1.msra.mxu0 0.0
        %1791 = vmatprep.subr.mxu0 0.0
        %1792 = vmatpush1.msra.mxu0 0.0
        %1793 = vmatprep.subr.mxu0 0.0
        %1794 = vmatpush1.msra.mxu0 0.0
        %1795 = vmatprep.subr.mxu0 0.0
        %1796 = vmatpush1.msra.mxu0 0.0
        %1797 = vmatprep.subr.mxu0 0.0
        %1798 = vmatpush1.msra.mxu0 0.0
        %1799 = vmatprep.subr.mxu0 0.0
        %1800 = vmatpush1.msra.mxu0 0.0
        %1801 = vmatprep.subr.mxu0 0.0
        %1802 = vmatpush1.msra.mxu0 0.0
        %1803 = vmatprep.subr.mxu0 0.0
        %1804 = vmatpush1.msra.mxu0 0.0
        %1805 = vmatprep.subr.mxu0 0.0
        %1806 = vmatpush1.msra.mxu0 0.0
        %1807 = vmatprep.subr.mxu0 0.0
        %1808 = vmatpush1.msra.mxu0 0.0
        %1809 = vmatprep.subr.mxu0 0.0
        %1810 = vmatpush1.msra.mxu0 0.0
        %1811 = vmatprep.subr.mxu0 0.0
        %1812 = vmatpush1.msra.mxu0 0.0
        %1813 = vmatprep.subr.mxu0 0.0
        %1814 = vmatpush1.msra.mxu0 0.0
        %1815 = vmatprep.subr.mxu0 0.0
        %1816 = vmatpush1.msra.mxu0 0.0
        %1817 = vmatprep.subr.mxu0 0.0
        %1818 = vmatpush1.msra.mxu0 0.0
        %1819 = vmatprep.subr.mxu0 0.0
        %1820 = vmatpush1.msra.mxu0 0.0
        %1821 = vmatprep.subr.mxu0 0.0
        %1822 = vmatpush1.msra.mxu0 0.0
        %1823 = vmatprep.subr.mxu0 0.0
        %1824 = vmatpush1.msra.mxu0 0.0
        %1825 = vmatprep.subr.mxu0 0.0
        %1826 = vmatpush1.msra.mxu0 0.0
        %1827 = vmatprep.mubr.f32.mxu0 0.0
        %v1828 = vand.u32 %v400, 4294901760
        %1829 = vmatmul.mubr.f32.gmra.mrb[0].mxu0 %v1828
        %v1830 = vpop.f32.mrb[0].mxu0
        %v1831 = vadd.f32 %v1509, %v1830
        %v1832 = vpop.f32.mrb[0].mxu0
        %1833 = vmatprep.mubr.f32.mxu0 0.0
        %v1834 = vand.u32 %v403, 4294901760
        %1835 = vmatmul.mubr.f32.gmra.mrb[0].mxu0 %v1834
        %v1836 = vpop.f32.mrb[0].mxu0
        %v1837 = vadd.f32 %v1517, %v1836
        %v1838 = vpop.f32.mrb[0].mxu0
        %1839 = vmatprep.mubr.f32.mxu0 0.0
        %v1840 = vand.u32 %v406, 4294901760
        %1841 = vmatmul.mubr.f32.gmra.mrb[0].mxu0 %v1840
        %v1842 = vpop.f32.mrb[0].mxu0
        %v1843 = vadd.f32 %v1525, %v1842
        %v1844 = vpop.f32.mrb[0].mxu0
        %1845 = vmatprep.mubr.f32.mxu0 0.0
        %v1846 = vand.u32 %v409, 4294901760
        %1847 = vmatmul.mubr.f32.gmra.mrb[0].mxu0 %v1846
        %v1848 = vpop.f32.mrb[0].mxu0
        %v1849 = vadd.f32 %v1533, %v1848
        %v1850 = vpop.f32.mrb[0].mxu0
        %1851 = vmatprep.mubr.f32.mxu0 0.0
        %v1852 = vand.u32 %v412, 4294901760
        %1853 = vmatmul.mubr.f32.gmra.mrb[0].mxu0 %v1852
        %v1854 = vpop.f32.mrb[0].mxu0
        %v1855 = vadd.f32 %v1541, %v1854
        %v1856 = vpop.f32.mrb[0].mxu0
        %1857 = vmatprep.mubr.f32.mxu0 0.0
        %v1858 = vand.u32 %v415, 4294901760
        %1859 = vmatmul.mubr.f32.gmra.mrb[0].mxu0 %v1858
        %v1860 = vpop.f32.mrb[0].mxu0
        %v1861 = vadd.f32 %v1549, %v1860
        %v1862 = vpop.f32.mrb[0].mxu0
        %1863 = vmatprep.mubr.f32.mxu0 0.0
        %v1864 = vand.u32 %v418, 4294901760
        %1865 = vmatmul.mubr.f32.gmra.mrb[0].mxu0 %v1864
        %v1866 = vpop.f32.mrb[0].mxu0
        %v1867 = vadd.f32 %v1557, %v1866
        %v1868 = vpop.f32.mrb[0].mxu0
        %1869 = vmatprep.mubr.f32.mxu0 0.0
        %v1870 = vand.u32 %v421, 4294901760
        %1871 = vmatmul.mubr.f32.gmra.mrb[0].mxu0 %v1870
        %v1872 = vpop.f32.mrb[0].mxu0
        %v1873 = vadd.f32 %v1565, %v1872
        %v1874 = vpop.f32.mrb[0].mxu0
        %1875 = vmatprep.mubr.f32.mxu0 0.0
        %v1876 = vand.u32 %v424, 4294901760
        %1877 = vmatmul.mubr.f32.gmra.mrb[0].mxu0 %v1876
        %v1878 = vpop.f32.mrb[0].mxu0
        %v1879 = vadd.f32 %v1573, %v1878
        %v1880 = vpop.f32.mrb[0].mxu0
        %1881 = vmatprep.mubr.f32.mxu0 0.0
        %v1882 = vand.u32 %v427, 4294901760
        %1883 = vmatmul.mubr.f32.gmra.mrb[0].mxu0 %v1882
        %v1884 = vpop.f32.mrb[0].mxu0
        %v1885 = vadd.f32 %v1581, %v1884
        %v1886 = vpop.f32.mrb[0].mxu0
        %1887 = vmatprep.mubr.f32.mxu0 0.0
        %v1888 = vand.u32 %v430, 4294901760
        %1889 = vmatmul.mubr.f32.gmra.mrb[0].mxu0 %v1888
        %v1890 = vpop.f32.mrb[0].mxu0
        %v1891 = vadd.f32 %v1589, %v1890
        %v1892 = vpop.f32.mrb[0].mxu0
        %1893 = vmatprep.mubr.f32.mxu0 0.0
        %v1894 = vand.u32 %v433, 4294901760
        %1895 = vmatmul.mubr.f32.gmra.mrb[0].mxu0 %v1894
        %v1896 = vpop.f32.mrb[0].mxu0
        %v1897 = vadd.f32 %v1597, %v1896
        %v1898 = vpop.f32.mrb[0].mxu0
        %1899 = vmatprep.mubr.f32.mxu0 0.0
        %v1900 = vand.u32 %v436, 4294901760
        %1901 = vmatmul.mubr.f32.gmra.mrb[0].mxu0 %v1900
        %v1902 = vpop.f32.mrb[0].mxu0
        %v1903 = vadd.f32 %v1605, %v1902
        %v1904 = vpop.f32.mrb[0].mxu0
        %1905 = vmatprep.mubr.f32.mxu0 0.0
        %v1906 = vand.u32 %v439, 4294901760
        %1907 = vmatmul.mubr.f32.gmra.mrb[0].mxu0 %v1906
        %v1908 = vpop.f32.mrb[0].mxu0
        %v1909 = vadd.f32 %v1613, %v1908
        %v1910 = vpop.f32.mrb[0].mxu0
        %1911 = vmatprep.mubr.f32.mxu0 0.0
        %v1912 = vand.u32 %v442, 4294901760
        %1913 = vmatmul.mubr.f32.gmra.mrb[0].mxu0 %v1912
        %v1914 = vpop.f32.mrb[0].mxu0
        %v1915 = vadd.f32 %v1621, %v1914
        %v1916 = vpop.f32.mrb[0].mxu0
        %1917 = vmatprep.mubr.f32.mxu0 0.0
        %v1918 = vand.u32 %v445, 4294901760
        %1919 = vmatmul.mubr.f32.gmra.mrb[0].mxu0 %v1918
        %v1920 = vpop.f32.mrb[0].mxu0
        %v1921 = vadd.f32 %v1629, %v1920
        %v1922 = vpop.f32.mrb[0].mxu0
        %1923 = vmatprep.mubr.f32.mxu0 0.0
        %v1924 = vand.u32 %v448, 4294901760
        %1925 = vmatmul.mubr.f32.gmra.mrb[0].mxu0 %v1924
        %v1926 = vpop.f32.mrb[0].mxu0
        %v1927 = vadd.f32 %v1637, %v1926
        %v1928 = vpop.f32.mrb[0].mxu0
        %1929 = vmatprep.mubr.f32.mxu0 0.0
        %v1930 = vand.u32 %v451, 4294901760
        %1931 = vmatmul.mubr.f32.gmra.mrb[0].mxu0 %v1930
        %v1932 = vpop.f32.mrb[0].mxu0
        %v1933 = vadd.f32 %v1645, %v1932
        %v1934 = vpop.f32.mrb[0].mxu0
        %1935 = vmatprep.mubr.f32.mxu0 0.0
        %v1936 = vand.u32 %v454, 4294901760
        %1937 = vmatmul.mubr.f32.gmra.mrb[0].mxu0 %v1936
        %v1938 = vpop.f32.mrb[0].mxu0
        %v1939 = vadd.f32 %v1653, %v1938
        %v1940 = vpop.f32.mrb[0].mxu0
        %1941 = vmatprep.mubr.f32.mxu0 0.0
        %v1942 = vand.u32 %v457, 4294901760
        %1943 = vmatmul.mubr.f32.gmra.mrb[0].mxu0 %v1942
        %v1944 = vpop.f32.mrb[0].mxu0
        %v1945 = vadd.f32 %v1661, %v1944
        %v1946 = vpop.f32.mrb[0].mxu0
        %1947 = vmatprep.mubr.f32.mxu0 0.0
        %v1948 = vand.u32 %v460, 4294901760
        %1949 = vmatmul.mubr.f32.gmra.mrb[0].mxu0 %v1948
        %v1950 = vpop.f32.mrb[0].mxu0
        %v1951 = vadd.f32 %v1669, %v1950
        %v1952 = vpop.f32.mrb[0].mxu0
        %1953 = vmatprep.mubr.f32.mxu0 0.0
        %v1954 = vand.u32 %v463, 4294901760
        %1955 = vmatmul.mubr.f32.gmra.mrb[0].mxu0 %v1954
        %v1956 = vpop.f32.mrb[0].mxu0
        %v1957 = vadd.f32 %v1677, %v1956
        %v1958 = vpop.f32.mrb[0].mxu0
        %1959 = vmatprep.mubr.f32.mxu0 0.0
        %v1960 = vand.u32 %v466, 4294901760
        %1961 = vmatmul.mubr.f32.gmra.mrb[0].mxu0 %v1960
        %v1962 = vpop.f32.mrb[0].mxu0
        %v1963 = vadd.f32 %v1685, %v1962
        %v1964 = vpop.f32.mrb[0].mxu0
        %1965 = vmatprep.mubr.f32.mxu0 0.0
        %v1966 = vand.u32 %v469, 4294901760
        %1967 = vmatmul.mubr.f32.gmra.mrb[0].mxu0 %v1966
        %v1968 = vpop.f32.mrb[0].mxu0
        %v1969 = vadd.f32 %v1693, %v1968
        %v1970 = vpop.f32.mrb[0].mxu0
        %1971 = vmatprep.mubr.f32.mxu0 0.0
        %v1972 = vand.u32 %v472, 4294901760
        %1973 = vmatmul.mubr.f32.gmra.mrb[0].mxu0 %v1972
        %v1974 = vpop.f32.mrb[0].mxu0
        %v1975 = vadd.f32 %v1701, %v1974
        %v1976 = vpop.f32.mrb[0].mxu0
        %1977 = vmatprep.mubr.f32.mxu0 0.0
        %v1978 = vand.u32 %v475, 4294901760
        %1979 = vmatmul.mubr.f32.gmra.mrb[0].mxu0 %v1978
        %v1980 = vpop.f32.mrb[0].mxu0
        %v1981 = vadd.f32 %v1709, %v1980
        %v1982 = vpop.f32.mrb[0].mxu0
        %1983 = vmatprep.mubr.f32.mxu0 0.0
        %v1984 = vand.u32 %v478, 4294901760
        %1985 = vmatmul.mubr.f32.gmra.mrb[0].mxu0 %v1984
        %v1986 = vpop.f32.mrb[0].mxu0
        %v1987 = vadd.f32 %v1717, %v1986
        %v1988 = vpop.f32.mrb[0].mxu0
        %1989 = vmatprep.mubr.f32.mxu0 0.0
        %v1990 = vand.u32 %v481, 4294901760
        %1991 = vmatmul.mubr.f32.gmra.mrb[0].mxu0 %v1990
        %v1992 = vpop.f32.mrb[0].mxu0
        %v1993 = vadd.f32 %v1725, %v1992
        %v1994 = vpop.f32.mrb[0].mxu0
        %1995 = vmatprep.mubr.f32.mxu0 0.0
        %v1996 = vand.u32 %v484, 4294901760
        %1997 = vmatmul.mubr.f32.gmra.mrb[0].mxu0 %v1996
        %v1998 = vpop.f32.mrb[0].mxu0
        %v1999 = vadd.f32 %v1733, %v1998
        %v2000 = vpop.f32.mrb[0].mxu0
        %2001 = vmatprep.mubr.f32.mxu0 0.0
        %v2002 = vand.u32 %v487, 4294901760
        %2003 = vmatmul.mubr.f32.gmra.mrb[0].mxu0 %v2002
        %v2004 = vpop.f32.mrb[0].mxu0
        %v2005 = vadd.f32 %v1741, %v2004
        %v2006 = vpop.f32.mrb[0].mxu0
        %2007 = vmatprep.mubr.f32.mxu0 0.0
        %v2008 = vand.u32 %v490, 4294901760
        %2009 = vmatmul.mubr.f32.gmra.mrb[0].mxu0 %v2008
        %v2010 = vpop.f32.mrb[0].mxu0
        %v2011 = vadd.f32 %v1749, %v2010
        %v2012 = vpop.f32.mrb[0].mxu0
        %2013 = vmatprep.mubr.f32.mxu0 0.0
        %v2014 = vand.u32 %v493, 4294901760
        %2015 = vmatmul.mubr.f32.gmra.mrb[0].mxu0 %v2014
        %v2016 = vpop.f32.mrb[0].mxu0
        %v2017 = vadd.f32 %v1757, %v2016
        %v2018 = vpop.f32.mrb[0].mxu0
        %2019 = vdwg.mxu0
        %2020 = vmatprep.subr.mxu0 0.0
        %v2021 = vand.u32 %v497, 4294901760
        %2022 = vmatpush1.msra.mxu0 %v2021
        %2023 = vmatprep.subr.mxu0 0.0
        %2024 = vmatpush1.msra.mxu0 0.0
        %2025 = vmatprep.subr.mxu0 0.0
        %2026 = vmatpush1.msra.mxu0 0.0
        %2027 = vmatprep.subr.mxu0 0.0
        %2028 = vmatpush1.msra.mxu0 0.0
        %2029 = vmatprep.subr.mxu0 0.0
        %2030 = vmatpush1.msra.mxu0 0.0
        %2031 = vmatprep.subr.mxu0 0.0
        %2032 = vmatpush1.msra.mxu0 0.0
        %2033 = vmatprep.subr.mxu0 0.0
        %2034 = vmatpush1.msra.mxu0 0.0
        %2035 = vmatprep.subr.mxu0 0.0
        %2036 = vmatpush1.msra.mxu0 0.0
        %2037 = vmatprep.subr.mxu0 0.0
        %2038 = vmatpush1.msra.mxu0 0.0
        %2039 = vmatprep.subr.mxu0 0.0
        %2040 = vmatpush1.msra.mxu0 0.0
        %2041 = vmatprep.subr.mxu0 0.0
        %2042 = vmatpush1.msra.mxu0 0.0
        %2043 = vmatprep.subr.mxu0 0.0
        %2044 = vmatpush1.msra.mxu0 0.0
        %2045 = vmatprep.subr.mxu0 0.0
        %2046 = vmatpush1.msra.mxu0 0.0
        %2047 = vmatprep.subr.mxu0 0.0
        %2048 = vmatpush1.msra.mxu0 0.0
        %2049 = vmatprep.subr.mxu0 0.0
        %2050 = vmatpush1.msra.mxu0 0.0
        %2051 = vmatprep.subr.mxu0 0.0
        %2052 = vmatpush1.msra.mxu0 0.0
        %2053 = vmatprep.subr.mxu0 0.0
        %2054 = vmatpush1.msra.mxu0 0.0
        %2055 = vmatprep.subr.mxu0 0.0
        %2056 = vmatpush1.msra.mxu0 0.0
        %2057 = vmatprep.subr.mxu0 0.0
        %2058 = vmatpush1.msra.mxu0 0.0
        %2059 = vmatprep.subr.mxu0 0.0
        %2060 = vmatpush1.msra.mxu0 0.0
        %2061 = vmatprep.subr.mxu0 0.0
        %2062 = vmatpush1.msra.mxu0 0.0
        %2063 = vmatprep.subr.mxu0 0.0
        %2064 = vmatpush1.msra.mxu0 0.0
        %2065 = vmatprep.subr.mxu0 0.0
        %2066 = vmatpush1.msra.mxu0 0.0
        %2067 = vmatprep.subr.mxu0 0.0
        %2068 = vmatpush1.msra.mxu0 0.0
        %2069 = vmatprep.subr.mxu0 0.0
        %2070 = vmatpush1.msra.mxu0 0.0
        %2071 = vmatprep.subr.mxu0 0.0
        %2072 = vmatpush1.msra.mxu0 0.0
        %2073 = vmatprep.subr.mxu0 0.0
        %2074 = vmatpush1.msra.mxu0 0.0
        %2075 = vmatprep.subr.mxu0 0.0
        %2076 = vmatpush1.msra.mxu0 0.0
        %2077 = vmatprep.subr.mxu0 0.0
        %2078 = vmatpush1.msra.mxu0 0.0
        %2079 = vmatprep.subr.mxu0 0.0
        %2080 = vmatpush1.msra.mxu0 0.0
        %2081 = vmatprep.subr.mxu0 0.0
        %2082 = vmatpush1.msra.mxu0 0.0
        %2083 = vmatprep.subr.mxu0 0.0
        %2084 = vmatpush1.msra.mxu0 0.0
        %2085 = vmatprep.mubr.f32.mxu0 0.0
        %v2086 = vand.u32 %v400, 4294901760
        %2087 = vmatmul.mubr.f32.gmra.mrb[0].mxu0 %v2086
        %v2088 = vpop.f32.mrb[0].mxu0
        %v2089 = vadd.f32 %v1831, %v2088
        %v2090 = vpop.f32.mrb[0].mxu0
        %2091 = vmatprep.mubr.f32.mxu0 0.0
        %v2092 = vand.u32 %v403, 4294901760
        %2093 = vmatmul.mubr.f32.gmra.mrb[0].mxu0 %v2092
        %v2094 = vpop.f32.mrb[0].mxu0
        %v2095 = vadd.f32 %v1837, %v2094
        %v2096 = vpop.f32.mrb[0].mxu0
        %2097 = vmatprep.mubr.f32.mxu0 0.0
        %v2098 = vand.u32 %v406, 4294901760
        %2099 = vmatmul.mubr.f32.gmra.mrb[0].mxu0 %v2098
        %v2100 = vpop.f32.mrb[0].mxu0
        %v2101 = vadd.f32 %v1843, %v2100
        %v2102 = vpop.f32.mrb[0].mxu0
        %2103 = vmatprep.mubr.f32.mxu0 0.0
        %v2104 = vand.u32 %v409, 4294901760
        %2105 = vmatmul.mubr.f32.gmra.mrb[0].mxu0 %v2104
        %v2106 = vpop.f32.mrb[0].mxu0
        %v2107 = vadd.f32 %v1849, %v2106
        %v2108 = vpop.f32.mrb[0].mxu0
        %2109 = vmatprep.mubr.f32.mxu0 0.0
        %v2110 = vand.u32 %v412, 4294901760
        %2111 = vmatmul.mubr.f32.gmra.mrb[0].mxu0 %v2110
        %v2112 = vpop.f32.mrb[0].mxu0
        %v2113 = vadd.f32 %v1855, %v2112
        %v2114 = vpop.f32.mrb[0].mxu0
        %2115 = vmatprep.mubr.f32.mxu0 0.0
        %v2116 = vand.u32 %v415, 4294901760
        %2117 = vmatmul.mubr.f32.gmra.mrb[0].mxu0 %v2116
        %v2118 = vpop.f32.mrb[0].mxu0
        %v2119 = vadd.f32 %v1861, %v2118
        %v2120 = vpop.f32.mrb[0].mxu0
        %2121 = vmatprep.mubr.f32.mxu0 0.0
        %v2122 = vand.u32 %v418, 4294901760
        %2123 = vmatmul.mubr.f32.gmra.mrb[0].mxu0 %v2122
        %v2124 = vpop.f32.mrb[0].mxu0
        %v2125 = vadd.f32 %v1867, %v2124
        %v2126 = vpop.f32.mrb[0].mxu0
        %2127 = vmatprep.mubr.f32.mxu0 0.0
        %v2128 = vand.u32 %v421, 4294901760
        %2129 = vmatmul.mubr.f32.gmra.mrb[0].mxu0 %v2128
        %v2130 = vpop.f32.mrb[0].mxu0
        %v2131 = vadd.f32 %v1873, %v2130
        %v2132 = vpop.f32.mrb[0].mxu0
        %2133 = vmatprep.mubr.f32.mxu0 0.0
        %v2134 = vand.u32 %v424, 4294901760
        %2135 = vmatmul.mubr.f32.gmra.mrb[0].mxu0 %v2134
        %v2136 = vpop.f32.mrb[0].mxu0
        %v2137 = vadd.f32 %v1879, %v2136
        %v2138 = vpop.f32.mrb[0].mxu0
        %2139 = vmatprep.mubr.f32.mxu0 0.0
        %v2140 = vand.u32 %v427, 4294901760
        %2141 = vmatmul.mubr.f32.gmra.mrb[0].mxu0 %v2140
        %v2142 = vpop.f32.mrb[0].mxu0
        %v2143 = vadd.f32 %v1885, %v2142
        %v2144 = vpop.f32.mrb[0].mxu0
        %2145 = vmatprep.mubr.f32.mxu0 0.0
        %v2146 = vand.u32 %v430, 4294901760
        %2147 = vmatmul.mubr.f32.gmra.mrb[0].mxu0 %v2146
        %v2148 = vpop.f32.mrb[0].mxu0
        %v2149 = vadd.f32 %v1891, %v2148
        %v2150 = vpop.f32.mrb[0].mxu0
        %2151 = vmatprep.mubr.f32.mxu0 0.0
        %v2152 = vand.u32 %v433, 4294901760
        %2153 = vmatmul.mubr.f32.gmra.mrb[0].mxu0 %v2152
        %v2154 = vpop.f32.mrb[0].mxu0
        %v2155 = vadd.f32 %v1897, %v2154
        %v2156 = vpop.f32.mrb[0].mxu0
        %2157 = vmatprep.mubr.f32.mxu0 0.0
        %v2158 = vand.u32 %v436, 4294901760
        %2159 = vmatmul.mubr.f32.gmra.mrb[0].mxu0 %v2158
        %v2160 = vpop.f32.mrb[0].mxu0
        %v2161 = vadd.f32 %v1903, %v2160
        %v2162 = vpop.f32.mrb[0].mxu0
        %2163 = vmatprep.mubr.f32.mxu0 0.0
        %v2164 = vand.u32 %v439, 4294901760
        %2165 = vmatmul.mubr.f32.gmra.mrb[0].mxu0 %v2164
        %v2166 = vpop.f32.mrb[0].mxu0
        %v2167 = vadd.f32 %v1909, %v2166
        %v2168 = vpop.f32.mrb[0].mxu0
        %2169 = vmatprep.mubr.f32.mxu0 0.0
        %v2170 = vand.u32 %v442, 4294901760
        %2171 = vmatmul.mubr.f32.gmra.mrb[0].mxu0 %v2170
        %v2172 = vpop.f32.mrb[0].mxu0
        %v2173 = vadd.f32 %v1915, %v2172
        %v2174 = vpop.f32.mrb[0].mxu0
        %2175 = vmatprep.mubr.f32.mxu0 0.0
        %v2176 = vand.u32 %v445, 4294901760
        %2177 = vmatmul.mubr.f32.gmra.mrb[0].mxu0 %v2176
        %v2178 = vpop.f32.mrb[0].mxu0
        %v2179 = vadd.f32 %v1921, %v2178
        %v2180 = vpop.f32.mrb[0].mxu0
        %2181 = vmatprep.mubr.f32.mxu0 0.0
        %v2182 = vand.u32 %v448, 4294901760
        %2183 = vmatmul.mubr.f32.gmra.mrb[0].mxu0 %v2182
        %v2184 = vpop.f32.mrb[0].mxu0
        %v2185 = vadd.f32 %v1927, %v2184
        %v2186 = vpop.f32.mrb[0].mxu0
        %2187 = vmatprep.mubr.f32.mxu0 0.0
        %v2188 = vand.u32 %v451, 4294901760
        %2189 = vmatmul.mubr.f32.gmra.mrb[0].mxu0 %v2188
        %v2190 = vpop.f32.mrb[0].mxu0
        %v2191 = vadd.f32 %v1933, %v2190
        %v2192 = vpop.f32.mrb[0].mxu0
        %2193 = vmatprep.mubr.f32.mxu0 0.0
        %v2194 = vand.u32 %v454, 4294901760
        %2195 = vmatmul.mubr.f32.gmra.mrb[0].mxu0 %v2194
        %v2196 = vpop.f32.mrb[0].mxu0
        %v2197 = vadd.f32 %v1939, %v2196
        %v2198 = vpop.f32.mrb[0].mxu0
        %2199 = vmatprep.mubr.f32.mxu0 0.0
        %v2200 = vand.u32 %v457, 4294901760
        %2201 = vmatmul.mubr.f32.gmra.mrb[0].mxu0 %v2200
        %v2202 = vpop.f32.mrb[0].mxu0
        %v2203 = vadd.f32 %v1945, %v2202
        %v2204 = vpop.f32.mrb[0].mxu0
        %2205 = vmatprep.mubr.f32.mxu0 0.0
        %v2206 = vand.u32 %v460, 4294901760
        %2207 = vmatmul.mubr.f32.gmra.mrb[0].mxu0 %v2206
        %v2208 = vpop.f32.mrb[0].mxu0
        %v2209 = vadd.f32 %v1951, %v2208
        %v2210 = vpop.f32.mrb[0].mxu0
        %2211 = vmatprep.mubr.f32.mxu0 0.0
        %v2212 = vand.u32 %v463, 4294901760
        %2213 = vmatmul.mubr.f32.gmra.mrb[0].mxu0 %v2212
        %v2214 = vpop.f32.mrb[0].mxu0
        %v2215 = vadd.f32 %v1957, %v2214
        %v2216 = vpop.f32.mrb[0].mxu0
        %2217 = vmatprep.mubr.f32.mxu0 0.0
        %v2218 = vand.u32 %v466, 4294901760
        %2219 = vmatmul.mubr.f32.gmra.mrb[0].mxu0 %v2218
        %v2220 = vpop.f32.mrb[0].mxu0
        %v2221 = vadd.f32 %v1963, %v2220
        %v2222 = vpop.f32.mrb[0].mxu0
        %2223 = vmatprep.mubr.f32.mxu0 0.0
        %v2224 = vand.u32 %v469, 4294901760
        %2225 = vmatmul.mubr.f32.gmra.mrb[0].mxu0 %v2224
        %v2226 = vpop.f32.mrb[0].mxu0
        %v2227 = vadd.f32 %v1969, %v2226
        %v2228 = vpop.f32.mrb[0].mxu0
        %2229 = vmatprep.mubr.f32.mxu0 0.0
        %v2230 = vand.u32 %v472, 4294901760
        %2231 = vmatmul.mubr.f32.gmra.mrb[0].mxu0 %v2230
        %v2232 = vpop.f32.mrb[0].mxu0
        %v2233 = vadd.f32 %v1975, %v2232
        %v2234 = vpop.f32.mrb[0].mxu0
        %2235 = vmatprep.mubr.f32.mxu0 0.0
        %v2236 = vand.u32 %v475, 4294901760
        %2237 = vmatmul.mubr.f32.gmra.mrb[0].mxu0 %v2236
        %v2238 = vpop.f32.mrb[0].mxu0
        %v2239 = vadd.f32 %v1981, %v2238
        %v2240 = vpop.f32.mrb[0].mxu0
        %2241 = vmatprep.mubr.f32.mxu0 0.0
        %v2242 = vand.u32 %v478, 4294901760
        %2243 = vmatmul.mubr.f32.gmra.mrb[0].mxu0 %v2242
        %v2244 = vpop.f32.mrb[0].mxu0
        %v2245 = vadd.f32 %v1987, %v2244
        %v2246 = vpop.f32.mrb[0].mxu0
        %2247 = vmatprep.mubr.f32.mxu0 0.0
        %v2248 = vand.u32 %v481, 4294901760
        %2249 = vmatmul.mubr.f32.gmra.mrb[0].mxu0 %v2248
        %v2250 = vpop.f32.mrb[0].mxu0
        %v2251 = vadd.f32 %v1993, %v2250
        %v2252 = vpop.f32.mrb[0].mxu0
        %2253 = vmatprep.mubr.f32.mxu0 0.0
        %v2254 = vand.u32 %v484, 4294901760
        %2255 = vmatmul.mubr.f32.gmra.mrb[0].mxu0 %v2254
        %v2256 = vpop.f32.mrb[0].mxu0
        %v2257 = vadd.f32 %v1999, %v2256
        %v2258 = vpop.f32.mrb[0].mxu0
        %2259 = vmatprep.mubr.f32.mxu0 0.0
        %v2260 = vand.u32 %v487, 4294901760
        %2261 = vmatmul.mubr.f32.gmra.mrb[0].mxu0 %v2260
        %v2262 = vpop.f32.mrb[0].mxu0
        %v2263 = vadd.f32 %v2005, %v2262
        %v2264 = vpop.f32.mrb[0].mxu0
        %2265 = vmatprep.mubr.f32.mxu0 0.0
        %v2266 = vand.u32 %v490, 4294901760
        %2267 = vmatmul.mubr.f32.gmra.mrb[0].mxu0 %v2266
        %v2268 = vpop.f32.mrb[0].mxu0
        %v2269 = vadd.f32 %v2011, %v2268
        %v2270 = vpop.f32.mrb[0].mxu0
        %2271 = vmatprep.mubr.f32.mxu0 0.0
        %v2272 = vand.u32 %v493, 4294901760
        %2273 = vmatmul.mubr.f32.gmra.mrb[0].mxu0 %v2272
        %v2274 = vpop.f32.mrb[0].mxu0
        %v2275 = vadd.f32 %v2017, %v2274
        %v2276 = vpop.f32.mrb[0].mxu0
        %2277 = vdwg.mxu0
        %v2278 = vmax.f32 %v2089, 0.0
        %v2279 = vmax.f32 %v2095, 0.0
        %v2280 = vmax.f32 %v2101, 0.0
        %v2281 = vmax.f32 %v2107, 0.0
        %v2282 = vmax.f32 %v2113, 0.0
        %v2283 = vmax.f32 %v2119, 0.0
        %v2284 = vmax.f32 %v2125, 0.0
        %v2285 = vmax.f32 %v2131, 0.0
        %v2286 = vmax.f32 %v2137, 0.0
        %v2287 = vmax.f32 %v2143, 0.0
        %v2288 = vmax.f32 %v2149, 0.0
        %v2289 = vmax.f32 %v2155, 0.0
        %v2290 = vmax.f32 %v2161, 0.0
        %v2291 = vmax.f32 %v2167, 0.0
        %v2292 = vmax.f32 %v2173, 0.0
        %v2293 = vmax.f32 %v2179, 0.0
        %v2294 = vmax.f32 %v2185, 0.0
        %v2295 = vmax.f32 %v2191, 0.0
        %v2296 = vmax.f32 %v2197, 0.0
        %v2297 = vmax.f32 %v2203, 0.0
        %v2298 = vmax.f32 %v2209, 0.0
        %v2299 = vmax.f32 %v2215, 0.0
        %v2300 = vmax.f32 %v2221, 0.0
        %v2301 = vmax.f32 %v2227, 0.0
        %v2302 = vmax.f32 %v2233, 0.0
        %v2303 = vmax.f32 %v2239, 0.0
        %v2304 = vmax.f32 %v2245, 0.0
        %v2305 = vmax.f32 %v2251, 0.0
        %v2306 = vmax.f32 %v2257, 0.0
        %v2307 = vmax.f32 %v2263, 0.0
        %v2308 = vmax.f32 %v2269, 0.0
        %v2309 = vmax.f32 %v2275, 0.0
        %2310 = vst [vmem:[#allocation2] sm:$0xff] 0.0
        %2311 = vst [vmem:[#allocation2 + $0x8] sm:$0xff] 0.0
        %2312 = vst [vmem:[#allocation2 + $0x10] sm:$0xf] 0.0
        %2313 = vst [vmem:[#allocation2 + $0x18] sm:$0xff] 0.0
        %2314 = vst [vmem:[#allocation2 + $0x20] sm:$0xff] 0.0
        %2315 = vst [vmem:[#allocation2 + $0x28] sm:$0xf] 0.0
        %2316 = vst [vmem:[#allocation2 + $0x30] sm:$0xff] 0.0
        %2317 = vst [vmem:[#allocation2 + $0x38] sm:$0xff] 0.0
        %2318 = vst [vmem:[#allocation2 + $0x40] sm:$0xf] 0.0
        %2319 = vst [vmem:[#allocation2 + $0x48] sm:$0xff] 0.0
        %2320 = vst [vmem:[#allocation2 + $0x50] sm:$0xff] 0.0
        %2321 = vst [vmem:[#allocation2 + $0x58] sm:$0xf] 0.0
        %2322 = vst [vmem:[#allocation2 + $0x60] sm:$0xff] 0.0
        %2323 = vst [vmem:[#allocation2 + $0x68] sm:$0xff] 0.0
        %2324 = vst [vmem:[#allocation2 + $0x70] sm:$0xf] 0.0
        %2325 = vst [vmem:[#allocation2 + $0x78] sm:$0xff] 0.0
        %2326 = vst [vmem:[#allocation2 + $0x80] sm:$0xff] 0.0
        %2327 = vst [vmem:[#allocation2 + $0x88] sm:$0xf] 0.0
        %2328 = vst [vmem:[#allocation2 + $0x90] sm:$0xff] 0.0
        %2329 = vst [vmem:[#allocation2 + $0x98] sm:$0xff] 0.0
        %2330 = vst [vmem:[#allocation2 + $0xa0] sm:$0xf] 0.0
        %2331 = vst [vmem:[#allocation2 + $0xa8] sm:$0xff] 0.0
        %2332 = vst [vmem:[#allocation2 + $0xb0] sm:$0xff] 0.0
        %2333 = vst [vmem:[#allocation2 + $0xb8] sm:$0xf] 0.0
        %2334 = vst [vmem:[#allocation2 + $0xc0] sm:$0xff] 0.0
        %2335 = vst [vmem:[#allocation2 + $0xc8] sm:$0xff] 0.0
        %2336 = vst [vmem:[#allocation2 + $0xd0] sm:$0xf] 0.0
        %2337 = vst [vmem:[#allocation2 + $0xd8] sm:$0xff] 0.0
        %2338 = vst [vmem:[#allocation2 + $0xe0] sm:$0xff] 0.0
        %2339 = vst [vmem:[#allocation2 + $0xe8] sm:$0xf] 0.0
        %2340 = vst [vmem:[#allocation2 + $0xf0] sm:$0xff] 0.0
        %2341 = vst [vmem:[#allocation2 + $0xf8] sm:$0xff] 0.0
        %2342 = vst [vmem:[#allocation2 + $0x100] sm:$0xf] 0.0
        %2343 = vst [vmem:[#allocation2 + $0x108] sm:$0xff] 0.0
        %2344 = vst [vmem:[#allocation2 + $0x110] sm:$0xff] 0.0
        %2345 = vst [vmem:[#allocation2 + $0x118] sm:$0xf] 0.0
        %2346 = vst [vmem:[#allocation2 + $0x120] sm:$0xff] 0.0
        %2347 = vst [vmem:[#allocation2 + $0x128] sm:$0xff] 0.0
        %2348 = vst [vmem:[#allocation2 + $0x130] sm:$0xf] 0.0
        %2349 = vst [vmem:[#allocation2 + $0x138] sm:$0xff] 0.0
        %2350 = vst [vmem:[#allocation2 + $0x140] sm:$0xff] 0.0
        %2351 = vst [vmem:[#allocation2 + $0x148] sm:$0xf] 0.0
        %2352 = vst [vmem:[#allocation2 + $0x150] sm:$0xff] 0.0
        %2353 = vst [vmem:[#allocation2 + $0x158] sm:$0xff] 0.0
        %2354 = vst [vmem:[#allocation2 + $0x160] sm:$0xf] 0.0
        %2355 = vst [vmem:[#allocation2 + $0x168] sm:$0xff] 0.0
        %2356 = vst [vmem:[#allocation2 + $0x170] sm:$0xff] 0.0
        %2357 = vst [vmem:[#allocation2 + $0x178] sm:$0xf] 0.0
        %2358 = vst [vmem:[#allocation2 + $0x180] sm:$0xff] 0.0
        %2359 = vst [vmem:[#allocation2 + $0x188] sm:$0xff] 0.0
        %2360 = vst [vmem:[#allocation2 + $0x190] sm:$0xf] 0.0
        %2361 = vst [vmem:[#allocation2 + $0x198] sm:$0xff] 0.0
        %2362 = vst [vmem:[#allocation2 + $0x1a0] sm:$0xff] 0.0
        %2363 = vst [vmem:[#allocation2 + $0x1a8] sm:$0xf] 0.0
        %2364 = vst [vmem:[#allocation2 + $0x1b0] sm:$0xff] 0.0
        %2365 = vst [vmem:[#allocation2 + $0x1b8] sm:$0xff] 0.0
        %2366 = vst [vmem:[#allocation2 + $0x1c0] sm:$0xf] 0.0
        %2367 = vst [vmem:[#allocation2 + $0x1c8] sm:$0xff] 0.0
        %2368 = vst [vmem:[#allocation2 + $0x1d0] sm:$0xff] 0.0
        %2369 = vst [vmem:[#allocation2 + $0x1d8] sm:$0xf] 0.0
        %s2370 = scalar_lea.vmem [#allocation2], 48
        %2371 = vst [vmem:[%s2370 + $0x2] sm:$0xff] %v2278
        %2372 = vst [vmem:[%s2370 + $0xa] sm:$0xff] %v2279
        %2373 = vst [vmem:[%s2370 + $0x1a] sm:$0xff] %v2280
        %2374 = vst [vmem:[%s2370 + $0x22] sm:$0xff] %v2281
        %2375 = vst [vmem:[%s2370 + $0x32] sm:$0xff] %v2282
        %2376 = vst [vmem:[%s2370 + $0x3a] sm:$0xff] %v2283
        %2377 = vst [vmem:[%s2370 + $0x4a] sm:$0xff] %v2284
        %2378 = vst [vmem:[%s2370 + $0x52] sm:$0xff] %v2285
        %2379 = vst [vmem:[%s2370 + $0x62] sm:$0xff] %v2286
        %2380 = vst [vmem:[%s2370 + $0x6a] sm:$0xff] %v2287
        %2381 = vst [vmem:[%s2370 + $0x7a] sm:$0xff] %v2288
        %2382 = vst [vmem:[%s2370 + $0x82] sm:$0xff] %v2289
        %2383 = vst [vmem:[%s2370 + $0x92] sm:$0xff] %v2290
        %2384 = vst [vmem:[%s2370 + $0x9a] sm:$0xff] %v2291
        %2385 = vst [vmem:[%s2370 + $0xaa] sm:$0xff] %v2292
        %2386 = vst [vmem:[%s2370 + $0xb2] sm:$0xff] %v2293
        %2387 = vst [vmem:[%s2370 + $0xc2] sm:$0xff] %v2294
        %2388 = vst [vmem:[%s2370 + $0xca] sm:$0xff] %v2295
        %2389 = vst [vmem:[%s2370 + $0xda] sm:$0xff] %v2296
        %2390 = vst [vmem:[%s2370 + $0xe2] sm:$0xff] %v2297
        %2391 = vst [vmem:[%s2370 + $0xf2] sm:$0xff] %v2298
        %2392 = vst [vmem:[%s2370 + $0xfa] sm:$0xff] %v2299
        %2393 = vst [vmem:[%s2370 + $0x10a] sm:$0xff] %v2300
        %2394 = vst [vmem:[%s2370 + $0x112] sm:$0xff] %v2301
        %2395 = vst [vmem:[%s2370 + $0x122] sm:$0xff] %v2302
        %2396 = vst [vmem:[%s2370 + $0x12a] sm:$0xff] %v2303
        %2397 = vst [vmem:[%s2370 + $0x13a] sm:$0xff] %v2304
        %2398 = vst [vmem:[%s2370 + $0x142] sm:$0xff] %v2305
        %2399 = vst [vmem:[%s2370 + $0x152] sm:$0xff] %v2306
        %2400 = vst [vmem:[%s2370 + $0x15a] sm:$0xff] %v2307
        %2401 = vst [vmem:[%s2370 + $0x16a] sm:$0xff] %v2308
        %2402 = vst [vmem:[%s2370 + $0x172] sm:$0xff] %v2309
        %s2403 = scalar_lea.vmem [#allocation2], 24
        %v2404 = vld [vmem:[%s2403 + $0x1] sm:$0xff]
        %v2405 = vld [vmem:[%s2403 + $0x9] sm:$0xff]
        %v2406 = vld [vmem:[%s2403 + $0x19] sm:$0xff]
        %v2407 = vld [vmem:[%s2403 + $0x21] sm:$0xff]
        %v2408 = vld [vmem:[%s2403 + $0x31] sm:$0xff]
        %v2409 = vld [vmem:[%s2403 + $0x39] sm:$0xff]
        %v2410 = vld [vmem:[%s2403 + $0x49] sm:$0xff]
        %v2411 = vld [vmem:[%s2403 + $0x51] sm:$0xff]
        %v2412 = vld [vmem:[%s2403 + $0x61] sm:$0xff]
        %v2413 = vld [vmem:[%s2403 + $0x69] sm:$0xff]
        %v2414 = vld [vmem:[%s2403 + $0x79] sm:$0xff]
        %v2415 = vld [vmem:[%s2403 + $0x81] sm:$0xff]
        %v2416 = vld [vmem:[%s2403 + $0x91] sm:$0xff]
        %v2417 = vld [vmem:[%s2403 + $0x99] sm:$0xff]
        %v2418 = vld [vmem:[%s2403 + $0xa9] sm:$0xff]
        %v2419 = vld [vmem:[%s2403 + $0xb1] sm:$0xff]
        %v2420 = vld [vmem:[%s2403 + $0xc1] sm:$0xff]
        %v2421 = vld [vmem:[%s2403 + $0xc9] sm:$0xff]
        %v2422 = vld [vmem:[%s2403 + $0xd9] sm:$0xff]
        %v2423 = vld [vmem:[%s2403 + $0xe1] sm:$0xff]
        %v2424 = vld [vmem:[%s2403 + $0xf1] sm:$0xff]
        %v2425 = vld [vmem:[%s2403 + $0xf9] sm:$0xff]
        %v2426 = vld [vmem:[%s2403 + $0x109] sm:$0xff]
        %v2427 = vld [vmem:[%s2403 + $0x111] sm:$0xff]
        %v2428 = vld [vmem:[%s2403 + $0x121] sm:$0xff]
        %v2429 = vld [vmem:[%s2403 + $0x129] sm:$0xff]
        %v2430 = vld [vmem:[%s2403 + $0x139] sm:$0xff]
        %v2431 = vld [vmem:[%s2403 + $0x141] sm:$0xff]
        %v2432 = vld [vmem:[%s2403 + $0x151] sm:$0xff]
        %v2433 = vld [vmem:[%s2403 + $0x159] sm:$0xff]
        %v2434 = vld [vmem:[%s2403 + $0x169] sm:$0xff]
        %v2435 = vld [vmem:[%s2403 + $0x171] sm:$0xff]
        %v2436 = vld [vmem:[%s3] sm:$0x1]
        %v2437 = vlaneseq
        %v2438 = vshrl.u32 %v2437, 7
        %v2439 = vsub.s32 0, %v2438
        %v2440 = vrot.slane %v2436, %v2439
        %v2441 = vmul.f32 %v2404, %v2440
        %v2442 = vmul.f32 %v2405, %v2440
        %v2443 = vmul.f32 %v2406, %v2440
        %v2444 = vmul.f32 %v2407, %v2440
        %v2445 = vmul.f32 %v2408, %v2440
        %v2446 = vmul.f32 %v2409, %v2440
        %v2447 = vmul.f32 %v2410, %v2440
        %v2448 = vmul.f32 %v2411, %v2440
        %v2449 = vmul.f32 %v2412, %v2440
        %v2450 = vmul.f32 %v2413, %v2440
        %v2451 = vmul.f32 %v2414, %v2440
        %v2452 = vmul.f32 %v2415, %v2440
        %v2453 = vmul.f32 %v2416, %v2440
        %v2454 = vmul.f32 %v2417, %v2440
        %v2455 = vmul.f32 %v2418, %v2440
        %v2456 = vmul.f32 %v2419, %v2440
        %v2457 = vmul.f32 %v2420, %v2440
        %v2458 = vmul.f32 %v2421, %v2440
        %v2459 = vmul.f32 %v2422, %v2440
        %v2460 = vmul.f32 %v2423, %v2440
        %v2461 = vmul.f32 %v2424, %v2440
        %v2462 = vmul.f32 %v2425, %v2440
        %v2463 = vmul.f32 %v2426, %v2440
        %v2464 = vmul.f32 %v2427, %v2440
        %v2465 = vmul.f32 %v2428, %v2440
        %v2466 = vmul.f32 %v2429, %v2440
        %v2467 = vmul.f32 %v2430, %v2440
        %v2468 = vmul.f32 %v2431, %v2440
        %v2469 = vmul.f32 %v2432, %v2440
        %v2470 = vmul.f32 %v2433, %v2440
        %v2471 = vmul.f32 %v2434, %v2440
        %v2472 = vmul.f32 %v2435, %v2440
        %v2473 = vadd.f32 %v2441, 0.0
        %v2474 = vadd.f32 %v2442, 0.0
        %v2475 = vadd.f32 %v2443, 0.0
        %v2476 = vadd.f32 %v2444, 0.0
        %v2477 = vadd.f32 %v2445, 0.0
        %v2478 = vadd.f32 %v2446, 0.0
        %v2479 = vadd.f32 %v2447, 0.0
        %v2480 = vadd.f32 %v2448, 0.0
        %v2481 = vadd.f32 %v2449, 0.0
        %v2482 = vadd.f32 %v2450, 0.0
        %v2483 = vadd.f32 %v2451, 0.0
        %v2484 = vadd.f32 %v2452, 0.0
        %v2485 = vadd.f32 %v2453, 0.0
        %v2486 = vadd.f32 %v2454, 0.0
        %v2487 = vadd.f32 %v2455, 0.0
        %v2488 = vadd.f32 %v2456, 0.0
        %v2489 = vadd.f32 %v2457, 0.0
        %v2490 = vadd.f32 %v2458, 0.0
        %v2491 = vadd.f32 %v2459, 0.0
        %v2492 = vadd.f32 %v2460, 0.0
        %v2493 = vadd.f32 %v2461, 0.0
        %v2494 = vadd.f32 %v2462, 0.0
        %v2495 = vadd.f32 %v2463, 0.0
        %v2496 = vadd.f32 %v2464, 0.0
        %v2497 = vadd.f32 %v2465, 0.0
        %v2498 = vadd.f32 %v2466, 0.0
        %v2499 = vadd.f32 %v2467, 0.0
        %v2500 = vadd.f32 %v2468, 0.0
        %v2501 = vadd.f32 %v2469, 0.0
        %v2502 = vadd.f32 %v2470, 0.0
        %v2503 = vadd.f32 %v2471, 0.0
        %v2504 = vadd.f32 %v2472, 0.0
        %v2505 = vld [vmem:[%s2403 + $0x2] sm:$0xff]
        %v2506 = vld [vmem:[%s2403 + $0xa] sm:$0xff]
        %v2507 = vld [vmem:[%s2403 + $0x1a] sm:$0xff]
        %v2508 = vld [vmem:[%s2403 + $0x22] sm:$0xff]
        %v2509 = vld [vmem:[%s2403 + $0x32] sm:$0xff]
        %v2510 = vld [vmem:[%s2403 + $0x3a] sm:$0xff]
        %v2511 = vld [vmem:[%s2403 + $0x4a] sm:$0xff]
        %v2512 = vld [vmem:[%s2403 + $0x52] sm:$0xff]
        %v2513 = vld [vmem:[%s2403 + $0x62] sm:$0xff]
        %v2514 = vld [vmem:[%s2403 + $0x6a] sm:$0xff]
        %v2515 = vld [vmem:[%s2403 + $0x7a] sm:$0xff]
        %v2516 = vld [vmem:[%s2403 + $0x82] sm:$0xff]
        %v2517 = vld [vmem:[%s2403 + $0x92] sm:$0xff]
        %v2518 = vld [vmem:[%s2403 + $0x9a] sm:$0xff]
        %v2519 = vld [vmem:[%s2403 + $0xaa] sm:$0xff]
        %v2520 = vld [vmem:[%s2403 + $0xb2] sm:$0xff]
        %v2521 = vld [vmem:[%s2403 + $0xc2] sm:$0xff]
        %v2522 = vld [vmem:[%s2403 + $0xca] sm:$0xff]
        %v2523 = vld [vmem:[%s2403 + $0xda] sm:$0xff]
        %v2524 = vld [vmem:[%s2403 + $0xe2] sm:$0xff]
        %v2525 = vld [vmem:[%s2403 + $0xf2] sm:$0xff]
        %v2526 = vld [vmem:[%s2403 + $0xfa] sm:$0xff]
        %v2527 = vld [vmem:[%s2403 + $0x10a] sm:$0xff]
        %v2528 = vld [vmem:[%s2403 + $0x112] sm:$0xff]
        %v2529 = vld [vmem:[%s2403 + $0x122] sm:$0xff]
        %v2530 = vld [vmem:[%s2403 + $0x12a] sm:$0xff]
        %v2531 = vld [vmem:[%s2403 + $0x13a] sm:$0xff]
        %v2532 = vld [vmem:[%s2403 + $0x142] sm:$0xff]
        %v2533 = vld [vmem:[%s2403 + $0x152] sm:$0xff]
        %v2534 = vld [vmem:[%s2403 + $0x15a] sm:$0xff]
        %v2535 = vld [vmem:[%s2403 + $0x16a] sm:$0xff]
        %v2536 = vld [vmem:[%s2403 + $0x172] sm:$0xff]
        %v2537 = vld [vmem:[%s3 + $0x1] sm:$0x1]
        %v2538 = vlaneseq
        %v2539 = vshrl.u32 %v2538, 7
        %v2540 = vsub.s32 0, %v2539
        %v2541 = vrot.slane %v2537, %v2540
        %v2542 = vmul.f32 %v2505, %v2541
        %v2543 = vmul.f32 %v2506, %v2541
        %v2544 = vmul.f32 %v2507, %v2541
        %v2545 = vmul.f32 %v2508, %v2541
        %v2546 = vmul.f32 %v2509, %v2541
        %v2547 = vmul.f32 %v2510, %v2541
        %v2548 = vmul.f32 %v2511, %v2541
        %v2549 = vmul.f32 %v2512, %v2541
        %v2550 = vmul.f32 %v2513, %v2541
        %v2551 = vmul.f32 %v2514, %v2541
        %v2552 = vmul.f32 %v2515, %v2541
        %v2553 = vmul.f32 %v2516, %v2541
        %v2554 = vmul.f32 %v2517, %v2541
        %v2555 = vmul.f32 %v2518, %v2541
        %v2556 = vmul.f32 %v2519, %v2541
        %v2557 = vmul.f32 %v2520, %v2541
        %v2558 = vmul.f32 %v2521, %v2541
        %v2559 = vmul.f32 %v2522, %v2541
        %v2560 = vmul.f32 %v2523, %v2541
        %v2561 = vmul.f32 %v2524, %v2541
        %v2562 = vmul.f32 %v2525, %v2541
        %v2563 = vmul.f32 %v2526, %v2541
        %v2564 = vmul.f32 %v2527, %v2541
        %v2565 = vmul.f32 %v2528, %v2541
        %v2566 = vmul.f32 %v2529, %v2541
        %v2567 = vmul.f32 %v2530, %v2541
        %v2568 = vmul.f32 %v2531, %v2541
        %v2569 = vmul.f32 %v2532, %v2541
        %v2570 = vmul.f32 %v2533, %v2541
        %v2571 = vmul.f32 %v2534, %v2541
        %v2572 = vmul.f32 %v2535, %v2541
        %v2573 = vmul.f32 %v2536, %v2541
        %v2574 = vadd.f32 %v2473, %v2542
        %v2575 = vadd.f32 %v2474, %v2543
        %v2576 = vadd.f32 %v2475, %v2544
        %v2577 = vadd.f32 %v2476, %v2545
        %v2578 = vadd.f32 %v2477, %v2546
        %v2579 = vadd.f32 %v2478, %v2547
        %v2580 = vadd.f32 %v2479, %v2548
        %v2581 = vadd.f32 %v2480, %v2549
        %v2582 = vadd.f32 %v2481, %v2550
        %v2583 = vadd.f32 %v2482, %v2551
        %v2584 = vadd.f32 %v2483, %v2552
        %v2585 = vadd.f32 %v2484, %v2553
        %v2586 = vadd.f32 %v2485, %v2554
        %v2587 = vadd.f32 %v2486, %v2555
        %v2588 = vadd.f32 %v2487, %v2556
        %v2589 = vadd.f32 %v2488, %v2557
        %v2590 = vadd.f32 %v2489, %v2558
        %v2591 = vadd.f32 %v2490, %v2559
        %v2592 = vadd.f32 %v2491, %v2560
        %v2593 = vadd.f32 %v2492, %v2561
        %v2594 = vadd.f32 %v2493, %v2562
        %v2595 = vadd.f32 %v2494, %v2563
        %v2596 = vadd.f32 %v2495, %v2564
        %v2597 = vadd.f32 %v2496, %v2565
        %v2598 = vadd.f32 %v2497, %v2566
        %v2599 = vadd.f32 %v2498, %v2567
        %v2600 = vadd.f32 %v2499, %v2568
        %v2601 = vadd.f32 %v2500, %v2569
        %v2602 = vadd.f32 %v2501, %v2570
        %v2603 = vadd.f32 %v2502, %v2571
        %v2604 = vadd.f32 %v2503, %v2572
        %v2605 = vadd.f32 %v2504, %v2573
        %v2606 = vld [vmem:[%s2403 + $0x3] sm:$0xff]
        %v2607 = vld [vmem:[%s2403 + $0xb] sm:$0xff]
        %v2608 = vld [vmem:[%s2403 + $0x1b] sm:$0xff]
        %v2609 = vld [vmem:[%s2403 + $0x23] sm:$0xff]
        %v2610 = vld [vmem:[%s2403 + $0x33] sm:$0xff]
        %v2611 = vld [vmem:[%s2403 + $0x3b] sm:$0xff]
        %v2612 = vld [vmem:[%s2403 + $0x4b] sm:$0xff]
        %v2613 = vld [vmem:[%s2403 + $0x53] sm:$0xff]
        %v2614 = vld [vmem:[%s2403 + $0x63] sm:$0xff]
        %v2615 = vld [vmem:[%s2403 + $0x6b] sm:$0xff]
        %v2616 = vld [vmem:[%s2403 + $0x7b] sm:$0xff]
        %v2617 = vld [vmem:[%s2403 + $0x83] sm:$0xff]
        %v2618 = vld [vmem:[%s2403 + $0x93] sm:$0xff]
        %v2619 = vld [vmem:[%s2403 + $0x9b] sm:$0xff]
        %v2620 = vld [vmem:[%s2403 + $0xab] sm:$0xff]
        %v2621 = vld [vmem:[%s2403 + $0xb3] sm:$0xff]
        %v2622 = vld [vmem:[%s2403 + $0xc3] sm:$0xff]
        %v2623 = vld [vmem:[%s2403 + $0xcb] sm:$0xff]
        %v2624 = vld [vmem:[%s2403 + $0xdb] sm:$0xff]
        %v2625 = vld [vmem:[%s2403 + $0xe3] sm:$0xff]
        %v2626 = vld [vmem:[%s2403 + $0xf3] sm:$0xff]
        %v2627 = vld [vmem:[%s2403 + $0xfb] sm:$0xff]
        %v2628 = vld [vmem:[%s2403 + $0x10b] sm:$0xff]
        %v2629 = vld [vmem:[%s2403 + $0x113] sm:$0xff]
        %v2630 = vld [vmem:[%s2403 + $0x123] sm:$0xff]
        %v2631 = vld [vmem:[%s2403 + $0x12b] sm:$0xff]
        %v2632 = vld [vmem:[%s2403 + $0x13b] sm:$0xff]
        %v2633 = vld [vmem:[%s2403 + $0x143] sm:$0xff]
        %v2634 = vld [vmem:[%s2403 + $0x153] sm:$0xff]
        %v2635 = vld [vmem:[%s2403 + $0x15b] sm:$0xff]
        %v2636 = vld [vmem:[%s2403 + $0x16b] sm:$0xff]
        %v2637 = vld [vmem:[%s2403 + $0x173] sm:$0xff]
        %v2638 = vld [vmem:[%s3 + $0x2] sm:$0x1]
        %v2639 = vlaneseq
        %v2640 = vshrl.u32 %v2639, 7
        %v2641 = vsub.s32 0, %v2640
        %v2642 = vrot.slane %v2638, %v2641
        %v2643 = vmul.f32 %v2606, %v2642
        %v2644 = vmul.f32 %v2607, %v2642
        %v2645 = vmul.f32 %v2608, %v2642
        %v2646 = vmul.f32 %v2609, %v2642
        %v2647 = vmul.f32 %v2610, %v2642
        %v2648 = vmul.f32 %v2611, %v2642
        %v2649 = vmul.f32 %v2612, %v2642
        %v2650 = vmul.f32 %v2613, %v2642
        %v2651 = vmul.f32 %v2614, %v2642
        %v2652 = vmul.f32 %v2615, %v2642
        %v2653 = vmul.f32 %v2616, %v2642
        %v2654 = vmul.f32 %v2617, %v2642
        %v2655 = vmul.f32 %v2618, %v2642
        %v2656 = vmul.f32 %v2619, %v2642
        %v2657 = vmul.f32 %v2620, %v2642
        %v2658 = vmul.f32 %v2621, %v2642
        %v2659 = vmul.f32 %v2622, %v2642
        %v2660 = vmul.f32 %v2623, %v2642
        %v2661 = vmul.f32 %v2624, %v2642
        %v2662 = vmul.f32 %v2625, %v2642
        %v2663 = vmul.f32 %v2626, %v2642
        %v2664 = vmul.f32 %v2627, %v2642
        %v2665 = vmul.f32 %v2628, %v2642
        %v2666 = vmul.f32 %v2629, %v2642
        %v2667 = vmul.f32 %v2630, %v2642
        %v2668 = vmul.f32 %v2631, %v2642
        %v2669 = vmul.f32 %v2632, %v2642
        %v2670 = vmul.f32 %v2633, %v2642
        %v2671 = vmul.f32 %v2634, %v2642
        %v2672 = vmul.f32 %v2635, %v2642
        %v2673 = vmul.f32 %v2636, %v2642
        %v2674 = vmul.f32 %v2637, %v2642
        %v2675 = vadd.f32 %v2574, %v2643
        %v2676 = vadd.f32 %v2575, %v2644
        %v2677 = vadd.f32 %v2576, %v2645
        %v2678 = vadd.f32 %v2577, %v2646
        %v2679 = vadd.f32 %v2578, %v2647
        %v2680 = vadd.f32 %v2579, %v2648
        %v2681 = vadd.f32 %v2580, %v2649
        %v2682 = vadd.f32 %v2581, %v2650
        %v2683 = vadd.f32 %v2582, %v2651
        %v2684 = vadd.f32 %v2583, %v2652
        %v2685 = vadd.f32 %v2584, %v2653
        %v2686 = vadd.f32 %v2585, %v2654
        %v2687 = vadd.f32 %v2586, %v2655
        %v2688 = vadd.f32 %v2587, %v2656
        %v2689 = vadd.f32 %v2588, %v2657
        %v2690 = vadd.f32 %v2589, %v2658
        %v2691 = vadd.f32 %v2590, %v2659
        %v2692 = vadd.f32 %v2591, %v2660
        %v2693 = vadd.f32 %v2592, %v2661
        %v2694 = vadd.f32 %v2593, %v2662
        %v2695 = vadd.f32 %v2594, %v2663
        %v2696 = vadd.f32 %v2595, %v2664
        %v2697 = vadd.f32 %v2596, %v2665
        %v2698 = vadd.f32 %v2597, %v2666
        %v2699 = vadd.f32 %v2598, %v2667
        %v2700 = vadd.f32 %v2599, %v2668
        %v2701 = vadd.f32 %v2600, %v2669
        %v2702 = vadd.f32 %v2601, %v2670
        %v2703 = vadd.f32 %v2602, %v2671
        %v2704 = vadd.f32 %v2603, %v2672
        %v2705 = vadd.f32 %v2604, %v2673
        %v2706 = vadd.f32 %v2605, %v2674
        %v2707 = vld [vmem:[%s2370 + $0x1] sm:$0xff]
        %v2708 = vld [vmem:[%s2370 + $0x9] sm:$0xff]
        %v2709 = vld [vmem:[%s2370 + $0x19] sm:$0xff]
        %v2710 = vld [vmem:[%s2370 + $0x21] sm:$0xff]
        %v2711 = vld [vmem:[%s2370 + $0x31] sm:$0xff]
        %v2712 = vld [vmem:[%s2370 + $0x39] sm:$0xff]
        %v2713 = vld [vmem:[%s2370 + $0x49] sm:$0xff]
        %v2714 = vld [vmem:[%s2370 + $0x51] sm:$0xff]
        %v2715 = vld [vmem:[%s2370 + $0x61] sm:$0xff]
        %v2716 = vld [vmem:[%s2370 + $0x69] sm:$0xff]
        %v2717 = vld [vmem:[%s2370 + $0x79] sm:$0xff]
        %v2718 = vld [vmem:[%s2370 + $0x81] sm:$0xff]
        %v2719 = vld [vmem:[%s2370 + $0x91] sm:$0xff]
        %v2720 = vld [vmem:[%s2370 + $0x99] sm:$0xff]
        %v2721 = vld [vmem:[%s2370 + $0xa9] sm:$0xff]
        %v2722 = vld [vmem:[%s2370 + $0xb1] sm:$0xff]
        %v2723 = vld [vmem:[%s2370 + $0xc1] sm:$0xff]
        %v2724 = vld [vmem:[%s2370 + $0xc9] sm:$0xff]
        %v2725 = vld [vmem:[%s2370 + $0xd9] sm:$0xff]
        %v2726 = vld [vmem:[%s2370 + $0xe1] sm:$0xff]
        %v2727 = vld [vmem:[%s2370 + $0xf1] sm:$0xff]
        %v2728 = vld [vmem:[%s2370 + $0xf9] sm:$0xff]
        %v2729 = vld [vmem:[%s2370 + $0x109] sm:$0xff]
        %v2730 = vld [vmem:[%s2370 + $0x111] sm:$0xff]
        %v2731 = vld [vmem:[%s2370 + $0x121] sm:$0xff]
        %v2732 = vld [vmem:[%s2370 + $0x129] sm:$0xff]
        %v2733 = vld [vmem:[%s2370 + $0x139] sm:$0xff]
        %v2734 = vld [vmem:[%s2370 + $0x141] sm:$0xff]
        %v2735 = vld [vmem:[%s2370 + $0x151] sm:$0xff]
        %v2736 = vld [vmem:[%s2370 + $0x159] sm:$0xff]
        %v2737 = vld [vmem:[%s2370 + $0x169] sm:$0xff]
        %v2738 = vld [vmem:[%s2370 + $0x171] sm:$0xff]
        %s2739 = scalar_lea.vmem %s3, 4
        %v2740 = vld [vmem:[%s2739] sm:$0x1]
        %v2741 = vlaneseq
        %v2742 = vshrl.u32 %v2741, 7
        %v2743 = vsub.s32 0, %v2742
        %v2744 = vrot.slane %v2740, %v2743
        %v2745 = vmul.f32 %v2707, %v2744
        %v2746 = vmul.f32 %v2708, %v2744
        %v2747 = vmul.f32 %v2709, %v2744
        %v2748 = vmul.f32 %v2710, %v2744
        %v2749 = vmul.f32 %v2711, %v2744
        %v2750 = vmul.f32 %v2712, %v2744
        %v2751 = vmul.f32 %v2713, %v2744
        %v2752 = vmul.f32 %v2714, %v2744
        %v2753 = vmul.f32 %v2715, %v2744
        %v2754 = vmul.f32 %v2716, %v2744
        %v2755 = vmul.f32 %v2717, %v2744
        %v2756 = vmul.f32 %v2718, %v2744
        %v2757 = vmul.f32 %v2719, %v2744
        %v2758 = vmul.f32 %v2720, %v2744
        %v2759 = vmul.f32 %v2721, %v2744
        %v2760 = vmul.f32 %v2722, %v2744
        %v2761 = vmul.f32 %v2723, %v2744
        %v2762 = vmul.f32 %v2724, %v2744
        %v2763 = vmul.f32 %v2725, %v2744
        %v2764 = vmul.f32 %v2726, %v2744
        %v2765 = vmul.f32 %v2727, %v2744
        %v2766 = vmul.f32 %v2728, %v2744
        %v2767 = vmul.f32 %v2729, %v2744
        %v2768 = vmul.f32 %v2730, %v2744
        %v2769 = vmul.f32 %v2731, %v2744
        %v2770 = vmul.f32 %v2732, %v2744
        %v2771 = vmul.f32 %v2733, %v2744
        %v2772 = vmul.f32 %v2734, %v2744
        %v2773 = vmul.f32 %v2735, %v2744
        %v2774 = vmul.f32 %v2736, %v2744
        %v2775 = vmul.f32 %v2737, %v2744
        %v2776 = vmul.f32 %v2738, %v2744
        %v2777 = vadd.f32 %v2675, %v2745
        %v2778 = vadd.f32 %v2676, %v2746
        %v2779 = vadd.f32 %v2677, %v2747
        %v2780 = vadd.f32 %v2678, %v2748
        %v2781 = vadd.f32 %v2679, %v2749
        %v2782 = vadd.f32 %v2680, %v2750
        %v2783 = vadd.f32 %v2681, %v2751
        %v2784 = vadd.f32 %v2682, %v2752
        %v2785 = vadd.f32 %v2683, %v2753
        %v2786 = vadd.f32 %v2684, %v2754
        %v2787 = vadd.f32 %v2685, %v2755
        %v2788 = vadd.f32 %v2686, %v2756
        %v2789 = vadd.f32 %v2687, %v2757
        %v2790 = vadd.f32 %v2688, %v2758
        %v2791 = vadd.f32 %v2689, %v2759
        %v2792 = vadd.f32 %v2690, %v2760
        %v2793 = vadd.f32 %v2691, %v2761
        %v2794 = vadd.f32 %v2692, %v2762
        %v2795 = vadd.f32 %v2693, %v2763
        %v2796 = vadd.f32 %v2694, %v2764
        %v2797 = vadd.f32 %v2695, %v2765
        %v2798 = vadd.f32 %v2696, %v2766
        %v2799 = vadd.f32 %v2697, %v2767
        %v2800 = vadd.f32 %v2698, %v2768
        %v2801 = vadd.f32 %v2699, %v2769
        %v2802 = vadd.f32 %v2700, %v2770
        %v2803 = vadd.f32 %v2701, %v2771
        %v2804 = vadd.f32 %v2702, %v2772
        %v2805 = vadd.f32 %v2703, %v2773
        %v2806 = vadd.f32 %v2704, %v2774
        %v2807 = vadd.f32 %v2705, %v2775
        %v2808 = vadd.f32 %v2706, %v2776
        %v2809 = vld [vmem:[%s2370 + $0x2] sm:$0xff]
        %v2810 = vld [vmem:[%s2370 + $0xa] sm:$0xff]
        %v2811 = vld [vmem:[%s2370 + $0x1a] sm:$0xff]
        %v2812 = vld [vmem:[%s2370 + $0x22] sm:$0xff]
        %v2813 = vld [vmem:[%s2370 + $0x32] sm:$0xff]
        %v2814 = vld [vmem:[%s2370 + $0x3a] sm:$0xff]
        %v2815 = vld [vmem:[%s2370 + $0x4a] sm:$0xff]
        %v2816 = vld [vmem:[%s2370 + $0x52] sm:$0xff]
        %v2817 = vld [vmem:[%s2370 + $0x62] sm:$0xff]
        %v2818 = vld [vmem:[%s2370 + $0x6a] sm:$0xff]
        %v2819 = vld [vmem:[%s2370 + $0x7a] sm:$0xff]
        %v2820 = vld [vmem:[%s2370 + $0x82] sm:$0xff]
        %v2821 = vld [vmem:[%s2370 + $0x92] sm:$0xff]
        %v2822 = vld [vmem:[%s2370 + $0x9a] sm:$0xff]
        %v2823 = vld [vmem:[%s2370 + $0xaa] sm:$0xff]
        %v2824 = vld [vmem:[%s2370 + $0xb2] sm:$0xff]
        %v2825 = vld [vmem:[%s2370 + $0xc2] sm:$0xff]
        %v2826 = vld [vmem:[%s2370 + $0xca] sm:$0xff]
        %v2827 = vld [vmem:[%s2370 + $0xda] sm:$0xff]
        %v2828 = vld [vmem:[%s2370 + $0xe2] sm:$0xff]
        %v2829 = vld [vmem:[%s2370 + $0xf2] sm:$0xff]
        %v2830 = vld [vmem:[%s2370 + $0xfa] sm:$0xff]
        %v2831 = vld [vmem:[%s2370 + $0x10a] sm:$0xff]
        %v2832 = vld [vmem:[%s2370 + $0x112] sm:$0xff]
        %v2833 = vld [vmem:[%s2370 + $0x122] sm:$0xff]
        %v2834 = vld [vmem:[%s2370 + $0x12a] sm:$0xff]
        %v2835 = vld [vmem:[%s2370 + $0x13a] sm:$0xff]
        %v2836 = vld [vmem:[%s2370 + $0x142] sm:$0xff]
        %v2837 = vld [vmem:[%s2370 + $0x152] sm:$0xff]
        %v2838 = vld [vmem:[%s2370 + $0x15a] sm:$0xff]
        %v2839 = vld [vmem:[%s2370 + $0x16a] sm:$0xff]
        %v2840 = vld [vmem:[%s2370 + $0x172] sm:$0xff]
        %v2841 = vld [vmem:[%s2739 + $0x1] sm:$0x1]
        %v2842 = vlaneseq
        %v2843 = vshrl.u32 %v2842, 7
        %v2844 = vsub.s32 0, %v2843
        %v2845 = vrot.slane %v2841, %v2844
        %v2846 = vmul.f32 %v2809, %v2845
        %v2847 = vmul.f32 %v2810, %v2845
        %v2848 = vmul.f32 %v2811, %v2845
        %v2849 = vmul.f32 %v2812, %v2845
        %v2850 = vmul.f32 %v2813, %v2845
        %v2851 = vmul.f32 %v2814, %v2845
        %v2852 = vmul.f32 %v2815, %v2845
        %v2853 = vmul.f32 %v2816, %v2845
        %v2854 = vmul.f32 %v2817, %v2845
        %v2855 = vmul.f32 %v2818, %v2845
        %v2856 = vmul.f32 %v2819, %v2845
        %v2857 = vmul.f32 %v2820, %v2845
        %v2858 = vmul.f32 %v2821, %v2845
        %v2859 = vmul.f32 %v2822, %v2845
        %v2860 = vmul.f32 %v2823, %v2845
        %v2861 = vmul.f32 %v2824, %v2845
        %v2862 = vmul.f32 %v2825, %v2845
        %v2863 = vmul.f32 %v2826, %v2845
        %v2864 = vmul.f32 %v2827, %v2845
        %v2865 = vmul.f32 %v2828, %v2845
        %v2866 = vmul.f32 %v2829, %v2845
        %v2867 = vmul.f32 %v2830, %v2845
        %v2868 = vmul.f32 %v2831, %v2845
        %v2869 = vmul.f32 %v2832, %v2845
        %v2870 = vmul.f32 %v2833, %v2845
        %v2871 = vmul.f32 %v2834, %v2845
        %v2872 = vmul.f32 %v2835, %v2845
        %v2873 = vmul.f32 %v2836, %v2845
        %v2874 = vmul.f32 %v2837, %v2845
        %v2875 = vmul.f32 %v2838, %v2845
        %v2876 = vmul.f32 %v2839, %v2845
        %v2877 = vmul.f32 %v2840, %v2845
        %v2878 = vadd.f32 %v2777, %v2846
        %v2879 = vadd.f32 %v2778, %v2847
        %v2880 = vadd.f32 %v2779, %v2848
        %v2881 = vadd.f32 %v2780, %v2849
        %v2882 = vadd.f32 %v2781, %v2850
        %v2883 = vadd.f32 %v2782, %v2851
        %v2884 = vadd.f32 %v2783, %v2852
        %v2885 = vadd.f32 %v2784, %v2853
        %v2886 = vadd.f32 %v2785, %v2854
        %v2887 = vadd.f32 %v2786, %v2855
        %v2888 = vadd.f32 %v2787, %v2856
        %v2889 = vadd.f32 %v2788, %v2857
        %v2890 = vadd.f32 %v2789, %v2858
        %v2891 = vadd.f32 %v2790, %v2859
        %v2892 = vadd.f32 %v2791, %v2860
        %v2893 = vadd.f32 %v2792, %v2861
        %v2894 = vadd.f32 %v2793, %v2862
        %v2895 = vadd.f32 %v2794, %v2863
        %v2896 = vadd.f32 %v2795, %v2864
        %v2897 = vadd.f32 %v2796, %v2865
        %v2898 = vadd.f32 %v2797, %v2866
        %v2899 = vadd.f32 %v2798, %v2867
        %v2900 = vadd.f32 %v2799, %v2868
        %v2901 = vadd.f32 %v2800, %v2869
        %v2902 = vadd.f32 %v2801, %v2870
        %v2903 = vadd.f32 %v2802, %v2871
        %v2904 = vadd.f32 %v2803, %v2872
        %v2905 = vadd.f32 %v2804, %v2873
        %v2906 = vadd.f32 %v2805, %v2874
        %v2907 = vadd.f32 %v2806, %v2875
        %v2908 = vadd.f32 %v2807, %v2876
        %v2909 = vadd.f32 %v2808, %v2877
        %v2910 = vld [vmem:[%s2370 + $0x3] sm:$0xff]
        %v2911 = vld [vmem:[%s2370 + $0xb] sm:$0xff]
        %v2912 = vld [vmem:[%s2370 + $0x1b] sm:$0xff]
        %v2913 = vld [vmem:[%s2370 + $0x23] sm:$0xff]
        %v2914 = vld [vmem:[%s2370 + $0x33] sm:$0xff]
        %v2915 = vld [vmem:[%s2370 + $0x3b] sm:$0xff]
        %v2916 = vld [vmem:[%s2370 + $0x4b] sm:$0xff]
        %v2917 = vld [vmem:[%s2370 + $0x53] sm:$0xff]
        %v2918 = vld [vmem:[%s2370 + $0x63] sm:$0xff]
        %v2919 = vld [vmem:[%s2370 + $0x6b] sm:$0xff]
        %v2920 = vld [vmem:[%s2370 + $0x7b] sm:$0xff]
        %v2921 = vld [vmem:[%s2370 + $0x83] sm:$0xff]
        %v2922 = vld [vmem:[%s2370 + $0x93] sm:$0xff]
        %v2923 = vld [vmem:[%s2370 + $0x9b] sm:$0xff]
        %v2924 = vld [vmem:[%s2370 + $0xab] sm:$0xff]
        %v2925 = vld [vmem:[%s2370 + $0xb3] sm:$0xff]
        %v2926 = vld [vmem:[%s2370 + $0xc3] sm:$0xff]
        %v2927 = vld [vmem:[%s2370 + $0xcb] sm:$0xff]
        %v2928 = vld [vmem:[%s2370 + $0xdb] sm:$0xff]
        %v2929 = vld [vmem:[%s2370 + $0xe3] sm:$0xff]
        %v2930 = vld [vmem:[%s2370 + $0xf3] sm:$0xff]
        %v2931 = vld [vmem:[%s2370 + $0xfb] sm:$0xff]
        %v2932 = vld [vmem:[%s2370 + $0x10b] sm:$0xff]
        %v2933 = vld [vmem:[%s2370 + $0x113] sm:$0xff]
        %v2934 = vld [vmem:[%s2370 + $0x123] sm:$0xff]
        %v2935 = vld [vmem:[%s2370 + $0x12b] sm:$0xff]
        %v2936 = vld [vmem:[%s2370 + $0x13b] sm:$0xff]
        %v2937 = vld [vmem:[%s2370 + $0x143] sm:$0xff]
        %v2938 = vld [vmem:[%s2370 + $0x153] sm:$0xff]
        %v2939 = vld [vmem:[%s2370 + $0x15b] sm:$0xff]
        %v2940 = vld [vmem:[%s2370 + $0x16b] sm:$0xff]
        %v2941 = vld [vmem:[%s2370 + $0x173] sm:$0xff]
        %v2942 = vld [vmem:[%s2739 + $0x2] sm:$0x1]
        %v2943 = vlaneseq
        %v2944 = vshrl.u32 %v2943, 7
        %v2945 = vsub.s32 0, %v2944
        %v2946 = vrot.slane %v2942, %v2945
        %v2947 = vmul.f32 %v2910, %v2946
        %v2948 = vmul.f32 %v2911, %v2946
        %v2949 = vmul.f32 %v2912, %v2946
        %v2950 = vmul.f32 %v2913, %v2946
        %v2951 = vmul.f32 %v2914, %v2946
        %v2952 = vmul.f32 %v2915, %v2946
        %v2953 = vmul.f32 %v2916, %v2946
        %v2954 = vmul.f32 %v2917, %v2946
        %v2955 = vmul.f32 %v2918, %v2946
        %v2956 = vmul.f32 %v2919, %v2946
        %v2957 = vmul.f32 %v2920, %v2946
        %v2958 = vmul.f32 %v2921, %v2946
        %v2959 = vmul.f32 %v2922, %v2946
        %v2960 = vmul.f32 %v2923, %v2946
        %v2961 = vmul.f32 %v2924, %v2946
        %v2962 = vmul.f32 %v2925, %v2946
        %v2963 = vmul.f32 %v2926, %v2946
        %v2964 = vmul.f32 %v2927, %v2946
        %v2965 = vmul.f32 %v2928, %v2946
        %v2966 = vmul.f32 %v2929, %v2946
        %v2967 = vmul.f32 %v2930, %v2946
        %v2968 = vmul.f32 %v2931, %v2946
        %v2969 = vmul.f32 %v2932, %v2946
        %v2970 = vmul.f32 %v2933, %v2946
        %v2971 = vmul.f32 %v2934, %v2946
        %v2972 = vmul.f32 %v2935, %v2946
        %v2973 = vmul.f32 %v2936, %v2946
        %v2974 = vmul.f32 %v2937, %v2946
        %v2975 = vmul.f32 %v2938, %v2946
        %v2976 = vmul.f32 %v2939, %v2946
        %v2977 = vmul.f32 %v2940, %v2946
        %v2978 = vmul.f32 %v2941, %v2946
        %v2979 = vadd.f32 %v2878, %v2947
        %v2980 = vadd.f32 %v2879, %v2948
        %v2981 = vadd.f32 %v2880, %v2949
        %v2982 = vadd.f32 %v2881, %v2950
        %v2983 = vadd.f32 %v2882, %v2951
        %v2984 = vadd.f32 %v2883, %v2952
        %v2985 = vadd.f32 %v2884, %v2953
        %v2986 = vadd.f32 %v2885, %v2954
        %v2987 = vadd.f32 %v2886, %v2955
        %v2988 = vadd.f32 %v2887, %v2956
        %v2989 = vadd.f32 %v2888, %v2957
        %v2990 = vadd.f32 %v2889, %v2958
        %v2991 = vadd.f32 %v2890, %v2959
        %v2992 = vadd.f32 %v2891, %v2960
        %v2993 = vadd.f32 %v2892, %v2961
        %v2994 = vadd.f32 %v2893, %v2962
        %v2995 = vadd.f32 %v2894, %v2963
        %v2996 = vadd.f32 %v2895, %v2964
        %v2997 = vadd.f32 %v2896, %v2965
        %v2998 = vadd.f32 %v2897, %v2966
        %v2999 = vadd.f32 %v2898, %v2967
        %v3000 = vadd.f32 %v2899, %v2968
        %v3001 = vadd.f32 %v2900, %v2969
        %v3002 = vadd.f32 %v2901, %v2970
        %v3003 = vadd.f32 %v2902, %v2971
        %v3004 = vadd.f32 %v2903, %v2972
        %v3005 = vadd.f32 %v2904, %v2973
        %v3006 = vadd.f32 %v2905, %v2974
        %v3007 = vadd.f32 %v2906, %v2975
        %v3008 = vadd.f32 %v2907, %v2976
        %v3009 = vadd.f32 %v2908, %v2977
        %v3010 = vadd.f32 %v2909, %v2978
        %s3011 = scalar_lea.vmem [#allocation2], 72
        %v3012 = vld [vmem:[%s3011 + $0x1] sm:$0xff]
        %v3013 = vld [vmem:[%s3011 + $0x9] sm:$0xff]
        %v3014 = vld [vmem:[%s3011 + $0x19] sm:$0xff]
        %v3015 = vld [vmem:[%s3011 + $0x21] sm:$0xff]
        %v3016 = vld [vmem:[%s3011 + $0x31] sm:$0xff]
        %v3017 = vld [vmem:[%s3011 + $0x39] sm:$0xff]
        %v3018 = vld [vmem:[%s3011 + $0x49] sm:$0xff]
        %v3019 = vld [vmem:[%s3011 + $0x51] sm:$0xff]
        %v3020 = vld [vmem:[%s3011 + $0x61] sm:$0xff]
        %v3021 = vld [vmem:[%s3011 + $0x69] sm:$0xff]
        %v3022 = vld [vmem:[%s3011 + $0x79] sm:$0xff]
        %v3023 = vld [vmem:[%s3011 + $0x81] sm:$0xff]
        %v3024 = vld [vmem:[%s3011 + $0x91] sm:$0xff]
        %v3025 = vld [vmem:[%s3011 + $0x99] sm:$0xff]
        %v3026 = vld [vmem:[%s3011 + $0xa9] sm:$0xff]
        %v3027 = vld [vmem:[%s3011 + $0xb1] sm:$0xff]
        %v3028 = vld [vmem:[%s3011 + $0xc1] sm:$0xff]
        %v3029 = vld [vmem:[%s3011 + $0xc9] sm:$0xff]
        %v3030 = vld [vmem:[%s3011 + $0xd9] sm:$0xff]
        %v3031 = vld [vmem:[%s3011 + $0xe1] sm:$0xff]
        %v3032 = vld [vmem:[%s3011 + $0xf1] sm:$0xff]
        %v3033 = vld [vmem:[%s3011 + $0xf9] sm:$0xff]
        %v3034 = vld [vmem:[%s3011 + $0x109] sm:$0xff]
        %v3035 = vld [vmem:[%s3011 + $0x111] sm:$0xff]
        %v3036 = vld [vmem:[%s3011 + $0x121] sm:$0xff]
        %v3037 = vld [vmem:[%s3011 + $0x129] sm:$0xff]
        %v3038 = vld [vmem:[%s3011 + $0x139] sm:$0xff]
        %v3039 = vld [vmem:[%s3011 + $0x141] sm:$0xff]
        %v3040 = vld [vmem:[%s3011 + $0x151] sm:$0xff]
        %v3041 = vld [vmem:[%s3011 + $0x159] sm:$0xff]
        %v3042 = vld [vmem:[%s3011 + $0x169] sm:$0xff]
        %v3043 = vld [vmem:[%s3011 + $0x171] sm:$0xff]
        %s3044 = scalar_lea.vmem %s3, 8
        %v3045 = vld [vmem:[%s3044] sm:$0x1]
        %v3046 = vlaneseq
        %v3047 = vshrl.u32 %v3046, 7
        %v3048 = vsub.s32 0, %v3047
        %v3049 = vrot.slane %v3045, %v3048
        %v3050 = vmul.f32 %v3012, %v3049
        %v3051 = vmul.f32 %v3013, %v3049
        %v3052 = vmul.f32 %v3014, %v3049
        %v3053 = vmul.f32 %v3015, %v3049
        %v3054 = vmul.f32 %v3016, %v3049
        %v3055 = vmul.f32 %v3017, %v3049
        %v3056 = vmul.f32 %v3018, %v3049
        %v3057 = vmul.f32 %v3019, %v3049
        %v3058 = vmul.f32 %v3020, %v3049
        %v3059 = vmul.f32 %v3021, %v3049
        %v3060 = vmul.f32 %v3022, %v3049
        %v3061 = vmul.f32 %v3023, %v3049
        %v3062 = vmul.f32 %v3024, %v3049
        %v3063 = vmul.f32 %v3025, %v3049
        %v3064 = vmul.f32 %v3026, %v3049
        %v3065 = vmul.f32 %v3027, %v3049
        %v3066 = vmul.f32 %v3028, %v3049
        %v3067 = vmul.f32 %v3029, %v3049
        %v3068 = vmul.f32 %v3030, %v3049
        %v3069 = vmul.f32 %v3031, %v3049
        %v3070 = vmul.f32 %v3032, %v3049
        %v3071 = vmul.f32 %v3033, %v3049
        %v3072 = vmul.f32 %v3034, %v3049
        %v3073 = vmul.f32 %v3035, %v3049
        %v3074 = vmul.f32 %v3036, %v3049
        %v3075 = vmul.f32 %v3037, %v3049
        %v3076 = vmul.f32 %v3038, %v3049
        %v3077 = vmul.f32 %v3039, %v3049
        %v3078 = vmul.f32 %v3040, %v3049
        %v3079 = vmul.f32 %v3041, %v3049
        %v3080 = vmul.f32 %v3042, %v3049
        %v3081 = vmul.f32 %v3043, %v3049
        %v3082 = vadd.f32 %v2979, %v3050
        %v3083 = vadd.f32 %v2980, %v3051
        %v3084 = vadd.f32 %v2981, %v3052
        %v3085 = vadd.f32 %v2982, %v3053
        %v3086 = vadd.f32 %v2983, %v3054
        %v3087 = vadd.f32 %v2984, %v3055
        %v3088 = vadd.f32 %v2985, %v3056
        %v3089 = vadd.f32 %v2986, %v3057
        %v3090 = vadd.f32 %v2987, %v3058
        %v3091 = vadd.f32 %v2988, %v3059
        %v3092 = vadd.f32 %v2989, %v3060
        %v3093 = vadd.f32 %v2990, %v3061
        %v3094 = vadd.f32 %v2991, %v3062
        %v3095 = vadd.f32 %v2992, %v3063
        %v3096 = vadd.f32 %v2993, %v3064
        %v3097 = vadd.f32 %v2994, %v3065
        %v3098 = vadd.f32 %v2995, %v3066
        %v3099 = vadd.f32 %v2996, %v3067
        %v3100 = vadd.f32 %v2997, %v3068
        %v3101 = vadd.f32 %v2998, %v3069
        %v3102 = vadd.f32 %v2999, %v3070
        %v3103 = vadd.f32 %v3000, %v3071
        %v3104 = vadd.f32 %v3001, %v3072
        %v3105 = vadd.f32 %v3002, %v3073
        %v3106 = vadd.f32 %v3003, %v3074
        %v3107 = vadd.f32 %v3004, %v3075
        %v3108 = vadd.f32 %v3005, %v3076
        %v3109 = vadd.f32 %v3006, %v3077
        %v3110 = vadd.f32 %v3007, %v3078
        %v3111 = vadd.f32 %v3008, %v3079
        %v3112 = vadd.f32 %v3009, %v3080
        %v3113 = vadd.f32 %v3010, %v3081
        %v3114 = vld [vmem:[%s3011 + $0x2] sm:$0xff]
        %v3115 = vld [vmem:[%s3011 + $0xa] sm:$0xff]
        %v3116 = vld [vmem:[%s3011 + $0x1a] sm:$0xff]
        %v3117 = vld [vmem:[%s3011 + $0x22] sm:$0xff]
        %v3118 = vld [vmem:[%s3011 + $0x32] sm:$0xff]
        %v3119 = vld [vmem:[%s3011 + $0x3a] sm:$0xff]
        %v3120 = vld [vmem:[%s3011 + $0x4a] sm:$0xff]
        %v3121 = vld [vmem:[%s3011 + $0x52] sm:$0xff]
        %v3122 = vld [vmem:[%s3011 + $0x62] sm:$0xff]
        %v3123 = vld [vmem:[%s3011 + $0x6a] sm:$0xff]
        %v3124 = vld [vmem:[%s3011 + $0x7a] sm:$0xff]
        %v3125 = vld [vmem:[%s3011 + $0x82] sm:$0xff]
        %v3126 = vld [vmem:[%s3011 + $0x92] sm:$0xff]
        %v3127 = vld [vmem:[%s3011 + $0x9a] sm:$0xff]
        %v3128 = vld [vmem:[%s3011 + $0xaa] sm:$0xff]
        %v3129 = vld [vmem:[%s3011 + $0xb2] sm:$0xff]
        %v3130 = vld [vmem:[%s3011 + $0xc2] sm:$0xff]
        %v3131 = vld [vmem:[%s3011 + $0xca] sm:$0xff]
        %v3132 = vld [vmem:[%s3011 + $0xda] sm:$0xff]
        %v3133 = vld [vmem:[%s3011 + $0xe2] sm:$0xff]
        %v3134 = vld [vmem:[%s3011 + $0xf2] sm:$0xff]
        %v3135 = vld [vmem:[%s3011 + $0xfa] sm:$0xff]
        %v3136 = vld [vmem:[%s3011 + $0x10a] sm:$0xff]
        %v3137 = vld [vmem:[%s3011 + $0x112] sm:$0xff]
        %v3138 = vld [vmem:[%s3011 + $0x122] sm:$0xff]
        %v3139 = vld [vmem:[%s3011 + $0x12a] sm:$0xff]
        %v3140 = vld [vmem:[%s3011 + $0x13a] sm:$0xff]
        %v3141 = vld [vmem:[%s3011 + $0x142] sm:$0xff]
        %v3142 = vld [vmem:[%s3011 + $0x152] sm:$0xff]
        %v3143 = vld [vmem:[%s3011 + $0x15a] sm:$0xff]
        %v3144 = vld [vmem:[%s3011 + $0x16a] sm:$0xff]
        %v3145 = vld [vmem:[%s3011 + $0x172] sm:$0xff]
        %v3146 = vld [vmem:[%s3044 + $0x1] sm:$0x1]
        %v3147 = vlaneseq
        %v3148 = vshrl.u32 %v3147, 7
        %v3149 = vsub.s32 0, %v3148
        %v3150 = vrot.slane %v3146, %v3149
        %v3151 = vmul.f32 %v3114, %v3150
        %v3152 = vmul.f32 %v3115, %v3150
        %v3153 = vmul.f32 %v3116, %v3150
        %v3154 = vmul.f32 %v3117, %v3150
        %v3155 = vmul.f32 %v3118, %v3150
        %v3156 = vmul.f32 %v3119, %v3150
        %v3157 = vmul.f32 %v3120, %v3150
        %v3158 = vmul.f32 %v3121, %v3150
        %v3159 = vmul.f32 %v3122, %v3150
        %v3160 = vmul.f32 %v3123, %v3150
        %v3161 = vmul.f32 %v3124, %v3150
        %v3162 = vmul.f32 %v3125, %v3150
        %v3163 = vmul.f32 %v3126, %v3150
        %v3164 = vmul.f32 %v3127, %v3150
        %v3165 = vmul.f32 %v3128, %v3150
        %v3166 = vmul.f32 %v3129, %v3150
        %v3167 = vmul.f32 %v3130, %v3150
        %v3168 = vmul.f32 %v3131, %v3150
        %v3169 = vmul.f32 %v3132, %v3150
        %v3170 = vmul.f32 %v3133, %v3150
        %v3171 = vmul.f32 %v3134, %v3150
        %v3172 = vmul.f32 %v3135, %v3150
        %v3173 = vmul.f32 %v3136, %v3150
        %v3174 = vmul.f32 %v3137, %v3150
        %v3175 = vmul.f32 %v3138, %v3150
        %v3176 = vmul.f32 %v3139, %v3150
        %v3177 = vmul.f32 %v3140, %v3150
        %v3178 = vmul.f32 %v3141, %v3150
        %v3179 = vmul.f32 %v3142, %v3150
        %v3180 = vmul.f32 %v3143, %v3150
        %v3181 = vmul.f32 %v3144, %v3150
        %v3182 = vmul.f32 %v3145, %v3150
        %v3183 = vadd.f32 %v3082, %v3151
        %v3184 = vadd.f32 %v3083, %v3152
        %v3185 = vadd.f32 %v3084, %v3153
        %v3186 = vadd.f32 %v3085, %v3154
        %v3187 = vadd.f32 %v3086, %v3155
        %v3188 = vadd.f32 %v3087, %v3156
        %v3189 = vadd.f32 %v3088, %v3157
        %v3190 = vadd.f32 %v3089, %v3158
        %v3191 = vadd.f32 %v3090, %v3159
        %v3192 = vadd.f32 %v3091, %v3160
        %v3193 = vadd.f32 %v3092, %v3161
        %v3194 = vadd.f32 %v3093, %v3162
        %v3195 = vadd.f32 %v3094, %v3163
        %v3196 = vadd.f32 %v3095, %v3164
        %v3197 = vadd.f32 %v3096, %v3165
        %v3198 = vadd.f32 %v3097, %v3166
        %v3199 = vadd.f32 %v3098, %v3167
        %v3200 = vadd.f32 %v3099, %v3168
        %v3201 = vadd.f32 %v3100, %v3169
        %v3202 = vadd.f32 %v3101, %v3170
        %v3203 = vadd.f32 %v3102, %v3171
        %v3204 = vadd.f32 %v3103, %v3172
        %v3205 = vadd.f32 %v3104, %v3173
        %v3206 = vadd.f32 %v3105, %v3174
        %v3207 = vadd.f32 %v3106, %v3175
        %v3208 = vadd.f32 %v3107, %v3176
        %v3209 = vadd.f32 %v3108, %v3177
        %v3210 = vadd.f32 %v3109, %v3178
        %v3211 = vadd.f32 %v3110, %v3179
        %v3212 = vadd.f32 %v3111, %v3180
        %v3213 = vadd.f32 %v3112, %v3181
        %v3214 = vadd.f32 %v3113, %v3182
        %v3215 = vld [vmem:[%s3011 + $0x3] sm:$0xff]
        %v3216 = vld [vmem:[%s3011 + $0xb] sm:$0xff]
        %v3217 = vld [vmem:[%s3011 + $0x1b] sm:$0xff]
        %v3218 = vld [vmem:[%s3011 + $0x23] sm:$0xff]
        %v3219 = vld [vmem:[%s3011 + $0x33] sm:$0xff]
        %v3220 = vld [vmem:[%s3011 + $0x3b] sm:$0xff]
        %v3221 = vld [vmem:[%s3011 + $0x4b] sm:$0xff]
        %v3222 = vld [vmem:[%s3011 + $0x53] sm:$0xff]
        %v3223 = vld [vmem:[%s3011 + $0x63] sm:$0xff]
        %v3224 = vld [vmem:[%s3011 + $0x6b] sm:$0xff]
        %v3225 = vld [vmem:[%s3011 + $0x7b] sm:$0xff]
        %v3226 = vld [vmem:[%s3011 + $0x83] sm:$0xff]
        %v3227 = vld [vmem:[%s3011 + $0x93] sm:$0xff]
        %v3228 = vld [vmem:[%s3011 + $0x9b] sm:$0xff]
        %v3229 = vld [vmem:[%s3011 + $0xab] sm:$0xff]
        %v3230 = vld [vmem:[%s3011 + $0xb3] sm:$0xff]
        %v3231 = vld [vmem:[%s3011 + $0xc3] sm:$0xff]
        %v3232 = vld [vmem:[%s3011 + $0xcb] sm:$0xff]
        %v3233 = vld [vmem:[%s3011 + $0xdb] sm:$0xff]
        %v3234 = vld [vmem:[%s3011 + $0xe3] sm:$0xff]
        %v3235 = vld [vmem:[%s3011 + $0xf3] sm:$0xff]
        %v3236 = vld [vmem:[%s3011 + $0xfb] sm:$0xff]
        %v3237 = vld [vmem:[%s3011 + $0x10b] sm:$0xff]
        %v3238 = vld [vmem:[%s3011 + $0x113] sm:$0xff]
        %v3239 = vld [vmem:[%s3011 + $0x123] sm:$0xff]
        %v3240 = vld [vmem:[%s3011 + $0x12b] sm:$0xff]
        %v3241 = vld [vmem:[%s3011 + $0x13b] sm:$0xff]
        %v3242 = vld [vmem:[%s3011 + $0x143] sm:$0xff]
        %v3243 = vld [vmem:[%s3011 + $0x153] sm:$0xff]
        %v3244 = vld [vmem:[%s3011 + $0x15b] sm:$0xff]
        %v3245 = vld [vmem:[%s3011 + $0x16b] sm:$0xff]
        %v3246 = vld [vmem:[%s3011 + $0x173] sm:$0xff]
        %v3247 = vld [vmem:[%s3044 + $0x2] sm:$0x1]
        %v3248 = vlaneseq
        %v3249 = vshrl.u32 %v3248, 7
        %v3250 = vsub.s32 0, %v3249
        %v3251 = vrot.slane %v3247, %v3250
        %v3252 = vmul.f32 %v3215, %v3251
        %v3253 = vmul.f32 %v3216, %v3251
        %v3254 = vmul.f32 %v3217, %v3251
        %v3255 = vmul.f32 %v3218, %v3251
        %v3256 = vmul.f32 %v3219, %v3251
        %v3257 = vmul.f32 %v3220, %v3251
        %v3258 = vmul.f32 %v3221, %v3251
        %v3259 = vmul.f32 %v3222, %v3251
        %v3260 = vmul.f32 %v3223, %v3251
        %v3261 = vmul.f32 %v3224, %v3251
        %v3262 = vmul.f32 %v3225, %v3251
        %v3263 = vmul.f32 %v3226, %v3251
        %v3264 = vmul.f32 %v3227, %v3251
        %v3265 = vmul.f32 %v3228, %v3251
        %v3266 = vmul.f32 %v3229, %v3251
        %v3267 = vmul.f32 %v3230, %v3251
        %v3268 = vmul.f32 %v3231, %v3251
        %v3269 = vmul.f32 %v3232, %v3251
        %v3270 = vmul.f32 %v3233, %v3251
        %v3271 = vmul.f32 %v3234, %v3251
        %v3272 = vmul.f32 %v3235, %v3251
        %v3273 = vmul.f32 %v3236, %v3251
        %v3274 = vmul.f32 %v3237, %v3251
        %v3275 = vmul.f32 %v3238, %v3251
        %v3276 = vmul.f32 %v3239, %v3251
        %v3277 = vmul.f32 %v3240, %v3251
        %v3278 = vmul.f32 %v3241, %v3251
        %v3279 = vmul.f32 %v3242, %v3251
        %v3280 = vmul.f32 %v3243, %v3251
        %v3281 = vmul.f32 %v3244, %v3251
        %v3282 = vmul.f32 %v3245, %v3251
        %v3283 = vmul.f32 %v3246, %v3251
        %v3284 = vadd.f32 %v3183, %v3252
        %v3285 = vadd.f32 %v3184, %v3253
        %v3286 = vadd.f32 %v3185, %v3254
        %v3287 = vadd.f32 %v3186, %v3255
        %v3288 = vadd.f32 %v3187, %v3256
        %v3289 = vadd.f32 %v3188, %v3257
        %v3290 = vadd.f32 %v3189, %v3258
        %v3291 = vadd.f32 %v3190, %v3259
        %v3292 = vadd.f32 %v3191, %v3260
        %v3293 = vadd.f32 %v3192, %v3261
        %v3294 = vadd.f32 %v3193, %v3262
        %v3295 = vadd.f32 %v3194, %v3263
        %v3296 = vadd.f32 %v3195, %v3264
        %v3297 = vadd.f32 %v3196, %v3265
        %v3298 = vadd.f32 %v3197, %v3266
        %v3299 = vadd.f32 %v3198, %v3267
        %v3300 = vadd.f32 %v3199, %v3268
        %v3301 = vadd.f32 %v3200, %v3269
        %v3302 = vadd.f32 %v3201, %v3270
        %v3303 = vadd.f32 %v3202, %v3271
        %v3304 = vadd.f32 %v3203, %v3272
        %v3305 = vadd.f32 %v3204, %v3273
        %v3306 = vadd.f32 %v3205, %v3274
        %v3307 = vadd.f32 %v3206, %v3275
        %v3308 = vadd.f32 %v3207, %v3276
        %v3309 = vadd.f32 %v3208, %v3277
        %v3310 = vadd.f32 %v3209, %v3278
        %v3311 = vadd.f32 %v3210, %v3279
        %v3312 = vadd.f32 %v3211, %v3280
        %v3313 = vadd.f32 %v3212, %v3281
        %v3314 = vadd.f32 %v3213, %v3282
        %v3315 = vadd.f32 %v3214, %v3283
        %v3316 = vld [vmem:[%s4] sm:$0x1]
        %v3318 = vlaneseq
        %v3319 = vshrl.u32 %v3318, 7
        %v3320 = vsub.s32 0, %v3319
        %v3321 = vrot.slane %v3316, %v3320
        %v3323 = vadd.f32 %v3284, %v3321
        %v3324 = vadd.f32 %v3285, %v3321
        %v3325 = vadd.f32 %v3286, %v3321
        %v3326 = vadd.f32 %v3287, %v3321
        %v3327 = vadd.f32 %v3288, %v3321
        %v3328 = vadd.f32 %v3289, %v3321
        %v3329 = vadd.f32 %v3290, %v3321
        %v3330 = vadd.f32 %v3291, %v3321
        %v3331 = vadd.f32 %v3292, %v3321
        %v3332 = vadd.f32 %v3293, %v3321
        %v3333 = vadd.f32 %v3294, %v3321
        %v3334 = vadd.f32 %v3295, %v3321
        %v3335 = vadd.f32 %v3296, %v3321
        %v3336 = vadd.f32 %v3297, %v3321
        %v3337 = vadd.f32 %v3298, %v3321
        %v3338 = vadd.f32 %v3299, %v3321
        %v3339 = vadd.f32 %v3300, %v3321
        %v3340 = vadd.f32 %v3301, %v3321
        %v3341 = vadd.f32 %v3302, %v3321
        %v3342 = vadd.f32 %v3303, %v3321
        %v3343 = vadd.f32 %v3304, %v3321
        %v3344 = vadd.f32 %v3305, %v3321
        %v3345 = vadd.f32 %v3306, %v3321
        %v3346 = vadd.f32 %v3307, %v3321
        %v3347 = vadd.f32 %v3308, %v3321
        %v3348 = vadd.f32 %v3309, %v3321
        %v3349 = vadd.f32 %v3310, %v3321
        %v3350 = vadd.f32 %v3311, %v3321
        %v3351 = vadd.f32 %v3312, %v3321
        %v3352 = vadd.f32 %v3313, %v3321
        %v3353 = vadd.f32 %v3314, %v3321
        %v3354 = vadd.f32 %v3315, %v3321
        %v3355 = vmax.f32 %v3323, 0.0
        %v3356 = vmax.f32 %v3324, 0.0
        %v3357 = vmax.f32 %v3325, 0.0
        %v3358 = vmax.f32 %v3326, 0.0
        %v3359 = vmax.f32 %v3327, 0.0
        %v3360 = vmax.f32 %v3328, 0.0
        %v3361 = vmax.f32 %v3329, 0.0
        %v3362 = vmax.f32 %v3330, 0.0
        %v3363 = vmax.f32 %v3331, 0.0
        %v3364 = vmax.f32 %v3332, 0.0
        %v3365 = vmax.f32 %v3333, 0.0
        %v3366 = vmax.f32 %v3334, 0.0
        %v3367 = vmax.f32 %v3335, 0.0
        %v3368 = vmax.f32 %v3336, 0.0
        %v3369 = vmax.f32 %v3337, 0.0
        %v3370 = vmax.f32 %v3338, 0.0
        %v3371 = vmax.f32 %v3339, 0.0
        %v3372 = vmax.f32 %v3340, 0.0
        %v3373 = vmax.f32 %v3341, 0.0
        %v3374 = vmax.f32 %v3342, 0.0
        %v3375 = vmax.f32 %v3343, 0.0
        %v3376 = vmax.f32 %v3344, 0.0
        %v3377 = vmax.f32 %v3345, 0.0
        %v3378 = vmax.f32 %v3346, 0.0
        %v3379 = vmax.f32 %v3347, 0.0
        %v3380 = vmax.f32 %v3348, 0.0
        %v3381 = vmax.f32 %v3349, 0.0
        %v3382 = vmax.f32 %v3350, 0.0
        %v3383 = vmax.f32 %v3351, 0.0
        %v3384 = vmax.f32 %v3352, 0.0
        %v3385 = vmax.f32 %v3353, 0.0
        %v3386 = vmax.f32 %v3354, 0.0
        %v3387 = vld [vmem:[#allocation2] sm:$0xff]
        %v3388 = vld [vmem:[#allocation2 + $0x8] sm:$0xff]
        %v3389 = vld [vmem:[#allocation2 + $0x18] sm:$0xff]
        %v3390 = vld [vmem:[#allocation2 + $0x20] sm:$0xff]
        %v3391 = vld [vmem:[#allocation2 + $0x30] sm:$0xff]
        %v3392 = vld [vmem:[#allocation2 + $0x38] sm:$0xff]
        %v3393 = vld [vmem:[#allocation2 + $0x48] sm:$0xff]
        %v3394 = vld [vmem:[#allocation2 + $0x50] sm:$0xff]
        %v3395 = vld [vmem:[#allocation2 + $0x60] sm:$0xff]
        %v3396 = vld [vmem:[#allocation2 + $0x68] sm:$0xff]
        %v3397 = vld [vmem:[#allocation2 + $0x78] sm:$0xff]
        %v3398 = vld [vmem:[#allocation2 + $0x80] sm:$0xff]
        %v3399 = vld [vmem:[#allocation2 + $0x90] sm:$0xff]
        %v3400 = vld [vmem:[#allocation2 + $0x98] sm:$0xff]
        %v3401 = vld [vmem:[#allocation2 + $0xa8] sm:$0xff]
        %v3402 = vld [vmem:[#allocation2 + $0xb0] sm:$0xff]
        %v3403 = vld [vmem:[#allocation2 + $0xc0] sm:$0xff]
        %v3404 = vld [vmem:[#allocation2 + $0xc8] sm:$0xff]
        %v3405 = vld [vmem:[#allocation2 + $0xd8] sm:$0xff]
        %v3406 = vld [vmem:[#allocation2 + $0xe0] sm:$0xff]
        %v3407 = vld [vmem:[#allocation2 + $0xf0] sm:$0xff]
        %v3408 = vld [vmem:[#allocation2 + $0xf8] sm:$0xff]
        %v3409 = vld [vmem:[#allocation2 + $0x108] sm:$0xff]
        %v3410 = vld [vmem:[#allocation2 + $0x110] sm:$0xff]
        %v3411 = vld [vmem:[#allocation2 + $0x120] sm:$0xff]
        %v3412 = vld [vmem:[#allocation2 + $0x128] sm:$0xff]
        %v3413 = vld [vmem:[#allocation2 + $0x138] sm:$0xff]
        %v3414 = vld [vmem:[#allocation2 + $0x140] sm:$0xff]
        %v3415 = vld [vmem:[#allocation2 + $0x150] sm:$0xff]
        %v3416 = vld [vmem:[#allocation2 + $0x158] sm:$0xff]
        %v3417 = vld [vmem:[#allocation2 + $0x168] sm:$0xff]
        %v3418 = vld [vmem:[#allocation2 + $0x170] sm:$0xff]
        %v3419 = vld [vmem:[%s5] sm:$0x1]
        %v3420 = vlaneseq
        %v3421 = vshrl.u32 %v3420, 7
        %v3422 = vsub.s32 0, %v3421
        %v3423 = vrot.slane %v3419, %v3422
        %v3424 = vmul.f32 %v3387, %v3423
        %v3425 = vmul.f32 %v3388, %v3423
        %v3426 = vmul.f32 %v3389, %v3423
        %v3427 = vmul.f32 %v3390, %v3423
        %v3428 = vmul.f32 %v3391, %v3423
        %v3429 = vmul.f32 %v3392, %v3423
        %v3430 = vmul.f32 %v3393, %v3423
        %v3431 = vmul.f32 %v3394, %v3423
        %v3432 = vmul.f32 %v3395, %v3423
        %v3433 = vmul.f32 %v3396, %v3423
        %v3434 = vmul.f32 %v3397, %v3423
        %v3435 = vmul.f32 %v3398, %v3423
        %v3436 = vmul.f32 %v3399, %v3423
        %v3437 = vmul.f32 %v3400, %v3423
        %v3438 = vmul.f32 %v3401, %v3423
        %v3439 = vmul.f32 %v3402, %v3423
        %v3440 = vmul.f32 %v3403, %v3423
        %v3441 = vmul.f32 %v3404, %v3423
        %v3442 = vmul.f32 %v3405, %v3423
        %v3443 = vmul.f32 %v3406, %v3423
        %v3444 = vmul.f32 %v3407, %v3423
        %v3445 = vmul.f32 %v3408, %v3423
        %v3446 = vmul.f32 %v3409, %v3423
        %v3447 = vmul.f32 %v3410, %v3423
        %v3448 = vmul.f32 %v3411, %v3423
        %v3449 = vmul.f32 %v3412, %v3423
        %v3450 = vmul.f32 %v3413, %v3423
        %v3451 = vmul.f32 %v3414, %v3423
        %v3452 = vmul.f32 %v3415, %v3423
        %v3453 = vmul.f32 %v3416, %v3423
        %v3454 = vmul.f32 %v3417, %v3423
        %v3455 = vmul.f32 %v3418, %v3423
        %v3456 = vadd.f32 %v3424, 0.0
        %v3457 = vadd.f32 %v3425, 0.0
        %v3458 = vadd.f32 %v3426, 0.0
        %v3459 = vadd.f32 %v3427, 0.0
        %v3460 = vadd.f32 %v3428, 0.0
        %v3461 = vadd.f32 %v3429, 0.0
        %v3462 = vadd.f32 %v3430, 0.0
        %v3463 = vadd.f32 %v3431, 0.0
        %v3464 = vadd.f32 %v3432, 0.0
        %v3465 = vadd.f32 %v3433, 0.0
        %v3466 = vadd.f32 %v3434, 0.0
        %v3467 = vadd.f32 %v3435, 0.0
        %v3468 = vadd.f32 %v3436, 0.0
        %v3469 = vadd.f32 %v3437, 0.0
        %v3470 = vadd.f32 %v3438, 0.0
        %v3471 = vadd.f32 %v3439, 0.0
        %v3472 = vadd.f32 %v3440, 0.0
        %v3473 = vadd.f32 %v3441, 0.0
        %v3474 = vadd.f32 %v3442, 0.0
        %v3475 = vadd.f32 %v3443, 0.0
        %v3476 = vadd.f32 %v3444, 0.0
        %v3477 = vadd.f32 %v3445, 0.0
        %v3478 = vadd.f32 %v3446, 0.0
        %v3479 = vadd.f32 %v3447, 0.0
        %v3480 = vadd.f32 %v3448, 0.0
        %v3481 = vadd.f32 %v3449, 0.0
        %v3482 = vadd.f32 %v3450, 0.0
        %v3483 = vadd.f32 %v3451, 0.0
        %v3484 = vadd.f32 %v3452, 0.0
        %v3485 = vadd.f32 %v3453, 0.0
        %v3486 = vadd.f32 %v3454, 0.0
        %v3487 = vadd.f32 %v3455, 0.0
        %v3488 = vld [vmem:[#allocation2 + $0x1] sm:$0xff]
        %v3489 = vld [vmem:[#allocation2 + $0x9] sm:$0xff]
        %v3490 = vld [vmem:[#allocation2 + $0x19] sm:$0xff]
        %v3491 = vld [vmem:[#allocation2 + $0x21] sm:$0xff]
        %v3492 = vld [vmem:[#allocation2 + $0x31] sm:$0xff]
        %v3493 = vld [vmem:[#allocation2 + $0x39] sm:$0xff]
        %v3494 = vld [vmem:[#allocation2 + $0x49] sm:$0xff]
        %v3495 = vld [vmem:[#allocation2 + $0x51] sm:$0xff]
        %v3496 = vld [vmem:[#allocation2 + $0x61] sm:$0xff]
        %v3497 = vld [vmem:[#allocation2 + $0x69] sm:$0xff]
        %v3498 = vld [vmem:[#allocation2 + $0x79] sm:$0xff]
        %v3499 = vld [vmem:[#allocation2 + $0x81] sm:$0xff]
        %v3500 = vld [vmem:[#allocation2 + $0x91] sm:$0xff]
        %v3501 = vld [vmem:[#allocation2 + $0x99] sm:$0xff]
        %v3502 = vld [vmem:[#allocation2 + $0xa9] sm:$0xff]
        %v3503 = vld [vmem:[#allocation2 + $0xb1] sm:$0xff]
        %v3504 = vld [vmem:[#allocation2 + $0xc1] sm:$0xff]
        %v3505 = vld [vmem:[#allocation2 + $0xc9] sm:$0xff]
        %v3506 = vld [vmem:[#allocation2 + $0xd9] sm:$0xff]
        %v3507 = vld [vmem:[#allocation2 + $0xe1] sm:$0xff]
        %v3508 = vld [vmem:[#allocation2 + $0xf1] sm:$0xff]
        %v3509 = vld [vmem:[#allocation2 + $0xf9] sm:$0xff]
        %v3510 = vld [vmem:[#allocation2 + $0x109] sm:$0xff]
        %v3511 = vld [vmem:[#allocation2 + $0x111] sm:$0xff]
        %v3512 = vld [vmem:[#allocation2 + $0x121] sm:$0xff]
        %v3513 = vld [vmem:[#allocation2 + $0x129] sm:$0xff]
        %v3514 = vld [vmem:[#allocation2 + $0x139] sm:$0xff]
        %v3515 = vld [vmem:[#allocation2 + $0x141] sm:$0xff]
        %v3516 = vld [vmem:[#allocation2 + $0x151] sm:$0xff]
        %v3517 = vld [vmem:[#allocation2 + $0x159] sm:$0xff]
        %v3518 = vld [vmem:[#allocation2 + $0x169] sm:$0xff]
        %v3519 = vld [vmem:[#allocation2 + $0x171] sm:$0xff]
        %v3520 = vld [vmem:[%s5 + $0x1] sm:$0x1]
        %v3521 = vlaneseq
        %v3522 = vshrl.u32 %v3521, 7
        %v3523 = vsub.s32 0, %v3522
        %v3524 = vrot.slane %v3520, %v3523
        %v3525 = vmul.f32 %v3488, %v3524
        %v3526 = vmul.f32 %v3489, %v3524
        %v3527 = vmul.f32 %v3490, %v3524
        %v3528 = vmul.f32 %v3491, %v3524
        %v3529 = vmul.f32 %v3492, %v3524
        %v3530 = vmul.f32 %v3493, %v3524
        %v3531 = vmul.f32 %v3494, %v3524
        %v3532 = vmul.f32 %v3495, %v3524
        %v3533 = vmul.f32 %v3496, %v3524
        %v3534 = vmul.f32 %v3497, %v3524
        %v3535 = vmul.f32 %v3498, %v3524
        %v3536 = vmul.f32 %v3499, %v3524
        %v3537 = vmul.f32 %v3500, %v3524
        %v3538 = vmul.f32 %v3501, %v3524
        %v3539 = vmul.f32 %v3502, %v3524
        %v3540 = vmul.f32 %v3503, %v3524
        %v3541 = vmul.f32 %v3504, %v3524
        %v3542 = vmul.f32 %v3505, %v3524
        %v3543 = vmul.f32 %v3506, %v3524
        %v3544 = vmul.f32 %v3507, %v3524
        %v3545 = vmul.f32 %v3508, %v3524
        %v3546 = vmul.f32 %v3509, %v3524
        %v3547 = vmul.f32 %v3510, %v3524
        %v3548 = vmul.f32 %v3511, %v3524
        %v3549 = vmul.f32 %v3512, %v3524
        %v3550 = vmul.f32 %v3513, %v3524
        %v3551 = vmul.f32 %v3514, %v3524
        %v3552 = vmul.f32 %v3515, %v3524
        %v3553 = vmul.f32 %v3516, %v3524
        %v3554 = vmul.f32 %v3517, %v3524
        %v3555 = vmul.f32 %v3518, %v3524
        %v3556 = vmul.f32 %v3519, %v3524
        %v3557 = vadd.f32 %v3456, %v3525
        %v3558 = vadd.f32 %v3457, %v3526
        %v3559 = vadd.f32 %v3458, %v3527
        %v3560 = vadd.f32 %v3459, %v3528
        %v3561 = vadd.f32 %v3460, %v3529
        %v3562 = vadd.f32 %v3461, %v3530
        %v3563 = vadd.f32 %v3462, %v3531
        %v3564 = vadd.f32 %v3463, %v3532
        %v3565 = vadd.f32 %v3464, %v3533
        %v3566 = vadd.f32 %v3465, %v3534
        %v3567 = vadd.f32 %v3466, %v3535
        %v3568 = vadd.f32 %v3467, %v3536
        %v3569 = vadd.f32 %v3468, %v3537
        %v3570 = vadd.f32 %v3469, %v3538
        %v3571 = vadd.f32 %v3470, %v3539
        %v3572 = vadd.f32 %v3471, %v3540
        %v3573 = vadd.f32 %v3472, %v3541
        %v3574 = vadd.f32 %v3473, %v3542
        %v3575 = vadd.f32 %v3474, %v3543
        %v3576 = vadd.f32 %v3475, %v3544
        %v3577 = vadd.f32 %v3476, %v3545
        %v3578 = vadd.f32 %v3477, %v3546
        %v3579 = vadd.f32 %v3478, %v3547
        %v3580 = vadd.f32 %v3479, %v3548
        %v3581 = vadd.f32 %v3480, %v3549
        %v3582 = vadd.f32 %v3481, %v3550
        %v3583 = vadd.f32 %v3482, %v3551
        %v3584 = vadd.f32 %v3483, %v3552
        %v3585 = vadd.f32 %v3484, %v3553
        %v3586 = vadd.f32 %v3485, %v3554
        %v3587 = vadd.f32 %v3486, %v3555
        %v3588 = vadd.f32 %v3487, %v3556
        %v3589 = vld [vmem:[#allocation2 + $0x2] sm:$0xff]
        %v3590 = vld [vmem:[#allocation2 + $0xa] sm:$0xff]
        %v3591 = vld [vmem:[#allocation2 + $0x1a] sm:$0xff]
        %v3592 = vld [vmem:[#allocation2 + $0x22] sm:$0xff]
        %v3593 = vld [vmem:[#allocation2 + $0x32] sm:$0xff]
        %v3594 = vld [vmem:[#allocation2 + $0x3a] sm:$0xff]
        %v3595 = vld [vmem:[#allocation2 + $0x4a] sm:$0xff]
        %v3596 = vld [vmem:[#allocation2 + $0x52] sm:$0xff]
        %v3597 = vld [vmem:[#allocation2 + $0x62] sm:$0xff]
        %v3598 = vld [vmem:[#allocation2 + $0x6a] sm:$0xff]
        %v3599 = vld [vmem:[#allocation2 + $0x7a] sm:$0xff]
        %v3600 = vld [vmem:[#allocation2 + $0x82] sm:$0xff]
        %v3601 = vld [vmem:[#allocation2 + $0x92] sm:$0xff]
        %v3602 = vld [vmem:[#allocation2 + $0x9a] sm:$0xff]
        %v3603 = vld [vmem:[#allocation2 + $0xaa] sm:$0xff]
        %v3604 = vld [vmem:[#allocation2 + $0xb2] sm:$0xff]
        %v3605 = vld [vmem:[#allocation2 + $0xc2] sm:$0xff]
        %v3606 = vld [vmem:[#allocation2 + $0xca] sm:$0xff]
        %v3607 = vld [vmem:[#allocation2 + $0xda] sm:$0xff]
        %v3608 = vld [vmem:[#allocation2 + $0xe2] sm:$0xff]
        %v3609 = vld [vmem:[#allocation2 + $0xf2] sm:$0xff]
        %v3610 = vld [vmem:[#allocation2 + $0xfa] sm:$0xff]
        %v3611 = vld [vmem:[#allocation2 + $0x10a] sm:$0xff]
        %v3612 = vld [vmem:[#allocation2 + $0x112] sm:$0xff]
        %v3613 = vld [vmem:[#allocation2 + $0x122] sm:$0xff]
        %v3614 = vld [vmem:[#allocation2 + $0x12a] sm:$0xff]
        %v3615 = vld [vmem:[#allocation2 + $0x13a] sm:$0xff]
        %v3616 = vld [vmem:[#allocation2 + $0x142] sm:$0xff]
        %v3617 = vld [vmem:[#allocation2 + $0x152] sm:$0xff]
        %v3618 = vld [vmem:[#allocation2 + $0x15a] sm:$0xff]
        %v3619 = vld [vmem:[#allocation2 + $0x16a] sm:$0xff]
        %v3620 = vld [vmem:[#allocation2 + $0x172] sm:$0xff]
        %v3621 = vld [vmem:[%s5 + $0x2] sm:$0x1]
        %v3622 = vlaneseq
        %v3623 = vshrl.u32 %v3622, 7
        %v3624 = vsub.s32 0, %v3623
        %v3625 = vrot.slane %v3621, %v3624
        %v3626 = vmul.f32 %v3589, %v3625
        %v3627 = vmul.f32 %v3590, %v3625
        %v3628 = vmul.f32 %v3591, %v3625
        %v3629 = vmul.f32 %v3592, %v3625
        %v3630 = vmul.f32 %v3593, %v3625
        %v3631 = vmul.f32 %v3594, %v3625
        %v3632 = vmul.f32 %v3595, %v3625
        %v3633 = vmul.f32 %v3596, %v3625
        %v3634 = vmul.f32 %v3597, %v3625
        %v3635 = vmul.f32 %v3598, %v3625
        %v3636 = vmul.f32 %v3599, %v3625
        %v3637 = vmul.f32 %v3600, %v3625
        %v3638 = vmul.f32 %v3601, %v3625
        %v3639 = vmul.f32 %v3602, %v3625
        %v3640 = vmul.f32 %v3603, %v3625
        %v3641 = vmul.f32 %v3604, %v3625
        %v3642 = vmul.f32 %v3605, %v3625
        %v3643 = vmul.f32 %v3606, %v3625
        %v3644 = vmul.f32 %v3607, %v3625
        %v3645 = vmul.f32 %v3608, %v3625
        %v3646 = vmul.f32 %v3609, %v3625
        %v3647 = vmul.f32 %v3610, %v3625
        %v3648 = vmul.f32 %v3611, %v3625
        %v3649 = vmul.f32 %v3612, %v3625
        %v3650 = vmul.f32 %v3613, %v3625
        %v3651 = vmul.f32 %v3614, %v3625
        %v3652 = vmul.f32 %v3615, %v3625
        %v3653 = vmul.f32 %v3616, %v3625
        %v3654 = vmul.f32 %v3617, %v3625
        %v3655 = vmul.f32 %v3618, %v3625
        %v3656 = vmul.f32 %v3619, %v3625
        %v3657 = vmul.f32 %v3620, %v3625
        %v3658 = vadd.f32 %v3557, %v3626
        %v3659 = vadd.f32 %v3558, %v3627
        %v3660 = vadd.f32 %v3559, %v3628
        %v3661 = vadd.f32 %v3560, %v3629
        %v3662 = vadd.f32 %v3561, %v3630
        %v3663 = vadd.f32 %v3562, %v3631
        %v3664 = vadd.f32 %v3563, %v3632
        %v3665 = vadd.f32 %v3564, %v3633
        %v3666 = vadd.f32 %v3565, %v3634
        %v3667 = vadd.f32 %v3566, %v3635
        %v3668 = vadd.f32 %v3567, %v3636
        %v3669 = vadd.f32 %v3568, %v3637
        %v3670 = vadd.f32 %v3569, %v3638
        %v3671 = vadd.f32 %v3570, %v3639
        %v3672 = vadd.f32 %v3571, %v3640
        %v3673 = vadd.f32 %v3572, %v3641
        %v3674 = vadd.f32 %v3573, %v3642
        %v3675 = vadd.f32 %v3574, %v3643
        %v3676 = vadd.f32 %v3575, %v3644
        %v3677 = vadd.f32 %v3576, %v3645
        %v3678 = vadd.f32 %v3577, %v3646
        %v3679 = vadd.f32 %v3578, %v3647
        %v3680 = vadd.f32 %v3579, %v3648
        %v3681 = vadd.f32 %v3580, %v3649
        %v3682 = vadd.f32 %v3581, %v3650
        %v3683 = vadd.f32 %v3582, %v3651
        %v3684 = vadd.f32 %v3583, %v3652
        %v3685 = vadd.f32 %v3584, %v3653
        %v3686 = vadd.f32 %v3585, %v3654
        %v3687 = vadd.f32 %v3586, %v3655
        %v3688 = vadd.f32 %v3587, %v3656
        %v3689 = vadd.f32 %v3588, %v3657
        %v3690 = vld [vmem:[#allocation2 + $0x3] sm:$0xff]
        %v3691 = vld [vmem:[#allocation2 + $0xb] sm:$0xff]
        %v3692 = vld [vmem:[#allocation2 + $0x1b] sm:$0xff]
        %v3693 = vld [vmem:[#allocation2 + $0x23] sm:$0xff]
        %v3694 = vld [vmem:[#allocation2 + $0x33] sm:$0xff]
        %v3695 = vld [vmem:[#allocation2 + $0x3b] sm:$0xff]
        %v3696 = vld [vmem:[#allocation2 + $0x4b] sm:$0xff]
        %v3697 = vld [vmem:[#allocation2 + $0x53] sm:$0xff]
        %v3698 = vld [vmem:[#allocation2 + $0x63] sm:$0xff]
        %v3699 = vld [vmem:[#allocation2 + $0x6b] sm:$0xff]
        %v3700 = vld [vmem:[#allocation2 + $0x7b] sm:$0xff]
        %v3701 = vld [vmem:[#allocation2 + $0x83] sm:$0xff]
        %v3702 = vld [vmem:[#allocation2 + $0x93] sm:$0xff]
        %v3703 = vld [vmem:[#allocation2 + $0x9b] sm:$0xff]
        %v3704 = vld [vmem:[#allocation2 + $0xab] sm:$0xff]
        %v3705 = vld [vmem:[#allocation2 + $0xb3] sm:$0xff]
        %v3706 = vld [vmem:[#allocation2 + $0xc3] sm:$0xff]
        %v3707 = vld [vmem:[#allocation2 + $0xcb] sm:$0xff]
        %v3708 = vld [vmem:[#allocation2 + $0xdb] sm:$0xff]
        %v3709 = vld [vmem:[#allocation2 + $0xe3] sm:$0xff]
        %v3710 = vld [vmem:[#allocation2 + $0xf3] sm:$0xff]
        %v3711 = vld [vmem:[#allocation2 + $0xfb] sm:$0xff]
        %v3712 = vld [vmem:[#allocation2 + $0x10b] sm:$0xff]
        %v3713 = vld [vmem:[#allocation2 + $0x113] sm:$0xff]
        %v3714 = vld [vmem:[#allocation2 + $0x123] sm:$0xff]
        %v3715 = vld [vmem:[#allocation2 + $0x12b] sm:$0xff]
        %v3716 = vld [vmem:[#allocation2 + $0x13b] sm:$0xff]
        %v3717 = vld [vmem:[#allocation2 + $0x143] sm:$0xff]
        %v3718 = vld [vmem:[#allocation2 + $0x153] sm:$0xff]
        %v3719 = vld [vmem:[#allocation2 + $0x15b] sm:$0xff]
        %v3720 = vld [vmem:[#allocation2 + $0x16b] sm:$0xff]
        %v3721 = vld [vmem:[#allocation2 + $0x173] sm:$0xff]
        %v3722 = vld [vmem:[%s5 + $0x3] sm:$0x1]
        %v3723 = vlaneseq
        %v3724 = vshrl.u32 %v3723, 7
        %v3725 = vsub.s32 0, %v3724
        %v3726 = vrot.slane %v3722, %v3725
        %v3727 = vmul.f32 %v3690, %v3726
        %v3728 = vmul.f32 %v3691, %v3726
        %v3729 = vmul.f32 %v3692, %v3726
        %v3730 = vmul.f32 %v3693, %v3726
        %v3731 = vmul.f32 %v3694, %v3726
        %v3732 = vmul.f32 %v3695, %v3726
        %v3733 = vmul.f32 %v3696, %v3726
        %v3734 = vmul.f32 %v3697, %v3726
        %v3735 = vmul.f32 %v3698, %v3726
        %v3736 = vmul.f32 %v3699, %v3726
        %v3737 = vmul.f32 %v3700, %v3726
        %v3738 = vmul.f32 %v3701, %v3726
        %v3739 = vmul.f32 %v3702, %v3726
        %v3740 = vmul.f32 %v3703, %v3726
        %v3741 = vmul.f32 %v3704, %v3726
        %v3742 = vmul.f32 %v3705, %v3726
        %v3743 = vmul.f32 %v3706, %v3726
        %v3744 = vmul.f32 %v3707, %v3726
        %v3745 = vmul.f32 %v3708, %v3726
        %v3746 = vmul.f32 %v3709, %v3726
        %v3747 = vmul.f32 %v3710, %v3726
        %v3748 = vmul.f32 %v3711, %v3726
        %v3749 = vmul.f32 %v3712, %v3726
        %v3750 = vmul.f32 %v3713, %v3726
        %v3751 = vmul.f32 %v3714, %v3726
        %v3752 = vmul.f32 %v3715, %v3726
        %v3753 = vmul.f32 %v3716, %v3726
        %v3754 = vmul.f32 %v3717, %v3726
        %v3755 = vmul.f32 %v3718, %v3726
        %v3756 = vmul.f32 %v3719, %v3726
        %v3757 = vmul.f32 %v3720, %v3726
        %v3758 = vmul.f32 %v3721, %v3726
        %v3759 = vadd.f32 %v3658, %v3727
        %v3760 = vadd.f32 %v3659, %v3728
        %v3761 = vadd.f32 %v3660, %v3729
        %v3762 = vadd.f32 %v3661, %v3730
        %v3763 = vadd.f32 %v3662, %v3731
        %v3764 = vadd.f32 %v3663, %v3732
        %v3765 = vadd.f32 %v3664, %v3733
        %v3766 = vadd.f32 %v3665, %v3734
        %v3767 = vadd.f32 %v3666, %v3735
        %v3768 = vadd.f32 %v3667, %v3736
        %v3769 = vadd.f32 %v3668, %v3737
        %v3770 = vadd.f32 %v3669, %v3738
        %v3771 = vadd.f32 %v3670, %v3739
        %v3772 = vadd.f32 %v3671, %v3740
        %v3773 = vadd.f32 %v3672, %v3741
        %v3774 = vadd.f32 %v3673, %v3742
        %v3775 = vadd.f32 %v3674, %v3743
        %v3776 = vadd.f32 %v3675, %v3744
        %v3777 = vadd.f32 %v3676, %v3745
        %v3778 = vadd.f32 %v3677, %v3746
        %v3779 = vadd.f32 %v3678, %v3747
        %v3780 = vadd.f32 %v3679, %v3748
        %v3781 = vadd.f32 %v3680, %v3749
        %v3782 = vadd.f32 %v3681, %v3750
        %v3783 = vadd.f32 %v3682, %v3751
        %v3784 = vadd.f32 %v3683, %v3752
        %v3785 = vadd.f32 %v3684, %v3753
        %v3786 = vadd.f32 %v3685, %v3754
        %v3787 = vadd.f32 %v3686, %v3755
        %v3788 = vadd.f32 %v3687, %v3756
        %v3789 = vadd.f32 %v3688, %v3757
        %v3790 = vadd.f32 %v3689, %v3758
        %v3791 = vld [vmem:[#allocation2 + $0x4] sm:$0xff]
        %v3792 = vld [vmem:[#allocation2 + $0xc] sm:$0xff]
        %v3793 = vld [vmem:[#allocation2 + $0x1c] sm:$0xff]
        %v3794 = vld [vmem:[#allocation2 + $0x24] sm:$0xff]
        %v3795 = vld [vmem:[#allocation2 + $0x34] sm:$0xff]
        %v3796 = vld [vmem:[#allocation2 + $0x3c] sm:$0xff]
        %v3797 = vld [vmem:[#allocation2 + $0x4c] sm:$0xff]
        %v3798 = vld [vmem:[#allocation2 + $0x54] sm:$0xff]
        %v3799 = vld [vmem:[#allocation2 + $0x64] sm:$0xff]
        %v3800 = vld [vmem:[#allocation2 + $0x6c] sm:$0xff]
        %v3801 = vld [vmem:[#allocation2 + $0x7c] sm:$0xff]
        %v3802 = vld [vmem:[#allocation2 + $0x84] sm:$0xff]
        %v3803 = vld [vmem:[#allocation2 + $0x94] sm:$0xff]
        %v3804 = vld [vmem:[#allocation2 + $0x9c] sm:$0xff]
        %v3805 = vld [vmem:[#allocation2 + $0xac] sm:$0xff]
        %v3806 = vld [vmem:[#allocation2 + $0xb4] sm:$0xff]
        %v3807 = vld [vmem:[#allocation2 + $0xc4] sm:$0xff]
        %v3808 = vld [vmem:[#allocation2 + $0xcc] sm:$0xff]
        %v3809 = vld [vmem:[#allocation2 + $0xdc] sm:$0xff]
        %v3810 = vld [vmem:[#allocation2 + $0xe4] sm:$0xff]
        %v3811 = vld [vmem:[#allocation2 + $0xf4] sm:$0xff]
        %v3812 = vld [vmem:[#allocation2 + $0xfc] sm:$0xff]
        %v3813 = vld [vmem:[#allocation2 + $0x10c] sm:$0xff]
        %v3814 = vld [vmem:[#allocation2 + $0x114] sm:$0xff]
        %v3815 = vld [vmem:[#allocation2 + $0x124] sm:$0xff]
        %v3816 = vld [vmem:[#allocation2 + $0x12c] sm:$0xff]
        %v3817 = vld [vmem:[#allocation2 + $0x13c] sm:$0xff]
        %v3818 = vld [vmem:[#allocation2 + $0x144] sm:$0xff]
        %v3819 = vld [vmem:[#allocation2 + $0x154] sm:$0xff]
        %v3820 = vld [vmem:[#allocation2 + $0x15c] sm:$0xff]
        %v3821 = vld [vmem:[#allocation2 + $0x16c] sm:$0xff]
        %v3822 = vld [vmem:[#allocation2 + $0x174] sm:$0xff]
        %v3823 = vld [vmem:[%s5 + $0x4] sm:$0x1]
        %v3824 = vlaneseq
        %v3825 = vshrl.u32 %v3824, 7
        %v3826 = vsub.s32 0, %v3825
        %v3827 = vrot.slane %v3823, %v3826
        %v3828 = vmul.f32 %v3791, %v3827
        %v3829 = vmul.f32 %v3792, %v3827
        %v3830 = vmul.f32 %v3793, %v3827
        %v3831 = vmul.f32 %v3794, %v3827
        %v3832 = vmul.f32 %v3795, %v3827
        %v3833 = vmul.f32 %v3796, %v3827
        %v3834 = vmul.f32 %v3797, %v3827
        %v3835 = vmul.f32 %v3798, %v3827
        %v3836 = vmul.f32 %v3799, %v3827
        %v3837 = vmul.f32 %v3800, %v3827
        %v3838 = vmul.f32 %v3801, %v3827
        %v3839 = vmul.f32 %v3802, %v3827
        %v3840 = vmul.f32 %v3803, %v3827
        %v3841 = vmul.f32 %v3804, %v3827
        %v3842 = vmul.f32 %v3805, %v3827
        %v3843 = vmul.f32 %v3806, %v3827
        %v3844 = vmul.f32 %v3807, %v3827
        %v3845 = vmul.f32 %v3808, %v3827
        %v3846 = vmul.f32 %v3809, %v3827
        %v3847 = vmul.f32 %v3810, %v3827
        %v3848 = vmul.f32 %v3811, %v3827
        %v3849 = vmul.f32 %v3812, %v3827
        %v3850 = vmul.f32 %v3813, %v3827
        %v3851 = vmul.f32 %v3814, %v3827
        %v3852 = vmul.f32 %v3815, %v3827
        %v3853 = vmul.f32 %v3816, %v3827
        %v3854 = vmul.f32 %v3817, %v3827
        %v3855 = vmul.f32 %v3818, %v3827
        %v3856 = vmul.f32 %v3819, %v3827
        %v3857 = vmul.f32 %v3820, %v3827
        %v3858 = vmul.f32 %v3821, %v3827
        %v3859 = vmul.f32 %v3822, %v3827
        %v3860 = vadd.f32 %v3759, %v3828
        %v3861 = vadd.f32 %v3760, %v3829
        %v3862 = vadd.f32 %v3761, %v3830
        %v3863 = vadd.f32 %v3762, %v3831
        %v3864 = vadd.f32 %v3763, %v3832
        %v3865 = vadd.f32 %v3764, %v3833
        %v3866 = vadd.f32 %v3765, %v3834
        %v3867 = vadd.f32 %v3766, %v3835
        %v3868 = vadd.f32 %v3767, %v3836
        %v3869 = vadd.f32 %v3768, %v3837
        %v3870 = vadd.f32 %v3769, %v3838
        %v3871 = vadd.f32 %v3770, %v3839
        %v3872 = vadd.f32 %v3771, %v3840
        %v3873 = vadd.f32 %v3772, %v3841
        %v3874 = vadd.f32 %v3773, %v3842
        %v3875 = vadd.f32 %v3774, %v3843
        %v3876 = vadd.f32 %v3775, %v3844
        %v3877 = vadd.f32 %v3776, %v3845
        %v3878 = vadd.f32 %v3777, %v3846
        %v3879 = vadd.f32 %v3778, %v3847
        %v3880 = vadd.f32 %v3779, %v3848
        %v3881 = vadd.f32 %v3780, %v3849
        %v3882 = vadd.f32 %v3781, %v3850
        %v3883 = vadd.f32 %v3782, %v3851
        %v3884 = vadd.f32 %v3783, %v3852
        %v3885 = vadd.f32 %v3784, %v3853
        %v3886 = vadd.f32 %v3785, %v3854
        %v3887 = vadd.f32 %v3786, %v3855
        %v3888 = vadd.f32 %v3787, %v3856
        %v3889 = vadd.f32 %v3788, %v3857
        %v3890 = vadd.f32 %v3789, %v3858
        %v3891 = vadd.f32 %v3790, %v3859
        %v3892 = vld [vmem:[%s2403] sm:$0xff]
        %v3893 = vld [vmem:[%s2403 + $0x8] sm:$0xff]
        %v3894 = vld [vmem:[%s2403 + $0x18] sm:$0xff]
        %v3895 = vld [vmem:[%s2403 + $0x20] sm:$0xff]
        %v3896 = vld [vmem:[%s2403 + $0x30] sm:$0xff]
        %v3897 = vld [vmem:[%s2403 + $0x38] sm:$0xff]
        %v3898 = vld [vmem:[%s2403 + $0x48] sm:$0xff]
        %v3899 = vld [vmem:[%s2403 + $0x50] sm:$0xff]
        %v3900 = vld [vmem:[%s2403 + $0x60] sm:$0xff]
        %v3901 = vld [vmem:[%s2403 + $0x68] sm:$0xff]
        %v3902 = vld [vmem:[%s2403 + $0x78] sm:$0xff]
        %v3903 = vld [vmem:[%s2403 + $0x80] sm:$0xff]
        %v3904 = vld [vmem:[%s2403 + $0x90] sm:$0xff]
        %v3905 = vld [vmem:[%s2403 + $0x98] sm:$0xff]
        %v3906 = vld [vmem:[%s2403 + $0xa8] sm:$0xff]
        %v3907 = vld [vmem:[%s2403 + $0xb0] sm:$0xff]
        %v3908 = vld [vmem:[%s2403 + $0xc0] sm:$0xff]
        %v3909 = vld [vmem:[%s2403 + $0xc8] sm:$0xff]
        %v3910 = vld [vmem:[%s2403 + $0xd8] sm:$0xff]
        %v3911 = vld [vmem:[%s2403 + $0xe0] sm:$0xff]
        %v3912 = vld [vmem:[%s2403 + $0xf0] sm:$0xff]
        %v3913 = vld [vmem:[%s2403 + $0xf8] sm:$0xff]
        %v3914 = vld [vmem:[%s2403 + $0x108] sm:$0xff]
        %v3915 = vld [vmem:[%s2403 + $0x110] sm:$0xff]
        %v3916 = vld [vmem:[%s2403 + $0x120] sm:$0xff]
        %v3917 = vld [vmem:[%s2403 + $0x128] sm:$0xff]
        %v3918 = vld [vmem:[%s2403 + $0x138] sm:$0xff]
        %v3919 = vld [vmem:[%s2403 + $0x140] sm:$0xff]
        %v3920 = vld [vmem:[%s2403 + $0x150] sm:$0xff]
        %v3921 = vld [vmem:[%s2403 + $0x158] sm:$0xff]
        %v3922 = vld [vmem:[%s2403 + $0x168] sm:$0xff]
        %v3923 = vld [vmem:[%s2403 + $0x170] sm:$0xff]
        %s3924 = scalar_lea.vmem %s5, 8
        %v3925 = vld [vmem:[%s3924] sm:$0x1]
        %v3926 = vlaneseq
        %v3927 = vshrl.u32 %v3926, 7
        %v3928 = vsub.s32 0, %v3927
        %v3929 = vrot.slane %v3925, %v3928
        %v3930 = vmul.f32 %v3892, %v3929
        %v3931 = vmul.f32 %v3893, %v3929
        %v3932 = vmul.f32 %v3894, %v3929
        %v3933 = vmul.f32 %v3895, %v3929
        %v3934 = vmul.f32 %v3896, %v3929
        %v3935 = vmul.f32 %v3897, %v3929
        %v3936 = vmul.f32 %v3898, %v3929
        %v3937 = vmul.f32 %v3899, %v3929
        %v3938 = vmul.f32 %v3900, %v3929
        %v3939 = vmul.f32 %v3901, %v3929
        %v3940 = vmul.f32 %v3902, %v3929
        %v3941 = vmul.f32 %v3903, %v3929
        %v3942 = vmul.f32 %v3904, %v3929
        %v3943 = vmul.f32 %v3905, %v3929
        %v3944 = vmul.f32 %v3906, %v3929
        %v3945 = vmul.f32 %v3907, %v3929
        %v3946 = vmul.f32 %v3908, %v3929
        %v3947 = vmul.f32 %v3909, %v3929
        %v3948 = vmul.f32 %v3910, %v3929
        %v3949 = vmul.f32 %v3911, %v3929
        %v3950 = vmul.f32 %v3912, %v3929
        %v3951 = vmul.f32 %v3913, %v3929
        %v3952 = vmul.f32 %v3914, %v3929
        %v3953 = vmul.f32 %v3915, %v3929
        %v3954 = vmul.f32 %v3916, %v3929
        %v3955 = vmul.f32 %v3917, %v3929
        %v3956 = vmul.f32 %v3918, %v3929
        %v3957 = vmul.f32 %v3919, %v3929
        %v3958 = vmul.f32 %v3920, %v3929
        %v3959 = vmul.f32 %v3921, %v3929
        %v3960 = vmul.f32 %v3922, %v3929
        %v3961 = vmul.f32 %v3923, %v3929
        %v3962 = vadd.f32 %v3860, %v3930
        %v3963 = vadd.f32 %v3861, %v3931
        %v3964 = vadd.f32 %v3862, %v3932
        %v3965 = vadd.f32 %v3863, %v3933
        %v3966 = vadd.f32 %v3864, %v3934
        %v3967 = vadd.f32 %v3865, %v3935
        %v3968 = vadd.f32 %v3866, %v3936
        %v3969 = vadd.f32 %v3867, %v3937
        %v3970 = vadd.f32 %v3868, %v3938
        %v3971 = vadd.f32 %v3869, %v3939
        %v3972 = vadd.f32 %v3870, %v3940
        %v3973 = vadd.f32 %v3871, %v3941
        %v3974 = vadd.f32 %v3872, %v3942
        %v3975 = vadd.f32 %v3873, %v3943
        %v3976 = vadd.f32 %v3874, %v3944
        %v3977 = vadd.f32 %v3875, %v3945
        %v3978 = vadd.f32 %v3876, %v3946
        %v3979 = vadd.f32 %v3877, %v3947
        %v3980 = vadd.f32 %v3878, %v3948
        %v3981 = vadd.f32 %v3879, %v3949
        %v3982 = vadd.f32 %v3880, %v3950
        %v3983 = vadd.f32 %v3881, %v3951
        %v3984 = vadd.f32 %v3882, %v3952
        %v3985 = vadd.f32 %v3883, %v3953
        %v3986 = vadd.f32 %v3884, %v3954
        %v3987 = vadd.f32 %v3885, %v3955
        %v3988 = vadd.f32 %v3886, %v3956
        %v3989 = vadd.f32 %v3887, %v3957
        %v3990 = vadd.f32 %v3888, %v3958
        %v3991 = vadd.f32 %v3889, %v3959
        %v3992 = vadd.f32 %v3890, %v3960
        %v3993 = vadd.f32 %v3891, %v3961
        %v3994 = vld [vmem:[%s3924 + $0x1] sm:$0x1]
        %v3995 = vlaneseq
        %v3996 = vshrl.u32 %v3995, 7
        %v3997 = vsub.s32 0, %v3996
        %v3998 = vrot.slane %v3994, %v3997
        %v3999 = vmul.f32 %v2404, %v3998
        %v4000 = vmul.f32 %v2405, %v3998
        %v4001 = vmul.f32 %v2406, %v3998
        %v4002 = vmul.f32 %v2407, %v3998
        %v4003 = vmul.f32 %v2408, %v3998
        %v4004 = vmul.f32 %v2409, %v3998
        %v4005 = vmul.f32 %v2410, %v3998
        %v4006 = vmul.f32 %v2411, %v3998
        %v4007 = vmul.f32 %v2412, %v3998
        %v4008 = vmul.f32 %v2413, %v3998
        %v4009 = vmul.f32 %v2414, %v3998
        %v4010 = vmul.f32 %v2415, %v3998
        %v4011 = vmul.f32 %v2416, %v3998
        %v4012 = vmul.f32 %v2417, %v3998
        %v4013 = vmul.f32 %v2418, %v3998
        %v4014 = vmul.f32 %v2419, %v3998
        %v4015 = vmul.f32 %v2420, %v3998
        %v4016 = vmul.f32 %v2421, %v3998
        %v4017 = vmul.f32 %v2422, %v3998
        %v4018 = vmul.f32 %v2423, %v3998
        %v4019 = vmul.f32 %v2424, %v3998
        %v4020 = vmul.f32 %v2425, %v3998
        %v4021 = vmul.f32 %v2426, %v3998
        %v4022 = vmul.f32 %v2427, %v3998
        %v4023 = vmul.f32 %v2428, %v3998
        %v4024 = vmul.f32 %v2429, %v3998
        %v4025 = vmul.f32 %v2430, %v3998
        %v4026 = vmul.f32 %v2431, %v3998
        %v4027 = vmul.f32 %v2432, %v3998
        %v4028 = vmul.f32 %v2433, %v3998
        %v4029 = vmul.f32 %v2434, %v3998
        %v4030 = vmul.f32 %v2435, %v3998
        %v4031 = vadd.f32 %v3962, %v3999
        %v4032 = vadd.f32 %v3963, %v4000
        %v4033 = vadd.f32 %v3964, %v4001
        %v4034 = vadd.f32 %v3965, %v4002
        %v4035 = vadd.f32 %v3966, %v4003
        %v4036 = vadd.f32 %v3967, %v4004
        %v4037 = vadd.f32 %v3968, %v4005
        %v4038 = vadd.f32 %v3969, %v4006
        %v4039 = vadd.f32 %v3970, %v4007
        %v4040 = vadd.f32 %v3971, %v4008
        %v4041 = vadd.f32 %v3972, %v4009
        %v4042 = vadd.f32 %v3973, %v4010
        %v4043 = vadd.f32 %v3974, %v4011
        %v4044 = vadd.f32 %v3975, %v4012
        %v4045 = vadd.f32 %v3976, %v4013
        %v4046 = vadd.f32 %v3977, %v4014
        %v4047 = vadd.f32 %v3978, %v4015
        %v4048 = vadd.f32 %v3979, %v4016
        %v4049 = vadd.f32 %v3980, %v4017
        %v4050 = vadd.f32 %v3981, %v4018
        %v4051 = vadd.f32 %v3982, %v4019
        %v4052 = vadd.f32 %v3983, %v4020
        %v4053 = vadd.f32 %v3984, %v4021
        %v4054 = vadd.f32 %v3985, %v4022
        %v4055 = vadd.f32 %v3986, %v4023
        %v4056 = vadd.f32 %v3987, %v4024
        %v4057 = vadd.f32 %v3988, %v4025
        %v4058 = vadd.f32 %v3989, %v4026
        %v4059 = vadd.f32 %v3990, %v4027
        %v4060 = vadd.f32 %v3991, %v4028
        %v4061 = vadd.f32 %v3992, %v4029
        %v4062 = vadd.f32 %v3993, %v4030
        %v4063 = vld [vmem:[%s3924 + $0x2] sm:$0x1]
        %v4064 = vlaneseq
        %v4065 = vshrl.u32 %v4064, 7
        %v4066 = vsub.s32 0, %v4065
        %v4067 = vrot.slane %v4063, %v4066
        %v4068 = vmul.f32 %v2505, %v4067
        %v4069 = vmul.f32 %v2506, %v4067
        %v4070 = vmul.f32 %v2507, %v4067
        %v4071 = vmul.f32 %v2508, %v4067
        %v4072 = vmul.f32 %v2509, %v4067
        %v4073 = vmul.f32 %v2510, %v4067
        %v4074 = vmul.f32 %v2511, %v4067
        %v4075 = vmul.f32 %v2512, %v4067
        %v4076 = vmul.f32 %v2513, %v4067
        %v4077 = vmul.f32 %v2514, %v4067
        %v4078 = vmul.f32 %v2515, %v4067
        %v4079 = vmul.f32 %v2516, %v4067
        %v4080 = vmul.f32 %v2517, %v4067
        %v4081 = vmul.f32 %v2518, %v4067
        %v4082 = vmul.f32 %v2519, %v4067
        %v4083 = vmul.f32 %v2520, %v4067
        %v4084 = vmul.f32 %v2521, %v4067
        %v4085 = vmul.f32 %v2522, %v4067
        %v4086 = vmul.f32 %v2523, %v4067
        %v4087 = vmul.f32 %v2524, %v4067
        %v4088 = vmul.f32 %v2525, %v4067
        %v4089 = vmul.f32 %v2526, %v4067
        %v4090 = vmul.f32 %v2527, %v4067
        %v4091 = vmul.f32 %v2528, %v4067
        %v4092 = vmul.f32 %v2529, %v4067
        %v4093 = vmul.f32 %v2530, %v4067
        %v4094 = vmul.f32 %v2531, %v4067
        %v4095 = vmul.f32 %v2532, %v4067
        %v4096 = vmul.f32 %v2533, %v4067
        %v4097 = vmul.f32 %v2534, %v4067
        %v4098 = vmul.f32 %v2535, %v4067
        %v4099 = vmul.f32 %v2536, %v4067
        %v4100 = vadd.f32 %v4031, %v4068
        %v4101 = vadd.f32 %v4032, %v4069
        %v4102 = vadd.f32 %v4033, %v4070
        %v4103 = vadd.f32 %v4034, %v4071
        %v4104 = vadd.f32 %v4035, %v4072
        %v4105 = vadd.f32 %v4036, %v4073
        %v4106 = vadd.f32 %v4037, %v4074
        %v4107 = vadd.f32 %v4038, %v4075
        %v4108 = vadd.f32 %v4039, %v4076
        %v4109 = vadd.f32 %v4040, %v4077
        %v4110 = vadd.f32 %v4041, %v4078
        %v4111 = vadd.f32 %v4042, %v4079
        %v4112 = vadd.f32 %v4043, %v4080
        %v4113 = vadd.f32 %v4044, %v4081
        %v4114 = vadd.f32 %v4045, %v4082
        %v4115 = vadd.f32 %v4046, %v4083
        %v4116 = vadd.f32 %v4047, %v4084
        %v4117 = vadd.f32 %v4048, %v4085
        %v4118 = vadd.f32 %v4049, %v4086
        %v4119 = vadd.f32 %v4050, %v4087
        %v4120 = vadd.f32 %v4051, %v4088
        %v4121 = vadd.f32 %v4052, %v4089
        %v4122 = vadd.f32 %v4053, %v4090
        %v4123 = vadd.f32 %v4054, %v4091
        %v4124 = vadd.f32 %v4055, %v4092
        %v4125 = vadd.f32 %v4056, %v4093
        %v4126 = vadd.f32 %v4057, %v4094
        %v4127 = vadd.f32 %v4058, %v4095
        %v4128 = vadd.f32 %v4059, %v4096
        %v4129 = vadd.f32 %v4060, %v4097
        %v4130 = vadd.f32 %v4061, %v4098
        %v4131 = vadd.f32 %v4062, %v4099
        %v4132 = vld [vmem:[%s3924 + $0x3] sm:$0x1]
        %v4133 = vlaneseq
        %v4134 = vshrl.u32 %v4133, 7
        %v4135 = vsub.s32 0, %v4134
        %v4136 = vrot.slane %v4132, %v4135
        %v4137 = vmul.f32 %v2606, %v4136
        %v4138 = vmul.f32 %v2607, %v4136
        %v4139 = vmul.f32 %v2608, %v4136
        %v4140 = vmul.f32 %v2609, %v4136
        %v4141 = vmul.f32 %v2610, %v4136
        %v4142 = vmul.f32 %v2611, %v4136
        %v4143 = vmul.f32 %v2612, %v4136
        %v4144 = vmul.f32 %v2613, %v4136
        %v4145 = vmul.f32 %v2614, %v4136
        %v4146 = vmul.f32 %v2615, %v4136
        %v4147 = vmul.f32 %v2616, %v4136
        %v4148 = vmul.f32 %v2617, %v4136
        %v4149 = vmul.f32 %v2618, %v4136
        %v4150 = vmul.f32 %v2619, %v4136
        %v4151 = vmul.f32 %v2620, %v4136
        %v4152 = vmul.f32 %v2621, %v4136
        %v4153 = vmul.f32 %v2622, %v4136
        %v4154 = vmul.f32 %v2623, %v4136
        %v4155 = vmul.f32 %v2624, %v4136
        %v4156 = vmul.f32 %v2625, %v4136
        %v4157 = vmul.f32 %v2626, %v4136
        %v4158 = vmul.f32 %v2627, %v4136
        %v4159 = vmul.f32 %v2628, %v4136
        %v4160 = vmul.f32 %v2629, %v4136
        %v4161 = vmul.f32 %v2630, %v4136
        %v4162 = vmul.f32 %v2631, %v4136
        %v4163 = vmul.f32 %v2632, %v4136
        %v4164 = vmul.f32 %v2633, %v4136
        %v4165 = vmul.f32 %v2634, %v4136
        %v4166 = vmul.f32 %v2635, %v4136
        %v4167 = vmul.f32 %v2636, %v4136
        %v4168 = vmul.f32 %v2637, %v4136
        %v4169 = vadd.f32 %v4100, %v4137
        %v4170 = vadd.f32 %v4101, %v4138
        %v4171 = vadd.f32 %v4102, %v4139
        %v4172 = vadd.f32 %v4103, %v4140
        %v4173 = vadd.f32 %v4104, %v4141
        %v4174 = vadd.f32 %v4105, %v4142
        %v4175 = vadd.f32 %v4106, %v4143
        %v4176 = vadd.f32 %v4107, %v4144
        %v4177 = vadd.f32 %v4108, %v4145
        %v4178 = vadd.f32 %v4109, %v4146
        %v4179 = vadd.f32 %v4110, %v4147
        %v4180 = vadd.f32 %v4111, %v4148
        %v4181 = vadd.f32 %v4112, %v4149
        %v4182 = vadd.f32 %v4113, %v4150
        %v4183 = vadd.f32 %v4114, %v4151
        %v4184 = vadd.f32 %v4115, %v4152
        %v4185 = vadd.f32 %v4116, %v4153
        %v4186 = vadd.f32 %v4117, %v4154
        %v4187 = vadd.f32 %v4118, %v4155
        %v4188 = vadd.f32 %v4119, %v4156
        %v4189 = vadd.f32 %v4120, %v4157
        %v4190 = vadd.f32 %v4121, %v4158
        %v4191 = vadd.f32 %v4122, %v4159
        %v4192 = vadd.f32 %v4123, %v4160
        %v4193 = vadd.f32 %v4124, %v4161
        %v4194 = vadd.f32 %v4125, %v4162
        %v4195 = vadd.f32 %v4126, %v4163
        %v4196 = vadd.f32 %v4127, %v4164
        %v4197 = vadd.f32 %v4128, %v4165
        %v4198 = vadd.f32 %v4129, %v4166
        %v4199 = vadd.f32 %v4130, %v4167
        %v4200 = vadd.f32 %v4131, %v4168
        %v4201 = vld [vmem:[%s2403 + $0x4] sm:$0xff]
        %v4202 = vld [vmem:[%s2403 + $0xc] sm:$0xff]
        %v4203 = vld [vmem:[%s2403 + $0x1c] sm:$0xff]
        %v4204 = vld [vmem:[%s2403 + $0x24] sm:$0xff]
        %v4205 = vld [vmem:[%s2403 + $0x34] sm:$0xff]
        %v4206 = vld [vmem:[%s2403 + $0x3c] sm:$0xff]
        %v4207 = vld [vmem:[%s2403 + $0x4c] sm:$0xff]
        %v4208 = vld [vmem:[%s2403 + $0x54] sm:$0xff]
        %v4209 = vld [vmem:[%s2403 + $0x64] sm:$0xff]
        %v4210 = vld [vmem:[%s2403 + $0x6c] sm:$0xff]
        %v4211 = vld [vmem:[%s2403 + $0x7c] sm:$0xff]
        %v4212 = vld [vmem:[%s2403 + $0x84] sm:$0xff]
        %v4213 = vld [vmem:[%s2403 + $0x94] sm:$0xff]
        %v4214 = vld [vmem:[%s2403 + $0x9c] sm:$0xff]
        %v4215 = vld [vmem:[%s2403 + $0xac] sm:$0xff]
        %v4216 = vld [vmem:[%s2403 + $0xb4] sm:$0xff]
        %v4217 = vld [vmem:[%s2403 + $0xc4] sm:$0xff]
        %v4218 = vld [vmem:[%s2403 + $0xcc] sm:$0xff]
        %v4219 = vld [vmem:[%s2403 + $0xdc] sm:$0xff]
        %v4220 = vld [vmem:[%s2403 + $0xe4] sm:$0xff]
        %v4221 = vld [vmem:[%s2403 + $0xf4] sm:$0xff]
        %v4222 = vld [vmem:[%s2403 + $0xfc] sm:$0xff]
        %v4223 = vld [vmem:[%s2403 + $0x10c] sm:$0xff]
        %v4224 = vld [vmem:[%s2403 + $0x114] sm:$0xff]
        %v4225 = vld [vmem:[%s2403 + $0x124] sm:$0xff]
        %v4226 = vld [vmem:[%s2403 + $0x12c] sm:$0xff]
        %v4227 = vld [vmem:[%s2403 + $0x13c] sm:$0xff]
        %v4228 = vld [vmem:[%s2403 + $0x144] sm:$0xff]
        %v4229 = vld [vmem:[%s2403 + $0x154] sm:$0xff]
        %v4230 = vld [vmem:[%s2403 + $0x15c] sm:$0xff]
        %v4231 = vld [vmem:[%s2403 + $0x16c] sm:$0xff]
        %v4232 = vld [vmem:[%s2403 + $0x174] sm:$0xff]
        %v4233 = vld [vmem:[%s3924 + $0x4] sm:$0x1]
        %v4234 = vlaneseq
        %v4235 = vshrl.u32 %v4234, 7
        %v4236 = vsub.s32 0, %v4235
        %v4237 = vrot.slane %v4233, %v4236
        %v4238 = vmul.f32 %v4201, %v4237
        %v4239 = vmul.f32 %v4202, %v4237
        %v4240 = vmul.f32 %v4203, %v4237
        %v4241 = vmul.f32 %v4204, %v4237
        %v4242 = vmul.f32 %v4205, %v4237
        %v4243 = vmul.f32 %v4206, %v4237
        %v4244 = vmul.f32 %v4207, %v4237
        %v4245 = vmul.f32 %v4208, %v4237
        %v4246 = vmul.f32 %v4209, %v4237
        %v4247 = vmul.f32 %v4210, %v4237
        %v4248 = vmul.f32 %v4211, %v4237
        %v4249 = vmul.f32 %v4212, %v4237
        %v4250 = vmul.f32 %v4213, %v4237
        %v4251 = vmul.f32 %v4214, %v4237
        %v4252 = vmul.f32 %v4215, %v4237
        %v4253 = vmul.f32 %v4216, %v4237
        %v4254 = vmul.f32 %v4217, %v4237
        %v4255 = vmul.f32 %v4218, %v4237
        %v4256 = vmul.f32 %v4219, %v4237
        %v4257 = vmul.f32 %v4220, %v4237
        %v4258 = vmul.f32 %v4221, %v4237
        %v4259 = vmul.f32 %v4222, %v4237
        %v4260 = vmul.f32 %v4223, %v4237
        %v4261 = vmul.f32 %v4224, %v4237
        %v4262 = vmul.f32 %v4225, %v4237
        %v4263 = vmul.f32 %v4226, %v4237
        %v4264 = vmul.f32 %v4227, %v4237
        %v4265 = vmul.f32 %v4228, %v4237
        %v4266 = vmul.f32 %v4229, %v4237
        %v4267 = vmul.f32 %v4230, %v4237
        %v4268 = vmul.f32 %v4231, %v4237
        %v4269 = vmul.f32 %v4232, %v4237
        %v4270 = vadd.f32 %v4169, %v4238
        %v4271 = vadd.f32 %v4170, %v4239
        %v4272 = vadd.f32 %v4171, %v4240
        %v4273 = vadd.f32 %v4172, %v4241
        %v4274 = vadd.f32 %v4173, %v4242
        %v4275 = vadd.f32 %v4174, %v4243
        %v4276 = vadd.f32 %v4175, %v4244
        %v4277 = vadd.f32 %v4176, %v4245
        %v4278 = vadd.f32 %v4177, %v4246
        %v4279 = vadd.f32 %v4178, %v4247
        %v4280 = vadd.f32 %v4179, %v4248
        %v4281 = vadd.f32 %v4180, %v4249
        %v4282 = vadd.f32 %v4181, %v4250
        %v4283 = vadd.f32 %v4182, %v4251
        %v4284 = vadd.f32 %v4183, %v4252
        %v4285 = vadd.f32 %v4184, %v4253
        %v4286 = vadd.f32 %v4185, %v4254
        %v4287 = vadd.f32 %v4186, %v4255
        %v4288 = vadd.f32 %v4187, %v4256
        %v4289 = vadd.f32 %v4188, %v4257
        %v4290 = vadd.f32 %v4189, %v4258
        %v4291 = vadd.f32 %v4190, %v4259
        %v4292 = vadd.f32 %v4191, %v4260
        %v4293 = vadd.f32 %v4192, %v4261
        %v4294 = vadd.f32 %v4193, %v4262
        %v4295 = vadd.f32 %v4194, %v4263
        %v4296 = vadd.f32 %v4195, %v4264
        %v4297 = vadd.f32 %v4196, %v4265
        %v4298 = vadd.f32 %v4197, %v4266
        %v4299 = vadd.f32 %v4198, %v4267
        %v4300 = vadd.f32 %v4199, %v4268
        %v4301 = vadd.f32 %v4200, %v4269
        %v4302 = vld [vmem:[%s2370] sm:$0xff]
        %v4303 = vld [vmem:[%s2370 + $0x8] sm:$0xff]
        %v4304 = vld [vmem:[%s2370 + $0x18] sm:$0xff]
        %v4305 = vld [vmem:[%s2370 + $0x20] sm:$0xff]
        %v4306 = vld [vmem:[%s2370 + $0x30] sm:$0xff]
        %v4307 = vld [vmem:[%s2370 + $0x38] sm:$0xff]
        %v4308 = vld [vmem:[%s2370 + $0x48] sm:$0xff]
        %v4309 = vld [vmem:[%s2370 + $0x50] sm:$0xff]
        %v4310 = vld [vmem:[%s2370 + $0x60] sm:$0xff]
        %v4311 = vld [vmem:[%s2370 + $0x68] sm:$0xff]
        %v4312 = vld [vmem:[%s2370 + $0x78] sm:$0xff]
        %v4313 = vld [vmem:[%s2370 + $0x80] sm:$0xff]
        %v4314 = vld [vmem:[%s2370 + $0x90] sm:$0xff]
        %v4315 = vld [vmem:[%s2370 + $0x98] sm:$0xff]
        %v4316 = vld [vmem:[%s2370 + $0xa8] sm:$0xff]
        %v4317 = vld [vmem:[%s2370 + $0xb0] sm:$0xff]
        %v4318 = vld [vmem:[%s2370 + $0xc0] sm:$0xff]
        %v4319 = vld [vmem:[%s2370 + $0xc8] sm:$0xff]
        %v4320 = vld [vmem:[%s2370 + $0xd8] sm:$0xff]
        %v4321 = vld [vmem:[%s2370 + $0xe0] sm:$0xff]
        %v4322 = vld [vmem:[%s2370 + $0xf0] sm:$0xff]
        %v4323 = vld [vmem:[%s2370 + $0xf8] sm:$0xff]
        %v4324 = vld [vmem:[%s2370 + $0x108] sm:$0xff]
        %v4325 = vld [vmem:[%s2370 + $0x110] sm:$0xff]
        %v4326 = vld [vmem:[%s2370 + $0x120] sm:$0xff]
        %v4327 = vld [vmem:[%s2370 + $0x128] sm:$0xff]
        %v4328 = vld [vmem:[%s2370 + $0x138] sm:$0xff]
        %v4329 = vld [vmem:[%s2370 + $0x140] sm:$0xff]
        %v4330 = vld [vmem:[%s2370 + $0x150] sm:$0xff]
        %v4331 = vld [vmem:[%s2370 + $0x158] sm:$0xff]
        %v4332 = vld [vmem:[%s2370 + $0x168] sm:$0xff]
        %v4333 = vld [vmem:[%s2370 + $0x170] sm:$0xff]
        %s4334 = scalar_lea.vmem %s5, 16
        %v4335 = vld [vmem:[%s4334] sm:$0x1]
        %v4336 = vlaneseq
        %v4337 = vshrl.u32 %v4336, 7
        %v4338 = vsub.s32 0, %v4337
        %v4339 = vrot.slane %v4335, %v4338
        %v4340 = vmul.f32 %v4302, %v4339
        %v4341 = vmul.f32 %v4303, %v4339
        %v4342 = vmul.f32 %v4304, %v4339
        %v4343 = vmul.f32 %v4305, %v4339
        %v4344 = vmul.f32 %v4306, %v4339
        %v4345 = vmul.f32 %v4307, %v4339
        %v4346 = vmul.f32 %v4308, %v4339
        %v4347 = vmul.f32 %v4309, %v4339
        %v4348 = vmul.f32 %v4310, %v4339
        %v4349 = vmul.f32 %v4311, %v4339
        %v4350 = vmul.f32 %v4312, %v4339
        %v4351 = vmul.f32 %v4313, %v4339
        %v4352 = vmul.f32 %v4314, %v4339
        %v4353 = vmul.f32 %v4315, %v4339
        %v4354 = vmul.f32 %v4316, %v4339
        %v4355 = vmul.f32 %v4317, %v4339
        %v4356 = vmul.f32 %v4318, %v4339
        %v4357 = vmul.f32 %v4319, %v4339
        %v4358 = vmul.f32 %v4320, %v4339
        %v4359 = vmul.f32 %v4321, %v4339
        %v4360 = vmul.f32 %v4322, %v4339
        %v4361 = vmul.f32 %v4323, %v4339
        %v4362 = vmul.f32 %v4324, %v4339
        %v4363 = vmul.f32 %v4325, %v4339
        %v4364 = vmul.f32 %v4326, %v4339
        %v4365 = vmul.f32 %v4327, %v4339
        %v4366 = vmul.f32 %v4328, %v4339
        %v4367 = vmul.f32 %v4329, %v4339
        %v4368 = vmul.f32 %v4330, %v4339
        %v4369 = vmul.f32 %v4331, %v4339
        %v4370 = vmul.f32 %v4332, %v4339
        %v4371 = vmul.f32 %v4333, %v4339
        %v4372 = vadd.f32 %v4270, %v4340
        %v4373 = vadd.f32 %v4271, %v4341
        %v4374 = vadd.f32 %v4272, %v4342
        %v4375 = vadd.f32 %v4273, %v4343
        %v4376 = vadd.f32 %v4274, %v4344
        %v4377 = vadd.f32 %v4275, %v4345
        %v4378 = vadd.f32 %v4276, %v4346
        %v4379 = vadd.f32 %v4277, %v4347
        %v4380 = vadd.f32 %v4278, %v4348
        %v4381 = vadd.f32 %v4279, %v4349
        %v4382 = vadd.f32 %v4280, %v4350
        %v4383 = vadd.f32 %v4281, %v4351
        %v4384 = vadd.f32 %v4282, %v4352
        %v4385 = vadd.f32 %v4283, %v4353
        %v4386 = vadd.f32 %v4284, %v4354
        %v4387 = vadd.f32 %v4285, %v4355
        %v4388 = vadd.f32 %v4286, %v4356
        %v4389 = vadd.f32 %v4287, %v4357
        %v4390 = vadd.f32 %v4288, %v4358
        %v4391 = vadd.f32 %v4289, %v4359
        %v4392 = vadd.f32 %v4290, %v4360
        %v4393 = vadd.f32 %v4291, %v4361
        %v4394 = vadd.f32 %v4292, %v4362
        %v4395 = vadd.f32 %v4293, %v4363
        %v4396 = vadd.f32 %v4294, %v4364
        %v4397 = vadd.f32 %v4295, %v4365
        %v4398 = vadd.f32 %v4296, %v4366
        %v4399 = vadd.f32 %v4297, %v4367
        %v4400 = vadd.f32 %v4298, %v4368
        %v4401 = vadd.f32 %v4299, %v4369
        %v4402 = vadd.f32 %v4300, %v4370
        %v4403 = vadd.f32 %v4301, %v4371
        %v4404 = vld [vmem:[%s4334 + $0x1] sm:$0x1]
        %v4405 = vlaneseq
        %v4406 = vshrl.u32 %v4405, 7
        %v4407 = vsub.s32 0, %v4406
        %v4408 = vrot.slane %v4404, %v4407
        %v4409 = vmul.f32 %v2707, %v4408
        %v4410 = vmul.f32 %v2708, %v4408
        %v4411 = vmul.f32 %v2709, %v4408
        %v4412 = vmul.f32 %v2710, %v4408
        %v4413 = vmul.f32 %v2711, %v4408
        %v4414 = vmul.f32 %v2712, %v4408
        %v4415 = vmul.f32 %v2713, %v4408
        %v4416 = vmul.f32 %v2714, %v4408
        %v4417 = vmul.f32 %v2715, %v4408
        %v4418 = vmul.f32 %v2716, %v4408
        %v4419 = vmul.f32 %v2717, %v4408
        %v4420 = vmul.f32 %v2718, %v4408
        %v4421 = vmul.f32 %v2719, %v4408
        %v4422 = vmul.f32 %v2720, %v4408
        %v4423 = vmul.f32 %v2721, %v4408
        %v4424 = vmul.f32 %v2722, %v4408
        %v4425 = vmul.f32 %v2723, %v4408
        %v4426 = vmul.f32 %v2724, %v4408
        %v4427 = vmul.f32 %v2725, %v4408
        %v4428 = vmul.f32 %v2726, %v4408
        %v4429 = vmul.f32 %v2727, %v4408
        %v4430 = vmul.f32 %v2728, %v4408
        %v4431 = vmul.f32 %v2729, %v4408
        %v4432 = vmul.f32 %v2730, %v4408
        %v4433 = vmul.f32 %v2731, %v4408
        %v4434 = vmul.f32 %v2732, %v4408
        %v4435 = vmul.f32 %v2733, %v4408
        %v4436 = vmul.f32 %v2734, %v4408
        %v4437 = vmul.f32 %v2735, %v4408
        %v4438 = vmul.f32 %v2736, %v4408
        %v4439 = vmul.f32 %v2737, %v4408
        %v4440 = vmul.f32 %v2738, %v4408
        %v4441 = vadd.f32 %v4372, %v4409
        %v4442 = vadd.f32 %v4373, %v4410
        %v4443 = vadd.f32 %v4374, %v4411
        %v4444 = vadd.f32 %v4375, %v4412
        %v4445 = vadd.f32 %v4376, %v4413
        %v4446 = vadd.f32 %v4377, %v4414
        %v4447 = vadd.f32 %v4378, %v4415
        %v4448 = vadd.f32 %v4379, %v4416
        %v4449 = vadd.f32 %v4380, %v4417
        %v4450 = vadd.f32 %v4381, %v4418
        %v4451 = vadd.f32 %v4382, %v4419
        %v4452 = vadd.f32 %v4383, %v4420
        %v4453 = vadd.f32 %v4384, %v4421
        %v4454 = vadd.f32 %v4385, %v4422
        %v4455 = vadd.f32 %v4386, %v4423
        %v4456 = vadd.f32 %v4387, %v4424
        %v4457 = vadd.f32 %v4388, %v4425
        %v4458 = vadd.f32 %v4389, %v4426
        %v4459 = vadd.f32 %v4390, %v4427
        %v4460 = vadd.f32 %v4391, %v4428
        %v4461 = vadd.f32 %v4392, %v4429
        %v4462 = vadd.f32 %v4393, %v4430
        %v4463 = vadd.f32 %v4394, %v4431
        %v4464 = vadd.f32 %v4395, %v4432
        %v4465 = vadd.f32 %v4396, %v4433
        %v4466 = vadd.f32 %v4397, %v4434
        %v4467 = vadd.f32 %v4398, %v4435
        %v4468 = vadd.f32 %v4399, %v4436
        %v4469 = vadd.f32 %v4400, %v4437
        %v4470 = vadd.f32 %v4401, %v4438
        %v4471 = vadd.f32 %v4402, %v4439
        %v4472 = vadd.f32 %v4403, %v4440
        %v4473 = vld [vmem:[%s4334 + $0x2] sm:$0x1]
        %v4474 = vlaneseq
        %v4475 = vshrl.u32 %v4474, 7
        %v4476 = vsub.s32 0, %v4475
        %v4477 = vrot.slane %v4473, %v4476
        %v4478 = vmul.f32 %v2809, %v4477
        %v4479 = vmul.f32 %v2810, %v4477
        %v4480 = vmul.f32 %v2811, %v4477
        %v4481 = vmul.f32 %v2812, %v4477
        %v4482 = vmul.f32 %v2813, %v4477
        %v4483 = vmul.f32 %v2814, %v4477
        %v4484 = vmul.f32 %v2815, %v4477
        %v4485 = vmul.f32 %v2816, %v4477
        %v4486 = vmul.f32 %v2817, %v4477
        %v4487 = vmul.f32 %v2818, %v4477
        %v4488 = vmul.f32 %v2819, %v4477
        %v4489 = vmul.f32 %v2820, %v4477
        %v4490 = vmul.f32 %v2821, %v4477
        %v4491 = vmul.f32 %v2822, %v4477
        %v4492 = vmul.f32 %v2823, %v4477
        %v4493 = vmul.f32 %v2824, %v4477
        %v4494 = vmul.f32 %v2825, %v4477
        %v4495 = vmul.f32 %v2826, %v4477
        %v4496 = vmul.f32 %v2827, %v4477
        %v4497 = vmul.f32 %v2828, %v4477
        %v4498 = vmul.f32 %v2829, %v4477
        %v4499 = vmul.f32 %v2830, %v4477
        %v4500 = vmul.f32 %v2831, %v4477
        %v4501 = vmul.f32 %v2832, %v4477
        %v4502 = vmul.f32 %v2833, %v4477
        %v4503 = vmul.f32 %v2834, %v4477
        %v4504 = vmul.f32 %v2835, %v4477
        %v4505 = vmul.f32 %v2836, %v4477
        %v4506 = vmul.f32 %v2837, %v4477
        %v4507 = vmul.f32 %v2838, %v4477
        %v4508 = vmul.f32 %v2839, %v4477
        %v4509 = vmul.f32 %v2840, %v4477
        %v4510 = vadd.f32 %v4441, %v4478
        %v4511 = vadd.f32 %v4442, %v4479
        %v4512 = vadd.f32 %v4443, %v4480
        %v4513 = vadd.f32 %v4444, %v4481
        %v4514 = vadd.f32 %v4445, %v4482
        %v4515 = vadd.f32 %v4446, %v4483
        %v4516 = vadd.f32 %v4447, %v4484
        %v4517 = vadd.f32 %v4448, %v4485
        %v4518 = vadd.f32 %v4449, %v4486
        %v4519 = vadd.f32 %v4450, %v4487
        %v4520 = vadd.f32 %v4451, %v4488
        %v4521 = vadd.f32 %v4452, %v4489
        %v4522 = vadd.f32 %v4453, %v4490
        %v4523 = vadd.f32 %v4454, %v4491
        %v4524 = vadd.f32 %v4455, %v4492
        %v4525 = vadd.f32 %v4456, %v4493
        %v4526 = vadd.f32 %v4457, %v4494
        %v4527 = vadd.f32 %v4458, %v4495
        %v4528 = vadd.f32 %v4459, %v4496
        %v4529 = vadd.f32 %v4460, %v4497
        %v4530 = vadd.f32 %v4461, %v4498
        %v4531 = vadd.f32 %v4462, %v4499
        %v4532 = vadd.f32 %v4463, %v4500
        %v4533 = vadd.f32 %v4464, %v4501
        %v4534 = vadd.f32 %v4465, %v4502
        %v4535 = vadd.f32 %v4466, %v4503
        %v4536 = vadd.f32 %v4467, %v4504
        %v4537 = vadd.f32 %v4468, %v4505
        %v4538 = vadd.f32 %v4469, %v4506
        %v4539 = vadd.f32 %v4470, %v4507
        %v4540 = vadd.f32 %v4471, %v4508
        %v4541 = vadd.f32 %v4472, %v4509
        %v4542 = vld [vmem:[%s4334 + $0x3] sm:$0x1]
        %v4543 = vlaneseq
        %v4544 = vshrl.u32 %v4543, 7
        %v4545 = vsub.s32 0, %v4544
        %v4546 = vrot.slane %v4542, %v4545
        %v4547 = vmul.f32 %v2910, %v4546
        %v4548 = vmul.f32 %v2911, %v4546
        %v4549 = vmul.f32 %v2912, %v4546
        %v4550 = vmul.f32 %v2913, %v4546
        %v4551 = vmul.f32 %v2914, %v4546
        %v4552 = vmul.f32 %v2915, %v4546
        %v4553 = vmul.f32 %v2916, %v4546
        %v4554 = vmul.f32 %v2917, %v4546
        %v4555 = vmul.f32 %v2918, %v4546
        %v4556 = vmul.f32 %v2919, %v4546
        %v4557 = vmul.f32 %v2920, %v4546
        %v4558 = vmul.f32 %v2921, %v4546
        %v4559 = vmul.f32 %v2922, %v4546
        %v4560 = vmul.f32 %v2923, %v4546
        %v4561 = vmul.f32 %v2924, %v4546
        %v4562 = vmul.f32 %v2925, %v4546
        %v4563 = vmul.f32 %v2926, %v4546
        %v4564 = vmul.f32 %v2927, %v4546
        %v4565 = vmul.f32 %v2928, %v4546
        %v4566 = vmul.f32 %v2929, %v4546
        %v4567 = vmul.f32 %v2930, %v4546
        %v4568 = vmul.f32 %v2931, %v4546
        %v4569 = vmul.f32 %v2932, %v4546
        %v4570 = vmul.f32 %v2933, %v4546
        %v4571 = vmul.f32 %v2934, %v4546
        %v4572 = vmul.f32 %v2935, %v4546
        %v4573 = vmul.f32 %v2936, %v4546
        %v4574 = vmul.f32 %v2937, %v4546
        %v4575 = vmul.f32 %v2938, %v4546
        %v4576 = vmul.f32 %v2939, %v4546
        %v4577 = vmul.f32 %v2940, %v4546
        %v4578 = vmul.f32 %v2941, %v4546
        %v4579 = vadd.f32 %v4510, %v4547
        %v4580 = vadd.f32 %v4511, %v4548
        %v4581 = vadd.f32 %v4512, %v4549
        %v4582 = vadd.f32 %v4513, %v4550
        %v4583 = vadd.f32 %v4514, %v4551
        %v4584 = vadd.f32 %v4515, %v4552
        %v4585 = vadd.f32 %v4516, %v4553
        %v4586 = vadd.f32 %v4517, %v4554
        %v4587 = vadd.f32 %v4518, %v4555
        %v4588 = vadd.f32 %v4519, %v4556
        %v4589 = vadd.f32 %v4520, %v4557
        %v4590 = vadd.f32 %v4521, %v4558
        %v4591 = vadd.f32 %v4522, %v4559
        %v4592 = vadd.f32 %v4523, %v4560
        %v4593 = vadd.f32 %v4524, %v4561
        %v4594 = vadd.f32 %v4525, %v4562
        %v4595 = vadd.f32 %v4526, %v4563
        %v4596 = vadd.f32 %v4527, %v4564
        %v4597 = vadd.f32 %v4528, %v4565
        %v4598 = vadd.f32 %v4529, %v4566
        %v4599 = vadd.f32 %v4530, %v4567
        %v4600 = vadd.f32 %v4531, %v4568
        %v4601 = vadd.f32 %v4532, %v4569
        %v4602 = vadd.f32 %v4533, %v4570
        %v4603 = vadd.f32 %v4534, %v4571
        %v4604 = vadd.f32 %v4535, %v4572
        %v4605 = vadd.f32 %v4536, %v4573
        %v4606 = vadd.f32 %v4537, %v4574
        %v4607 = vadd.f32 %v4538, %v4575
        %v4608 = vadd.f32 %v4539, %v4576
        %v4609 = vadd.f32 %v4540, %v4577
        %v4610 = vadd.f32 %v4541, %v4578
        %v4611 = vld [vmem:[%s2370 + $0x4] sm:$0xff]
        %v4612 = vld [vmem:[%s2370 + $0xc] sm:$0xff]
        %v4613 = vld [vmem:[%s2370 + $0x1c] sm:$0xff]
        %v4614 = vld [vmem:[%s2370 + $0x24] sm:$0xff]
        %v4615 = vld [vmem:[%s2370 + $0x34] sm:$0xff]
        %v4616 = vld [vmem:[%s2370 + $0x3c] sm:$0xff]
        %v4617 = vld [vmem:[%s2370 + $0x4c] sm:$0xff]
        %v4618 = vld [vmem:[%s2370 + $0x54] sm:$0xff]
        %v4619 = vld [vmem:[%s2370 + $0x64] sm:$0xff]
        %v4620 = vld [vmem:[%s2370 + $0x6c] sm:$0xff]
        %v4621 = vld [vmem:[%s2370 + $0x7c] sm:$0xff]
        %v4622 = vld [vmem:[%s2370 + $0x84] sm:$0xff]
        %v4623 = vld [vmem:[%s2370 + $0x94] sm:$0xff]
        %v4624 = vld [vmem:[%s2370 + $0x9c] sm:$0xff]
        %v4625 = vld [vmem:[%s2370 + $0xac] sm:$0xff]
        %v4626 = vld [vmem:[%s2370 + $0xb4] sm:$0xff]
        %v4627 = vld [vmem:[%s2370 + $0xc4] sm:$0xff]
        %v4628 = vld [vmem:[%s2370 + $0xcc] sm:$0xff]
        %v4629 = vld [vmem:[%s2370 + $0xdc] sm:$0xff]
        %v4630 = vld [vmem:[%s2370 + $0xe4] sm:$0xff]
        %v4631 = vld [vmem:[%s2370 + $0xf4] sm:$0xff]
        %v4632 = vld [vmem:[%s2370 + $0xfc] sm:$0xff]
        %v4633 = vld [vmem:[%s2370 + $0x10c] sm:$0xff]
        %v4634 = vld [vmem:[%s2370 + $0x114] sm:$0xff]
        %v4635 = vld [vmem:[%s2370 + $0x124] sm:$0xff]
        %v4636 = vld [vmem:[%s2370 + $0x12c] sm:$0xff]
        %v4637 = vld [vmem:[%s2370 + $0x13c] sm:$0xff]
        %v4638 = vld [vmem:[%s2370 + $0x144] sm:$0xff]
        %v4639 = vld [vmem:[%s2370 + $0x154] sm:$0xff]
        %v4640 = vld [vmem:[%s2370 + $0x15c] sm:$0xff]
        %v4641 = vld [vmem:[%s2370 + $0x16c] sm:$0xff]
        %v4642 = vld [vmem:[%s2370 + $0x174] sm:$0xff]
        %v4643 = vld [vmem:[%s4334 + $0x4] sm:$0x1]
        %v4644 = vlaneseq
        %v4645 = vshrl.u32 %v4644, 7
        %v4646 = vsub.s32 0, %v4645
        %v4647 = vrot.slane %v4643, %v4646
        %v4648 = vmul.f32 %v4611, %v4647
        %v4649 = vmul.f32 %v4612, %v4647
        %v4650 = vmul.f32 %v4613, %v4647
        %v4651 = vmul.f32 %v4614, %v4647
        %v4652 = vmul.f32 %v4615, %v4647
        %v4653 = vmul.f32 %v4616, %v4647
        %v4654 = vmul.f32 %v4617, %v4647
        %v4655 = vmul.f32 %v4618, %v4647
        %v4656 = vmul.f32 %v4619, %v4647
        %v4657 = vmul.f32 %v4620, %v4647
        %v4658 = vmul.f32 %v4621, %v4647
        %v4659 = vmul.f32 %v4622, %v4647
        %v4660 = vmul.f32 %v4623, %v4647
        %v4661 = vmul.f32 %v4624, %v4647
        %v4662 = vmul.f32 %v4625, %v4647
        %v4663 = vmul.f32 %v4626, %v4647
        %v4664 = vmul.f32 %v4627, %v4647
        %v4665 = vmul.f32 %v4628, %v4647
        %v4666 = vmul.f32 %v4629, %v4647
        %v4667 = vmul.f32 %v4630, %v4647
        %v4668 = vmul.f32 %v4631, %v4647
        %v4669 = vmul.f32 %v4632, %v4647
        %v4670 = vmul.f32 %v4633, %v4647
        %v4671 = vmul.f32 %v4634, %v4647
        %v4672 = vmul.f32 %v4635, %v4647
        %v4673 = vmul.f32 %v4636, %v4647
        %v4674 = vmul.f32 %v4637, %v4647
        %v4675 = vmul.f32 %v4638, %v4647
        %v4676 = vmul.f32 %v4639, %v4647
        %v4677 = vmul.f32 %v4640, %v4647
        %v4678 = vmul.f32 %v4641, %v4647
        %v4679 = vmul.f32 %v4642, %v4647
        %v4680 = vadd.f32 %v4579, %v4648
        %v4681 = vadd.f32 %v4580, %v4649
        %v4682 = vadd.f32 %v4581, %v4650
        %v4683 = vadd.f32 %v4582, %v4651
        %v4684 = vadd.f32 %v4583, %v4652
        %v4685 = vadd.f32 %v4584, %v4653
        %v4686 = vadd.f32 %v4585, %v4654
        %v4687 = vadd.f32 %v4586, %v4655
        %v4688 = vadd.f32 %v4587, %v4656
        %v4689 = vadd.f32 %v4588, %v4657
        %v4690 = vadd.f32 %v4589, %v4658
        %v4691 = vadd.f32 %v4590, %v4659
        %v4692 = vadd.f32 %v4591, %v4660
        %v4693 = vadd.f32 %v4592, %v4661
        %v4694 = vadd.f32 %v4593, %v4662
        %v4695 = vadd.f32 %v4594, %v4663
        %v4696 = vadd.f32 %v4595, %v4664
        %v4697 = vadd.f32 %v4596, %v4665
        %v4698 = vadd.f32 %v4597, %v4666
        %v4699 = vadd.f32 %v4598, %v4667
        %v4700 = vadd.f32 %v4599, %v4668
        %v4701 = vadd.f32 %v4600, %v4669
        %v4702 = vadd.f32 %v4601, %v4670
        %v4703 = vadd.f32 %v4602, %v4671
        %v4704 = vadd.f32 %v4603, %v4672
        %v4705 = vadd.f32 %v4604, %v4673
        %v4706 = vadd.f32 %v4605, %v4674
        %v4707 = vadd.f32 %v4606, %v4675
        %v4708 = vadd.f32 %v4607, %v4676
        %v4709 = vadd.f32 %v4608, %v4677
        %v4710 = vadd.f32 %v4609, %v4678
        %v4711 = vadd.f32 %v4610, %v4679
        %v4712 = vld [vmem:[%s3011] sm:$0xff]
        %v4713 = vld [vmem:[%s3011 + $0x8] sm:$0xff]
        %v4714 = vld [vmem:[%s3011 + $0x18] sm:$0xff]
        %v4715 = vld [vmem:[%s3011 + $0x20] sm:$0xff]
        %v4716 = vld [vmem:[%s3011 + $0x30] sm:$0xff]
        %v4717 = vld [vmem:[%s3011 + $0x38] sm:$0xff]
        %v4718 = vld [vmem:[%s3011 + $0x48] sm:$0xff]
        %v4719 = vld [vmem:[%s3011 + $0x50] sm:$0xff]
        %v4720 = vld [vmem:[%s3011 + $0x60] sm:$0xff]
        %v4721 = vld [vmem:[%s3011 + $0x68] sm:$0xff]
        %v4722 = vld [vmem:[%s3011 + $0x78] sm:$0xff]
        %v4723 = vld [vmem:[%s3011 + $0x80] sm:$0xff]
        %v4724 = vld [vmem:[%s3011 + $0x90] sm:$0xff]
        %v4725 = vld [vmem:[%s3011 + $0x98] sm:$0xff]
        %v4726 = vld [vmem:[%s3011 + $0xa8] sm:$0xff]
        %v4727 = vld [vmem:[%s3011 + $0xb0] sm:$0xff]
        %v4728 = vld [vmem:[%s3011 + $0xc0] sm:$0xff]
        %v4729 = vld [vmem:[%s3011 + $0xc8] sm:$0xff]
        %v4730 = vld [vmem:[%s3011 + $0xd8] sm:$0xff]
        %v4731 = vld [vmem:[%s3011 + $0xe0] sm:$0xff]
        %v4732 = vld [vmem:[%s3011 + $0xf0] sm:$0xff]
        %v4733 = vld [vmem:[%s3011 + $0xf8] sm:$0xff]
        %v4734 = vld [vmem:[%s3011 + $0x108] sm:$0xff]
        %v4735 = vld [vmem:[%s3011 + $0x110] sm:$0xff]
        %v4736 = vld [vmem:[%s3011 + $0x120] sm:$0xff]
        %v4737 = vld [vmem:[%s3011 + $0x128] sm:$0xff]
        %v4738 = vld [vmem:[%s3011 + $0x138] sm:$0xff]
        %v4739 = vld [vmem:[%s3011 + $0x140] sm:$0xff]
        %v4740 = vld [vmem:[%s3011 + $0x150] sm:$0xff]
        %v4741 = vld [vmem:[%s3011 + $0x158] sm:$0xff]
        %v4742 = vld [vmem:[%s3011 + $0x168] sm:$0xff]
        %v4743 = vld [vmem:[%s3011 + $0x170] sm:$0xff]
        %s4744 = scalar_lea.vmem %s5, 24
        %v4745 = vld [vmem:[%s4744] sm:$0x1]
        %v4746 = vlaneseq
        %v4747 = vshrl.u32 %v4746, 7
        %v4748 = vsub.s32 0, %v4747
        %v4749 = vrot.slane %v4745, %v4748
        %v4750 = vmul.f32 %v4712, %v4749
        %v4751 = vmul.f32 %v4713, %v4749
        %v4752 = vmul.f32 %v4714, %v4749
        %v4753 = vmul.f32 %v4715, %v4749
        %v4754 = vmul.f32 %v4716, %v4749
        %v4755 = vmul.f32 %v4717, %v4749
        %v4756 = vmul.f32 %v4718, %v4749
        %v4757 = vmul.f32 %v4719, %v4749
        %v4758 = vmul.f32 %v4720, %v4749
        %v4759 = vmul.f32 %v4721, %v4749
        %v4760 = vmul.f32 %v4722, %v4749
        %v4761 = vmul.f32 %v4723, %v4749
        %v4762 = vmul.f32 %v4724, %v4749
        %v4763 = vmul.f32 %v4725, %v4749
        %v4764 = vmul.f32 %v4726, %v4749
        %v4765 = vmul.f32 %v4727, %v4749
        %v4766 = vmul.f32 %v4728, %v4749
        %v4767 = vmul.f32 %v4729, %v4749
        %v4768 = vmul.f32 %v4730, %v4749
        %v4769 = vmul.f32 %v4731, %v4749
        %v4770 = vmul.f32 %v4732, %v4749
        %v4771 = vmul.f32 %v4733, %v4749
        %v4772 = vmul.f32 %v4734, %v4749
        %v4773 = vmul.f32 %v4735, %v4749
        %v4774 = vmul.f32 %v4736, %v4749
        %v4775 = vmul.f32 %v4737, %v4749
        %v4776 = vmul.f32 %v4738, %v4749
        %v4777 = vmul.f32 %v4739, %v4749
        %v4778 = vmul.f32 %v4740, %v4749
        %v4779 = vmul.f32 %v4741, %v4749
        %v4780 = vmul.f32 %v4742, %v4749
        %v4781 = vmul.f32 %v4743, %v4749
        %v4782 = vadd.f32 %v4680, %v4750
        %v4783 = vadd.f32 %v4681, %v4751
        %v4784 = vadd.f32 %v4682, %v4752
        %v4785 = vadd.f32 %v4683, %v4753
        %v4786 = vadd.f32 %v4684, %v4754
        %v4787 = vadd.f32 %v4685, %v4755
        %v4788 = vadd.f32 %v4686, %v4756
        %v4789 = vadd.f32 %v4687, %v4757
        %v4790 = vadd.f32 %v4688, %v4758
        %v4791 = vadd.f32 %v4689, %v4759
        %v4792 = vadd.f32 %v4690, %v4760
        %v4793 = vadd.f32 %v4691, %v4761
        %v4794 = vadd.f32 %v4692, %v4762
        %v4795 = vadd.f32 %v4693, %v4763
        %v4796 = vadd.f32 %v4694, %v4764
        %v4797 = vadd.f32 %v4695, %v4765
        %v4798 = vadd.f32 %v4696, %v4766
        %v4799 = vadd.f32 %v4697, %v4767
        %v4800 = vadd.f32 %v4698, %v4768
        %v4801 = vadd.f32 %v4699, %v4769
        %v4802 = vadd.f32 %v4700, %v4770
        %v4803 = vadd.f32 %v4701, %v4771
        %v4804 = vadd.f32 %v4702, %v4772
        %v4805 = vadd.f32 %v4703, %v4773
        %v4806 = vadd.f32 %v4704, %v4774
        %v4807 = vadd.f32 %v4705, %v4775
        %v4808 = vadd.f32 %v4706, %v4776
        %v4809 = vadd.f32 %v4707, %v4777
        %v4810 = vadd.f32 %v4708, %v4778
        %v4811 = vadd.f32 %v4709, %v4779
        %v4812 = vadd.f32 %v4710, %v4780
        %v4813 = vadd.f32 %v4711, %v4781
        %v4814 = vld [vmem:[%s4744 + $0x1] sm:$0x1]
        %v4815 = vlaneseq
        %v4816 = vshrl.u32 %v4815, 7
        %v4817 = vsub.s32 0, %v4816
        %v4818 = vrot.slane %v4814, %v4817
        %v4819 = vmul.f32 %v3012, %v4818
        %v4820 = vmul.f32 %v3013, %v4818
        %v4821 = vmul.f32 %v3014, %v4818
        %v4822 = vmul.f32 %v3015, %v4818
        %v4823 = vmul.f32 %v3016, %v4818
        %v4824 = vmul.f32 %v3017, %v4818
        %v4825 = vmul.f32 %v3018, %v4818
        %v4826 = vmul.f32 %v3019, %v4818
        %v4827 = vmul.f32 %v3020, %v4818
        %v4828 = vmul.f32 %v3021, %v4818
        %v4829 = vmul.f32 %v3022, %v4818
        %v4830 = vmul.f32 %v3023, %v4818
        %v4831 = vmul.f32 %v3024, %v4818
        %v4832 = vmul.f32 %v3025, %v4818
        %v4833 = vmul.f32 %v3026, %v4818
        %v4834 = vmul.f32 %v3027, %v4818
        %v4835 = vmul.f32 %v3028, %v4818
        %v4836 = vmul.f32 %v3029, %v4818
        %v4837 = vmul.f32 %v3030, %v4818
        %v4838 = vmul.f32 %v3031, %v4818
        %v4839 = vmul.f32 %v3032, %v4818
        %v4840 = vmul.f32 %v3033, %v4818
        %v4841 = vmul.f32 %v3034, %v4818
        %v4842 = vmul.f32 %v3035, %v4818
        %v4843 = vmul.f32 %v3036, %v4818
        %v4844 = vmul.f32 %v3037, %v4818
        %v4845 = vmul.f32 %v3038, %v4818
        %v4846 = vmul.f32 %v3039, %v4818
        %v4847 = vmul.f32 %v3040, %v4818
        %v4848 = vmul.f32 %v3041, %v4818
        %v4849 = vmul.f32 %v3042, %v4818
        %v4850 = vmul.f32 %v3043, %v4818
        %v4851 = vadd.f32 %v4782, %v4819
        %v4852 = vadd.f32 %v4783, %v4820
        %v4853 = vadd.f32 %v4784, %v4821
        %v4854 = vadd.f32 %v4785, %v4822
        %v4855 = vadd.f32 %v4786, %v4823
        %v4856 = vadd.f32 %v4787, %v4824
        %v4857 = vadd.f32 %v4788, %v4825
        %v4858 = vadd.f32 %v4789, %v4826
        %v4859 = vadd.f32 %v4790, %v4827
        %v4860 = vadd.f32 %v4791, %v4828
        %v4861 = vadd.f32 %v4792, %v4829
        %v4862 = vadd.f32 %v4793, %v4830
        %v4863 = vadd.f32 %v4794, %v4831
        %v4864 = vadd.f32 %v4795, %v4832
        %v4865 = vadd.f32 %v4796, %v4833
        %v4866 = vadd.f32 %v4797, %v4834
        %v4867 = vadd.f32 %v4798, %v4835
        %v4868 = vadd.f32 %v4799, %v4836
        %v4869 = vadd.f32 %v4800, %v4837
        %v4870 = vadd.f32 %v4801, %v4838
        %v4871 = vadd.f32 %v4802, %v4839
        %v4872 = vadd.f32 %v4803, %v4840
        %v4873 = vadd.f32 %v4804, %v4841
        %v4874 = vadd.f32 %v4805, %v4842
        %v4875 = vadd.f32 %v4806, %v4843
        %v4876 = vadd.f32 %v4807, %v4844
        %v4877 = vadd.f32 %v4808, %v4845
        %v4878 = vadd.f32 %v4809, %v4846
        %v4879 = vadd.f32 %v4810, %v4847
        %v4880 = vadd.f32 %v4811, %v4848
        %v4881 = vadd.f32 %v4812, %v4849
        %v4882 = vadd.f32 %v4813, %v4850
        %v4883 = vld [vmem:[%s4744 + $0x2] sm:$0x1]
        %v4884 = vlaneseq
        %v4885 = vshrl.u32 %v4884, 7
        %v4886 = vsub.s32 0, %v4885
        %v4887 = vrot.slane %v4883, %v4886
        %v4888 = vmul.f32 %v3114, %v4887
        %v4889 = vmul.f32 %v3115, %v4887
        %v4890 = vmul.f32 %v3116, %v4887
        %v4891 = vmul.f32 %v3117, %v4887
        %v4892 = vmul.f32 %v3118, %v4887
        %v4893 = vmul.f32 %v3119, %v4887
        %v4894 = vmul.f32 %v3120, %v4887
        %v4895 = vmul.f32 %v3121, %v4887
        %v4896 = vmul.f32 %v3122, %v4887
        %v4897 = vmul.f32 %v3123, %v4887
        %v4898 = vmul.f32 %v3124, %v4887
        %v4899 = vmul.f32 %v3125, %v4887
        %v4900 = vmul.f32 %v3126, %v4887
        %v4901 = vmul.f32 %v3127, %v4887
        %v4902 = vmul.f32 %v3128, %v4887
        %v4903 = vmul.f32 %v3129, %v4887
        %v4904 = vmul.f32 %v3130, %v4887
        %v4905 = vmul.f32 %v3131, %v4887
        %v4906 = vmul.f32 %v3132, %v4887
        %v4907 = vmul.f32 %v3133, %v4887
        %v4908 = vmul.f32 %v3134, %v4887
        %v4909 = vmul.f32 %v3135, %v4887
        %v4910 = vmul.f32 %v3136, %v4887
        %v4911 = vmul.f32 %v3137, %v4887
        %v4912 = vmul.f32 %v3138, %v4887
        %v4913 = vmul.f32 %v3139, %v4887
        %v4914 = vmul.f32 %v3140, %v4887
        %v4915 = vmul.f32 %v3141, %v4887
        %v4916 = vmul.f32 %v3142, %v4887
        %v4917 = vmul.f32 %v3143, %v4887
        %v4918 = vmul.f32 %v3144, %v4887
        %v4919 = vmul.f32 %v3145, %v4887
        %v4920 = vadd.f32 %v4851, %v4888
        %v4921 = vadd.f32 %v4852, %v4889
        %v4922 = vadd.f32 %v4853, %v4890
        %v4923 = vadd.f32 %v4854, %v4891
        %v4924 = vadd.f32 %v4855, %v4892
        %v4925 = vadd.f32 %v4856, %v4893
        %v4926 = vadd.f32 %v4857, %v4894
        %v4927 = vadd.f32 %v4858, %v4895
        %v4928 = vadd.f32 %v4859, %v4896
        %v4929 = vadd.f32 %v4860, %v4897
        %v4930 = vadd.f32 %v4861, %v4898
        %v4931 = vadd.f32 %v4862, %v4899
        %v4932 = vadd.f32 %v4863, %v4900
        %v4933 = vadd.f32 %v4864, %v4901
        %v4934 = vadd.f32 %v4865, %v4902
        %v4935 = vadd.f32 %v4866, %v4903
        %v4936 = vadd.f32 %v4867, %v4904
        %v4937 = vadd.f32 %v4868, %v4905
        %v4938 = vadd.f32 %v4869, %v4906
        %v4939 = vadd.f32 %v4870, %v4907
        %v4940 = vadd.f32 %v4871, %v4908
        %v4941 = vadd.f32 %v4872, %v4909
        %v4942 = vadd.f32 %v4873, %v4910
        %v4943 = vadd.f32 %v4874, %v4911
        %v4944 = vadd.f32 %v4875, %v4912
        %v4945 = vadd.f32 %v4876, %v4913
        %v4946 = vadd.f32 %v4877, %v4914
        %v4947 = vadd.f32 %v4878, %v4915
        %v4948 = vadd.f32 %v4879, %v4916
        %v4949 = vadd.f32 %v4880, %v4917
        %v4950 = vadd.f32 %v4881, %v4918
        %v4951 = vadd.f32 %v4882, %v4919
        %v4952 = vld [vmem:[%s4744 + $0x3] sm:$0x1]
        %v4953 = vlaneseq
        %v4954 = vshrl.u32 %v4953, 7
        %v4955 = vsub.s32 0, %v4954
        %v4956 = vrot.slane %v4952, %v4955
        %v4957 = vmul.f32 %v3215, %v4956
        %v4958 = vmul.f32 %v3216, %v4956
        %v4959 = vmul.f32 %v3217, %v4956
        %v4960 = vmul.f32 %v3218, %v4956
        %v4961 = vmul.f32 %v3219, %v4956
        %v4962 = vmul.f32 %v3220, %v4956
        %v4963 = vmul.f32 %v3221, %v4956
        %v4964 = vmul.f32 %v3222, %v4956
        %v4965 = vmul.f32 %v3223, %v4956
        %v4966 = vmul.f32 %v3224, %v4956
        %v4967 = vmul.f32 %v3225, %v4956
        %v4968 = vmul.f32 %v3226, %v4956
        %v4969 = vmul.f32 %v3227, %v4956
        %v4970 = vmul.f32 %v3228, %v4956
        %v4971 = vmul.f32 %v3229, %v4956
        %v4972 = vmul.f32 %v3230, %v4956
        %v4973 = vmul.f32 %v3231, %v4956
        %v4974 = vmul.f32 %v3232, %v4956
        %v4975 = vmul.f32 %v3233, %v4956
        %v4976 = vmul.f32 %v3234, %v4956
        %v4977 = vmul.f32 %v3235, %v4956
        %v4978 = vmul.f32 %v3236, %v4956
        %v4979 = vmul.f32 %v3237, %v4956
        %v4980 = vmul.f32 %v3238, %v4956
        %v4981 = vmul.f32 %v3239, %v4956
        %v4982 = vmul.f32 %v3240, %v4956
        %v4983 = vmul.f32 %v3241, %v4956
        %v4984 = vmul.f32 %v3242, %v4956
        %v4985 = vmul.f32 %v3243, %v4956
        %v4986 = vmul.f32 %v3244, %v4956
        %v4987 = vmul.f32 %v3245, %v4956
        %v4988 = vmul.f32 %v3246, %v4956
        %v4989 = vadd.f32 %v4920, %v4957
        %v4990 = vadd.f32 %v4921, %v4958
        %v4991 = vadd.f32 %v4922, %v4959
        %v4992 = vadd.f32 %v4923, %v4960
        %v4993 = vadd.f32 %v4924, %v4961
        %v4994 = vadd.f32 %v4925, %v4962
        %v4995 = vadd.f32 %v4926, %v4963
        %v4996 = vadd.f32 %v4927, %v4964
        %v4997 = vadd.f32 %v4928, %v4965
        %v4998 = vadd.f32 %v4929, %v4966
        %v4999 = vadd.f32 %v4930, %v4967
        %v5000 = vadd.f32 %v4931, %v4968
        %v5001 = vadd.f32 %v4932, %v4969
        %v5002 = vadd.f32 %v4933, %v4970
        %v5003 = vadd.f32 %v4934, %v4971
        %v5004 = vadd.f32 %v4935, %v4972
        %v5005 = vadd.f32 %v4936, %v4973
        %v5006 = vadd.f32 %v4937, %v4974
        %v5007 = vadd.f32 %v4938, %v4975
        %v5008 = vadd.f32 %v4939, %v4976
        %v5009 = vadd.f32 %v4940, %v4977
        %v5010 = vadd.f32 %v4941, %v4978
        %v5011 = vadd.f32 %v4942, %v4979
        %v5012 = vadd.f32 %v4943, %v4980
        %v5013 = vadd.f32 %v4944, %v4981
        %v5014 = vadd.f32 %v4945, %v4982
        %v5015 = vadd.f32 %v4946, %v4983
        %v5016 = vadd.f32 %v4947, %v4984
        %v5017 = vadd.f32 %v4948, %v4985
        %v5018 = vadd.f32 %v4949, %v4986
        %v5019 = vadd.f32 %v4950, %v4987
        %v5020 = vadd.f32 %v4951, %v4988
        %v5021 = vld [vmem:[%s3011 + $0x4] sm:$0xff]
        %v5022 = vld [vmem:[%s3011 + $0xc] sm:$0xff]
        %v5023 = vld [vmem:[%s3011 + $0x1c] sm:$0xff]
        %v5024 = vld [vmem:[%s3011 + $0x24] sm:$0xff]
        %v5025 = vld [vmem:[%s3011 + $0x34] sm:$0xff]
        %v5026 = vld [vmem:[%s3011 + $0x3c] sm:$0xff]
        %v5027 = vld [vmem:[%s3011 + $0x4c] sm:$0xff]
        %v5028 = vld [vmem:[%s3011 + $0x54] sm:$0xff]
        %v5029 = vld [vmem:[%s3011 + $0x64] sm:$0xff]
        %v5030 = vld [vmem:[%s3011 + $0x6c] sm:$0xff]
        %v5031 = vld [vmem:[%s3011 + $0x7c] sm:$0xff]
        %v5032 = vld [vmem:[%s3011 + $0x84] sm:$0xff]
        %v5033 = vld [vmem:[%s3011 + $0x94] sm:$0xff]
        %v5034 = vld [vmem:[%s3011 + $0x9c] sm:$0xff]
        %v5035 = vld [vmem:[%s3011 + $0xac] sm:$0xff]
        %v5036 = vld [vmem:[%s3011 + $0xb4] sm:$0xff]
        %v5037 = vld [vmem:[%s3011 + $0xc4] sm:$0xff]
        %v5038 = vld [vmem:[%s3011 + $0xcc] sm:$0xff]
        %v5039 = vld [vmem:[%s3011 + $0xdc] sm:$0xff]
        %v5040 = vld [vmem:[%s3011 + $0xe4] sm:$0xff]
        %v5041 = vld [vmem:[%s3011 + $0xf4] sm:$0xff]
        %v5042 = vld [vmem:[%s3011 + $0xfc] sm:$0xff]
        %v5043 = vld [vmem:[%s3011 + $0x10c] sm:$0xff]
        %v5044 = vld [vmem:[%s3011 + $0x114] sm:$0xff]
        %v5045 = vld [vmem:[%s3011 + $0x124] sm:$0xff]
        %v5046 = vld [vmem:[%s3011 + $0x12c] sm:$0xff]
        %v5047 = vld [vmem:[%s3011 + $0x13c] sm:$0xff]
        %v5048 = vld [vmem:[%s3011 + $0x144] sm:$0xff]
        %v5049 = vld [vmem:[%s3011 + $0x154] sm:$0xff]
        %v5050 = vld [vmem:[%s3011 + $0x15c] sm:$0xff]
        %v5051 = vld [vmem:[%s3011 + $0x16c] sm:$0xff]
        %v5052 = vld [vmem:[%s3011 + $0x174] sm:$0xff]
        %v5053 = vld [vmem:[%s4744 + $0x4] sm:$0x1]
        %v5054 = vlaneseq
        %v5055 = vshrl.u32 %v5054, 7
        %v5056 = vsub.s32 0, %v5055
        %v5057 = vrot.slane %v5053, %v5056
        %v5058 = vmul.f32 %v5021, %v5057
        %v5059 = vmul.f32 %v5022, %v5057
        %v5060 = vmul.f32 %v5023, %v5057
        %v5061 = vmul.f32 %v5024, %v5057
        %v5062 = vmul.f32 %v5025, %v5057
        %v5063 = vmul.f32 %v5026, %v5057
        %v5064 = vmul.f32 %v5027, %v5057
        %v5065 = vmul.f32 %v5028, %v5057
        %v5066 = vmul.f32 %v5029, %v5057
        %v5067 = vmul.f32 %v5030, %v5057
        %v5068 = vmul.f32 %v5031, %v5057
        %v5069 = vmul.f32 %v5032, %v5057
        %v5070 = vmul.f32 %v5033, %v5057
        %v5071 = vmul.f32 %v5034, %v5057
        %v5072 = vmul.f32 %v5035, %v5057
        %v5073 = vmul.f32 %v5036, %v5057
        %v5074 = vmul.f32 %v5037, %v5057
        %v5075 = vmul.f32 %v5038, %v5057
        %v5076 = vmul.f32 %v5039, %v5057
        %v5077 = vmul.f32 %v5040, %v5057
        %v5078 = vmul.f32 %v5041, %v5057
        %v5079 = vmul.f32 %v5042, %v5057
        %v5080 = vmul.f32 %v5043, %v5057
        %v5081 = vmul.f32 %v5044, %v5057
        %v5082 = vmul.f32 %v5045, %v5057
        %v5083 = vmul.f32 %v5046, %v5057
        %v5084 = vmul.f32 %v5047, %v5057
        %v5085 = vmul.f32 %v5048, %v5057
        %v5086 = vmul.f32 %v5049, %v5057
        %v5087 = vmul.f32 %v5050, %v5057
        %v5088 = vmul.f32 %v5051, %v5057
        %v5089 = vmul.f32 %v5052, %v5057
        %v5090 = vadd.f32 %v4989, %v5058
        %v5091 = vadd.f32 %v4990, %v5059
        %v5092 = vadd.f32 %v4991, %v5060
        %v5093 = vadd.f32 %v4992, %v5061
        %v5094 = vadd.f32 %v4993, %v5062
        %v5095 = vadd.f32 %v4994, %v5063
        %v5096 = vadd.f32 %v4995, %v5064
        %v5097 = vadd.f32 %v4996, %v5065
        %v5098 = vadd.f32 %v4997, %v5066
        %v5099 = vadd.f32 %v4998, %v5067
        %v5100 = vadd.f32 %v4999, %v5068
        %v5101 = vadd.f32 %v5000, %v5069
        %v5102 = vadd.f32 %v5001, %v5070
        %v5103 = vadd.f32 %v5002, %v5071
        %v5104 = vadd.f32 %v5003, %v5072
        %v5105 = vadd.f32 %v5004, %v5073
        %v5106 = vadd.f32 %v5005, %v5074
        %v5107 = vadd.f32 %v5006, %v5075
        %v5108 = vadd.f32 %v5007, %v5076
        %v5109 = vadd.f32 %v5008, %v5077
        %v5110 = vadd.f32 %v5009, %v5078
        %v5111 = vadd.f32 %v5010, %v5079
        %v5112 = vadd.f32 %v5011, %v5080
        %v5113 = vadd.f32 %v5012, %v5081
        %v5114 = vadd.f32 %v5013, %v5082
        %v5115 = vadd.f32 %v5014, %v5083
        %v5116 = vadd.f32 %v5015, %v5084
        %v5117 = vadd.f32 %v5016, %v5085
        %v5118 = vadd.f32 %v5017, %v5086
        %v5119 = vadd.f32 %v5018, %v5087
        %v5120 = vadd.f32 %v5019, %v5088
        %v5121 = vadd.f32 %v5020, %v5089
        %s5122 = scalar_lea.vmem [#allocation2], 96
        %v5123 = vld [vmem:[%s5122] sm:$0xff]
        %v5124 = vld [vmem:[%s5122 + $0x8] sm:$0xff]
        %v5125 = vld [vmem:[%s5122 + $0x18] sm:$0xff]
        %v5126 = vld [vmem:[%s5122 + $0x20] sm:$0xff]
        %v5127 = vld [vmem:[%s5122 + $0x30] sm:$0xff]
        %v5128 = vld [vmem:[%s5122 + $0x38] sm:$0xff]
        %v5129 = vld [vmem:[%s5122 + $0x48] sm:$0xff]
        %v5130 = vld [vmem:[%s5122 + $0x50] sm:$0xff]
        %v5131 = vld [vmem:[%s5122 + $0x60] sm:$0xff]
        %v5132 = vld [vmem:[%s5122 + $0x68] sm:$0xff]
        %v5133 = vld [vmem:[%s5122 + $0x78] sm:$0xff]
        %v5134 = vld [vmem:[%s5122 + $0x80] sm:$0xff]
        %v5135 = vld [vmem:[%s5122 + $0x90] sm:$0xff]
        %v5136 = vld [vmem:[%s5122 + $0x98] sm:$0xff]
        %v5137 = vld [vmem:[%s5122 + $0xa8] sm:$0xff]
        %v5138 = vld [vmem:[%s5122 + $0xb0] sm:$0xff]
        %v5139 = vld [vmem:[%s5122 + $0xc0] sm:$0xff]
        %v5140 = vld [vmem:[%s5122 + $0xc8] sm:$0xff]
        %v5141 = vld [vmem:[%s5122 + $0xd8] sm:$0xff]
        %v5142 = vld [vmem:[%s5122 + $0xe0] sm:$0xff]
        %v5143 = vld [vmem:[%s5122 + $0xf0] sm:$0xff]
        %v5144 = vld [vmem:[%s5122 + $0xf8] sm:$0xff]
        %v5145 = vld [vmem:[%s5122 + $0x108] sm:$0xff]
        %v5146 = vld [vmem:[%s5122 + $0x110] sm:$0xff]
        %v5147 = vld [vmem:[%s5122 + $0x120] sm:$0xff]
        %v5148 = vld [vmem:[%s5122 + $0x128] sm:$0xff]
        %v5149 = vld [vmem:[%s5122 + $0x138] sm:$0xff]
        %v5150 = vld [vmem:[%s5122 + $0x140] sm:$0xff]
        %v5151 = vld [vmem:[%s5122 + $0x150] sm:$0xff]
        %v5152 = vld [vmem:[%s5122 + $0x158] sm:$0xff]
        %v5153 = vld [vmem:[%s5122 + $0x168] sm:$0xff]
        %v5154 = vld [vmem:[%s5122 + $0x170] sm:$0xff]
        %s5155 = scalar_lea.vmem %s5, 32
        %v5156 = vld [vmem:[%s5155] sm:$0x1]
        %v5157 = vlaneseq
        %v5158 = vshrl.u32 %v5157, 7
        %v5159 = vsub.s32 0, %v5158
        %v5160 = vrot.slane %v5156, %v5159
        %v5161 = vmul.f32 %v5123, %v5160
        %v5162 = vmul.f32 %v5124, %v5160
        %v5163 = vmul.f32 %v5125, %v5160
        %v5164 = vmul.f32 %v5126, %v5160
        %v5165 = vmul.f32 %v5127, %v5160
        %v5166 = vmul.f32 %v5128, %v5160
        %v5167 = vmul.f32 %v5129, %v5160
        %v5168 = vmul.f32 %v5130, %v5160
        %v5169 = vmul.f32 %v5131, %v5160
        %v5170 = vmul.f32 %v5132, %v5160
        %v5171 = vmul.f32 %v5133, %v5160
        %v5172 = vmul.f32 %v5134, %v5160
        %v5173 = vmul.f32 %v5135, %v5160
        %v5174 = vmul.f32 %v5136, %v5160
        %v5175 = vmul.f32 %v5137, %v5160
        %v5176 = vmul.f32 %v5138, %v5160
        %v5177 = vmul.f32 %v5139, %v5160
        %v5178 = vmul.f32 %v5140, %v5160
        %v5179 = vmul.f32 %v5141, %v5160
        %v5180 = vmul.f32 %v5142, %v5160
        %v5181 = vmul.f32 %v5143, %v5160
        %v5182 = vmul.f32 %v5144, %v5160
        %v5183 = vmul.f32 %v5145, %v5160
        %v5184 = vmul.f32 %v5146, %v5160
        %v5185 = vmul.f32 %v5147, %v5160
        %v5186 = vmul.f32 %v5148, %v5160
        %v5187 = vmul.f32 %v5149, %v5160
        %v5188 = vmul.f32 %v5150, %v5160
        %v5189 = vmul.f32 %v5151, %v5160
        %v5190 = vmul.f32 %v5152, %v5160
        %v5191 = vmul.f32 %v5153, %v5160
        %v5192 = vmul.f32 %v5154, %v5160
        %v5193 = vadd.f32 %v5090, %v5161
        %v5194 = vadd.f32 %v5091, %v5162
        %v5195 = vadd.f32 %v5092, %v5163
        %v5196 = vadd.f32 %v5093, %v5164
        %v5197 = vadd.f32 %v5094, %v5165
        %v5198 = vadd.f32 %v5095, %v5166
        %v5199 = vadd.f32 %v5096, %v5167
        %v5200 = vadd.f32 %v5097, %v5168
        %v5201 = vadd.f32 %v5098, %v5169
        %v5202 = vadd.f32 %v5099, %v5170
        %v5203 = vadd.f32 %v5100, %v5171
        %v5204 = vadd.f32 %v5101, %v5172
        %v5205 = vadd.f32 %v5102, %v5173
        %v5206 = vadd.f32 %v5103, %v5174
        %v5207 = vadd.f32 %v5104, %v5175
        %v5208 = vadd.f32 %v5105, %v5176
        %v5209 = vadd.f32 %v5106, %v5177
        %v5210 = vadd.f32 %v5107, %v5178
        %v5211 = vadd.f32 %v5108, %v5179
        %v5212 = vadd.f32 %v5109, %v5180
        %v5213 = vadd.f32 %v5110, %v5181
        %v5214 = vadd.f32 %v5111, %v5182
        %v5215 = vadd.f32 %v5112, %v5183
        %v5216 = vadd.f32 %v5113, %v5184
        %v5217 = vadd.f32 %v5114, %v5185
        %v5218 = vadd.f32 %v5115, %v5186
        %v5219 = vadd.f32 %v5116, %v5187
        %v5220 = vadd.f32 %v5117, %v5188
        %v5221 = vadd.f32 %v5118, %v5189
        %v5222 = vadd.f32 %v5119, %v5190
        %v5223 = vadd.f32 %v5120, %v5191
        %v5224 = vadd.f32 %v5121, %v5192
        %v5225 = vld [vmem:[%s5122 + $0x1] sm:$0xff]
        %v5226 = vld [vmem:[%s5122 + $0x9] sm:$0xff]
        %v5227 = vld [vmem:[%s5122 + $0x19] sm:$0xff]
        %v5228 = vld [vmem:[%s5122 + $0x21] sm:$0xff]
        %v5229 = vld [vmem:[%s5122 + $0x31] sm:$0xff]
        %v5230 = vld [vmem:[%s5122 + $0x39] sm:$0xff]
        %v5231 = vld [vmem:[%s5122 + $0x49] sm:$0xff]
        %v5232 = vld [vmem:[%s5122 + $0x51] sm:$0xff]
        %v5233 = vld [vmem:[%s5122 + $0x61] sm:$0xff]
        %v5234 = vld [vmem:[%s5122 + $0x69] sm:$0xff]
        %v5235 = vld [vmem:[%s5122 + $0x79] sm:$0xff]
        %v5236 = vld [vmem:[%s5122 + $0x81] sm:$0xff]
        %v5237 = vld [vmem:[%s5122 + $0x91] sm:$0xff]
        %v5238 = vld [vmem:[%s5122 + $0x99] sm:$0xff]
        %v5239 = vld [vmem:[%s5122 + $0xa9] sm:$0xff]
        %v5240 = vld [vmem:[%s5122 + $0xb1] sm:$0xff]
        %v5241 = vld [vmem:[%s5122 + $0xc1] sm:$0xff]
        %v5242 = vld [vmem:[%s5122 + $0xc9] sm:$0xff]
        %v5243 = vld [vmem:[%s5122 + $0xd9] sm:$0xff]
        %v5244 = vld [vmem:[%s5122 + $0xe1] sm:$0xff]
        %v5245 = vld [vmem:[%s5122 + $0xf1] sm:$0xff]
        %v5246 = vld [vmem:[%s5122 + $0xf9] sm:$0xff]
        %v5247 = vld [vmem:[%s5122 + $0x109] sm:$0xff]
        %v5248 = vld [vmem:[%s5122 + $0x111] sm:$0xff]
        %v5249 = vld [vmem:[%s5122 + $0x121] sm:$0xff]
        %v5250 = vld [vmem:[%s5122 + $0x129] sm:$0xff]
        %v5251 = vld [vmem:[%s5122 + $0x139] sm:$0xff]
        %v5252 = vld [vmem:[%s5122 + $0x141] sm:$0xff]
        %v5253 = vld [vmem:[%s5122 + $0x151] sm:$0xff]
        %v5254 = vld [vmem:[%s5122 + $0x159] sm:$0xff]
        %v5255 = vld [vmem:[%s5122 + $0x169] sm:$0xff]
        %v5256 = vld [vmem:[%s5122 + $0x171] sm:$0xff]
        %v5257 = vld [vmem:[%s5155 + $0x1] sm:$0x1]
        %v5258 = vlaneseq
        %v5259 = vshrl.u32 %v5258, 7
        %v5260 = vsub.s32 0, %v5259
        %v5261 = vrot.slane %v5257, %v5260
        %v5262 = vmul.f32 %v5225, %v5261
        %v5263 = vmul.f32 %v5226, %v5261
        %v5264 = vmul.f32 %v5227, %v5261
        %v5265 = vmul.f32 %v5228, %v5261
        %v5266 = vmul.f32 %v5229, %v5261
        %v5267 = vmul.f32 %v5230, %v5261
        %v5268 = vmul.f32 %v5231, %v5261
        %v5269 = vmul.f32 %v5232, %v5261
        %v5270 = vmul.f32 %v5233, %v5261
        %v5271 = vmul.f32 %v5234, %v5261
        %v5272 = vmul.f32 %v5235, %v5261
        %v5273 = vmul.f32 %v5236, %v5261
        %v5274 = vmul.f32 %v5237, %v5261
        %v5275 = vmul.f32 %v5238, %v5261
        %v5276 = vmul.f32 %v5239, %v5261
        %v5277 = vmul.f32 %v5240, %v5261
        %v5278 = vmul.f32 %v5241, %v5261
        %v5279 = vmul.f32 %v5242, %v5261
        %v5280 = vmul.f32 %v5243, %v5261
        %v5281 = vmul.f32 %v5244, %v5261
        %v5282 = vmul.f32 %v5245, %v5261
        %v5283 = vmul.f32 %v5246, %v5261
        %v5284 = vmul.f32 %v5247, %v5261
        %v5285 = vmul.f32 %v5248, %v5261
        %v5286 = vmul.f32 %v5249, %v5261
        %v5287 = vmul.f32 %v5250, %v5261
        %v5288 = vmul.f32 %v5251, %v5261
        %v5289 = vmul.f32 %v5252, %v5261
        %v5290 = vmul.f32 %v5253, %v5261
        %v5291 = vmul.f32 %v5254, %v5261
        %v5292 = vmul.f32 %v5255, %v5261
        %v5293 = vmul.f32 %v5256, %v5261
        %v5294 = vadd.f32 %v5193, %v5262
        %v5295 = vadd.f32 %v5194, %v5263
        %v5296 = vadd.f32 %v5195, %v5264
        %v5297 = vadd.f32 %v5196, %v5265
        %v5298 = vadd.f32 %v5197, %v5266
        %v5299 = vadd.f32 %v5198, %v5267
        %v5300 = vadd.f32 %v5199, %v5268
        %v5301 = vadd.f32 %v5200, %v5269
        %v5302 = vadd.f32 %v5201, %v5270
        %v5303 = vadd.f32 %v5202, %v5271
        %v5304 = vadd.f32 %v5203, %v5272
        %v5305 = vadd.f32 %v5204, %v5273
        %v5306 = vadd.f32 %v5205, %v5274
        %v5307 = vadd.f32 %v5206, %v5275
        %v5308 = vadd.f32 %v5207, %v5276
        %v5309 = vadd.f32 %v5208, %v5277
        %v5310 = vadd.f32 %v5209, %v5278
        %v5311 = vadd.f32 %v5210, %v5279
        %v5312 = vadd.f32 %v5211, %v5280
        %v5313 = vadd.f32 %v5212, %v5281
        %v5314 = vadd.f32 %v5213, %v5282
        %v5315 = vadd.f32 %v5214, %v5283
        %v5316 = vadd.f32 %v5215, %v5284
        %v5317 = vadd.f32 %v5216, %v5285
        %v5318 = vadd.f32 %v5217, %v5286
        %v5319 = vadd.f32 %v5218, %v5287
        %v5320 = vadd.f32 %v5219, %v5288
        %v5321 = vadd.f32 %v5220, %v5289
        %v5322 = vadd.f32 %v5221, %v5290
        %v5323 = vadd.f32 %v5222, %v5291
        %v5324 = vadd.f32 %v5223, %v5292
        %v5325 = vadd.f32 %v5224, %v5293
        %v5326 = vld [vmem:[%s5122 + $0x2] sm:$0xff]
        %v5327 = vld [vmem:[%s5122 + $0xa] sm:$0xff]
        %v5328 = vld [vmem:[%s5122 + $0x1a] sm:$0xff]
        %v5329 = vld [vmem:[%s5122 + $0x22] sm:$0xff]
        %v5330 = vld [vmem:[%s5122 + $0x32] sm:$0xff]
        %v5331 = vld [vmem:[%s5122 + $0x3a] sm:$0xff]
        %v5332 = vld [vmem:[%s5122 + $0x4a] sm:$0xff]
        %v5333 = vld [vmem:[%s5122 + $0x52] sm:$0xff]
        %v5334 = vld [vmem:[%s5122 + $0x62] sm:$0xff]
        %v5335 = vld [vmem:[%s5122 + $0x6a] sm:$0xff]
        %v5336 = vld [vmem:[%s5122 + $0x7a] sm:$0xff]
        %v5337 = vld [vmem:[%s5122 + $0x82] sm:$0xff]
        %v5338 = vld [vmem:[%s5122 + $0x92] sm:$0xff]
        %v5339 = vld [vmem:[%s5122 + $0x9a] sm:$0xff]
        %v5340 = vld [vmem:[%s5122 + $0xaa] sm:$0xff]
        %v5341 = vld [vmem:[%s5122 + $0xb2] sm:$0xff]
        %v5342 = vld [vmem:[%s5122 + $0xc2] sm:$0xff]
        %v5343 = vld [vmem:[%s5122 + $0xca] sm:$0xff]
        %v5344 = vld [vmem:[%s5122 + $0xda] sm:$0xff]
        %v5345 = vld [vmem:[%s5122 + $0xe2] sm:$0xff]
        %v5346 = vld [vmem:[%s5122 + $0xf2] sm:$0xff]
        %v5347 = vld [vmem:[%s5122 + $0xfa] sm:$0xff]
        %v5348 = vld [vmem:[%s5122 + $0x10a] sm:$0xff]
        %v5349 = vld [vmem:[%s5122 + $0x112] sm:$0xff]
        %v5350 = vld [vmem:[%s5122 + $0x122] sm:$0xff]
        %v5351 = vld [vmem:[%s5122 + $0x12a] sm:$0xff]
        %v5352 = vld [vmem:[%s5122 + $0x13a] sm:$0xff]
        %v5353 = vld [vmem:[%s5122 + $0x142] sm:$0xff]
        %v5354 = vld [vmem:[%s5122 + $0x152] sm:$0xff]
        %v5355 = vld [vmem:[%s5122 + $0x15a] sm:$0xff]
        %v5356 = vld [vmem:[%s5122 + $0x16a] sm:$0xff]
        %v5357 = vld [vmem:[%s5122 + $0x172] sm:$0xff]
        %v5358 = vld [vmem:[%s5155 + $0x2] sm:$0x1]
        %v5359 = vlaneseq
        %v5360 = vshrl.u32 %v5359, 7
        %v5361 = vsub.s32 0, %v5360
        %v5362 = vrot.slane %v5358, %v5361
        %v5363 = vmul.f32 %v5326, %v5362
        %v5364 = vmul.f32 %v5327, %v5362
        %v5365 = vmul.f32 %v5328, %v5362
        %v5366 = vmul.f32 %v5329, %v5362
        %v5367 = vmul.f32 %v5330, %v5362
        %v5368 = vmul.f32 %v5331, %v5362
        %v5369 = vmul.f32 %v5332, %v5362
        %v5370 = vmul.f32 %v5333, %v5362
        %v5371 = vmul.f32 %v5334, %v5362
        %v5372 = vmul.f32 %v5335, %v5362
        %v5373 = vmul.f32 %v5336, %v5362
        %v5374 = vmul.f32 %v5337, %v5362
        %v5375 = vmul.f32 %v5338, %v5362
        %v5376 = vmul.f32 %v5339, %v5362
        %v5377 = vmul.f32 %v5340, %v5362
        %v5378 = vmul.f32 %v5341, %v5362
        %v5379 = vmul.f32 %v5342, %v5362
        %v5380 = vmul.f32 %v5343, %v5362
        %v5381 = vmul.f32 %v5344, %v5362
        %v5382 = vmul.f32 %v5345, %v5362
        %v5383 = vmul.f32 %v5346, %v5362
        %v5384 = vmul.f32 %v5347, %v5362
        %v5385 = vmul.f32 %v5348, %v5362
        %v5386 = vmul.f32 %v5349, %v5362
        %v5387 = vmul.f32 %v5350, %v5362
        %v5388 = vmul.f32 %v5351, %v5362
        %v5389 = vmul.f32 %v5352, %v5362
        %v5390 = vmul.f32 %v5353, %v5362
        %v5391 = vmul.f32 %v5354, %v5362
        %v5392 = vmul.f32 %v5355, %v5362
        %v5393 = vmul.f32 %v5356, %v5362
        %v5394 = vmul.f32 %v5357, %v5362
        %v5395 = vadd.f32 %v5294, %v5363
        %v5396 = vadd.f32 %v5295, %v5364
        %v5397 = vadd.f32 %v5296, %v5365
        %v5398 = vadd.f32 %v5297, %v5366
        %v5399 = vadd.f32 %v5298, %v5367
        %v5400 = vadd.f32 %v5299, %v5368
        %v5401 = vadd.f32 %v5300, %v5369
        %v5402 = vadd.f32 %v5301, %v5370
        %v5403 = vadd.f32 %v5302, %v5371
        %v5404 = vadd.f32 %v5303, %v5372
        %v5405 = vadd.f32 %v5304, %v5373
        %v5406 = vadd.f32 %v5305, %v5374
        %v5407 = vadd.f32 %v5306, %v5375
        %v5408 = vadd.f32 %v5307, %v5376
        %v5409 = vadd.f32 %v5308, %v5377
        %v5410 = vadd.f32 %v5309, %v5378
        %v5411 = vadd.f32 %v5310, %v5379
        %v5412 = vadd.f32 %v5311, %v5380
        %v5413 = vadd.f32 %v5312, %v5381
        %v5414 = vadd.f32 %v5313, %v5382
        %v5415 = vadd.f32 %v5314, %v5383
        %v5416 = vadd.f32 %v5315, %v5384
        %v5417 = vadd.f32 %v5316, %v5385
        %v5418 = vadd.f32 %v5317, %v5386
        %v5419 = vadd.f32 %v5318, %v5387
        %v5420 = vadd.f32 %v5319, %v5388
        %v5421 = vadd.f32 %v5320, %v5389
        %v5422 = vadd.f32 %v5321, %v5390
        %v5423 = vadd.f32 %v5322, %v5391
        %v5424 = vadd.f32 %v5323, %v5392
        %v5425 = vadd.f32 %v5324, %v5393
        %v5426 = vadd.f32 %v5325, %v5394
        %v5427 = vld [vmem:[%s5122 + $0x3] sm:$0xff]
        %v5428 = vld [vmem:[%s5122 + $0xb] sm:$0xff]
        %v5429 = vld [vmem:[%s5122 + $0x1b] sm:$0xff]
        %v5430 = vld [vmem:[%s5122 + $0x23] sm:$0xff]
        %v5431 = vld [vmem:[%s5122 + $0x33] sm:$0xff]
        %v5432 = vld [vmem:[%s5122 + $0x3b] sm:$0xff]
        %v5433 = vld [vmem:[%s5122 + $0x4b] sm:$0xff]
        %v5434 = vld [vmem:[%s5122 + $0x53] sm:$0xff]
        %v5435 = vld [vmem:[%s5122 + $0x63] sm:$0xff]
        %v5436 = vld [vmem:[%s5122 + $0x6b] sm:$0xff]
        %v5437 = vld [vmem:[%s5122 + $0x7b] sm:$0xff]
        %v5438 = vld [vmem:[%s5122 + $0x83] sm:$0xff]
        %v5439 = vld [vmem:[%s5122 + $0x93] sm:$0xff]
        %v5440 = vld [vmem:[%s5122 + $0x9b] sm:$0xff]
        %v5441 = vld [vmem:[%s5122 + $0xab] sm:$0xff]
        %v5442 = vld [vmem:[%s5122 + $0xb3] sm:$0xff]
        %v5443 = vld [vmem:[%s5122 + $0xc3] sm:$0xff]
        %v5444 = vld [vmem:[%s5122 + $0xcb] sm:$0xff]
        %v5445 = vld [vmem:[%s5122 + $0xdb] sm:$0xff]
        %v5446 = vld [vmem:[%s5122 + $0xe3] sm:$0xff]
        %v5447 = vld [vmem:[%s5122 + $0xf3] sm:$0xff]
        %v5448 = vld [vmem:[%s5122 + $0xfb] sm:$0xff]
        %v5449 = vld [vmem:[%s5122 + $0x10b] sm:$0xff]
        %v5450 = vld [vmem:[%s5122 + $0x113] sm:$0xff]
        %v5451 = vld [vmem:[%s5122 + $0x123] sm:$0xff]
        %v5452 = vld [vmem:[%s5122 + $0x12b] sm:$0xff]
        %v5453 = vld [vmem:[%s5122 + $0x13b] sm:$0xff]
        %v5454 = vld [vmem:[%s5122 + $0x143] sm:$0xff]
        %v5455 = vld [vmem:[%s5122 + $0x153] sm:$0xff]
        %v5456 = vld [vmem:[%s5122 + $0x15b] sm:$0xff]
        %v5457 = vld [vmem:[%s5122 + $0x16b] sm:$0xff]
        %v5458 = vld [vmem:[%s5122 + $0x173] sm:$0xff]
        %v5459 = vld [vmem:[%s5155 + $0x3] sm:$0x1]
        %v5460 = vlaneseq
        %v5461 = vshrl.u32 %v5460, 7
        %v5462 = vsub.s32 0, %v5461
        %v5463 = vrot.slane %v5459, %v5462
        %v5464 = vmul.f32 %v5427, %v5463
        %v5465 = vmul.f32 %v5428, %v5463
        %v5466 = vmul.f32 %v5429, %v5463
        %v5467 = vmul.f32 %v5430, %v5463
        %v5468 = vmul.f32 %v5431, %v5463
        %v5469 = vmul.f32 %v5432, %v5463
        %v5470 = vmul.f32 %v5433, %v5463
        %v5471 = vmul.f32 %v5434, %v5463
        %v5472 = vmul.f32 %v5435, %v5463
        %v5473 = vmul.f32 %v5436, %v5463
        %v5474 = vmul.f32 %v5437, %v5463
        %v5475 = vmul.f32 %v5438, %v5463
        %v5476 = vmul.f32 %v5439, %v5463
        %v5477 = vmul.f32 %v5440, %v5463
        %v5478 = vmul.f32 %v5441, %v5463
        %v5479 = vmul.f32 %v5442, %v5463
        %v5480 = vmul.f32 %v5443, %v5463
        %v5481 = vmul.f32 %v5444, %v5463
        %v5482 = vmul.f32 %v5445, %v5463
        %v5483 = vmul.f32 %v5446, %v5463
        %v5484 = vmul.f32 %v5447, %v5463
        %v5485 = vmul.f32 %v5448, %v5463
        %v5486 = vmul.f32 %v5449, %v5463
        %v5487 = vmul.f32 %v5450, %v5463
        %v5488 = vmul.f32 %v5451, %v5463
        %v5489 = vmul.f32 %v5452, %v5463
        %v5490 = vmul.f32 %v5453, %v5463
        %v5491 = vmul.f32 %v5454, %v5463
        %v5492 = vmul.f32 %v5455, %v5463
        %v5493 = vmul.f32 %v5456, %v5463
        %v5494 = vmul.f32 %v5457, %v5463
        %v5495 = vmul.f32 %v5458, %v5463
        %v5496 = vadd.f32 %v5395, %v5464
        %v5497 = vadd.f32 %v5396, %v5465
        %v5498 = vadd.f32 %v5397, %v5466
        %v5499 = vadd.f32 %v5398, %v5467
        %v5500 = vadd.f32 %v5399, %v5468
        %v5501 = vadd.f32 %v5400, %v5469
        %v5502 = vadd.f32 %v5401, %v5470
        %v5503 = vadd.f32 %v5402, %v5471
        %v5504 = vadd.f32 %v5403, %v5472
        %v5505 = vadd.f32 %v5404, %v5473
        %v5506 = vadd.f32 %v5405, %v5474
        %v5507 = vadd.f32 %v5406, %v5475
        %v5508 = vadd.f32 %v5407, %v5476
        %v5509 = vadd.f32 %v5408, %v5477
        %v5510 = vadd.f32 %v5409, %v5478
        %v5511 = vadd.f32 %v5410, %v5479
        %v5512 = vadd.f32 %v5411, %v5480
        %v5513 = vadd.f32 %v5412, %v5481
        %v5514 = vadd.f32 %v5413, %v5482
        %v5515 = vadd.f32 %v5414, %v5483
        %v5516 = vadd.f32 %v5415, %v5484
        %v5517 = vadd.f32 %v5416, %v5485
        %v5518 = vadd.f32 %v5417, %v5486
        %v5519 = vadd.f32 %v5418, %v5487
        %v5520 = vadd.f32 %v5419, %v5488
        %v5521 = vadd.f32 %v5420, %v5489
        %v5522 = vadd.f32 %v5421, %v5490
        %v5523 = vadd.f32 %v5422, %v5491
        %v5524 = vadd.f32 %v5423, %v5492
        %v5525 = vadd.f32 %v5424, %v5493
        %v5526 = vadd.f32 %v5425, %v5494
        %v5527 = vadd.f32 %v5426, %v5495
        %v5528 = vld [vmem:[%s5122 + $0x4] sm:$0xff]
        %v5529 = vld [vmem:[%s5122 + $0xc] sm:$0xff]
        %v5530 = vld [vmem:[%s5122 + $0x1c] sm:$0xff]
        %v5531 = vld [vmem:[%s5122 + $0x24] sm:$0xff]
        %v5532 = vld [vmem:[%s5122 + $0x34] sm:$0xff]
        %v5533 = vld [vmem:[%s5122 + $0x3c] sm:$0xff]
        %v5534 = vld [vmem:[%s5122 + $0x4c] sm:$0xff]
        %v5535 = vld [vmem:[%s5122 + $0x54] sm:$0xff]
        %v5536 = vld [vmem:[%s5122 + $0x64] sm:$0xff]
        %v5537 = vld [vmem:[%s5122 + $0x6c] sm:$0xff]
        %v5538 = vld [vmem:[%s5122 + $0x7c] sm:$0xff]
        %v5539 = vld [vmem:[%s5122 + $0x84] sm:$0xff]
        %v5540 = vld [vmem:[%s5122 + $0x94] sm:$0xff]
        %v5541 = vld [vmem:[%s5122 + $0x9c] sm:$0xff]
        %v5542 = vld [vmem:[%s5122 + $0xac] sm:$0xff]
        %v5543 = vld [vmem:[%s5122 + $0xb4] sm:$0xff]
        %v5544 = vld [vmem:[%s5122 + $0xc4] sm:$0xff]
        %v5545 = vld [vmem:[%s5122 + $0xcc] sm:$0xff]
        %v5546 = vld [vmem:[%s5122 + $0xdc] sm:$0xff]
        %v5547 = vld [vmem:[%s5122 + $0xe4] sm:$0xff]
        %v5548 = vld [vmem:[%s5122 + $0xf4] sm:$0xff]
        %v5549 = vld [vmem:[%s5122 + $0xfc] sm:$0xff]
        %v5550 = vld [vmem:[%s5122 + $0x10c] sm:$0xff]
        %v5551 = vld [vmem:[%s5122 + $0x114] sm:$0xff]
        %v5552 = vld [vmem:[%s5122 + $0x124] sm:$0xff]
        %v5553 = vld [vmem:[%s5122 + $0x12c] sm:$0xff]
        %v5554 = vld [vmem:[%s5122 + $0x13c] sm:$0xff]
        %v5555 = vld [vmem:[%s5122 + $0x144] sm:$0xff]
        %v5556 = vld [vmem:[%s5122 + $0x154] sm:$0xff]
        %v5557 = vld [vmem:[%s5122 + $0x15c] sm:$0xff]
        %v5558 = vld [vmem:[%s5122 + $0x16c] sm:$0xff]
        %v5559 = vld [vmem:[%s5122 + $0x174] sm:$0xff]
        %v5560 = vld [vmem:[%s5155 + $0x4] sm:$0x1]
        %v5561 = vlaneseq
        %v5562 = vshrl.u32 %v5561, 7
        %v5563 = vsub.s32 0, %v5562
        %v5564 = vrot.slane %v5560, %v5563
        %v5565 = vmul.f32 %v5528, %v5564
        %v5566 = vmul.f32 %v5529, %v5564
        %v5567 = vmul.f32 %v5530, %v5564
        %v5568 = vmul.f32 %v5531, %v5564
        %v5569 = vmul.f32 %v5532, %v5564
        %v5570 = vmul.f32 %v5533, %v5564
        %v5571 = vmul.f32 %v5534, %v5564
        %v5572 = vmul.f32 %v5535, %v5564
        %v5573 = vmul.f32 %v5536, %v5564
        %v5574 = vmul.f32 %v5537, %v5564
        %v5575 = vmul.f32 %v5538, %v5564
        %v5576 = vmul.f32 %v5539, %v5564
        %v5577 = vmul.f32 %v5540, %v5564
        %v5578 = vmul.f32 %v5541, %v5564
        %v5579 = vmul.f32 %v5542, %v5564
        %v5580 = vmul.f32 %v5543, %v5564
        %v5581 = vmul.f32 %v5544, %v5564
        %v5582 = vmul.f32 %v5545, %v5564
        %v5583 = vmul.f32 %v5546, %v5564
        %v5584 = vmul.f32 %v5547, %v5564
        %v5585 = vmul.f32 %v5548, %v5564
        %v5586 = vmul.f32 %v5549, %v5564
        %v5587 = vmul.f32 %v5550, %v5564
        %v5588 = vmul.f32 %v5551, %v5564
        %v5589 = vmul.f32 %v5552, %v5564
        %v5590 = vmul.f32 %v5553, %v5564
        %v5591 = vmul.f32 %v5554, %v5564
        %v5592 = vmul.f32 %v5555, %v5564
        %v5593 = vmul.f32 %v5556, %v5564
        %v5594 = vmul.f32 %v5557, %v5564
        %v5595 = vmul.f32 %v5558, %v5564
        %v5596 = vmul.f32 %v5559, %v5564
        %v5597 = vadd.f32 %v5496, %v5565
        %v5598 = vadd.f32 %v5497, %v5566
        %v5599 = vadd.f32 %v5498, %v5567
        %v5600 = vadd.f32 %v5499, %v5568
        %v5601 = vadd.f32 %v5500, %v5569
        %v5602 = vadd.f32 %v5501, %v5570
        %v5603 = vadd.f32 %v5502, %v5571
        %v5604 = vadd.f32 %v5503, %v5572
        %v5605 = vadd.f32 %v5504, %v5573
        %v5606 = vadd.f32 %v5505, %v5574
        %v5607 = vadd.f32 %v5506, %v5575
        %v5608 = vadd.f32 %v5507, %v5576
        %v5609 = vadd.f32 %v5508, %v5577
        %v5610 = vadd.f32 %v5509, %v5578
        %v5611 = vadd.f32 %v5510, %v5579
        %v5612 = vadd.f32 %v5511, %v5580
        %v5613 = vadd.f32 %v5512, %v5581
        %v5614 = vadd.f32 %v5513, %v5582
        %v5615 = vadd.f32 %v5514, %v5583
        %v5616 = vadd.f32 %v5515, %v5584
        %v5617 = vadd.f32 %v5516, %v5585
        %v5618 = vadd.f32 %v5517, %v5586
        %v5619 = vadd.f32 %v5518, %v5587
        %v5620 = vadd.f32 %v5519, %v5588
        %v5621 = vadd.f32 %v5520, %v5589
        %v5622 = vadd.f32 %v5521, %v5590
        %v5623 = vadd.f32 %v5522, %v5591
        %v5624 = vadd.f32 %v5523, %v5592
        %v5625 = vadd.f32 %v5524, %v5593
        %v5626 = vadd.f32 %v5525, %v5594
        %v5627 = vadd.f32 %v5526, %v5595
        %v5628 = vadd.f32 %v5527, %v5596
        %v5629 = vld [vmem:[%s6] sm:$0x1]
        %v5631 = vlaneseq
        %v5632 = vshrl.u32 %v5631, 7
        %v5633 = vsub.s32 0, %v5632
        %v5634 = vrot.slane %v5629, %v5633
        %v5636 = vadd.f32 %v5597, %v5634
        %v5637 = vadd.f32 %v5598, %v5634
        %v5638 = vadd.f32 %v5599, %v5634
        %v5639 = vadd.f32 %v5600, %v5634
        %v5640 = vadd.f32 %v5601, %v5634
        %v5641 = vadd.f32 %v5602, %v5634
        %v5642 = vadd.f32 %v5603, %v5634
        %v5643 = vadd.f32 %v5604, %v5634
        %v5644 = vadd.f32 %v5605, %v5634
        %v5645 = vadd.f32 %v5606, %v5634
        %v5646 = vadd.f32 %v5607, %v5634
        %v5647 = vadd.f32 %v5608, %v5634
        %v5648 = vadd.f32 %v5609, %v5634
        %v5649 = vadd.f32 %v5610, %v5634
        %v5650 = vadd.f32 %v5611, %v5634
        %v5651 = vadd.f32 %v5612, %v5634
        %v5652 = vadd.f32 %v5613, %v5634
        %v5653 = vadd.f32 %v5614, %v5634
        %v5654 = vadd.f32 %v5615, %v5634
        %v5655 = vadd.f32 %v5616, %v5634
        %v5656 = vadd.f32 %v5617, %v5634
        %v5657 = vadd.f32 %v5618, %v5634
        %v5658 = vadd.f32 %v5619, %v5634
        %v5659 = vadd.f32 %v5620, %v5634
        %v5660 = vadd.f32 %v5621, %v5634
        %v5661 = vadd.f32 %v5622, %v5634
        %v5662 = vadd.f32 %v5623, %v5634
        %v5663 = vadd.f32 %v5624, %v5634
        %v5664 = vadd.f32 %v5625, %v5634
        %v5665 = vadd.f32 %v5626, %v5634
        %v5666 = vadd.f32 %v5627, %v5634
        %v5667 = vadd.f32 %v5628, %v5634
        %v5668 = vmax.f32 %v5636, 0.0
        %v5669 = vmax.f32 %v5637, 0.0
        %v5670 = vmax.f32 %v5638, 0.0
        %v5671 = vmax.f32 %v5639, 0.0
        %v5672 = vmax.f32 %v5640, 0.0
        %v5673 = vmax.f32 %v5641, 0.0
        %v5674 = vmax.f32 %v5642, 0.0
        %v5675 = vmax.f32 %v5643, 0.0
        %v5676 = vmax.f32 %v5644, 0.0
        %v5677 = vmax.f32 %v5645, 0.0
        %v5678 = vmax.f32 %v5646, 0.0
        %v5679 = vmax.f32 %v5647, 0.0
        %v5680 = vmax.f32 %v5648, 0.0
        %v5681 = vmax.f32 %v5649, 0.0
        %v5682 = vmax.f32 %v5650, 0.0
        %v5683 = vmax.f32 %v5651, 0.0
        %v5684 = vmax.f32 %v5652, 0.0
        %v5685 = vmax.f32 %v5653, 0.0
        %v5686 = vmax.f32 %v5654, 0.0
        %v5687 = vmax.f32 %v5655, 0.0
        %v5688 = vmax.f32 %v5656, 0.0
        %v5689 = vmax.f32 %v5657, 0.0
        %v5690 = vmax.f32 %v5658, 0.0
        %v5691 = vmax.f32 %v5659, 0.0
        %v5692 = vmax.f32 %v5660, 0.0
        %v5693 = vmax.f32 %v5661, 0.0
        %v5694 = vmax.f32 %v5662, 0.0
        %v5695 = vmax.f32 %v5663, 0.0
        %v5696 = vmax.f32 %v5664, 0.0
        %v5697 = vmax.f32 %v5665, 0.0
        %v5698 = vmax.f32 %v5666, 0.0
        %v5699 = vmax.f32 %v5667, 0.0
        %v5700 = vld [vmem:[%s7] sm:$0xff]
        %v5701 = vld [vmem:[%s7 + $0x8] sm:$0xff]
        %v5702 = vld [vmem:[%s7 + $0x10] sm:$0xff]
        %v5703 = vld [vmem:[%s7 + $0x18] sm:$0xff]
        %v5704 = vld [vmem:[%s7 + $0x20] sm:$0xff]
        %v5705 = vld [vmem:[%s7 + $0x28] sm:$0xff]
        %v5706 = vld [vmem:[%s7 + $0x30] sm:$0xff]
        %v5707 = vld [vmem:[%s7 + $0x38] sm:$0xff]
        %v5708 = vld [vmem:[%s7 + $0x40] sm:$0xff]
        %v5709 = vld [vmem:[%s7 + $0x48] sm:$0xff]
        %v5710 = vld [vmem:[%s7 + $0x50] sm:$0xff]
        %v5711 = vld [vmem:[%s7 + $0x58] sm:$0xff]
        %v5712 = vld [vmem:[%s7 + $0x60] sm:$0xff]
        %v5713 = vld [vmem:[%s7 + $0x68] sm:$0xff]
        %v5714 = vld [vmem:[%s7 + $0x70] sm:$0xff]
        %v5715 = vld [vmem:[%s7 + $0x78] sm:$0xff]
        %v5716 = vld [vmem:[%s8] sm:$0xff]
        %v5717 = vld [vmem:[%s8 + $0x8] sm:$0xff]
        %v5718 = vld [vmem:[%s8 + $0x10] sm:$0xff]
        %v5719 = vld [vmem:[%s8 + $0x18] sm:$0xff]
        %v5720 = vld [vmem:[%s8 + $0x20] sm:$0xff]
        %v5721 = vld [vmem:[%s8 + $0x28] sm:$0xff]
        %v5722 = vld [vmem:[%s8 + $0x30] sm:$0xff]
        %v5723 = vld [vmem:[%s8 + $0x38] sm:$0xff]
        %v5724 = vld [vmem:[%s8 + $0x40] sm:$0xff]
        %v5725 = vld [vmem:[%s8 + $0x48] sm:$0xff]
        %v5726 = vld [vmem:[%s8 + $0x50] sm:$0xff]
        %v5727 = vld [vmem:[%s8 + $0x58] sm:$0xff]
        %v5728 = vld [vmem:[%s8 + $0x60] sm:$0xff]
        %v5729 = vld [vmem:[%s8 + $0x68] sm:$0xff]
        %v5730 = vld [vmem:[%s8 + $0x70] sm:$0xff]
        %v5731 = vld [vmem:[%s8 + $0x78] sm:$0xff]
        %5732 = vmatprep.subr.mxu0 0.0
        %v5733 = vand.u32 %v5716, 4294901760
        %5734 = vmatpush1.msra.mxu0 %v5733
        %5735 = vmatprep.subr.mxu0 0.0
        %v5736 = vand.u32 %v5717, 4294901760
        %5737 = vmatpush1.msra.mxu0 %v5736
        %5738 = vmatprep.subr.mxu0 0.0
        %v5739 = vand.u32 %v5718, 4294901760
        %5740 = vmatpush1.msra.mxu0 %v5739
        %5741 = vmatprep.subr.mxu0 0.0
        %v5742 = vand.u32 %v5719, 4294901760
        %5743 = vmatpush1.msra.mxu0 %v5742
        %5744 = vmatprep.subr.mxu0 0.0
        %v5745 = vand.u32 %v5720, 4294901760
        %5746 = vmatpush1.msra.mxu0 %v5745
        %5747 = vmatprep.subr.mxu0 0.0
        %v5748 = vand.u32 %v5721, 4294901760
        %5749 = vmatpush1.msra.mxu0 %v5748
        %5750 = vmatprep.subr.mxu0 0.0
        %v5751 = vand.u32 %v5722, 4294901760
        %5752 = vmatpush1.msra.mxu0 %v5751
        %5753 = vmatprep.subr.mxu0 0.0
        %v5754 = vand.u32 %v5723, 4294901760
        %5755 = vmatpush1.msra.mxu0 %v5754
        %5756 = vmatprep.subr.mxu0 0.0
        %v5757 = vand.u32 %v5724, 4294901760
        %5758 = vmatpush1.msra.mxu0 %v5757
        %5759 = vmatprep.subr.mxu0 0.0
        %v5760 = vand.u32 %v5725, 4294901760
        %5761 = vmatpush1.msra.mxu0 %v5760
        %5762 = vmatprep.subr.mxu0 0.0
        %v5763 = vand.u32 %v5726, 4294901760
        %5764 = vmatpush1.msra.mxu0 %v5763
        %5765 = vmatprep.subr.mxu0 0.0
        %v5766 = vand.u32 %v5727, 4294901760
        %5767 = vmatpush1.msra.mxu0 %v5766
        %5768 = vmatprep.subr.mxu0 0.0
        %v5769 = vand.u32 %v5728, 4294901760
        %5770 = vmatpush1.msra.mxu0 %v5769
        %5771 = vmatprep.subr.mxu0 0.0
        %v5772 = vand.u32 %v5729, 4294901760
        %5773 = vmatpush1.msra.mxu0 %v5772
        %5774 = vmatprep.subr.mxu0 0.0
        %v5775 = vand.u32 %v5730, 4294901760
        %5776 = vmatpush1.msra.mxu0 %v5775
        %5777 = vmatprep.subr.mxu0 0.0
        %v5778 = vand.u32 %v5731, 4294901760
        %5779 = vmatpush1.msra.mxu0 %v5778
        %5780 = vmatprep.subr.mxu0 0.0
        %5781 = vmatpush1.msra.mxu0 0.0
        %5782 = vmatprep.subr.mxu0 0.0
        %5783 = vmatpush1.msra.mxu0 0.0
        %5784 = vmatprep.subr.mxu0 0.0
        %5785 = vmatpush1.msra.mxu0 0.0
        %5786 = vmatprep.subr.mxu0 0.0
        %5787 = vmatpush1.msra.mxu0 0.0
        %5788 = vmatprep.subr.mxu0 0.0
        %5789 = vmatpush1.msra.mxu0 0.0
        %5790 = vmatprep.subr.mxu0 0.0
        %5791 = vmatpush1.msra.mxu0 0.0
        %5792 = vmatprep.subr.mxu0 0.0
        %5793 = vmatpush1.msra.mxu0 0.0
        %5794 = vmatprep.subr.mxu0 0.0
        %5795 = vmatpush1.msra.mxu0 0.0
        %5796 = vmatprep.subr.mxu0 0.0
        %5797 = vmatpush1.msra.mxu0 0.0
        %5798 = vmatprep.subr.mxu0 0.0
        %5799 = vmatpush1.msra.mxu0 0.0
        %5800 = vmatprep.subr.mxu0 0.0
        %5801 = vmatpush1.msra.mxu0 0.0
        %5802 = vmatprep.subr.mxu0 0.0
        %5803 = vmatpush1.msra.mxu0 0.0
        %5804 = vmatprep.subr.mxu0 0.0
        %5805 = vmatpush1.msra.mxu0 0.0
        %5806 = vmatprep.subr.mxu0 0.0
        %5807 = vmatpush1.msra.mxu0 0.0
        %5808 = vmatprep.subr.mxu0 0.0
        %5809 = vmatpush1.msra.mxu0 0.0
        %5810 = vmatprep.subr.mxu0 0.0
        %5811 = vmatpush1.msra.mxu0 0.0
        %5812 = vmatprep.mubr.f32.mxu0 0.0
        %v5813 = vand.u32 %v5668, 4294901760
        %v5814 = vsub.f32 %v5668, %v5813
        %v5815 = vand.u32 %v5814, 4294901760
        %v5816 = vsub.f32 %v5814, %v5815
        %v5817 = vand.u32 %v5816, 4294901760
        %5818 = vmatmul.mubr.f32.gmra.mrb[0].mxu0 %v5817
        %v5819 = vpop.f32.mrb[0].mxu0
        %v5820 = vadd.f32 0.0, %v5819
        %v5821 = vpop.f32.mrb[0].mxu0
        %5822 = vmatprep.mubr.f32.mxu0 0.0
        %v5823 = vand.u32 %v5669, 4294901760
        %v5824 = vsub.f32 %v5669, %v5823
        %v5825 = vand.u32 %v5824, 4294901760
        %v5826 = vsub.f32 %v5824, %v5825
        %v5827 = vand.u32 %v5826, 4294901760
        %5828 = vmatmul.mubr.f32.gmra.mrb[0].mxu0 %v5827
        %v5829 = vpop.f32.mrb[0].mxu0
        %v5830 = vadd.f32 0.0, %v5829
        %v5831 = vpop.f32.mrb[0].mxu0
        %5832 = vmatprep.mubr.f32.mxu0 0.0
        %v5833 = vand.u32 %v5670, 4294901760
        %v5834 = vsub.f32 %v5670, %v5833
        %v5835 = vand.u32 %v5834, 4294901760
        %v5836 = vsub.f32 %v5834, %v5835
        %v5837 = vand.u32 %v5836, 4294901760
        %5838 = vmatmul.mubr.f32.gmra.mrb[0].mxu0 %v5837
        %v5839 = vpop.f32.mrb[0].mxu0
        %v5840 = vadd.f32 0.0, %v5839
        %v5841 = vpop.f32.mrb[0].mxu0
        %5842 = vmatprep.mubr.f32.mxu0 0.0
        %v5843 = vand.u32 %v5671, 4294901760
        %v5844 = vsub.f32 %v5671, %v5843
        %v5845 = vand.u32 %v5844, 4294901760
        %v5846 = vsub.f32 %v5844, %v5845
        %v5847 = vand.u32 %v5846, 4294901760
        %5848 = vmatmul.mubr.f32.gmra.mrb[0].mxu0 %v5847
        %v5849 = vpop.f32.mrb[0].mxu0
        %v5850 = vadd.f32 0.0, %v5849
        %v5851 = vpop.f32.mrb[0].mxu0
        %5852 = vmatprep.mubr.f32.mxu0 0.0
        %v5853 = vand.u32 %v5672, 4294901760
        %v5854 = vsub.f32 %v5672, %v5853
        %v5855 = vand.u32 %v5854, 4294901760
        %v5856 = vsub.f32 %v5854, %v5855
        %v5857 = vand.u32 %v5856, 4294901760
        %5858 = vmatmul.mubr.f32.gmra.mrb[0].mxu0 %v5857
        %v5859 = vpop.f32.mrb[0].mxu0
        %v5860 = vadd.f32 0.0, %v5859
        %v5861 = vpop.f32.mrb[0].mxu0
        %5862 = vmatprep.mubr.f32.mxu0 0.0
        %v5863 = vand.u32 %v5673, 4294901760
        %v5864 = vsub.f32 %v5673, %v5863
        %v5865 = vand.u32 %v5864, 4294901760
        %v5866 = vsub.f32 %v5864, %v5865
        %v5867 = vand.u32 %v5866, 4294901760
        %5868 = vmatmul.mubr.f32.gmra.mrb[0].mxu0 %v5867
        %v5869 = vpop.f32.mrb[0].mxu0
        %v5870 = vadd.f32 0.0, %v5869
        %v5871 = vpop.f32.mrb[0].mxu0
        %5872 = vmatprep.mubr.f32.mxu0 0.0
        %v5873 = vand.u32 %v5674, 4294901760
        %v5874 = vsub.f32 %v5674, %v5873
        %v5875 = vand.u32 %v5874, 4294901760
        %v5876 = vsub.f32 %v5874, %v5875
        %v5877 = vand.u32 %v5876, 4294901760
        %5878 = vmatmul.mubr.f32.gmra.mrb[0].mxu0 %v5877
        %v5879 = vpop.f32.mrb[0].mxu0
        %v5880 = vadd.f32 0.0, %v5879
        %v5881 = vpop.f32.mrb[0].mxu0
        %5882 = vmatprep.mubr.f32.mxu0 0.0
        %v5883 = vand.u32 %v5675, 4294901760
        %v5884 = vsub.f32 %v5675, %v5883
        %v5885 = vand.u32 %v5884, 4294901760
        %v5886 = vsub.f32 %v5884, %v5885
        %v5887 = vand.u32 %v5886, 4294901760
        %5888 = vmatmul.mubr.f32.gmra.mrb[0].mxu0 %v5887
        %v5889 = vpop.f32.mrb[0].mxu0
        %v5890 = vadd.f32 0.0, %v5889
        %v5891 = vpop.f32.mrb[0].mxu0
        %5892 = vmatprep.mubr.f32.mxu0 0.0
        %v5893 = vand.u32 %v5676, 4294901760
        %v5894 = vsub.f32 %v5676, %v5893
        %v5895 = vand.u32 %v5894, 4294901760
        %v5896 = vsub.f32 %v5894, %v5895
        %v5897 = vand.u32 %v5896, 4294901760
        %5898 = vmatmul.mubr.f32.gmra.mrb[0].mxu0 %v5897
        %v5899 = vpop.f32.mrb[0].mxu0
        %v5900 = vadd.f32 0.0, %v5899
        %v5901 = vpop.f32.mrb[0].mxu0
        %5902 = vmatprep.mubr.f32.mxu0 0.0
        %v5903 = vand.u32 %v5677, 4294901760
        %v5904 = vsub.f32 %v5677, %v5903
        %v5905 = vand.u32 %v5904, 4294901760
        %v5906 = vsub.f32 %v5904, %v5905
        %v5907 = vand.u32 %v5906, 4294901760
        %5908 = vmatmul.mubr.f32.gmra.mrb[0].mxu0 %v5907
        %v5909 = vpop.f32.mrb[0].mxu0
        %v5910 = vadd.f32 0.0, %v5909
        %v5911 = vpop.f32.mrb[0].mxu0
        %5912 = vmatprep.mubr.f32.mxu0 0.0
        %v5913 = vand.u32 %v5678, 4294901760
        %v5914 = vsub.f32 %v5678, %v5913
        %v5915 = vand.u32 %v5914, 4294901760
        %v5916 = vsub.f32 %v5914, %v5915
        %v5917 = vand.u32 %v5916, 4294901760
        %5918 = vmatmul.mubr.f32.gmra.mrb[0].mxu0 %v5917
        %v5919 = vpop.f32.mrb[0].mxu0
        %v5920 = vadd.f32 0.0, %v5919
        %v5921 = vpop.f32.mrb[0].mxu0
        %5922 = vmatprep.mubr.f32.mxu0 0.0
        %v5923 = vand.u32 %v5679, 4294901760
        %v5924 = vsub.f32 %v5679, %v5923
        %v5925 = vand.u32 %v5924, 4294901760
        %v5926 = vsub.f32 %v5924, %v5925
        %v5927 = vand.u32 %v5926, 4294901760
        %5928 = vmatmul.mubr.f32.gmra.mrb[0].mxu0 %v5927
        %v5929 = vpop.f32.mrb[0].mxu0
        %v5930 = vadd.f32 0.0, %v5929
        %v5931 = vpop.f32.mrb[0].mxu0
        %5932 = vmatprep.mubr.f32.mxu0 0.0
        %v5933 = vand.u32 %v5680, 4294901760
        %v5934 = vsub.f32 %v5680, %v5933
        %v5935 = vand.u32 %v5934, 4294901760
        %v5936 = vsub.f32 %v5934, %v5935
        %v5937 = vand.u32 %v5936, 4294901760
        %5938 = vmatmul.mubr.f32.gmra.mrb[0].mxu0 %v5937
        %v5939 = vpop.f32.mrb[0].mxu0
        %v5940 = vadd.f32 0.0, %v5939
        %v5941 = vpop.f32.mrb[0].mxu0
        %5942 = vmatprep.mubr.f32.mxu0 0.0
        %v5943 = vand.u32 %v5681, 4294901760
        %v5944 = vsub.f32 %v5681, %v5943
        %v5945 = vand.u32 %v5944, 4294901760
        %v5946 = vsub.f32 %v5944, %v5945
        %v5947 = vand.u32 %v5946, 4294901760
        %5948 = vmatmul.mubr.f32.gmra.mrb[0].mxu0 %v5947
        %v5949 = vpop.f32.mrb[0].mxu0
        %v5950 = vadd.f32 0.0, %v5949
        %v5951 = vpop.f32.mrb[0].mxu0
        %5952 = vmatprep.mubr.f32.mxu0 0.0
        %v5953 = vand.u32 %v5682, 4294901760
        %v5954 = vsub.f32 %v5682, %v5953
        %v5955 = vand.u32 %v5954, 4294901760
        %v5956 = vsub.f32 %v5954, %v5955
        %v5957 = vand.u32 %v5956, 4294901760
        %5958 = vmatmul.mubr.f32.gmra.mrb[0].mxu0 %v5957
        %v5959 = vpop.f32.mrb[0].mxu0
        %v5960 = vadd.f32 0.0, %v5959
        %v5961 = vpop.f32.mrb[0].mxu0
        %5962 = vmatprep.mubr.f32.mxu0 0.0
        %v5963 = vand.u32 %v5683, 4294901760
        %v5964 = vsub.f32 %v5683, %v5963
        %v5965 = vand.u32 %v5964, 4294901760
        %v5966 = vsub.f32 %v5964, %v5965
        %v5967 = vand.u32 %v5966, 4294901760
        %5968 = vmatmul.mubr.f32.gmra.mrb[0].mxu0 %v5967
        %v5969 = vpop.f32.mrb[0].mxu0
        %v5970 = vadd.f32 0.0, %v5969
        %v5971 = vpop.f32.mrb[0].mxu0
        %5972 = vmatprep.mubr.f32.mxu0 0.0
        %v5973 = vand.u32 %v5684, 4294901760
        %v5974 = vsub.f32 %v5684, %v5973
        %v5975 = vand.u32 %v5974, 4294901760
        %v5976 = vsub.f32 %v5974, %v5975
        %v5977 = vand.u32 %v5976, 4294901760
        %5978 = vmatmul.mubr.f32.gmra.mrb[0].mxu0 %v5977
        %v5979 = vpop.f32.mrb[0].mxu0
        %v5980 = vadd.f32 0.0, %v5979
        %v5981 = vpop.f32.mrb[0].mxu0
        %5982 = vmatprep.mubr.f32.mxu0 0.0
        %v5983 = vand.u32 %v5685, 4294901760
        %v5984 = vsub.f32 %v5685, %v5983
        %v5985 = vand.u32 %v5984, 4294901760
        %v5986 = vsub.f32 %v5984, %v5985
        %v5987 = vand.u32 %v5986, 4294901760
        %5988 = vmatmul.mubr.f32.gmra.mrb[0].mxu0 %v5987
        %v5989 = vpop.f32.mrb[0].mxu0
        %v5990 = vadd.f32 0.0, %v5989
        %v5991 = vpop.f32.mrb[0].mxu0
        %5992 = vmatprep.mubr.f32.mxu0 0.0
        %v5993 = vand.u32 %v5686, 4294901760
        %v5994 = vsub.f32 %v5686, %v5993
        %v5995 = vand.u32 %v5994, 4294901760
        %v5996 = vsub.f32 %v5994, %v5995
        %v5997 = vand.u32 %v5996, 4294901760
        %5998 = vmatmul.mubr.f32.gmra.mrb[0].mxu0 %v5997
        %v5999 = vpop.f32.mrb[0].mxu0
        %v6000 = vadd.f32 0.0, %v5999
        %v6001 = vpop.f32.mrb[0].mxu0
        %6002 = vmatprep.mubr.f32.mxu0 0.0
        %v6003 = vand.u32 %v5687, 4294901760
        %v6004 = vsub.f32 %v5687, %v6003
        %v6005 = vand.u32 %v6004, 4294901760
        %v6006 = vsub.f32 %v6004, %v6005
        %v6007 = vand.u32 %v6006, 4294901760
        %6008 = vmatmul.mubr.f32.gmra.mrb[0].mxu0 %v6007
        %v6009 = vpop.f32.mrb[0].mxu0
        %v6010 = vadd.f32 0.0, %v6009
        %v6011 = vpop.f32.mrb[0].mxu0
        %6012 = vmatprep.mubr.f32.mxu0 0.0
        %v6013 = vand.u32 %v5688, 4294901760
        %v6014 = vsub.f32 %v5688, %v6013
        %v6015 = vand.u32 %v6014, 4294901760
        %v6016 = vsub.f32 %v6014, %v6015
        %v6017 = vand.u32 %v6016, 4294901760
        %6018 = vmatmul.mubr.f32.gmra.mrb[0].mxu0 %v6017
        %v6019 = vpop.f32.mrb[0].mxu0
        %v6020 = vadd.f32 0.0, %v6019
        %v6021 = vpop.f32.mrb[0].mxu0
        %6022 = vmatprep.mubr.f32.mxu0 0.0
        %v6023 = vand.u32 %v5689, 4294901760
        %v6024 = vsub.f32 %v5689, %v6023
        %v6025 = vand.u32 %v6024, 4294901760
        %v6026 = vsub.f32 %v6024, %v6025
        %v6027 = vand.u32 %v6026, 4294901760
        %6028 = vmatmul.mubr.f32.gmra.mrb[0].mxu0 %v6027
        %v6029 = vpop.f32.mrb[0].mxu0
        %v6030 = vadd.f32 0.0, %v6029
        %v6031 = vpop.f32.mrb[0].mxu0
        %6032 = vmatprep.mubr.f32.mxu0 0.0
        %v6033 = vand.u32 %v5690, 4294901760
        %v6034 = vsub.f32 %v5690, %v6033
        %v6035 = vand.u32 %v6034, 4294901760
        %v6036 = vsub.f32 %v6034, %v6035
        %v6037 = vand.u32 %v6036, 4294901760
        %6038 = vmatmul.mubr.f32.gmra.mrb[0].mxu0 %v6037
        %v6039 = vpop.f32.mrb[0].mxu0
        %v6040 = vadd.f32 0.0, %v6039
        %v6041 = vpop.f32.mrb[0].mxu0
        %6042 = vmatprep.mubr.f32.mxu0 0.0
        %v6043 = vand.u32 %v5691, 4294901760
        %v6044 = vsub.f32 %v5691, %v6043
        %v6045 = vand.u32 %v6044, 4294901760
        %v6046 = vsub.f32 %v6044, %v6045
        %v6047 = vand.u32 %v6046, 4294901760
        %6048 = vmatmul.mubr.f32.gmra.mrb[0].mxu0 %v6047
        %v6049 = vpop.f32.mrb[0].mxu0
        %v6050 = vadd.f32 0.0, %v6049
        %v6051 = vpop.f32.mrb[0].mxu0
        %6052 = vmatprep.mubr.f32.mxu0 0.0
        %v6053 = vand.u32 %v5692, 4294901760
        %v6054 = vsub.f32 %v5692, %v6053
        %v6055 = vand.u32 %v6054, 4294901760
        %v6056 = vsub.f32 %v6054, %v6055
        %v6057 = vand.u32 %v6056, 4294901760
        %6058 = vmatmul.mubr.f32.gmra.mrb[0].mxu0 %v6057
        %v6059 = vpop.f32.mrb[0].mxu0
        %v6060 = vadd.f32 0.0, %v6059
        %v6061 = vpop.f32.mrb[0].mxu0
        %6062 = vmatprep.mubr.f32.mxu0 0.0
        %v6063 = vand.u32 %v5693, 4294901760
        %v6064 = vsub.f32 %v5693, %v6063
        %v6065 = vand.u32 %v6064, 4294901760
        %v6066 = vsub.f32 %v6064, %v6065
        %v6067 = vand.u32 %v6066, 4294901760
        %6068 = vmatmul.mubr.f32.gmra.mrb[0].mxu0 %v6067
        %v6069 = vpop.f32.mrb[0].mxu0
        %v6070 = vadd.f32 0.0, %v6069
        %v6071 = vpop.f32.mrb[0].mxu0
        %6072 = vmatprep.mubr.f32.mxu0 0.0
        %v6073 = vand.u32 %v5694, 4294901760
        %v6074 = vsub.f32 %v5694, %v6073
        %v6075 = vand.u32 %v6074, 4294901760
        %v6076 = vsub.f32 %v6074, %v6075
        %v6077 = vand.u32 %v6076, 4294901760
        %6078 = vmatmul.mubr.f32.gmra.mrb[0].mxu0 %v6077
        %v6079 = vpop.f32.mrb[0].mxu0
        %v6080 = vadd.f32 0.0, %v6079
        %v6081 = vpop.f32.mrb[0].mxu0
        %6082 = vmatprep.mubr.f32.mxu0 0.0
        %v6083 = vand.u32 %v5695, 4294901760
        %v6084 = vsub.f32 %v5695, %v6083
        %v6085 = vand.u32 %v6084, 4294901760
        %v6086 = vsub.f32 %v6084, %v6085
        %v6087 = vand.u32 %v6086, 4294901760
        %6088 = vmatmul.mubr.f32.gmra.mrb[0].mxu0 %v6087
        %v6089 = vpop.f32.mrb[0].mxu0
        %v6090 = vadd.f32 0.0, %v6089
        %v6091 = vpop.f32.mrb[0].mxu0
        %6092 = vmatprep.mubr.f32.mxu0 0.0
        %v6093 = vand.u32 %v5696, 4294901760
        %v6094 = vsub.f32 %v5696, %v6093
        %v6095 = vand.u32 %v6094, 4294901760
        %v6096 = vsub.f32 %v6094, %v6095
        %v6097 = vand.u32 %v6096, 4294901760
        %6098 = vmatmul.mubr.f32.gmra.mrb[0].mxu0 %v6097
        %v6099 = vpop.f32.mrb[0].mxu0
        %v6100 = vadd.f32 0.0, %v6099
        %v6101 = vpop.f32.mrb[0].mxu0
        %6102 = vmatprep.mubr.f32.mxu0 0.0
        %v6103 = vand.u32 %v5697, 4294901760
        %v6104 = vsub.f32 %v5697, %v6103
        %v6105 = vand.u32 %v6104, 4294901760
        %v6106 = vsub.f32 %v6104, %v6105
        %v6107 = vand.u32 %v6106, 4294901760
        %6108 = vmatmul.mubr.f32.gmra.mrb[0].mxu0 %v6107
        %v6109 = vpop.f32.mrb[0].mxu0
        %v6110 = vadd.f32 0.0, %v6109
        %v6111 = vpop.f32.mrb[0].mxu0
        %6112 = vmatprep.mubr.f32.mxu0 0.0
        %v6113 = vand.u32 %v5698, 4294901760
        %v6114 = vsub.f32 %v5698, %v6113
        %v6115 = vand.u32 %v6114, 4294901760
        %v6116 = vsub.f32 %v6114, %v6115
        %v6117 = vand.u32 %v6116, 4294901760
        %6118 = vmatmul.mubr.f32.gmra.mrb[0].mxu0 %v6117
        %v6119 = vpop.f32.mrb[0].mxu0
        %v6120 = vadd.f32 0.0, %v6119
        %v6121 = vpop.f32.mrb[0].mxu0
        %6122 = vmatprep.mubr.f32.mxu0 0.0
        %v6123 = vand.u32 %v5699, 4294901760
        %v6124 = vsub.f32 %v5699, %v6123
        %v6125 = vand.u32 %v6124, 4294901760
        %v6126 = vsub.f32 %v6124, %v6125
        %v6127 = vand.u32 %v6126, 4294901760
        %6128 = vmatmul.mubr.f32.gmra.mrb[0].mxu0 %v6127
        %v6129 = vpop.f32.mrb[0].mxu0
        %v6130 = vadd.f32 0.0, %v6129
        %v6131 = vpop.f32.mrb[0].mxu0
        %6132 = vdwg.mxu0
        %6133 = vmatprep.subr.mxu0 0.0
        %v6134 = vand.u32 %v5716, 4294901760
        %v6135 = vsub.f32 %v5716, %v6134
        %v6136 = vand.u32 %v6135, 4294901760
        %v6137 = vsub.f32 %v6135, %v6136
        %v6138 = vand.u32 %v6137, 4294901760
        %6139 = vmatpush1.msra.mxu0 %v6138
        %6140 = vmatprep.subr.mxu0 0.0
        %v6141 = vand.u32 %v5717, 4294901760
        %v6142 = vsub.f32 %v5717, %v6141
        %v6143 = vand.u32 %v6142, 4294901760
        %v6144 = vsub.f32 %v6142, %v6143
        %v6145 = vand.u32 %v6144, 4294901760
        %6146 = vmatpush1.msra.mxu0 %v6145
        %6147 = vmatprep.subr.mxu0 0.0
        %v6148 = vand.u32 %v5718, 4294901760
        %v6149 = vsub.f32 %v5718, %v6148
        %v6150 = vand.u32 %v6149, 4294901760
        %v6151 = vsub.f32 %v6149, %v6150
        %v6152 = vand.u32 %v6151, 4294901760
        %6153 = vmatpush1.msra.mxu0 %v6152
        %6154 = vmatprep.subr.mxu0 0.0
        %v6155 = vand.u32 %v5719, 4294901760
        %v6156 = vsub.f32 %v5719, %v6155
        %v6157 = vand.u32 %v6156, 4294901760
        %v6158 = vsub.f32 %v6156, %v6157
        %v6159 = vand.u32 %v6158, 4294901760
        %6160 = vmatpush1.msra.mxu0 %v6159
        %6161 = vmatprep.subr.mxu0 0.0
        %v6162 = vand.u32 %v5720, 4294901760
        %v6163 = vsub.f32 %v5720, %v6162
        %v6164 = vand.u32 %v6163, 4294901760
        %v6165 = vsub.f32 %v6163, %v6164
        %v6166 = vand.u32 %v6165, 4294901760
        %6167 = vmatpush1.msra.mxu0 %v6166
        %6168 = vmatprep.subr.mxu0 0.0
        %v6169 = vand.u32 %v5721, 4294901760
        %v6170 = vsub.f32 %v5721, %v6169
        %v6171 = vand.u32 %v6170, 4294901760
        %v6172 = vsub.f32 %v6170, %v6171
        %v6173 = vand.u32 %v6172, 4294901760
        %6174 = vmatpush1.msra.mxu0 %v6173
        %6175 = vmatprep.subr.mxu0 0.0
        %v6176 = vand.u32 %v5722, 4294901760
        %v6177 = vsub.f32 %v5722, %v6176
        %v6178 = vand.u32 %v6177, 4294901760
        %v6179 = vsub.f32 %v6177, %v6178
        %v6180 = vand.u32 %v6179, 4294901760
        %6181 = vmatpush1.msra.mxu0 %v6180
        %6182 = vmatprep.subr.mxu0 0.0
        %v6183 = vand.u32 %v5723, 4294901760
        %v6184 = vsub.f32 %v5723, %v6183
        %v6185 = vand.u32 %v6184, 4294901760
        %v6186 = vsub.f32 %v6184, %v6185
        %v6187 = vand.u32 %v6186, 4294901760
        %6188 = vmatpush1.msra.mxu0 %v6187
        %6189 = vmatprep.subr.mxu0 0.0
        %v6190 = vand.u32 %v5724, 4294901760
        %v6191 = vsub.f32 %v5724, %v6190
        %v6192 = vand.u32 %v6191, 4294901760
        %v6193 = vsub.f32 %v6191, %v6192
        %v6194 = vand.u32 %v6193, 4294901760
        %6195 = vmatpush1.msra.mxu0 %v6194
        %6196 = vmatprep.subr.mxu0 0.0
        %v6197 = vand.u32 %v5725, 4294901760
        %v6198 = vsub.f32 %v5725, %v6197
        %v6199 = vand.u32 %v6198, 4294901760
        %v6200 = vsub.f32 %v6198, %v6199
        %v6201 = vand.u32 %v6200, 4294901760
        %6202 = vmatpush1.msra.mxu0 %v6201
        %6203 = vmatprep.subr.mxu0 0.0
        %v6204 = vand.u32 %v5726, 4294901760
        %v6205 = vsub.f32 %v5726, %v6204
        %v6206 = vand.u32 %v6205, 4294901760
        %v6207 = vsub.f32 %v6205, %v6206
        %v6208 = vand.u32 %v6207, 4294901760
        %6209 = vmatpush1.msra.mxu0 %v6208
        %6210 = vmatprep.subr.mxu0 0.0
        %v6211 = vand.u32 %v5727, 4294901760
        %v6212 = vsub.f32 %v5727, %v6211
        %v6213 = vand.u32 %v6212, 4294901760
        %v6214 = vsub.f32 %v6212, %v6213
        %v6215 = vand.u32 %v6214, 4294901760
        %6216 = vmatpush1.msra.mxu0 %v6215
        %6217 = vmatprep.subr.mxu0 0.0
        %v6218 = vand.u32 %v5728, 4294901760
        %v6219 = vsub.f32 %v5728, %v6218
        %v6220 = vand.u32 %v6219, 4294901760
        %v6221 = vsub.f32 %v6219, %v6220
        %v6222 = vand.u32 %v6221, 4294901760
        %6223 = vmatpush1.msra.mxu0 %v6222
        %6224 = vmatprep.subr.mxu0 0.0
        %v6225 = vand.u32 %v5729, 4294901760
        %v6226 = vsub.f32 %v5729, %v6225
        %v6227 = vand.u32 %v6226, 4294901760
        %v6228 = vsub.f32 %v6226, %v6227
        %v6229 = vand.u32 %v6228, 4294901760
        %6230 = vmatpush1.msra.mxu0 %v6229
        %6231 = vmatprep.subr.mxu0 0.0
        %v6232 = vand.u32 %v5730, 4294901760
        %v6233 = vsub.f32 %v5730, %v6232
        %v6234 = vand.u32 %v6233, 4294901760
        %v6235 = vsub.f32 %v6233, %v6234
        %v6236 = vand.u32 %v6235, 4294901760
        %6237 = vmatpush1.msra.mxu0 %v6236
        %6238 = vmatprep.subr.mxu0 0.0
        %v6239 = vand.u32 %v5731, 4294901760
        %v6240 = vsub.f32 %v5731, %v6239
        %v6241 = vand.u32 %v6240, 4294901760
        %v6242 = vsub.f32 %v6240, %v6241
        %v6243 = vand.u32 %v6242, 4294901760
        %6244 = vmatpush1.msra.mxu0 %v6243
        %6245 = vmatprep.subr.mxu0 0.0
        %6246 = vmatpush1.msra.mxu0 0.0
        %6247 = vmatprep.subr.mxu0 0.0
        %6248 = vmatpush1.msra.mxu0 0.0
        %6249 = vmatprep.subr.mxu0 0.0
        %6250 = vmatpush1.msra.mxu0 0.0
        %6251 = vmatprep.subr.mxu0 0.0
        %6252 = vmatpush1.msra.mxu0 0.0
        %6253 = vmatprep.subr.mxu0 0.0
        %6254 = vmatpush1.msra.mxu0 0.0
        %6255 = vmatprep.subr.mxu0 0.0
        %6256 = vmatpush1.msra.mxu0 0.0
        %6257 = vmatprep.subr.mxu0 0.0
        %6258 = vmatpush1.msra.mxu0 0.0
        %6259 = vmatprep.subr.mxu0 0.0
        %6260 = vmatpush1.msra.mxu0 0.0
        %6261 = vmatprep.subr.mxu0 0.0
        %6262 = vmatpush1.msra.mxu0 0.0
        %6263 = vmatprep.subr.mxu0 0.0
        %6264 = vmatpush1.msra.mxu0 0.0
        %6265 = vmatprep.subr.mxu0 0.0
        %6266 = vmatpush1.msra.mxu0 0.0
        %6267 = vmatprep.subr.mxu0 0.0
        %6268 = vmatpush1.msra.mxu0 0.0
        %6269 = vmatprep.subr.mxu0 0.0
        %6270 = vmatpush1.msra.mxu0 0.0
        %6271 = vmatprep.subr.mxu0 0.0
        %6272 = vmatpush1.msra.mxu0 0.0
        %6273 = vmatprep.subr.mxu0 0.0
        %6274 = vmatpush1.msra.mxu0 0.0
        %6275 = vmatprep.subr.mxu0 0.0
        %6276 = vmatpush1.msra.mxu0 0.0
        %6277 = vmatprep.mubr.f32.mxu0 0.0
        %v6278 = vand.u32 %v5668, 4294901760
        %6279 = vmatmul.mubr.f32.gmra.mrb[0].mxu0 %v6278
        %v6280 = vpop.f32.mrb[0].mxu0
        %v6281 = vadd.f32 %v5820, %v6280
        %v6282 = vpop.f32.mrb[0].mxu0
        %6283 = vmatprep.mubr.f32.mxu0 0.0
        %v6284 = vand.u32 %v5669, 4294901760
        %6285 = vmatmul.mubr.f32.gmra.mrb[0].mxu0 %v6284
        %v6286 = vpop.f32.mrb[0].mxu0
        %v6287 = vadd.f32 %v5830, %v6286
        %v6288 = vpop.f32.mrb[0].mxu0
        %6289 = vmatprep.mubr.f32.mxu0 0.0
        %v6290 = vand.u32 %v5670, 4294901760
        %6291 = vmatmul.mubr.f32.gmra.mrb[0].mxu0 %v6290
        %v6292 = vpop.f32.mrb[0].mxu0
        %v6293 = vadd.f32 %v5840, %v6292
        %v6294 = vpop.f32.mrb[0].mxu0
        %6295 = vmatprep.mubr.f32.mxu0 0.0
        %v6296 = vand.u32 %v5671, 4294901760
        %6297 = vmatmul.mubr.f32.gmra.mrb[0].mxu0 %v6296
        %v6298 = vpop.f32.mrb[0].mxu0
        %v6299 = vadd.f32 %v5850, %v6298
        %v6300 = vpop.f32.mrb[0].mxu0
        %6301 = vmatprep.mubr.f32.mxu0 0.0
        %v6302 = vand.u32 %v5672, 4294901760
        %6303 = vmatmul.mubr.f32.gmra.mrb[0].mxu0 %v6302
        %v6304 = vpop.f32.mrb[0].mxu0
        %v6305 = vadd.f32 %v5860, %v6304
        %v6306 = vpop.f32.mrb[0].mxu0
        %6307 = vmatprep.mubr.f32.mxu0 0.0
        %v6308 = vand.u32 %v5673, 4294901760
        %6309 = vmatmul.mubr.f32.gmra.mrb[0].mxu0 %v6308
        %v6310 = vpop.f32.mrb[0].mxu0
        %v6311 = vadd.f32 %v5870, %v6310
        %v6312 = vpop.f32.mrb[0].mxu0
        %6313 = vmatprep.mubr.f32.mxu0 0.0
        %v6314 = vand.u32 %v5674, 4294901760
        %6315 = vmatmul.mubr.f32.gmra.mrb[0].mxu0 %v6314
        %v6316 = vpop.f32.mrb[0].mxu0
        %v6317 = vadd.f32 %v5880, %v6316
        %v6318 = vpop.f32.mrb[0].mxu0
        %6319 = vmatprep.mubr.f32.mxu0 0.0
        %v6320 = vand.u32 %v5675, 4294901760
        %6321 = vmatmul.mubr.f32.gmra.mrb[0].mxu0 %v6320
        %v6322 = vpop.f32.mrb[0].mxu0
        %v6323 = vadd.f32 %v5890, %v6322
        %v6324 = vpop.f32.mrb[0].mxu0
        %6325 = vmatprep.mubr.f32.mxu0 0.0
        %v6326 = vand.u32 %v5676, 4294901760
        %6327 = vmatmul.mubr.f32.gmra.mrb[0].mxu0 %v6326
        %v6328 = vpop.f32.mrb[0].mxu0
        %v6329 = vadd.f32 %v5900, %v6328
        %v6330 = vpop.f32.mrb[0].mxu0
        %6331 = vmatprep.mubr.f32.mxu0 0.0
        %v6332 = vand.u32 %v5677, 4294901760
        %6333 = vmatmul.mubr.f32.gmra.mrb[0].mxu0 %v6332
        %v6334 = vpop.f32.mrb[0].mxu0
        %v6335 = vadd.f32 %v5910, %v6334
        %v6336 = vpop.f32.mrb[0].mxu0
        %6337 = vmatprep.mubr.f32.mxu0 0.0
        %v6338 = vand.u32 %v5678, 4294901760
        %6339 = vmatmul.mubr.f32.gmra.mrb[0].mxu0 %v6338
        %v6340 = vpop.f32.mrb[0].mxu0
        %v6341 = vadd.f32 %v5920, %v6340
        %v6342 = vpop.f32.mrb[0].mxu0
        %6343 = vmatprep.mubr.f32.mxu0 0.0
        %v6344 = vand.u32 %v5679, 4294901760
        %6345 = vmatmul.mubr.f32.gmra.mrb[0].mxu0 %v6344
        %v6346 = vpop.f32.mrb[0].mxu0
        %v6347 = vadd.f32 %v5930, %v6346
        %v6348 = vpop.f32.mrb[0].mxu0
        %6349 = vmatprep.mubr.f32.mxu0 0.0
        %v6350 = vand.u32 %v5680, 4294901760
        %6351 = vmatmul.mubr.f32.gmra.mrb[0].mxu0 %v6350
        %v6352 = vpop.f32.mrb[0].mxu0
        %v6353 = vadd.f32 %v5940, %v6352
        %v6354 = vpop.f32.mrb[0].mxu0
        %6355 = vmatprep.mubr.f32.mxu0 0.0
        %v6356 = vand.u32 %v5681, 4294901760
        %6357 = vmatmul.mubr.f32.gmra.mrb[0].mxu0 %v6356
        %v6358 = vpop.f32.mrb[0].mxu0
        %v6359 = vadd.f32 %v5950, %v6358
        %v6360 = vpop.f32.mrb[0].mxu0
        %6361 = vmatprep.mubr.f32.mxu0 0.0
        %v6362 = vand.u32 %v5682, 4294901760
        %6363 = vmatmul.mubr.f32.gmra.mrb[0].mxu0 %v6362
        %v6364 = vpop.f32.mrb[0].mxu0
        %v6365 = vadd.f32 %v5960, %v6364
        %v6366 = vpop.f32.mrb[0].mxu0
        %6367 = vmatprep.mubr.f32.mxu0 0.0
        %v6368 = vand.u32 %v5683, 4294901760
        %6369 = vmatmul.mubr.f32.gmra.mrb[0].mxu0 %v6368
        %v6370 = vpop.f32.mrb[0].mxu0
        %v6371 = vadd.f32 %v5970, %v6370
        %v6372 = vpop.f32.mrb[0].mxu0
        %6373 = vmatprep.mubr.f32.mxu0 0.0
        %v6374 = vand.u32 %v5684, 4294901760
        %6375 = vmatmul.mubr.f32.gmra.mrb[0].mxu0 %v6374
        %v6376 = vpop.f32.mrb[0].mxu0
        %v6377 = vadd.f32 %v5980, %v6376
        %v6378 = vpop.f32.mrb[0].mxu0
        %6379 = vmatprep.mubr.f32.mxu0 0.0
        %v6380 = vand.u32 %v5685, 4294901760
        %6381 = vmatmul.mubr.f32.gmra.mrb[0].mxu0 %v6380
        %v6382 = vpop.f32.mrb[0].mxu0
        %v6383 = vadd.f32 %v5990, %v6382
        %v6384 = vpop.f32.mrb[0].mxu0
        %6385 = vmatprep.mubr.f32.mxu0 0.0
        %v6386 = vand.u32 %v5686, 4294901760
        %6387 = vmatmul.mubr.f32.gmra.mrb[0].mxu0 %v6386
        %v6388 = vpop.f32.mrb[0].mxu0
        %v6389 = vadd.f32 %v6000, %v6388
        %v6390 = vpop.f32.mrb[0].mxu0
        %6391 = vmatprep.mubr.f32.mxu0 0.0
        %v6392 = vand.u32 %v5687, 4294901760
        %6393 = vmatmul.mubr.f32.gmra.mrb[0].mxu0 %v6392
        %v6394 = vpop.f32.mrb[0].mxu0
        %v6395 = vadd.f32 %v6010, %v6394
        %v6396 = vpop.f32.mrb[0].mxu0
        %6397 = vmatprep.mubr.f32.mxu0 0.0
        %v6398 = vand.u32 %v5688, 4294901760
        %6399 = vmatmul.mubr.f32.gmra.mrb[0].mxu0 %v6398
        %v6400 = vpop.f32.mrb[0].mxu0
        %v6401 = vadd.f32 %v6020, %v6400
        %v6402 = vpop.f32.mrb[0].mxu0
        %6403 = vmatprep.mubr.f32.mxu0 0.0
        %v6404 = vand.u32 %v5689, 4294901760
        %6405 = vmatmul.mubr.f32.gmra.mrb[0].mxu0 %v6404
        %v6406 = vpop.f32.mrb[0].mxu0
        %v6407 = vadd.f32 %v6030, %v6406
        %v6408 = vpop.f32.mrb[0].mxu0
        %6409 = vmatprep.mubr.f32.mxu0 0.0
        %v6410 = vand.u32 %v5690, 4294901760
        %6411 = vmatmul.mubr.f32.gmra.mrb[0].mxu0 %v6410
        %v6412 = vpop.f32.mrb[0].mxu0
        %v6413 = vadd.f32 %v6040, %v6412
        %v6414 = vpop.f32.mrb[0].mxu0
        %6415 = vmatprep.mubr.f32.mxu0 0.0
        %v6416 = vand.u32 %v5691, 4294901760
        %6417 = vmatmul.mubr.f32.gmra.mrb[0].mxu0 %v6416
        %v6418 = vpop.f32.mrb[0].mxu0
        %v6419 = vadd.f32 %v6050, %v6418
        %v6420 = vpop.f32.mrb[0].mxu0
        %6421 = vmatprep.mubr.f32.mxu0 0.0
        %v6422 = vand.u32 %v5692, 4294901760
        %6423 = vmatmul.mubr.f32.gmra.mrb[0].mxu0 %v6422
        %v6424 = vpop.f32.mrb[0].mxu0
        %v6425 = vadd.f32 %v6060, %v6424
        %v6426 = vpop.f32.mrb[0].mxu0
        %6427 = vmatprep.mubr.f32.mxu0 0.0
        %v6428 = vand.u32 %v5693, 4294901760
        %6429 = vmatmul.mubr.f32.gmra.mrb[0].mxu0 %v6428
        %v6430 = vpop.f32.mrb[0].mxu0
        %v6431 = vadd.f32 %v6070, %v6430
        %v6432 = vpop.f32.mrb[0].mxu0
        %6433 = vmatprep.mubr.f32.mxu0 0.0
        %v6434 = vand.u32 %v5694, 4294901760
        %6435 = vmatmul.mubr.f32.gmra.mrb[0].mxu0 %v6434
        %v6436 = vpop.f32.mrb[0].mxu0
        %v6437 = vadd.f32 %v6080, %v6436
        %v6438 = vpop.f32.mrb[0].mxu0
        %6439 = vmatprep.mubr.f32.mxu0 0.0
        %v6440 = vand.u32 %v5695, 4294901760
        %6441 = vmatmul.mubr.f32.gmra.mrb[0].mxu0 %v6440
        %v6442 = vpop.f32.mrb[0].mxu0
        %v6443 = vadd.f32 %v6090, %v6442
        %v6444 = vpop.f32.mrb[0].mxu0
        %6445 = vmatprep.mubr.f32.mxu0 0.0
        %v6446 = vand.u32 %v5696, 4294901760
        %6447 = vmatmul.mubr.f32.gmra.mrb[0].mxu0 %v6446
        %v6448 = vpop.f32.mrb[0].mxu0
        %v6449 = vadd.f32 %v6100, %v6448
        %v6450 = vpop.f32.mrb[0].mxu0
        %6451 = vmatprep.mubr.f32.mxu0 0.0
        %v6452 = vand.u32 %v5697, 4294901760
        %6453 = vmatmul.mubr.f32.gmra.mrb[0].mxu0 %v6452
        %v6454 = vpop.f32.mrb[0].mxu0
        %v6455 = vadd.f32 %v6110, %v6454
        %v6456 = vpop.f32.mrb[0].mxu0
        %6457 = vmatprep.mubr.f32.mxu0 0.0
        %v6458 = vand.u32 %v5698, 4294901760
        %6459 = vmatmul.mubr.f32.gmra.mrb[0].mxu0 %v6458
        %v6460 = vpop.f32.mrb[0].mxu0
        %v6461 = vadd.f32 %v6120, %v6460
        %v6462 = vpop.f32.mrb[0].mxu0
        %6463 = vmatprep.mubr.f32.mxu0 0.0
        %v6464 = vand.u32 %v5699, 4294901760
        %6465 = vmatmul.mubr.f32.gmra.mrb[0].mxu0 %v6464
        %v6466 = vpop.f32.mrb[0].mxu0
        %v6467 = vadd.f32 %v6130, %v6466
        %v6468 = vpop.f32.mrb[0].mxu0
        %6469 = vdwg.mxu0
        %6470 = vmatprep.subr.mxu0 0.0
        %v6471 = vand.u32 %v5716, 4294901760
        %v6472 = vsub.f32 %v5716, %v6471
        %6473 = vmatpush1.msra.mxu0 %v6472
        %6474 = vmatprep.subr.mxu0 0.0
        %v6475 = vand.u32 %v5717, 4294901760
        %v6476 = vsub.f32 %v5717, %v6475
        %6477 = vmatpush1.msra.mxu0 %v6476
        %6478 = vmatprep.subr.mxu0 0.0
        %v6479 = vand.u32 %v5718, 4294901760
        %v6480 = vsub.f32 %v5718, %v6479
        %6481 = vmatpush1.msra.mxu0 %v6480
        %6482 = vmatprep.subr.mxu0 0.0
        %v6483 = vand.u32 %v5719, 4294901760
        %v6484 = vsub.f32 %v5719, %v6483
        %6485 = vmatpush1.msra.mxu0 %v6484
        %6486 = vmatprep.subr.mxu0 0.0
        %v6487 = vand.u32 %v5720, 4294901760
        %v6488 = vsub.f32 %v5720, %v6487
        %6489 = vmatpush1.msra.mxu0 %v6488
        %6490 = vmatprep.subr.mxu0 0.0
        %v6491 = vand.u32 %v5721, 4294901760
        %v6492 = vsub.f32 %v5721, %v6491
        %6493 = vmatpush1.msra.mxu0 %v6492
        %6494 = vmatprep.subr.mxu0 0.0
        %v6495 = vand.u32 %v5722, 4294901760
        %v6496 = vsub.f32 %v5722, %v6495
        %6497 = vmatpush1.msra.mxu0 %v6496
        %6498 = vmatprep.subr.mxu0 0.0
        %v6499 = vand.u32 %v5723, 4294901760
        %v6500 = vsub.f32 %v5723, %v6499
        %6501 = vmatpush1.msra.mxu0 %v6500
        %6502 = vmatprep.subr.mxu0 0.0
        %v6503 = vand.u32 %v5724, 4294901760
        %v6504 = vsub.f32 %v5724, %v6503
        %6505 = vmatpush1.msra.mxu0 %v6504
        %6506 = vmatprep.subr.mxu0 0.0
        %v6507 = vand.u32 %v5725, 4294901760
        %v6508 = vsub.f32 %v5725, %v6507
        %6509 = vmatpush1.msra.mxu0 %v6508
        %6510 = vmatprep.subr.mxu0 0.0
        %v6511 = vand.u32 %v5726, 4294901760
        %v6512 = vsub.f32 %v5726, %v6511
        %6513 = vmatpush1.msra.mxu0 %v6512
        %6514 = vmatprep.subr.mxu0 0.0
        %v6515 = vand.u32 %v5727, 4294901760
        %v6516 = vsub.f32 %v5727, %v6515
        %6517 = vmatpush1.msra.mxu0 %v6516
        %6518 = vmatprep.subr.mxu0 0.0
        %v6519 = vand.u32 %v5728, 4294901760
        %v6520 = vsub.f32 %v5728, %v6519
        %6521 = vmatpush1.msra.mxu0 %v6520
        %6522 = vmatprep.subr.mxu0 0.0
        %v6523 = vand.u32 %v5729, 4294901760
        %v6524 = vsub.f32 %v5729, %v6523
        %6525 = vmatpush1.msra.mxu0 %v6524
        %6526 = vmatprep.subr.mxu0 0.0
        %v6527 = vand.u32 %v5730, 4294901760
        %v6528 = vsub.f32 %v5730, %v6527
        %6529 = vmatpush1.msra.mxu0 %v6528
        %6530 = vmatprep.subr.mxu0 0.0
        %v6531 = vand.u32 %v5731, 4294901760
        %v6532 = vsub.f32 %v5731, %v6531
        %6533 = vmatpush1.msra.mxu0 %v6532
        %6534 = vmatprep.subr.mxu0 0.0
        %6535 = vmatpush1.msra.mxu0 0.0
        %6536 = vmatprep.subr.mxu0 0.0
        %6537 = vmatpush1.msra.mxu0 0.0
        %6538 = vmatprep.subr.mxu0 0.0
        %6539 = vmatpush1.msra.mxu0 0.0
        %6540 = vmatprep.subr.mxu0 0.0
        %6541 = vmatpush1.msra.mxu0 0.0
        %6542 = vmatprep.subr.mxu0 0.0
        %6543 = vmatpush1.msra.mxu0 0.0
        %6544 = vmatprep.subr.mxu0 0.0
        %6545 = vmatpush1.msra.mxu0 0.0
        %6546 = vmatprep.subr.mxu0 0.0
        %6547 = vmatpush1.msra.mxu0 0.0
        %6548 = vmatprep.subr.mxu0 0.0
        %6549 = vmatpush1.msra.mxu0 0.0
        %6550 = vmatprep.subr.mxu0 0.0
        %6551 = vmatpush1.msra.mxu0 0.0
        %6552 = vmatprep.subr.mxu0 0.0
        %6553 = vmatpush1.msra.mxu0 0.0
        %6554 = vmatprep.subr.mxu0 0.0
        %6555 = vmatpush1.msra.mxu0 0.0
        %6556 = vmatprep.subr.mxu0 0.0
        %6557 = vmatpush1.msra.mxu0 0.0
        %6558 = vmatprep.subr.mxu0 0.0
        %6559 = vmatpush1.msra.mxu0 0.0
        %6560 = vmatprep.subr.mxu0 0.0
        %6561 = vmatpush1.msra.mxu0 0.0
        %6562 = vmatprep.subr.mxu0 0.0
        %6563 = vmatpush1.msra.mxu0 0.0
        %6564 = vmatprep.subr.mxu0 0.0
        %6565 = vmatpush1.msra.mxu0 0.0
        %6566 = vmatprep.mubr.f32.mxu0 0.0
        %v6567 = vand.u32 %v5668, 4294901760
        %v6568 = vsub.f32 %v5668, %v6567
        %6569 = vmatmul.mubr.f32.gmra.mrb[0].mxu0 %v6568
        %v6570 = vpop.f32.mrb[0].mxu0
        %v6571 = vadd.f32 %v6281, %v6570
        %v6572 = vpop.f32.mrb[0].mxu0
        %6573 = vmatprep.mubr.f32.mxu0 0.0
        %v6574 = vand.u32 %v5669, 4294901760
        %v6575 = vsub.f32 %v5669, %v6574
        %6576 = vmatmul.mubr.f32.gmra.mrb[0].mxu0 %v6575
        %v6577 = vpop.f32.mrb[0].mxu0
        %v6578 = vadd.f32 %v6287, %v6577
        %v6579 = vpop.f32.mrb[0].mxu0
        %6580 = vmatprep.mubr.f32.mxu0 0.0
        %v6581 = vand.u32 %v5670, 4294901760
        %v6582 = vsub.f32 %v5670, %v6581
        %6583 = vmatmul.mubr.f32.gmra.mrb[0].mxu0 %v6582
        %v6584 = vpop.f32.mrb[0].mxu0
        %v6585 = vadd.f32 %v6293, %v6584
        %v6586 = vpop.f32.mrb[0].mxu0
        %6587 = vmatprep.mubr.f32.mxu0 0.0
        %v6588 = vand.u32 %v5671, 4294901760
        %v6589 = vsub.f32 %v5671, %v6588
        %6590 = vmatmul.mubr.f32.gmra.mrb[0].mxu0 %v6589
        %v6591 = vpop.f32.mrb[0].mxu0
        %v6592 = vadd.f32 %v6299, %v6591
        %v6593 = vpop.f32.mrb[0].mxu0
        %6594 = vmatprep.mubr.f32.mxu0 0.0
        %v6595 = vand.u32 %v5672, 4294901760
        %v6596 = vsub.f32 %v5672, %v6595
        %6597 = vmatmul.mubr.f32.gmra.mrb[0].mxu0 %v6596
        %v6598 = vpop.f32.mrb[0].mxu0
        %v6599 = vadd.f32 %v6305, %v6598
        %v6600 = vpop.f32.mrb[0].mxu0
        %6601 = vmatprep.mubr.f32.mxu0 0.0
        %v6602 = vand.u32 %v5673, 4294901760
        %v6603 = vsub.f32 %v5673, %v6602
        %6604 = vmatmul.mubr.f32.gmra.mrb[0].mxu0 %v6603
        %v6605 = vpop.f32.mrb[0].mxu0
        %v6606 = vadd.f32 %v6311, %v6605
        %v6607 = vpop.f32.mrb[0].mxu0
        %6608 = vmatprep.mubr.f32.mxu0 0.0
        %v6609 = vand.u32 %v5674, 4294901760
        %v6610 = vsub.f32 %v5674, %v6609
        %6611 = vmatmul.mubr.f32.gmra.mrb[0].mxu0 %v6610
        %v6612 = vpop.f32.mrb[0].mxu0
        %v6613 = vadd.f32 %v6317, %v6612
        %v6614 = vpop.f32.mrb[0].mxu0
        %6615 = vmatprep.mubr.f32.mxu0 0.0
        %v6616 = vand.u32 %v5675, 4294901760
        %v6617 = vsub.f32 %v5675, %v6616
        %6618 = vmatmul.mubr.f32.gmra.mrb[0].mxu0 %v6617
        %v6619 = vpop.f32.mrb[0].mxu0
        %v6620 = vadd.f32 %v6323, %v6619
        %v6621 = vpop.f32.mrb[0].mxu0
        %6622 = vmatprep.mubr.f32.mxu0 0.0
        %v6623 = vand.u32 %v5676, 4294901760
        %v6624 = vsub.f32 %v5676, %v6623
        %6625 = vmatmul.mubr.f32.gmra.mrb[0].mxu0 %v6624
        %v6626 = vpop.f32.mrb[0].mxu0
        %v6627 = vadd.f32 %v6329, %v6626
        %v6628 = vpop.f32.mrb[0].mxu0
        %6629 = vmatprep.mubr.f32.mxu0 0.0
        %v6630 = vand.u32 %v5677, 4294901760
        %v6631 = vsub.f32 %v5677, %v6630
        %6632 = vmatmul.mubr.f32.gmra.mrb[0].mxu0 %v6631
        %v6633 = vpop.f32.mrb[0].mxu0
        %v6634 = vadd.f32 %v6335, %v6633
        %v6635 = vpop.f32.mrb[0].mxu0
        %6636 = vmatprep.mubr.f32.mxu0 0.0
        %v6637 = vand.u32 %v5678, 4294901760
        %v6638 = vsub.f32 %v5678, %v6637
        %6639 = vmatmul.mubr.f32.gmra.mrb[0].mxu0 %v6638
        %v6640 = vpop.f32.mrb[0].mxu0
        %v6641 = vadd.f32 %v6341, %v6640
        %v6642 = vpop.f32.mrb[0].mxu0
        %6643 = vmatprep.mubr.f32.mxu0 0.0
        %v6644 = vand.u32 %v5679, 4294901760
        %v6645 = vsub.f32 %v5679, %v6644
        %6646 = vmatmul.mubr.f32.gmra.mrb[0].mxu0 %v6645
        %v6647 = vpop.f32.mrb[0].mxu0
        %v6648 = vadd.f32 %v6347, %v6647
        %v6649 = vpop.f32.mrb[0].mxu0
        %6650 = vmatprep.mubr.f32.mxu0 0.0
        %v6651 = vand.u32 %v5680, 4294901760
        %v6652 = vsub.f32 %v5680, %v6651
        %6653 = vmatmul.mubr.f32.gmra.mrb[0].mxu0 %v6652
        %v6654 = vpop.f32.mrb[0].mxu0
        %v6655 = vadd.f32 %v6353, %v6654
        %v6656 = vpop.f32.mrb[0].mxu0
        %6657 = vmatprep.mubr.f32.mxu0 0.0
        %v6658 = vand.u32 %v5681, 4294901760
        %v6659 = vsub.f32 %v5681, %v6658
        %6660 = vmatmul.mubr.f32.gmra.mrb[0].mxu0 %v6659
        %v6661 = vpop.f32.mrb[0].mxu0
        %v6662 = vadd.f32 %v6359, %v6661
        %v6663 = vpop.f32.mrb[0].mxu0
        %6664 = vmatprep.mubr.f32.mxu0 0.0
        %v6665 = vand.u32 %v5682, 4294901760
        %v6666 = vsub.f32 %v5682, %v6665
        %6667 = vmatmul.mubr.f32.gmra.mrb[0].mxu0 %v6666
        %v6668 = vpop.f32.mrb[0].mxu0
        %v6669 = vadd.f32 %v6365, %v6668
        %v6670 = vpop.f32.mrb[0].mxu0
        %6671 = vmatprep.mubr.f32.mxu0 0.0
        %v6672 = vand.u32 %v5683, 4294901760
        %v6673 = vsub.f32 %v5683, %v6672
        %6674 = vmatmul.mubr.f32.gmra.mrb[0].mxu0 %v6673
        %v6675 = vpop.f32.mrb[0].mxu0
        %v6676 = vadd.f32 %v6371, %v6675
        %v6677 = vpop.f32.mrb[0].mxu0
        %6678 = vmatprep.mubr.f32.mxu0 0.0
        %v6679 = vand.u32 %v5684, 4294901760
        %v6680 = vsub.f32 %v5684, %v6679
        %6681 = vmatmul.mubr.f32.gmra.mrb[0].mxu0 %v6680
        %v6682 = vpop.f32.mrb[0].mxu0
        %v6683 = vadd.f32 %v6377, %v6682
        %v6684 = vpop.f32.mrb[0].mxu0
        %6685 = vmatprep.mubr.f32.mxu0 0.0
        %v6686 = vand.u32 %v5685, 4294901760
        %v6687 = vsub.f32 %v5685, %v6686
        %6688 = vmatmul.mubr.f32.gmra.mrb[0].mxu0 %v6687
        %v6689 = vpop.f32.mrb[0].mxu0
        %v6690 = vadd.f32 %v6383, %v6689
        %v6691 = vpop.f32.mrb[0].mxu0
        %6692 = vmatprep.mubr.f32.mxu0 0.0
        %v6693 = vand.u32 %v5686, 4294901760
        %v6694 = vsub.f32 %v5686, %v6693
        %6695 = vmatmul.mubr.f32.gmra.mrb[0].mxu0 %v6694
        %v6696 = vpop.f32.mrb[0].mxu0
        %v6697 = vadd.f32 %v6389, %v6696
        %v6698 = vpop.f32.mrb[0].mxu0
        %6699 = vmatprep.mubr.f32.mxu0 0.0
        %v6700 = vand.u32 %v5687, 4294901760
        %v6701 = vsub.f32 %v5687, %v6700
        %6702 = vmatmul.mubr.f32.gmra.mrb[0].mxu0 %v6701
        %v6703 = vpop.f32.mrb[0].mxu0
        %v6704 = vadd.f32 %v6395, %v6703
        %v6705 = vpop.f32.mrb[0].mxu0
        %6706 = vmatprep.mubr.f32.mxu0 0.0
        %v6707 = vand.u32 %v5688, 4294901760
        %v6708 = vsub.f32 %v5688, %v6707
        %6709 = vmatmul.mubr.f32.gmra.mrb[0].mxu0 %v6708
        %v6710 = vpop.f32.mrb[0].mxu0
        %v6711 = vadd.f32 %v6401, %v6710
        %v6712 = vpop.f32.mrb[0].mxu0
        %6713 = vmatprep.mubr.f32.mxu0 0.0
        %v6714 = vand.u32 %v5689, 4294901760
        %v6715 = vsub.f32 %v5689, %v6714
        %6716 = vmatmul.mubr.f32.gmra.mrb[0].mxu0 %v6715
        %v6717 = vpop.f32.mrb[0].mxu0
        %v6718 = vadd.f32 %v6407, %v6717
        %v6719 = vpop.f32.mrb[0].mxu0
        %6720 = vmatprep.mubr.f32.mxu0 0.0
        %v6721 = vand.u32 %v5690, 4294901760
        %v6722 = vsub.f32 %v5690, %v6721
        %6723 = vmatmul.mubr.f32.gmra.mrb[0].mxu0 %v6722
        %v6724 = vpop.f32.mrb[0].mxu0
        %v6725 = vadd.f32 %v6413, %v6724
        %v6726 = vpop.f32.mrb[0].mxu0
        %6727 = vmatprep.mubr.f32.mxu0 0.0
        %v6728 = vand.u32 %v5691, 4294901760
        %v6729 = vsub.f32 %v5691, %v6728
        %6730 = vmatmul.mubr.f32.gmra.mrb[0].mxu0 %v6729
        %v6731 = vpop.f32.mrb[0].mxu0
        %v6732 = vadd.f32 %v6419, %v6731
        %v6733 = vpop.f32.mrb[0].mxu0
        %6734 = vmatprep.mubr.f32.mxu0 0.0
        %v6735 = vand.u32 %v5692, 4294901760
        %v6736 = vsub.f32 %v5692, %v6735
        %6737 = vmatmul.mubr.f32.gmra.mrb[0].mxu0 %v6736
        %v6738 = vpop.f32.mrb[0].mxu0
        %v6739 = vadd.f32 %v6425, %v6738
        %v6740 = vpop.f32.mrb[0].mxu0
        %6741 = vmatprep.mubr.f32.mxu0 0.0
        %v6742 = vand.u32 %v5693, 4294901760
        %v6743 = vsub.f32 %v5693, %v6742
        %6744 = vmatmul.mubr.f32.gmra.mrb[0].mxu0 %v6743
        %v6745 = vpop.f32.mrb[0].mxu0
        %v6746 = vadd.f32 %v6431, %v6745
        %v6747 = vpop.f32.mrb[0].mxu0
        %6748 = vmatprep.mubr.f32.mxu0 0.0
        %v6749 = vand.u32 %v5694, 4294901760
        %v6750 = vsub.f32 %v5694, %v6749
        %6751 = vmatmul.mubr.f32.gmra.mrb[0].mxu0 %v6750
        %v6752 = vpop.f32.mrb[0].mxu0
        %v6753 = vadd.f32 %v6437, %v6752
        %v6754 = vpop.f32.mrb[0].mxu0
        %6755 = vmatprep.mubr.f32.mxu0 0.0
        %v6756 = vand.u32 %v5695, 4294901760
        %v6757 = vsub.f32 %v5695, %v6756
        %6758 = vmatmul.mubr.f32.gmra.mrb[0].mxu0 %v6757
        %v6759 = vpop.f32.mrb[0].mxu0
        %v6760 = vadd.f32 %v6443, %v6759
        %v6761 = vpop.f32.mrb[0].mxu0
        %6762 = vmatprep.mubr.f32.mxu0 0.0
        %v6763 = vand.u32 %v5696, 4294901760
        %v6764 = vsub.f32 %v5696, %v6763
        %6765 = vmatmul.mubr.f32.gmra.mrb[0].mxu0 %v6764
        %v6766 = vpop.f32.mrb[0].mxu0
        %v6767 = vadd.f32 %v6449, %v6766
        %v6768 = vpop.f32.mrb[0].mxu0
        %6769 = vmatprep.mubr.f32.mxu0 0.0
        %v6770 = vand.u32 %v5697, 4294901760
        %v6771 = vsub.f32 %v5697, %v6770
        %6772 = vmatmul.mubr.f32.gmra.mrb[0].mxu0 %v6771
        %v6773 = vpop.f32.mrb[0].mxu0
        %v6774 = vadd.f32 %v6455, %v6773
        %v6775 = vpop.f32.mrb[0].mxu0
        %6776 = vmatprep.mubr.f32.mxu0 0.0
        %v6777 = vand.u32 %v5698, 4294901760
        %v6778 = vsub.f32 %v5698, %v6777
        %6779 = vmatmul.mubr.f32.gmra.mrb[0].mxu0 %v6778
        %v6780 = vpop.f32.mrb[0].mxu0
        %v6781 = vadd.f32 %v6461, %v6780
        %v6782 = vpop.f32.mrb[0].mxu0
        %6783 = vmatprep.mubr.f32.mxu0 0.0
        %v6784 = vand.u32 %v5699, 4294901760
        %v6785 = vsub.f32 %v5699, %v6784
        %6786 = vmatmul.mubr.f32.gmra.mrb[0].mxu0 %v6785
        %v6787 = vpop.f32.mrb[0].mxu0
        %v6788 = vadd.f32 %v6467, %v6787
        %v6789 = vpop.f32.mrb[0].mxu0
        %6790 = vdwg.mxu0
        %6791 = vmatprep.subr.mxu0 0.0
        %v6792 = vand.u32 %v5716, 4294901760
        %6793 = vmatpush1.msra.mxu0 %v6792
        %6794 = vmatprep.subr.mxu0 0.0
        %v6795 = vand.u32 %v5717, 4294901760
        %6796 = vmatpush1.msra.mxu0 %v6795
        %6797 = vmatprep.subr.mxu0 0.0
        %v6798 = vand.u32 %v5718, 4294901760
        %6799 = vmatpush1.msra.mxu0 %v6798
        %6800 = vmatprep.subr.mxu0 0.0
        %v6801 = vand.u32 %v5719, 4294901760
        %6802 = vmatpush1.msra.mxu0 %v6801
        %6803 = vmatprep.subr.mxu0 0.0
        %v6804 = vand.u32 %v5720, 4294901760
        %6805 = vmatpush1.msra.mxu0 %v6804
        %6806 = vmatprep.subr.mxu0 0.0
        %v6807 = vand.u32 %v5721, 4294901760
        %6808 = vmatpush1.msra.mxu0 %v6807
        %6809 = vmatprep.subr.mxu0 0.0
        %v6810 = vand.u32 %v5722, 4294901760
        %6811 = vmatpush1.msra.mxu0 %v6810
        %6812 = vmatprep.subr.mxu0 0.0
        %v6813 = vand.u32 %v5723, 4294901760
        %6814 = vmatpush1.msra.mxu0 %v6813
        %6815 = vmatprep.subr.mxu0 0.0
        %v6816 = vand.u32 %v5724, 4294901760
        %6817 = vmatpush1.msra.mxu0 %v6816
        %6818 = vmatprep.subr.mxu0 0.0
        %v6819 = vand.u32 %v5725, 4294901760
        %6820 = vmatpush1.msra.mxu0 %v6819
        %6821 = vmatprep.subr.mxu0 0.0
        %v6822 = vand.u32 %v5726, 4294901760
        %6823 = vmatpush1.msra.mxu0 %v6822
        %6824 = vmatprep.subr.mxu0 0.0
        %v6825 = vand.u32 %v5727, 4294901760
        %6826 = vmatpush1.msra.mxu0 %v6825
        %6827 = vmatprep.subr.mxu0 0.0
        %v6828 = vand.u32 %v5728, 4294901760
        %6829 = vmatpush1.msra.mxu0 %v6828
        %6830 = vmatprep.subr.mxu0 0.0
        %v6831 = vand.u32 %v5729, 4294901760
        %6832 = vmatpush1.msra.mxu0 %v6831
        %6833 = vmatprep.subr.mxu0 0.0
        %v6834 = vand.u32 %v5730, 4294901760
        %6835 = vmatpush1.msra.mxu0 %v6834
        %6836 = vmatprep.subr.mxu0 0.0
        %v6837 = vand.u32 %v5731, 4294901760
        %6838 = vmatpush1.msra.mxu0 %v6837
        %6839 = vmatprep.subr.mxu0 0.0
        %6840 = vmatpush1.msra.mxu0 0.0
        %6841 = vmatprep.subr.mxu0 0.0
        %6842 = vmatpush1.msra.mxu0 0.0
        %6843 = vmatprep.subr.mxu0 0.0
        %6844 = vmatpush1.msra.mxu0 0.0
        %6845 = vmatprep.subr.mxu0 0.0
        %6846 = vmatpush1.msra.mxu0 0.0
        %6847 = vmatprep.subr.mxu0 0.0
        %6848 = vmatpush1.msra.mxu0 0.0
        %6849 = vmatprep.subr.mxu0 0.0
        %6850 = vmatpush1.msra.mxu0 0.0
        %6851 = vmatprep.subr.mxu0 0.0
        %6852 = vmatpush1.msra.mxu0 0.0
        %6853 = vmatprep.subr.mxu0 0.0
        %6854 = vmatpush1.msra.mxu0 0.0
        %6855 = vmatprep.subr.mxu0 0.0
        %6856 = vmatpush1.msra.mxu0 0.0
        %6857 = vmatprep.subr.mxu0 0.0
        %6858 = vmatpush1.msra.mxu0 0.0
        %6859 = vmatprep.subr.mxu0 0.0
        %6860 = vmatpush1.msra.mxu0 0.0
        %6861 = vmatprep.subr.mxu0 0.0
        %6862 = vmatpush1.msra.mxu0 0.0
        %6863 = vmatprep.subr.mxu0 0.0
        %6864 = vmatpush1.msra.mxu0 0.0
        %6865 = vmatprep.subr.mxu0 0.0
        %6866 = vmatpush1.msra.mxu0 0.0
        %6867 = vmatprep.subr.mxu0 0.0
        %6868 = vmatpush1.msra.mxu0 0.0
        %6869 = vmatprep.subr.mxu0 0.0
        %6870 = vmatpush1.msra.mxu0 0.0
        %6871 = vmatprep.mubr.f32.mxu0 0.0
        %v6872 = vand.u32 %v5668, 4294901760
        %v6873 = vsub.f32 %v5668, %v6872
        %v6874 = vand.u32 %v6873, 4294901760
        %6875 = vmatmul.mubr.f32.gmra.mrb[0].mxu0 %v6874
        %v6876 = vpop.f32.mrb[0].mxu0
        %v6877 = vadd.f32 %v6571, %v6876
        %v6878 = vpop.f32.mrb[0].mxu0
        %6879 = vmatprep.mubr.f32.mxu0 0.0
        %v6880 = vand.u32 %v5669, 4294901760
        %v6881 = vsub.f32 %v5669, %v6880
        %v6882 = vand.u32 %v6881, 4294901760
        %6883 = vmatmul.mubr.f32.gmra.mrb[0].mxu0 %v6882
        %v6884 = vpop.f32.mrb[0].mxu0
        %v6885 = vadd.f32 %v6578, %v6884
        %v6886 = vpop.f32.mrb[0].mxu0
        %6887 = vmatprep.mubr.f32.mxu0 0.0
        %v6888 = vand.u32 %v5670, 4294901760
        %v6889 = vsub.f32 %v5670, %v6888
        %v6890 = vand.u32 %v6889, 4294901760
        %6891 = vmatmul.mubr.f32.gmra.mrb[0].mxu0 %v6890
        %v6892 = vpop.f32.mrb[0].mxu0
        %v6893 = vadd.f32 %v6585, %v6892
        %v6894 = vpop.f32.mrb[0].mxu0
        %6895 = vmatprep.mubr.f32.mxu0 0.0
        %v6896 = vand.u32 %v5671, 4294901760
        %v6897 = vsub.f32 %v5671, %v6896
        %v6898 = vand.u32 %v6897, 4294901760
        %6899 = vmatmul.mubr.f32.gmra.mrb[0].mxu0 %v6898
        %v6900 = vpop.f32.mrb[0].mxu0
        %v6901 = vadd.f32 %v6592, %v6900
        %v6902 = vpop.f32.mrb[0].mxu0
        %6903 = vmatprep.mubr.f32.mxu0 0.0
        %v6904 = vand.u32 %v5672, 4294901760
        %v6905 = vsub.f32 %v5672, %v6904
        %v6906 = vand.u32 %v6905, 4294901760
        %6907 = vmatmul.mubr.f32.gmra.mrb[0].mxu0 %v6906
        %v6908 = vpop.f32.mrb[0].mxu0
        %v6909 = vadd.f32 %v6599, %v6908
        %v6910 = vpop.f32.mrb[0].mxu0
        %6911 = vmatprep.mubr.f32.mxu0 0.0
        %v6912 = vand.u32 %v5673, 4294901760
        %v6913 = vsub.f32 %v5673, %v6912
        %v6914 = vand.u32 %v6913, 4294901760
        %6915 = vmatmul.mubr.f32.gmra.mrb[0].mxu0 %v6914
        %v6916 = vpop.f32.mrb[0].mxu0
        %v6917 = vadd.f32 %v6606, %v6916
        %v6918 = vpop.f32.mrb[0].mxu0
        %6919 = vmatprep.mubr.f32.mxu0 0.0
        %v6920 = vand.u32 %v5674, 4294901760
        %v6921 = vsub.f32 %v5674, %v6920
        %v6922 = vand.u32 %v6921, 4294901760
        %6923 = vmatmul.mubr.f32.gmra.mrb[0].mxu0 %v6922
        %v6924 = vpop.f32.mrb[0].mxu0
        %v6925 = vadd.f32 %v6613, %v6924
        %v6926 = vpop.f32.mrb[0].mxu0
        %6927 = vmatprep.mubr.f32.mxu0 0.0
        %v6928 = vand.u32 %v5675, 4294901760
        %v6929 = vsub.f32 %v5675, %v6928
        %v6930 = vand.u32 %v6929, 4294901760
        %6931 = vmatmul.mubr.f32.gmra.mrb[0].mxu0 %v6930
        %v6932 = vpop.f32.mrb[0].mxu0
        %v6933 = vadd.f32 %v6620, %v6932
        %v6934 = vpop.f32.mrb[0].mxu0
        %6935 = vmatprep.mubr.f32.mxu0 0.0
        %v6936 = vand.u32 %v5676, 4294901760
        %v6937 = vsub.f32 %v5676, %v6936
        %v6938 = vand.u32 %v6937, 4294901760
        %6939 = vmatmul.mubr.f32.gmra.mrb[0].mxu0 %v6938
        %v6940 = vpop.f32.mrb[0].mxu0
        %v6941 = vadd.f32 %v6627, %v6940
        %v6942 = vpop.f32.mrb[0].mxu0
        %6943 = vmatprep.mubr.f32.mxu0 0.0
        %v6944 = vand.u32 %v5677, 4294901760
        %v6945 = vsub.f32 %v5677, %v6944
        %v6946 = vand.u32 %v6945, 4294901760
        %6947 = vmatmul.mubr.f32.gmra.mrb[0].mxu0 %v6946
        %v6948 = vpop.f32.mrb[0].mxu0
        %v6949 = vadd.f32 %v6634, %v6948
        %v6950 = vpop.f32.mrb[0].mxu0
        %6951 = vmatprep.mubr.f32.mxu0 0.0
        %v6952 = vand.u32 %v5678, 4294901760
        %v6953 = vsub.f32 %v5678, %v6952
        %v6954 = vand.u32 %v6953, 4294901760
        %6955 = vmatmul.mubr.f32.gmra.mrb[0].mxu0 %v6954
        %v6956 = vpop.f32.mrb[0].mxu0
        %v6957 = vadd.f32 %v6641, %v6956
        %v6958 = vpop.f32.mrb[0].mxu0
        %6959 = vmatprep.mubr.f32.mxu0 0.0
        %v6960 = vand.u32 %v5679, 4294901760
        %v6961 = vsub.f32 %v5679, %v6960
        %v6962 = vand.u32 %v6961, 4294901760
        %6963 = vmatmul.mubr.f32.gmra.mrb[0].mxu0 %v6962
        %v6964 = vpop.f32.mrb[0].mxu0
        %v6965 = vadd.f32 %v6648, %v6964
        %v6966 = vpop.f32.mrb[0].mxu0
        %6967 = vmatprep.mubr.f32.mxu0 0.0
        %v6968 = vand.u32 %v5680, 4294901760
        %v6969 = vsub.f32 %v5680, %v6968
        %v6970 = vand.u32 %v6969, 4294901760
        %6971 = vmatmul.mubr.f32.gmra.mrb[0].mxu0 %v6970
        %v6972 = vpop.f32.mrb[0].mxu0
        %v6973 = vadd.f32 %v6655, %v6972
        %v6974 = vpop.f32.mrb[0].mxu0
        %6975 = vmatprep.mubr.f32.mxu0 0.0
        %v6976 = vand.u32 %v5681, 4294901760
        %v6977 = vsub.f32 %v5681, %v6976
        %v6978 = vand.u32 %v6977, 4294901760
        %6979 = vmatmul.mubr.f32.gmra.mrb[0].mxu0 %v6978
        %v6980 = vpop.f32.mrb[0].mxu0
        %v6981 = vadd.f32 %v6662, %v6980
        %v6982 = vpop.f32.mrb[0].mxu0
        %6983 = vmatprep.mubr.f32.mxu0 0.0
        %v6984 = vand.u32 %v5682, 4294901760
        %v6985 = vsub.f32 %v5682, %v6984
        %v6986 = vand.u32 %v6985, 4294901760
        %6987 = vmatmul.mubr.f32.gmra.mrb[0].mxu0 %v6986
        %v6988 = vpop.f32.mrb[0].mxu0
        %v6989 = vadd.f32 %v6669, %v6988
        %v6990 = vpop.f32.mrb[0].mxu0
        %6991 = vmatprep.mubr.f32.mxu0 0.0
        %v6992 = vand.u32 %v5683, 4294901760
        %v6993 = vsub.f32 %v5683, %v6992
        %v6994 = vand.u32 %v6993, 4294901760
        %6995 = vmatmul.mubr.f32.gmra.mrb[0].mxu0 %v6994
        %v6996 = vpop.f32.mrb[0].mxu0
        %v6997 = vadd.f32 %v6676, %v6996
        %v6998 = vpop.f32.mrb[0].mxu0
        %6999 = vmatprep.mubr.f32.mxu0 0.0
        %v7000 = vand.u32 %v5684, 4294901760
        %v7001 = vsub.f32 %v5684, %v7000
        %v7002 = vand.u32 %v7001, 4294901760
        %7003 = vmatmul.mubr.f32.gmra.mrb[0].mxu0 %v7002
        %v7004 = vpop.f32.mrb[0].mxu0
        %v7005 = vadd.f32 %v6683, %v7004
        %v7006 = vpop.f32.mrb[0].mxu0
        %7007 = vmatprep.mubr.f32.mxu0 0.0
        %v7008 = vand.u32 %v5685, 4294901760
        %v7009 = vsub.f32 %v5685, %v7008
        %v7010 = vand.u32 %v7009, 4294901760
        %7011 = vmatmul.mubr.f32.gmra.mrb[0].mxu0 %v7010
        %v7012 = vpop.f32.mrb[0].mxu0
        %v7013 = vadd.f32 %v6690, %v7012
        %v7014 = vpop.f32.mrb[0].mxu0
        %7015 = vmatprep.mubr.f32.mxu0 0.0
        %v7016 = vand.u32 %v5686, 4294901760
        %v7017 = vsub.f32 %v5686, %v7016
        %v7018 = vand.u32 %v7017, 4294901760
        %7019 = vmatmul.mubr.f32.gmra.mrb[0].mxu0 %v7018
        %v7020 = vpop.f32.mrb[0].mxu0
        %v7021 = vadd.f32 %v6697, %v7020
        %v7022 = vpop.f32.mrb[0].mxu0
        %7023 = vmatprep.mubr.f32.mxu0 0.0
        %v7024 = vand.u32 %v5687, 4294901760
        %v7025 = vsub.f32 %v5687, %v7024
        %v7026 = vand.u32 %v7025, 4294901760
        %7027 = vmatmul.mubr.f32.gmra.mrb[0].mxu0 %v7026
        %v7028 = vpop.f32.mrb[0].mxu0
        %v7029 = vadd.f32 %v6704, %v7028
        %v7030 = vpop.f32.mrb[0].mxu0
        %7031 = vmatprep.mubr.f32.mxu0 0.0
        %v7032 = vand.u32 %v5688, 4294901760
        %v7033 = vsub.f32 %v5688, %v7032
        %v7034 = vand.u32 %v7033, 4294901760
        %7035 = vmatmul.mubr.f32.gmra.mrb[0].mxu0 %v7034
        %v7036 = vpop.f32.mrb[0].mxu0
        %v7037 = vadd.f32 %v6711, %v7036
        %v7038 = vpop.f32.mrb[0].mxu0
        %7039 = vmatprep.mubr.f32.mxu0 0.0
        %v7040 = vand.u32 %v5689, 4294901760
        %v7041 = vsub.f32 %v5689, %v7040
        %v7042 = vand.u32 %v7041, 4294901760
        %7043 = vmatmul.mubr.f32.gmra.mrb[0].mxu0 %v7042
        %v7044 = vpop.f32.mrb[0].mxu0
        %v7045 = vadd.f32 %v6718, %v7044
        %v7046 = vpop.f32.mrb[0].mxu0
        %7047 = vmatprep.mubr.f32.mxu0 0.0
        %v7048 = vand.u32 %v5690, 4294901760
        %v7049 = vsub.f32 %v5690, %v7048
        %v7050 = vand.u32 %v7049, 4294901760
        %7051 = vmatmul.mubr.f32.gmra.mrb[0].mxu0 %v7050
        %v7052 = vpop.f32.mrb[0].mxu0
        %v7053 = vadd.f32 %v6725, %v7052
        %v7054 = vpop.f32.mrb[0].mxu0
        %7055 = vmatprep.mubr.f32.mxu0 0.0
        %v7056 = vand.u32 %v5691, 4294901760
        %v7057 = vsub.f32 %v5691, %v7056
        %v7058 = vand.u32 %v7057, 4294901760
        %7059 = vmatmul.mubr.f32.gmra.mrb[0].mxu0 %v7058
        %v7060 = vpop.f32.mrb[0].mxu0
        %v7061 = vadd.f32 %v6732, %v7060
        %v7062 = vpop.f32.mrb[0].mxu0
        %7063 = vmatprep.mubr.f32.mxu0 0.0
        %v7064 = vand.u32 %v5692, 4294901760
        %v7065 = vsub.f32 %v5692, %v7064
        %v7066 = vand.u32 %v7065, 4294901760
        %7067 = vmatmul.mubr.f32.gmra.mrb[0].mxu0 %v7066
        %v7068 = vpop.f32.mrb[0].mxu0
        %v7069 = vadd.f32 %v6739, %v7068
        %v7070 = vpop.f32.mrb[0].mxu0
        %7071 = vmatprep.mubr.f32.mxu0 0.0
        %v7072 = vand.u32 %v5693, 4294901760
        %v7073 = vsub.f32 %v5693, %v7072
        %v7074 = vand.u32 %v7073, 4294901760
        %7075 = vmatmul.mubr.f32.gmra.mrb[0].mxu0 %v7074
        %v7076 = vpop.f32.mrb[0].mxu0
        %v7077 = vadd.f32 %v6746, %v7076
        %v7078 = vpop.f32.mrb[0].mxu0
        %7079 = vmatprep.mubr.f32.mxu0 0.0
        %v7080 = vand.u32 %v5694, 4294901760
        %v7081 = vsub.f32 %v5694, %v7080
        %v7082 = vand.u32 %v7081, 4294901760
        %7083 = vmatmul.mubr.f32.gmra.mrb[0].mxu0 %v7082
        %v7084 = vpop.f32.mrb[0].mxu0
        %v7085 = vadd.f32 %v6753, %v7084
        %v7086 = vpop.f32.mrb[0].mxu0
        %7087 = vmatprep.mubr.f32.mxu0 0.0
        %v7088 = vand.u32 %v5695, 4294901760
        %v7089 = vsub.f32 %v5695, %v7088
        %v7090 = vand.u32 %v7089, 4294901760
        %7091 = vmatmul.mubr.f32.gmra.mrb[0].mxu0 %v7090
        %v7092 = vpop.f32.mrb[0].mxu0
        %v7093 = vadd.f32 %v6760, %v7092
        %v7094 = vpop.f32.mrb[0].mxu0
        %7095 = vmatprep.mubr.f32.mxu0 0.0
        %v7096 = vand.u32 %v5696, 4294901760
        %v7097 = vsub.f32 %v5696, %v7096
        %v7098 = vand.u32 %v7097, 4294901760
        %7099 = vmatmul.mubr.f32.gmra.mrb[0].mxu0 %v7098
        %v7100 = vpop.f32.mrb[0].mxu0
        %v7101 = vadd.f32 %v6767, %v7100
        %v7102 = vpop.f32.mrb[0].mxu0
        %7103 = vmatprep.mubr.f32.mxu0 0.0
        %v7104 = vand.u32 %v5697, 4294901760
        %v7105 = vsub.f32 %v5697, %v7104
        %v7106 = vand.u32 %v7105, 4294901760
        %7107 = vmatmul.mubr.f32.gmra.mrb[0].mxu0 %v7106
        %v7108 = vpop.f32.mrb[0].mxu0
        %v7109 = vadd.f32 %v6774, %v7108
        %v7110 = vpop.f32.mrb[0].mxu0
        %7111 = vmatprep.mubr.f32.mxu0 0.0
        %v7112 = vand.u32 %v5698, 4294901760
        %v7113 = vsub.f32 %v5698, %v7112
        %v7114 = vand.u32 %v7113, 4294901760
        %7115 = vmatmul.mubr.f32.gmra.mrb[0].mxu0 %v7114
        %v7116 = vpop.f32.mrb[0].mxu0
        %v7117 = vadd.f32 %v6781, %v7116
        %v7118 = vpop.f32.mrb[0].mxu0
        %7119 = vmatprep.mubr.f32.mxu0 0.0
        %v7120 = vand.u32 %v5699, 4294901760
        %v7121 = vsub.f32 %v5699, %v7120
        %v7122 = vand.u32 %v7121, 4294901760
        %7123 = vmatmul.mubr.f32.gmra.mrb[0].mxu0 %v7122
        %v7124 = vpop.f32.mrb[0].mxu0
        %v7125 = vadd.f32 %v6788, %v7124
        %v7126 = vpop.f32.mrb[0].mxu0
        %7127 = vdwg.mxu0
        %7128 = vmatprep.subr.mxu0 0.0
        %v7129 = vand.u32 %v5716, 4294901760
        %v7130 = vsub.f32 %v5716, %v7129
        %v7131 = vand.u32 %v7130, 4294901760
        %7132 = vmatpush1.msra.mxu0 %v7131
        %7133 = vmatprep.subr.mxu0 0.0
        %v7134 = vand.u32 %v5717, 4294901760
        %v7135 = vsub.f32 %v5717, %v7134
        %v7136 = vand.u32 %v7135, 4294901760
        %7137 = vmatpush1.msra.mxu0 %v7136
        %7138 = vmatprep.subr.mxu0 0.0
        %v7139 = vand.u32 %v5718, 4294901760
        %v7140 = vsub.f32 %v5718, %v7139
        %v7141 = vand.u32 %v7140, 4294901760
        %7142 = vmatpush1.msra.mxu0 %v7141
        %7143 = vmatprep.subr.mxu0 0.0
        %v7144 = vand.u32 %v5719, 4294901760
        %v7145 = vsub.f32 %v5719, %v7144
        %v7146 = vand.u32 %v7145, 4294901760
        %7147 = vmatpush1.msra.mxu0 %v7146
        %7148 = vmatprep.subr.mxu0 0.0
        %v7149 = vand.u32 %v5720, 4294901760
        %v7150 = vsub.f32 %v5720, %v7149
        %v7151 = vand.u32 %v7150, 4294901760
        %7152 = vmatpush1.msra.mxu0 %v7151
        %7153 = vmatprep.subr.mxu0 0.0
        %v7154 = vand.u32 %v5721, 4294901760
        %v7155 = vsub.f32 %v5721, %v7154
        %v7156 = vand.u32 %v7155, 4294901760
        %7157 = vmatpush1.msra.mxu0 %v7156
        %7158 = vmatprep.subr.mxu0 0.0
        %v7159 = vand.u32 %v5722, 4294901760
        %v7160 = vsub.f32 %v5722, %v7159
        %v7161 = vand.u32 %v7160, 4294901760
        %7162 = vmatpush1.msra.mxu0 %v7161
        %7163 = vmatprep.subr.mxu0 0.0
        %v7164 = vand.u32 %v5723, 4294901760
        %v7165 = vsub.f32 %v5723, %v7164
        %v7166 = vand.u32 %v7165, 4294901760
        %7167 = vmatpush1.msra.mxu0 %v7166
        %7168 = vmatprep.subr.mxu0 0.0
        %v7169 = vand.u32 %v5724, 4294901760
        %v7170 = vsub.f32 %v5724, %v7169
        %v7171 = vand.u32 %v7170, 4294901760
        %7172 = vmatpush1.msra.mxu0 %v7171
        %7173 = vmatprep.subr.mxu0 0.0
        %v7174 = vand.u32 %v5725, 4294901760
        %v7175 = vsub.f32 %v5725, %v7174
        %v7176 = vand.u32 %v7175, 4294901760
        %7177 = vmatpush1.msra.mxu0 %v7176
        %7178 = vmatprep.subr.mxu0 0.0
        %v7179 = vand.u32 %v5726, 4294901760
        %v7180 = vsub.f32 %v5726, %v7179
        %v7181 = vand.u32 %v7180, 4294901760
        %7182 = vmatpush1.msra.mxu0 %v7181
        %7183 = vmatprep.subr.mxu0 0.0
        %v7184 = vand.u32 %v5727, 4294901760
        %v7185 = vsub.f32 %v5727, %v7184
        %v7186 = vand.u32 %v7185, 4294901760
        %7187 = vmatpush1.msra.mxu0 %v7186
        %7188 = vmatprep.subr.mxu0 0.0
        %v7189 = vand.u32 %v5728, 4294901760
        %v7190 = vsub.f32 %v5728, %v7189
        %v7191 = vand.u32 %v7190, 4294901760
        %7192 = vmatpush1.msra.mxu0 %v7191
        %7193 = vmatprep.subr.mxu0 0.0
        %v7194 = vand.u32 %v5729, 4294901760
        %v7195 = vsub.f32 %v5729, %v7194
        %v7196 = vand.u32 %v7195, 4294901760
        %7197 = vmatpush1.msra.mxu0 %v7196
        %7198 = vmatprep.subr.mxu0 0.0
        %v7199 = vand.u32 %v5730, 4294901760
        %v7200 = vsub.f32 %v5730, %v7199
        %v7201 = vand.u32 %v7200, 4294901760
        %7202 = vmatpush1.msra.mxu0 %v7201
        %7203 = vmatprep.subr.mxu0 0.0
        %v7204 = vand.u32 %v5731, 4294901760
        %v7205 = vsub.f32 %v5731, %v7204
        %v7206 = vand.u32 %v7205, 4294901760
        %7207 = vmatpush1.msra.mxu0 %v7206
        %7208 = vmatprep.subr.mxu0 0.0
        %7209 = vmatpush1.msra.mxu0 0.0
        %7210 = vmatprep.subr.mxu0 0.0
        %7211 = vmatpush1.msra.mxu0 0.0
        %7212 = vmatprep.subr.mxu0 0.0
        %7213 = vmatpush1.msra.mxu0 0.0
        %7214 = vmatprep.subr.mxu0 0.0
        %7215 = vmatpush1.msra.mxu0 0.0
        %7216 = vmatprep.subr.mxu0 0.0
        %7217 = vmatpush1.msra.mxu0 0.0
        %7218 = vmatprep.subr.mxu0 0.0
        %7219 = vmatpush1.msra.mxu0 0.0
        %7220 = vmatprep.subr.mxu0 0.0
        %7221 = vmatpush1.msra.mxu0 0.0
        %7222 = vmatprep.subr.mxu0 0.0
        %7223 = vmatpush1.msra.mxu0 0.0
        %7224 = vmatprep.subr.mxu0 0.0
        %7225 = vmatpush1.msra.mxu0 0.0
        %7226 = vmatprep.subr.mxu0 0.0
        %7227 = vmatpush1.msra.mxu0 0.0
        %7228 = vmatprep.subr.mxu0 0.0
        %7229 = vmatpush1.msra.mxu0 0.0
        %7230 = vmatprep.subr.mxu0 0.0
        %7231 = vmatpush1.msra.mxu0 0.0
        %7232 = vmatprep.subr.mxu0 0.0
        %7233 = vmatpush1.msra.mxu0 0.0
        %7234 = vmatprep.subr.mxu0 0.0
        %7235 = vmatpush1.msra.mxu0 0.0
        %7236 = vmatprep.subr.mxu0 0.0
        %7237 = vmatpush1.msra.mxu0 0.0
        %7238 = vmatprep.subr.mxu0 0.0
        %7239 = vmatpush1.msra.mxu0 0.0
        %7240 = vmatprep.mubr.f32.mxu0 0.0
        %v7241 = vand.u32 %v5668, 4294901760
        %7242 = vmatmul.mubr.f32.gmra.mrb[0].mxu0 %v7241
        %v7243 = vpop.f32.mrb[0].mxu0
        %v7244 = vadd.f32 %v6877, %v7243
        %v7245 = vpop.f32.mrb[0].mxu0
        %7246 = vmatprep.mubr.f32.mxu0 0.0
        %v7247 = vand.u32 %v5669, 4294901760
        %7248 = vmatmul.mubr.f32.gmra.mrb[0].mxu0 %v7247
        %v7249 = vpop.f32.mrb[0].mxu0
        %v7250 = vadd.f32 %v6885, %v7249
        %v7251 = vpop.f32.mrb[0].mxu0
        %7252 = vmatprep.mubr.f32.mxu0 0.0
        %v7253 = vand.u32 %v5670, 4294901760
        %7254 = vmatmul.mubr.f32.gmra.mrb[0].mxu0 %v7253
        %v7255 = vpop.f32.mrb[0].mxu0
        %v7256 = vadd.f32 %v6893, %v7255
        %v7257 = vpop.f32.mrb[0].mxu0
        %7258 = vmatprep.mubr.f32.mxu0 0.0
        %v7259 = vand.u32 %v5671, 4294901760
        %7260 = vmatmul.mubr.f32.gmra.mrb[0].mxu0 %v7259
        %v7261 = vpop.f32.mrb[0].mxu0
        %v7262 = vadd.f32 %v6901, %v7261
        %v7263 = vpop.f32.mrb[0].mxu0
        %7264 = vmatprep.mubr.f32.mxu0 0.0
        %v7265 = vand.u32 %v5672, 4294901760
        %7266 = vmatmul.mubr.f32.gmra.mrb[0].mxu0 %v7265
        %v7267 = vpop.f32.mrb[0].mxu0
        %v7268 = vadd.f32 %v6909, %v7267
        %v7269 = vpop.f32.mrb[0].mxu0
        %7270 = vmatprep.mubr.f32.mxu0 0.0
        %v7271 = vand.u32 %v5673, 4294901760
        %7272 = vmatmul.mubr.f32.gmra.mrb[0].mxu0 %v7271
        %v7273 = vpop.f32.mrb[0].mxu0
        %v7274 = vadd.f32 %v6917, %v7273
        %v7275 = vpop.f32.mrb[0].mxu0
        %7276 = vmatprep.mubr.f32.mxu0 0.0
        %v7277 = vand.u32 %v5674, 4294901760
        %7278 = vmatmul.mubr.f32.gmra.mrb[0].mxu0 %v7277
        %v7279 = vpop.f32.mrb[0].mxu0
        %v7280 = vadd.f32 %v6925, %v7279
        %v7281 = vpop.f32.mrb[0].mxu0
        %7282 = vmatprep.mubr.f32.mxu0 0.0
        %v7283 = vand.u32 %v5675, 4294901760
        %7284 = vmatmul.mubr.f32.gmra.mrb[0].mxu0 %v7283
        %v7285 = vpop.f32.mrb[0].mxu0
        %v7286 = vadd.f32 %v6933, %v7285
        %v7287 = vpop.f32.mrb[0].mxu0
        %7288 = vmatprep.mubr.f32.mxu0 0.0
        %v7289 = vand.u32 %v5676, 4294901760
        %7290 = vmatmul.mubr.f32.gmra.mrb[0].mxu0 %v7289
        %v7291 = vpop.f32.mrb[0].mxu0
        %v7292 = vadd.f32 %v6941, %v7291
        %v7293 = vpop.f32.mrb[0].mxu0
        %7294 = vmatprep.mubr.f32.mxu0 0.0
        %v7295 = vand.u32 %v5677, 4294901760
        %7296 = vmatmul.mubr.f32.gmra.mrb[0].mxu0 %v7295
        %v7297 = vpop.f32.mrb[0].mxu0
        %v7298 = vadd.f32 %v6949, %v7297
        %v7299 = vpop.f32.mrb[0].mxu0
        %7300 = vmatprep.mubr.f32.mxu0 0.0
        %v7301 = vand.u32 %v5678, 4294901760
        %7302 = vmatmul.mubr.f32.gmra.mrb[0].mxu0 %v7301
        %v7303 = vpop.f32.mrb[0].mxu0
        %v7304 = vadd.f32 %v6957, %v7303
        %v7305 = vpop.f32.mrb[0].mxu0
        %7306 = vmatprep.mubr.f32.mxu0 0.0
        %v7307 = vand.u32 %v5679, 4294901760
        %7308 = vmatmul.mubr.f32.gmra.mrb[0].mxu0 %v7307
        %v7309 = vpop.f32.mrb[0].mxu0
        %v7310 = vadd.f32 %v6965, %v7309
        %v7311 = vpop.f32.mrb[0].mxu0
        %7312 = vmatprep.mubr.f32.mxu0 0.0
        %v7313 = vand.u32 %v5680, 4294901760
        %7314 = vmatmul.mubr.f32.gmra.mrb[0].mxu0 %v7313
        %v7315 = vpop.f32.mrb[0].mxu0
        %v7316 = vadd.f32 %v6973, %v7315
        %v7317 = vpop.f32.mrb[0].mxu0
        %7318 = vmatprep.mubr.f32.mxu0 0.0
        %v7319 = vand.u32 %v5681, 4294901760
        %7320 = vmatmul.mubr.f32.gmra.mrb[0].mxu0 %v7319
        %v7321 = vpop.f32.mrb[0].mxu0
        %v7322 = vadd.f32 %v6981, %v7321
        %v7323 = vpop.f32.mrb[0].mxu0
        %7324 = vmatprep.mubr.f32.mxu0 0.0
        %v7325 = vand.u32 %v5682, 4294901760
        %7326 = vmatmul.mubr.f32.gmra.mrb[0].mxu0 %v7325
        %v7327 = vpop.f32.mrb[0].mxu0
        %v7328 = vadd.f32 %v6989, %v7327
        %v7329 = vpop.f32.mrb[0].mxu0
        %7330 = vmatprep.mubr.f32.mxu0 0.0
        %v7331 = vand.u32 %v5683, 4294901760
        %7332 = vmatmul.mubr.f32.gmra.mrb[0].mxu0 %v7331
        %v7333 = vpop.f32.mrb[0].mxu0
        %v7334 = vadd.f32 %v6997, %v7333
        %v7335 = vpop.f32.mrb[0].mxu0
        %7336 = vmatprep.mubr.f32.mxu0 0.0
        %v7337 = vand.u32 %v5684, 4294901760
        %7338 = vmatmul.mubr.f32.gmra.mrb[0].mxu0 %v7337
        %v7339 = vpop.f32.mrb[0].mxu0
        %v7340 = vadd.f32 %v7005, %v7339
        %v7341 = vpop.f32.mrb[0].mxu0
        %7342 = vmatprep.mubr.f32.mxu0 0.0
        %v7343 = vand.u32 %v5685, 4294901760
        %7344 = vmatmul.mubr.f32.gmra.mrb[0].mxu0 %v7343
        %v7345 = vpop.f32.mrb[0].mxu0
        %v7346 = vadd.f32 %v7013, %v7345
        %v7347 = vpop.f32.mrb[0].mxu0
        %7348 = vmatprep.mubr.f32.mxu0 0.0
        %v7349 = vand.u32 %v5686, 4294901760
        %7350 = vmatmul.mubr.f32.gmra.mrb[0].mxu0 %v7349
        %v7351 = vpop.f32.mrb[0].mxu0
        %v7352 = vadd.f32 %v7021, %v7351
        %v7353 = vpop.f32.mrb[0].mxu0
        %7354 = vmatprep.mubr.f32.mxu0 0.0
        %v7355 = vand.u32 %v5687, 4294901760
        %7356 = vmatmul.mubr.f32.gmra.mrb[0].mxu0 %v7355
        %v7357 = vpop.f32.mrb[0].mxu0
        %v7358 = vadd.f32 %v7029, %v7357
        %v7359 = vpop.f32.mrb[0].mxu0
        %7360 = vmatprep.mubr.f32.mxu0 0.0
        %v7361 = vand.u32 %v5688, 4294901760
        %7362 = vmatmul.mubr.f32.gmra.mrb[0].mxu0 %v7361
        %v7363 = vpop.f32.mrb[0].mxu0
        %v7364 = vadd.f32 %v7037, %v7363
        %v7365 = vpop.f32.mrb[0].mxu0
        %7366 = vmatprep.mubr.f32.mxu0 0.0
        %v7367 = vand.u32 %v5689, 4294901760
        %7368 = vmatmul.mubr.f32.gmra.mrb[0].mxu0 %v7367
        %v7369 = vpop.f32.mrb[0].mxu0
        %v7370 = vadd.f32 %v7045, %v7369
        %v7371 = vpop.f32.mrb[0].mxu0
        %7372 = vmatprep.mubr.f32.mxu0 0.0
        %v7373 = vand.u32 %v5690, 4294901760
        %7374 = vmatmul.mubr.f32.gmra.mrb[0].mxu0 %v7373
        %v7375 = vpop.f32.mrb[0].mxu0
        %v7376 = vadd.f32 %v7053, %v7375
        %v7377 = vpop.f32.mrb[0].mxu0
        %7378 = vmatprep.mubr.f32.mxu0 0.0
        %v7379 = vand.u32 %v5691, 4294901760
        %7380 = vmatmul.mubr.f32.gmra.mrb[0].mxu0 %v7379
        %v7381 = vpop.f32.mrb[0].mxu0
        %v7382 = vadd.f32 %v7061, %v7381
        %v7383 = vpop.f32.mrb[0].mxu0
        %7384 = vmatprep.mubr.f32.mxu0 0.0
        %v7385 = vand.u32 %v5692, 4294901760
        %7386 = vmatmul.mubr.f32.gmra.mrb[0].mxu0 %v7385
        %v7387 = vpop.f32.mrb[0].mxu0
        %v7388 = vadd.f32 %v7069, %v7387
        %v7389 = vpop.f32.mrb[0].mxu0
        %7390 = vmatprep.mubr.f32.mxu0 0.0
        %v7391 = vand.u32 %v5693, 4294901760
        %7392 = vmatmul.mubr.f32.gmra.mrb[0].mxu0 %v7391
        %v7393 = vpop.f32.mrb[0].mxu0
        %v7394 = vadd.f32 %v7077, %v7393
        %v7395 = vpop.f32.mrb[0].mxu0
        %7396 = vmatprep.mubr.f32.mxu0 0.0
        %v7397 = vand.u32 %v5694, 4294901760
        %7398 = vmatmul.mubr.f32.gmra.mrb[0].mxu0 %v7397
        %v7399 = vpop.f32.mrb[0].mxu0
        %v7400 = vadd.f32 %v7085, %v7399
        %v7401 = vpop.f32.mrb[0].mxu0
        %7402 = vmatprep.mubr.f32.mxu0 0.0
        %v7403 = vand.u32 %v5695, 4294901760
        %7404 = vmatmul.mubr.f32.gmra.mrb[0].mxu0 %v7403
        %v7405 = vpop.f32.mrb[0].mxu0
        %v7406 = vadd.f32 %v7093, %v7405
        %v7407 = vpop.f32.mrb[0].mxu0
        %7408 = vmatprep.mubr.f32.mxu0 0.0
        %v7409 = vand.u32 %v5696, 4294901760
        %7410 = vmatmul.mubr.f32.gmra.mrb[0].mxu0 %v7409
        %v7411 = vpop.f32.mrb[0].mxu0
        %v7412 = vadd.f32 %v7101, %v7411
        %v7413 = vpop.f32.mrb[0].mxu0
        %7414 = vmatprep.mubr.f32.mxu0 0.0
        %v7415 = vand.u32 %v5697, 4294901760
        %7416 = vmatmul.mubr.f32.gmra.mrb[0].mxu0 %v7415
        %v7417 = vpop.f32.mrb[0].mxu0
        %v7418 = vadd.f32 %v7109, %v7417
        %v7419 = vpop.f32.mrb[0].mxu0
        %7420 = vmatprep.mubr.f32.mxu0 0.0
        %v7421 = vand.u32 %v5698, 4294901760
        %7422 = vmatmul.mubr.f32.gmra.mrb[0].mxu0 %v7421
        %v7423 = vpop.f32.mrb[0].mxu0
        %v7424 = vadd.f32 %v7117, %v7423
        %v7425 = vpop.f32.mrb[0].mxu0
        %7426 = vmatprep.mubr.f32.mxu0 0.0
        %v7427 = vand.u32 %v5699, 4294901760
        %7428 = vmatmul.mubr.f32.gmra.mrb[0].mxu0 %v7427
        %v7429 = vpop.f32.mrb[0].mxu0
        %v7430 = vadd.f32 %v7125, %v7429
        %v7431 = vpop.f32.mrb[0].mxu0
        %7432 = vdwg.mxu0
        %7433 = vmatprep.subr.mxu0 0.0
        %v7434 = vand.u32 %v5716, 4294901760
        %7435 = vmatpush1.msra.mxu0 %v7434
        %7436 = vmatprep.subr.mxu0 0.0
        %v7437 = vand.u32 %v5717, 4294901760
        %7438 = vmatpush1.msra.mxu0 %v7437
        %7439 = vmatprep.subr.mxu0 0.0
        %v7440 = vand.u32 %v5718, 4294901760
        %7441 = vmatpush1.msra.mxu0 %v7440
        %7442 = vmatprep.subr.mxu0 0.0
        %v7443 = vand.u32 %v5719, 4294901760
        %7444 = vmatpush1.msra.mxu0 %v7443
        %7445 = vmatprep.subr.mxu0 0.0
        %v7446 = vand.u32 %v5720, 4294901760
        %7447 = vmatpush1.msra.mxu0 %v7446
        %7448 = vmatprep.subr.mxu0 0.0
        %v7449 = vand.u32 %v5721, 4294901760
        %7450 = vmatpush1.msra.mxu0 %v7449
        %7451 = vmatprep.subr.mxu0 0.0
        %v7452 = vand.u32 %v5722, 4294901760
        %7453 = vmatpush1.msra.mxu0 %v7452
        %7454 = vmatprep.subr.mxu0 0.0
        %v7455 = vand.u32 %v5723, 4294901760
        %7456 = vmatpush1.msra.mxu0 %v7455
        %7457 = vmatprep.subr.mxu0 0.0
        %v7458 = vand.u32 %v5724, 4294901760
        %7459 = vmatpush1.msra.mxu0 %v7458
        %7460 = vmatprep.subr.mxu0 0.0
        %v7461 = vand.u32 %v5725, 4294901760
        %7462 = vmatpush1.msra.mxu0 %v7461
        %7463 = vmatprep.subr.mxu0 0.0
        %v7464 = vand.u32 %v5726, 4294901760
        %7465 = vmatpush1.msra.mxu0 %v7464
        %7466 = vmatprep.subr.mxu0 0.0
        %v7467 = vand.u32 %v5727, 4294901760
        %7468 = vmatpush1.msra.mxu0 %v7467
        %7469 = vmatprep.subr.mxu0 0.0
        %v7470 = vand.u32 %v5728, 4294901760
        %7471 = vmatpush1.msra.mxu0 %v7470
        %7472 = vmatprep.subr.mxu0 0.0
        %v7473 = vand.u32 %v5729, 4294901760
        %7474 = vmatpush1.msra.mxu0 %v7473
        %7475 = vmatprep.subr.mxu0 0.0
        %v7476 = vand.u32 %v5730, 4294901760
        %7477 = vmatpush1.msra.mxu0 %v7476
        %7478 = vmatprep.subr.mxu0 0.0
        %v7479 = vand.u32 %v5731, 4294901760
        %7480 = vmatpush1.msra.mxu0 %v7479
        %7481 = vmatprep.subr.mxu0 0.0
        %7482 = vmatpush1.msra.mxu0 0.0
        %7483 = vmatprep.subr.mxu0 0.0
        %7484 = vmatpush1.msra.mxu0 0.0
        %7485 = vmatprep.subr.mxu0 0.0
        %7486 = vmatpush1.msra.mxu0 0.0
        %7487 = vmatprep.subr.mxu0 0.0
        %7488 = vmatpush1.msra.mxu0 0.0
        %7489 = vmatprep.subr.mxu0 0.0
        %7490 = vmatpush1.msra.mxu0 0.0
        %7491 = vmatprep.subr.mxu0 0.0
        %7492 = vmatpush1.msra.mxu0 0.0
        %7493 = vmatprep.subr.mxu0 0.0
        %7494 = vmatpush1.msra.mxu0 0.0
        %7495 = vmatprep.subr.mxu0 0.0
        %7496 = vmatpush1.msra.mxu0 0.0
        %7497 = vmatprep.subr.mxu0 0.0
        %7498 = vmatpush1.msra.mxu0 0.0
        %7499 = vmatprep.subr.mxu0 0.0
        %7500 = vmatpush1.msra.mxu0 0.0
        %7501 = vmatprep.subr.mxu0 0.0
        %7502 = vmatpush1.msra.mxu0 0.0
        %7503 = vmatprep.subr.mxu0 0.0
        %7504 = vmatpush1.msra.mxu0 0.0
        %7505 = vmatprep.subr.mxu0 0.0
        %7506 = vmatpush1.msra.mxu0 0.0
        %7507 = vmatprep.subr.mxu0 0.0
        %7508 = vmatpush1.msra.mxu0 0.0
        %7509 = vmatprep.subr.mxu0 0.0
        %7510 = vmatpush1.msra.mxu0 0.0
        %7511 = vmatprep.subr.mxu0 0.0
        %7512 = vmatpush1.msra.mxu0 0.0
        %7513 = vmatprep.mubr.f32.mxu0 0.0
        %v7514 = vand.u32 %v5668, 4294901760
        %7515 = vmatmul.mubr.f32.gmra.mrb[0].mxu0 %v7514
        %v7516 = vpop.f32.mrb[0].mxu0
        %v7517 = vadd.f32 %v7244, %v7516
        %v7518 = vpop.f32.mrb[0].mxu0
        %7519 = vmatprep.mubr.f32.mxu0 0.0
        %v7520 = vand.u32 %v5669, 4294901760
        %7521 = vmatmul.mubr.f32.gmra.mrb[0].mxu0 %v7520
        %v7522 = vpop.f32.mrb[0].mxu0
        %v7523 = vadd.f32 %v7250, %v7522
        %v7524 = vpop.f32.mrb[0].mxu0
        %7525 = vmatprep.mubr.f32.mxu0 0.0
        %v7526 = vand.u32 %v5670, 4294901760
        %7527 = vmatmul.mubr.f32.gmra.mrb[0].mxu0 %v7526
        %v7528 = vpop.f32.mrb[0].mxu0
        %v7529 = vadd.f32 %v7256, %v7528
        %v7530 = vpop.f32.mrb[0].mxu0
        %7531 = vmatprep.mubr.f32.mxu0 0.0
        %v7532 = vand.u32 %v5671, 4294901760
        %7533 = vmatmul.mubr.f32.gmra.mrb[0].mxu0 %v7532
        %v7534 = vpop.f32.mrb[0].mxu0
        %v7535 = vadd.f32 %v7262, %v7534
        %v7536 = vpop.f32.mrb[0].mxu0
        %7537 = vmatprep.mubr.f32.mxu0 0.0
        %v7538 = vand.u32 %v5672, 4294901760
        %7539 = vmatmul.mubr.f32.gmra.mrb[0].mxu0 %v7538
        %v7540 = vpop.f32.mrb[0].mxu0
        %v7541 = vadd.f32 %v7268, %v7540
        %v7542 = vpop.f32.mrb[0].mxu0
        %7543 = vmatprep.mubr.f32.mxu0 0.0
        %v7544 = vand.u32 %v5673, 4294901760
        %7545 = vmatmul.mubr.f32.gmra.mrb[0].mxu0 %v7544
        %v7546 = vpop.f32.mrb[0].mxu0
        %v7547 = vadd.f32 %v7274, %v7546
        %v7548 = vpop.f32.mrb[0].mxu0
        %7549 = vmatprep.mubr.f32.mxu0 0.0
        %v7550 = vand.u32 %v5674, 4294901760
        %7551 = vmatmul.mubr.f32.gmra.mrb[0].mxu0 %v7550
        %v7552 = vpop.f32.mrb[0].mxu0
        %v7553 = vadd.f32 %v7280, %v7552
        %v7554 = vpop.f32.mrb[0].mxu0
        %7555 = vmatprep.mubr.f32.mxu0 0.0
        %v7556 = vand.u32 %v5675, 4294901760
        %7557 = vmatmul.mubr.f32.gmra.mrb[0].mxu0 %v7556
        %v7558 = vpop.f32.mrb[0].mxu0
        %v7559 = vadd.f32 %v7286, %v7558
        %v7560 = vpop.f32.mrb[0].mxu0
        %7561 = vmatprep.mubr.f32.mxu0 0.0
        %v7562 = vand.u32 %v5676, 4294901760
        %7563 = vmatmul.mubr.f32.gmra.mrb[0].mxu0 %v7562
        %v7564 = vpop.f32.mrb[0].mxu0
        %v7565 = vadd.f32 %v7292, %v7564
        %v7566 = vpop.f32.mrb[0].mxu0
        %7567 = vmatprep.mubr.f32.mxu0 0.0
        %v7568 = vand.u32 %v5677, 4294901760
        %7569 = vmatmul.mubr.f32.gmra.mrb[0].mxu0 %v7568
        %v7570 = vpop.f32.mrb[0].mxu0
        %v7571 = vadd.f32 %v7298, %v7570
        %v7572 = vpop.f32.mrb[0].mxu0
        %7573 = vmatprep.mubr.f32.mxu0 0.0
        %v7574 = vand.u32 %v5678, 4294901760
        %7575 = vmatmul.mubr.f32.gmra.mrb[0].mxu0 %v7574
        %v7576 = vpop.f32.mrb[0].mxu0
        %v7577 = vadd.f32 %v7304, %v7576
        %v7578 = vpop.f32.mrb[0].mxu0
        %7579 = vmatprep.mubr.f32.mxu0 0.0
        %v7580 = vand.u32 %v5679, 4294901760
        %7581 = vmatmul.mubr.f32.gmra.mrb[0].mxu0 %v7580
        %v7582 = vpop.f32.mrb[0].mxu0
        %v7583 = vadd.f32 %v7310, %v7582
        %v7584 = vpop.f32.mrb[0].mxu0
        %7585 = vmatprep.mubr.f32.mxu0 0.0
        %v7586 = vand.u32 %v5680, 4294901760
        %7587 = vmatmul.mubr.f32.gmra.mrb[0].mxu0 %v7586
        %v7588 = vpop.f32.mrb[0].mxu0
        %v7589 = vadd.f32 %v7316, %v7588
        %v7590 = vpop.f32.mrb[0].mxu0
        %7591 = vmatprep.mubr.f32.mxu0 0.0
        %v7592 = vand.u32 %v5681, 4294901760
        %7593 = vmatmul.mubr.f32.gmra.mrb[0].mxu0 %v7592
        %v7594 = vpop.f32.mrb[0].mxu0
        %v7595 = vadd.f32 %v7322, %v7594
        %v7596 = vpop.f32.mrb[0].mxu0
        %7597 = vmatprep.mubr.f32.mxu0 0.0
        %v7598 = vand.u32 %v5682, 4294901760
        %7599 = vmatmul.mubr.f32.gmra.mrb[0].mxu0 %v7598
        %v7600 = vpop.f32.mrb[0].mxu0
        %v7601 = vadd.f32 %v7328, %v7600
        %v7602 = vpop.f32.mrb[0].mxu0
        %7603 = vmatprep.mubr.f32.mxu0 0.0
        %v7604 = vand.u32 %v5683, 4294901760
        %7605 = vmatmul.mubr.f32.gmra.mrb[0].mxu0 %v7604
        %v7606 = vpop.f32.mrb[0].mxu0
        %v7607 = vadd.f32 %v7334, %v7606
        %v7608 = vpop.f32.mrb[0].mxu0
        %7609 = vmatprep.mubr.f32.mxu0 0.0
        %v7610 = vand.u32 %v5684, 4294901760
        %7611 = vmatmul.mubr.f32.gmra.mrb[0].mxu0 %v7610
        %v7612 = vpop.f32.mrb[0].mxu0
        %v7613 = vadd.f32 %v7340, %v7612
        %v7614 = vpop.f32.mrb[0].mxu0
        %7615 = vmatprep.mubr.f32.mxu0 0.0
        %v7616 = vand.u32 %v5685, 4294901760
        %7617 = vmatmul.mubr.f32.gmra.mrb[0].mxu0 %v7616
        %v7618 = vpop.f32.mrb[0].mxu0
        %v7619 = vadd.f32 %v7346, %v7618
        %v7620 = vpop.f32.mrb[0].mxu0
        %7621 = vmatprep.mubr.f32.mxu0 0.0
        %v7622 = vand.u32 %v5686, 4294901760
        %7623 = vmatmul.mubr.f32.gmra.mrb[0].mxu0 %v7622
        %v7624 = vpop.f32.mrb[0].mxu0
        %v7625 = vadd.f32 %v7352, %v7624
        %v7626 = vpop.f32.mrb[0].mxu0
        %7627 = vmatprep.mubr.f32.mxu0 0.0
        %v7628 = vand.u32 %v5687, 4294901760
        %7629 = vmatmul.mubr.f32.gmra.mrb[0].mxu0 %v7628
        %v7630 = vpop.f32.mrb[0].mxu0
        %v7631 = vadd.f32 %v7358, %v7630
        %v7632 = vpop.f32.mrb[0].mxu0
        %7633 = vmatprep.mubr.f32.mxu0 0.0
        %v7634 = vand.u32 %v5688, 4294901760
        %7635 = vmatmul.mubr.f32.gmra.mrb[0].mxu0 %v7634
        %v7636 = vpop.f32.mrb[0].mxu0
        %v7637 = vadd.f32 %v7364, %v7636
        %v7638 = vpop.f32.mrb[0].mxu0
        %7639 = vmatprep.mubr.f32.mxu0 0.0
        %v7640 = vand.u32 %v5689, 4294901760
        %7641 = vmatmul.mubr.f32.gmra.mrb[0].mxu0 %v7640
        %v7642 = vpop.f32.mrb[0].mxu0
        %v7643 = vadd.f32 %v7370, %v7642
        %v7644 = vpop.f32.mrb[0].mxu0
        %7645 = vmatprep.mubr.f32.mxu0 0.0
        %v7646 = vand.u32 %v5690, 4294901760
        %7647 = vmatmul.mubr.f32.gmra.mrb[0].mxu0 %v7646
        %v7648 = vpop.f32.mrb[0].mxu0
        %v7649 = vadd.f32 %v7376, %v7648
        %v7650 = vpop.f32.mrb[0].mxu0
        %7651 = vmatprep.mubr.f32.mxu0 0.0
        %v7652 = vand.u32 %v5691, 4294901760
        %7653 = vmatmul.mubr.f32.gmra.mrb[0].mxu0 %v7652
        %v7654 = vpop.f32.mrb[0].mxu0
        %v7655 = vadd.f32 %v7382, %v7654
        %v7656 = vpop.f32.mrb[0].mxu0
        %7657 = vmatprep.mubr.f32.mxu0 0.0
        %v7658 = vand.u32 %v5692, 4294901760
        %7659 = vmatmul.mubr.f32.gmra.mrb[0].mxu0 %v7658
        %v7660 = vpop.f32.mrb[0].mxu0
        %v7661 = vadd.f32 %v7388, %v7660
        %v7662 = vpop.f32.mrb[0].mxu0
        %7663 = vmatprep.mubr.f32.mxu0 0.0
        %v7664 = vand.u32 %v5693, 4294901760
        %7665 = vmatmul.mubr.f32.gmra.mrb[0].mxu0 %v7664
        %v7666 = vpop.f32.mrb[0].mxu0
        %v7667 = vadd.f32 %v7394, %v7666
        %v7668 = vpop.f32.mrb[0].mxu0
        %7669 = vmatprep.mubr.f32.mxu0 0.0
        %v7670 = vand.u32 %v5694, 4294901760
        %7671 = vmatmul.mubr.f32.gmra.mrb[0].mxu0 %v7670
        %v7672 = vpop.f32.mrb[0].mxu0
        %v7673 = vadd.f32 %v7400, %v7672
        %v7674 = vpop.f32.mrb[0].mxu0
        %7675 = vmatprep.mubr.f32.mxu0 0.0
        %v7676 = vand.u32 %v5695, 4294901760
        %7677 = vmatmul.mubr.f32.gmra.mrb[0].mxu0 %v7676
        %v7678 = vpop.f32.mrb[0].mxu0
        %v7679 = vadd.f32 %v7406, %v7678
        %v7680 = vpop.f32.mrb[0].mxu0
        %7681 = vmatprep.mubr.f32.mxu0 0.0
        %v7682 = vand.u32 %v5696, 4294901760
        %7683 = vmatmul.mubr.f32.gmra.mrb[0].mxu0 %v7682
        %v7684 = vpop.f32.mrb[0].mxu0
        %v7685 = vadd.f32 %v7412, %v7684
        %v7686 = vpop.f32.mrb[0].mxu0
        %7687 = vmatprep.mubr.f32.mxu0 0.0
        %v7688 = vand.u32 %v5697, 4294901760
        %7689 = vmatmul.mubr.f32.gmra.mrb[0].mxu0 %v7688
        %v7690 = vpop.f32.mrb[0].mxu0
        %v7691 = vadd.f32 %v7418, %v7690
        %v7692 = vpop.f32.mrb[0].mxu0
        %7693 = vmatprep.mubr.f32.mxu0 0.0
        %v7694 = vand.u32 %v5698, 4294901760
        %7695 = vmatmul.mubr.f32.gmra.mrb[0].mxu0 %v7694
        %v7696 = vpop.f32.mrb[0].mxu0
        %v7697 = vadd.f32 %v7424, %v7696
        %v7698 = vpop.f32.mrb[0].mxu0
        %7699 = vmatprep.mubr.f32.mxu0 0.0
        %v7700 = vand.u32 %v5699, 4294901760
        %7701 = vmatmul.mubr.f32.gmra.mrb[0].mxu0 %v7700
        %v7702 = vpop.f32.mrb[0].mxu0
        %v7703 = vadd.f32 %v7430, %v7702
        %v7704 = vpop.f32.mrb[0].mxu0
        %7705 = vdwg.mxu0
        %7706 = vmatprep.subr.mxu0 0.0
        %v7707 = vand.u32 %v5700, 4294901760
        %7708 = vmatpush1.msra.mxu0 %v7707
        %7709 = vmatprep.subr.mxu0 0.0
        %v7710 = vand.u32 %v5701, 4294901760
        %7711 = vmatpush1.msra.mxu0 %v7710
        %7712 = vmatprep.subr.mxu0 0.0
        %v7713 = vand.u32 %v5702, 4294901760
        %7714 = vmatpush1.msra.mxu0 %v7713
        %7715 = vmatprep.subr.mxu0 0.0
        %v7716 = vand.u32 %v5703, 4294901760
        %7717 = vmatpush1.msra.mxu0 %v7716
        %7718 = vmatprep.subr.mxu0 0.0
        %v7719 = vand.u32 %v5704, 4294901760
        %7720 = vmatpush1.msra.mxu0 %v7719
        %7721 = vmatprep.subr.mxu0 0.0
        %v7722 = vand.u32 %v5705, 4294901760
        %7723 = vmatpush1.msra.mxu0 %v7722
        %7724 = vmatprep.subr.mxu0 0.0
        %v7725 = vand.u32 %v5706, 4294901760
        %7726 = vmatpush1.msra.mxu0 %v7725
        %7727 = vmatprep.subr.mxu0 0.0
        %v7728 = vand.u32 %v5707, 4294901760
        %7729 = vmatpush1.msra.mxu0 %v7728
        %7730 = vmatprep.subr.mxu0 0.0
        %v7731 = vand.u32 %v5708, 4294901760
        %7732 = vmatpush1.msra.mxu0 %v7731
        %7733 = vmatprep.subr.mxu0 0.0
        %v7734 = vand.u32 %v5709, 4294901760
        %7735 = vmatpush1.msra.mxu0 %v7734
        %7736 = vmatprep.subr.mxu0 0.0
        %v7737 = vand.u32 %v5710, 4294901760
        %7738 = vmatpush1.msra.mxu0 %v7737
        %7739 = vmatprep.subr.mxu0 0.0
        %v7740 = vand.u32 %v5711, 4294901760
        %7741 = vmatpush1.msra.mxu0 %v7740
        %7742 = vmatprep.subr.mxu0 0.0
        %v7743 = vand.u32 %v5712, 4294901760
        %7744 = vmatpush1.msra.mxu0 %v7743
        %7745 = vmatprep.subr.mxu0 0.0
        %v7746 = vand.u32 %v5713, 4294901760
        %7747 = vmatpush1.msra.mxu0 %v7746
        %7748 = vmatprep.subr.mxu0 0.0
        %v7749 = vand.u32 %v5714, 4294901760
        %7750 = vmatpush1.msra.mxu0 %v7749
        %7751 = vmatprep.subr.mxu0 0.0
        %v7752 = vand.u32 %v5715, 4294901760
        %7753 = vmatpush1.msra.mxu0 %v7752
        %7754 = vmatprep.subr.mxu0 0.0
        %7755 = vmatpush1.msra.mxu0 0.0
        %7756 = vmatprep.subr.mxu0 0.0
        %7757 = vmatpush1.msra.mxu0 0.0
        %7758 = vmatprep.subr.mxu0 0.0
        %7759 = vmatpush1.msra.mxu0 0.0
        %7760 = vmatprep.subr.mxu0 0.0
        %7761 = vmatpush1.msra.mxu0 0.0
        %7762 = vmatprep.subr.mxu0 0.0
        %7763 = vmatpush1.msra.mxu0 0.0
        %7764 = vmatprep.subr.mxu0 0.0
        %7765 = vmatpush1.msra.mxu0 0.0
        %7766 = vmatprep.subr.mxu0 0.0
        %7767 = vmatpush1.msra.mxu0 0.0
        %7768 = vmatprep.subr.mxu0 0.0
        %7769 = vmatpush1.msra.mxu0 0.0
        %7770 = vmatprep.subr.mxu0 0.0
        %7771 = vmatpush1.msra.mxu0 0.0
        %7772 = vmatprep.subr.mxu0 0.0
        %7773 = vmatpush1.msra.mxu0 0.0
        %7774 = vmatprep.subr.mxu0 0.0
        %7775 = vmatpush1.msra.mxu0 0.0
        %7776 = vmatprep.subr.mxu0 0.0
        %7777 = vmatpush1.msra.mxu0 0.0
        %7778 = vmatprep.subr.mxu0 0.0
        %7779 = vmatpush1.msra.mxu0 0.0
        %7780 = vmatprep.subr.mxu0 0.0
        %7781 = vmatpush1.msra.mxu0 0.0
        %7782 = vmatprep.subr.mxu0 0.0
        %7783 = vmatpush1.msra.mxu0 0.0
        %7784 = vmatprep.subr.mxu0 0.0
        %7785 = vmatpush1.msra.mxu0 0.0
        %7786 = vmatprep.mubr.f32.mxu0 0.0
        %v7787 = vand.u32 %v3355, 4294901760
        %v7788 = vsub.f32 %v3355, %v7787
        %v7789 = vand.u32 %v7788, 4294901760
        %v7790 = vsub.f32 %v7788, %v7789
        %v7791 = vand.u32 %v7790, 4294901760
        %7792 = vmatmul.mubr.f32.gmra.mrb[0].mxu0 %v7791
        %v7793 = vpop.f32.mrb[0].mxu0
        %v7794 = vadd.f32 %v7517, %v7793
        %v7795 = vpop.f32.mrb[0].mxu0
        %7796 = vmatprep.mubr.f32.mxu0 0.0
        %v7797 = vand.u32 %v3356, 4294901760
        %v7798 = vsub.f32 %v3356, %v7797
        %v7799 = vand.u32 %v7798, 4294901760
        %v7800 = vsub.f32 %v7798, %v7799
        %v7801 = vand.u32 %v7800, 4294901760
        %7802 = vmatmul.mubr.f32.gmra.mrb[0].mxu0 %v7801
        %v7803 = vpop.f32.mrb[0].mxu0
        %v7804 = vadd.f32 %v7523, %v7803
        %v7805 = vpop.f32.mrb[0].mxu0
        %7806 = vmatprep.mubr.f32.mxu0 0.0
        %v7807 = vand.u32 %v3357, 4294901760
        %v7808 = vsub.f32 %v3357, %v7807
        %v7809 = vand.u32 %v7808, 4294901760
        %v7810 = vsub.f32 %v7808, %v7809
        %v7811 = vand.u32 %v7810, 4294901760
        %7812 = vmatmul.mubr.f32.gmra.mrb[0].mxu0 %v7811
        %v7813 = vpop.f32.mrb[0].mxu0
        %v7814 = vadd.f32 %v7529, %v7813
        %v7815 = vpop.f32.mrb[0].mxu0
        %7816 = vmatprep.mubr.f32.mxu0 0.0
        %v7817 = vand.u32 %v3358, 4294901760
        %v7818 = vsub.f32 %v3358, %v7817
        %v7819 = vand.u32 %v7818, 4294901760
        %v7820 = vsub.f32 %v7818, %v7819
        %v7821 = vand.u32 %v7820, 4294901760
        %7822 = vmatmul.mubr.f32.gmra.mrb[0].mxu0 %v7821
        %v7823 = vpop.f32.mrb[0].mxu0
        %v7824 = vadd.f32 %v7535, %v7823
        %v7825 = vpop.f32.mrb[0].mxu0
        %7826 = vmatprep.mubr.f32.mxu0 0.0
        %v7827 = vand.u32 %v3359, 4294901760
        %v7828 = vsub.f32 %v3359, %v7827
        %v7829 = vand.u32 %v7828, 4294901760
        %v7830 = vsub.f32 %v7828, %v7829
        %v7831 = vand.u32 %v7830, 4294901760
        %7832 = vmatmul.mubr.f32.gmra.mrb[0].mxu0 %v7831
        %v7833 = vpop.f32.mrb[0].mxu0
        %v7834 = vadd.f32 %v7541, %v7833
        %v7835 = vpop.f32.mrb[0].mxu0
        %7836 = vmatprep.mubr.f32.mxu0 0.0
        %v7837 = vand.u32 %v3360, 4294901760
        %v7838 = vsub.f32 %v3360, %v7837
        %v7839 = vand.u32 %v7838, 4294901760
        %v7840 = vsub.f32 %v7838, %v7839
        %v7841 = vand.u32 %v7840, 4294901760
        %7842 = vmatmul.mubr.f32.gmra.mrb[0].mxu0 %v7841
        %v7843 = vpop.f32.mrb[0].mxu0
        %v7844 = vadd.f32 %v7547, %v7843
        %v7845 = vpop.f32.mrb[0].mxu0
        %7846 = vmatprep.mubr.f32.mxu0 0.0
        %v7847 = vand.u32 %v3361, 4294901760
        %v7848 = vsub.f32 %v3361, %v7847
        %v7849 = vand.u32 %v7848, 4294901760
        %v7850 = vsub.f32 %v7848, %v7849
        %v7851 = vand.u32 %v7850, 4294901760
        %7852 = vmatmul.mubr.f32.gmra.mrb[0].mxu0 %v7851
        %v7853 = vpop.f32.mrb[0].mxu0
        %v7854 = vadd.f32 %v7553, %v7853
        %v7855 = vpop.f32.mrb[0].mxu0
        %7856 = vmatprep.mubr.f32.mxu0 0.0
        %v7857 = vand.u32 %v3362, 4294901760
        %v7858 = vsub.f32 %v3362, %v7857
        %v7859 = vand.u32 %v7858, 4294901760
        %v7860 = vsub.f32 %v7858, %v7859
        %v7861 = vand.u32 %v7860, 4294901760
        %7862 = vmatmul.mubr.f32.gmra.mrb[0].mxu0 %v7861
        %v7863 = vpop.f32.mrb[0].mxu0
        %v7864 = vadd.f32 %v7559, %v7863
        %v7865 = vpop.f32.mrb[0].mxu0
        %7866 = vmatprep.mubr.f32.mxu0 0.0
        %v7867 = vand.u32 %v3363, 4294901760
        %v7868 = vsub.f32 %v3363, %v7867
        %v7869 = vand.u32 %v7868, 4294901760
        %v7870 = vsub.f32 %v7868, %v7869
        %v7871 = vand.u32 %v7870, 4294901760
        %7872 = vmatmul.mubr.f32.gmra.mrb[0].mxu0 %v7871
        %v7873 = vpop.f32.mrb[0].mxu0
        %v7874 = vadd.f32 %v7565, %v7873
        %v7875 = vpop.f32.mrb[0].mxu0
        %7876 = vmatprep.mubr.f32.mxu0 0.0
        %v7877 = vand.u32 %v3364, 4294901760
        %v7878 = vsub.f32 %v3364, %v7877
        %v7879 = vand.u32 %v7878, 4294901760
        %v7880 = vsub.f32 %v7878, %v7879
        %v7881 = vand.u32 %v7880, 4294901760
        %7882 = vmatmul.mubr.f32.gmra.mrb[0].mxu0 %v7881
        %v7883 = vpop.f32.mrb[0].mxu0
        %v7884 = vadd.f32 %v7571, %v7883
        %v7885 = vpop.f32.mrb[0].mxu0
        %7886 = vmatprep.mubr.f32.mxu0 0.0
        %v7887 = vand.u32 %v3365, 4294901760
        %v7888 = vsub.f32 %v3365, %v7887
        %v7889 = vand.u32 %v7888, 4294901760
        %v7890 = vsub.f32 %v7888, %v7889
        %v7891 = vand.u32 %v7890, 4294901760
        %7892 = vmatmul.mubr.f32.gmra.mrb[0].mxu0 %v7891
        %v7893 = vpop.f32.mrb[0].mxu0
        %v7894 = vadd.f32 %v7577, %v7893
        %v7895 = vpop.f32.mrb[0].mxu0
        %7896 = vmatprep.mubr.f32.mxu0 0.0
        %v7897 = vand.u32 %v3366, 4294901760
        %v7898 = vsub.f32 %v3366, %v7897
        %v7899 = vand.u32 %v7898, 4294901760
        %v7900 = vsub.f32 %v7898, %v7899
        %v7901 = vand.u32 %v7900, 4294901760
        %7902 = vmatmul.mubr.f32.gmra.mrb[0].mxu0 %v7901
        %v7903 = vpop.f32.mrb[0].mxu0
        %v7904 = vadd.f32 %v7583, %v7903
        %v7905 = vpop.f32.mrb[0].mxu0
        %7906 = vmatprep.mubr.f32.mxu0 0.0
        %v7907 = vand.u32 %v3367, 4294901760
        %v7908 = vsub.f32 %v3367, %v7907
        %v7909 = vand.u32 %v7908, 4294901760
        %v7910 = vsub.f32 %v7908, %v7909
        %v7911 = vand.u32 %v7910, 4294901760
        %7912 = vmatmul.mubr.f32.gmra.mrb[0].mxu0 %v7911
        %v7913 = vpop.f32.mrb[0].mxu0
        %v7914 = vadd.f32 %v7589, %v7913
        %v7915 = vpop.f32.mrb[0].mxu0
        %7916 = vmatprep.mubr.f32.mxu0 0.0
        %v7917 = vand.u32 %v3368, 4294901760
        %v7918 = vsub.f32 %v3368, %v7917
        %v7919 = vand.u32 %v7918, 4294901760
        %v7920 = vsub.f32 %v7918, %v7919
        %v7921 = vand.u32 %v7920, 4294901760
        %7922 = vmatmul.mubr.f32.gmra.mrb[0].mxu0 %v7921
        %v7923 = vpop.f32.mrb[0].mxu0
        %v7924 = vadd.f32 %v7595, %v7923
        %v7925 = vpop.f32.mrb[0].mxu0
        %7926 = vmatprep.mubr.f32.mxu0 0.0
        %v7927 = vand.u32 %v3369, 4294901760
        %v7928 = vsub.f32 %v3369, %v7927
        %v7929 = vand.u32 %v7928, 4294901760
        %v7930 = vsub.f32 %v7928, %v7929
        %v7931 = vand.u32 %v7930, 4294901760
        %7932 = vmatmul.mubr.f32.gmra.mrb[0].mxu0 %v7931
        %v7933 = vpop.f32.mrb[0].mxu0
        %v7934 = vadd.f32 %v7601, %v7933
        %v7935 = vpop.f32.mrb[0].mxu0
        %7936 = vmatprep.mubr.f32.mxu0 0.0
        %v7937 = vand.u32 %v3370, 4294901760
        %v7938 = vsub.f32 %v3370, %v7937
        %v7939 = vand.u32 %v7938, 4294901760
        %v7940 = vsub.f32 %v7938, %v7939
        %v7941 = vand.u32 %v7940, 4294901760
        %7942 = vmatmul.mubr.f32.gmra.mrb[0].mxu0 %v7941
        %v7943 = vpop.f32.mrb[0].mxu0
        %v7944 = vadd.f32 %v7607, %v7943
        %v7945 = vpop.f32.mrb[0].mxu0
        %7946 = vmatprep.mubr.f32.mxu0 0.0
        %v7947 = vand.u32 %v3371, 4294901760
        %v7948 = vsub.f32 %v3371, %v7947
        %v7949 = vand.u32 %v7948, 4294901760
        %v7950 = vsub.f32 %v7948, %v7949
        %v7951 = vand.u32 %v7950, 4294901760
        %7952 = vmatmul.mubr.f32.gmra.mrb[0].mxu0 %v7951
        %v7953 = vpop.f32.mrb[0].mxu0
        %v7954 = vadd.f32 %v7613, %v7953
        %v7955 = vpop.f32.mrb[0].mxu0
        %7956 = vmatprep.mubr.f32.mxu0 0.0
        %v7957 = vand.u32 %v3372, 4294901760
        %v7958 = vsub.f32 %v3372, %v7957
        %v7959 = vand.u32 %v7958, 4294901760
        %v7960 = vsub.f32 %v7958, %v7959
        %v7961 = vand.u32 %v7960, 4294901760
        %7962 = vmatmul.mubr.f32.gmra.mrb[0].mxu0 %v7961
        %v7963 = vpop.f32.mrb[0].mxu0
        %v7964 = vadd.f32 %v7619, %v7963
        %v7965 = vpop.f32.mrb[0].mxu0
        %7966 = vmatprep.mubr.f32.mxu0 0.0
        %v7967 = vand.u32 %v3373, 4294901760
        %v7968 = vsub.f32 %v3373, %v7967
        %v7969 = vand.u32 %v7968, 4294901760
        %v7970 = vsub.f32 %v7968, %v7969
        %v7971 = vand.u32 %v7970, 4294901760
        %7972 = vmatmul.mubr.f32.gmra.mrb[0].mxu0 %v7971
        %v7973 = vpop.f32.mrb[0].mxu0
        %v7974 = vadd.f32 %v7625, %v7973
        %v7975 = vpop.f32.mrb[0].mxu0
        %7976 = vmatprep.mubr.f32.mxu0 0.0
        %v7977 = vand.u32 %v3374, 4294901760
        %v7978 = vsub.f32 %v3374, %v7977
        %v7979 = vand.u32 %v7978, 4294901760
        %v7980 = vsub.f32 %v7978, %v7979
        %v7981 = vand.u32 %v7980, 4294901760
        %7982 = vmatmul.mubr.f32.gmra.mrb[0].mxu0 %v7981
        %v7983 = vpop.f32.mrb[0].mxu0
        %v7984 = vadd.f32 %v7631, %v7983
        %v7985 = vpop.f32.mrb[0].mxu0
        %7986 = vmatprep.mubr.f32.mxu0 0.0
        %v7987 = vand.u32 %v3375, 4294901760
        %v7988 = vsub.f32 %v3375, %v7987
        %v7989 = vand.u32 %v7988, 4294901760
        %v7990 = vsub.f32 %v7988, %v7989
        %v7991 = vand.u32 %v7990, 4294901760
        %7992 = vmatmul.mubr.f32.gmra.mrb[0].mxu0 %v7991
        %v7993 = vpop.f32.mrb[0].mxu0
        %v7994 = vadd.f32 %v7637, %v7993
        %v7995 = vpop.f32.mrb[0].mxu0
        %7996 = vmatprep.mubr.f32.mxu0 0.0
        %v7997 = vand.u32 %v3376, 4294901760
        %v7998 = vsub.f32 %v3376, %v7997
        %v7999 = vand.u32 %v7998, 4294901760
        %v8000 = vsub.f32 %v7998, %v7999
        %v8001 = vand.u32 %v8000, 4294901760
        %8002 = vmatmul.mubr.f32.gmra.mrb[0].mxu0 %v8001
        %v8003 = vpop.f32.mrb[0].mxu0
        %v8004 = vadd.f32 %v7643, %v8003
        %v8005 = vpop.f32.mrb[0].mxu0
        %8006 = vmatprep.mubr.f32.mxu0 0.0
        %v8007 = vand.u32 %v3377, 4294901760
        %v8008 = vsub.f32 %v3377, %v8007
        %v8009 = vand.u32 %v8008, 4294901760
        %v8010 = vsub.f32 %v8008, %v8009
        %v8011 = vand.u32 %v8010, 4294901760
        %8012 = vmatmul.mubr.f32.gmra.mrb[0].mxu0 %v8011
        %v8013 = vpop.f32.mrb[0].mxu0
        %v8014 = vadd.f32 %v7649, %v8013
        %v8015 = vpop.f32.mrb[0].mxu0
        %8016 = vmatprep.mubr.f32.mxu0 0.0
        %v8017 = vand.u32 %v3378, 4294901760
        %v8018 = vsub.f32 %v3378, %v8017
        %v8019 = vand.u32 %v8018, 4294901760
        %v8020 = vsub.f32 %v8018, %v8019
        %v8021 = vand.u32 %v8020, 4294901760
        %8022 = vmatmul.mubr.f32.gmra.mrb[0].mxu0 %v8021
        %v8023 = vpop.f32.mrb[0].mxu0
        %v8024 = vadd.f32 %v7655, %v8023
        %v8025 = vpop.f32.mrb[0].mxu0
        %8026 = vmatprep.mubr.f32.mxu0 0.0
        %v8027 = vand.u32 %v3379, 4294901760
        %v8028 = vsub.f32 %v3379, %v8027
        %v8029 = vand.u32 %v8028, 4294901760
        %v8030 = vsub.f32 %v8028, %v8029
        %v8031 = vand.u32 %v8030, 4294901760
        %8032 = vmatmul.mubr.f32.gmra.mrb[0].mxu0 %v8031
        %v8033 = vpop.f32.mrb[0].mxu0
        %v8034 = vadd.f32 %v7661, %v8033
        %v8035 = vpop.f32.mrb[0].mxu0
        %8036 = vmatprep.mubr.f32.mxu0 0.0
        %v8037 = vand.u32 %v3380, 4294901760
        %v8038 = vsub.f32 %v3380, %v8037
        %v8039 = vand.u32 %v8038, 4294901760
        %v8040 = vsub.f32 %v8038, %v8039
        %v8041 = vand.u32 %v8040, 4294901760
        %8042 = vmatmul.mubr.f32.gmra.mrb[0].mxu0 %v8041
        %v8043 = vpop.f32.mrb[0].mxu0
        %v8044 = vadd.f32 %v7667, %v8043
        %v8045 = vpop.f32.mrb[0].mxu0
        %8046 = vmatprep.mubr.f32.mxu0 0.0
        %v8047 = vand.u32 %v3381, 4294901760
        %v8048 = vsub.f32 %v3381, %v8047
        %v8049 = vand.u32 %v8048, 4294901760
        %v8050 = vsub.f32 %v8048, %v8049
        %v8051 = vand.u32 %v8050, 4294901760
        %8052 = vmatmul.mubr.f32.gmra.mrb[0].mxu0 %v8051
        %v8053 = vpop.f32.mrb[0].mxu0
        %v8054 = vadd.f32 %v7673, %v8053
        %v8055 = vpop.f32.mrb[0].mxu0
        %8056 = vmatprep.mubr.f32.mxu0 0.0
        %v8057 = vand.u32 %v3382, 4294901760
        %v8058 = vsub.f32 %v3382, %v8057
        %v8059 = vand.u32 %v8058, 4294901760
        %v8060 = vsub.f32 %v8058, %v8059
        %v8061 = vand.u32 %v8060, 4294901760
        %8062 = vmatmul.mubr.f32.gmra.mrb[0].mxu0 %v8061
        %v8063 = vpop.f32.mrb[0].mxu0
        %v8064 = vadd.f32 %v7679, %v8063
        %v8065 = vpop.f32.mrb[0].mxu0
        %8066 = vmatprep.mubr.f32.mxu0 0.0
        %v8067 = vand.u32 %v3383, 4294901760
        %v8068 = vsub.f32 %v3383, %v8067
        %v8069 = vand.u32 %v8068, 4294901760
        %v8070 = vsub.f32 %v8068, %v8069
        %v8071 = vand.u32 %v8070, 4294901760
        %8072 = vmatmul.mubr.f32.gmra.mrb[0].mxu0 %v8071
        %v8073 = vpop.f32.mrb[0].mxu0
        %v8074 = vadd.f32 %v7685, %v8073
        %v8075 = vpop.f32.mrb[0].mxu0
        %8076 = vmatprep.mubr.f32.mxu0 0.0
        %v8077 = vand.u32 %v3384, 4294901760
        %v8078 = vsub.f32 %v3384, %v8077
        %v8079 = vand.u32 %v8078, 4294901760
        %v8080 = vsub.f32 %v8078, %v8079
        %v8081 = vand.u32 %v8080, 4294901760
        %8082 = vmatmul.mubr.f32.gmra.mrb[0].mxu0 %v8081
        %v8083 = vpop.f32.mrb[0].mxu0
        %v8084 = vadd.f32 %v7691, %v8083
        %v8085 = vpop.f32.mrb[0].mxu0
        %8086 = vmatprep.mubr.f32.mxu0 0.0
        %v8087 = vand.u32 %v3385, 4294901760
        %v8088 = vsub.f32 %v3385, %v8087
        %v8089 = vand.u32 %v8088, 4294901760
        %v8090 = vsub.f32 %v8088, %v8089
        %v8091 = vand.u32 %v8090, 4294901760
        %8092 = vmatmul.mubr.f32.gmra.mrb[0].mxu0 %v8091
        %v8093 = vpop.f32.mrb[0].mxu0
        %v8094 = vadd.f32 %v7697, %v8093
        %v8095 = vpop.f32.mrb[0].mxu0
        %8096 = vmatprep.mubr.f32.mxu0 0.0
        %v8097 = vand.u32 %v3386, 4294901760
        %v8098 = vsub.f32 %v3386, %v8097
        %v8099 = vand.u32 %v8098, 4294901760
        %v8100 = vsub.f32 %v8098, %v8099
        %v8101 = vand.u32 %v8100, 4294901760
        %8102 = vmatmul.mubr.f32.gmra.mrb[0].mxu0 %v8101
        %v8103 = vpop.f32.mrb[0].mxu0
        %v8104 = vadd.f32 %v7703, %v8103
        %v8105 = vpop.f32.mrb[0].mxu0
        %8106 = vdwg.mxu0
        %8107 = vmatprep.subr.mxu0 0.0
        %v8108 = vand.u32 %v5700, 4294901760
        %v8109 = vsub.f32 %v5700, %v8108
        %v8110 = vand.u32 %v8109, 4294901760
        %v8111 = vsub.f32 %v8109, %v8110
        %v8112 = vand.u32 %v8111, 4294901760
        %8113 = vmatpush1.msra.mxu0 %v8112
        %8114 = vmatprep.subr.mxu0 0.0
        %v8115 = vand.u32 %v5701, 4294901760
        %v8116 = vsub.f32 %v5701, %v8115
        %v8117 = vand.u32 %v8116, 4294901760
        %v8118 = vsub.f32 %v8116, %v8117
        %v8119 = vand.u32 %v8118, 4294901760
        %8120 = vmatpush1.msra.mxu0 %v8119
        %8121 = vmatprep.subr.mxu0 0.0
        %v8122 = vand.u32 %v5702, 4294901760
        %v8123 = vsub.f32 %v5702, %v8122
        %v8124 = vand.u32 %v8123, 4294901760
        %v8125 = vsub.f32 %v8123, %v8124
        %v8126 = vand.u32 %v8125, 4294901760
        %8127 = vmatpush1.msra.mxu0 %v8126
        %8128 = vmatprep.subr.mxu0 0.0
        %v8129 = vand.u32 %v5703, 4294901760
        %v8130 = vsub.f32 %v5703, %v8129
        %v8131 = vand.u32 %v8130, 4294901760
        %v8132 = vsub.f32 %v8130, %v8131
        %v8133 = vand.u32 %v8132, 4294901760
        %8134 = vmatpush1.msra.mxu0 %v8133
        %8135 = vmatprep.subr.mxu0 0.0
        %v8136 = vand.u32 %v5704, 4294901760
        %v8137 = vsub.f32 %v5704, %v8136
        %v8138 = vand.u32 %v8137, 4294901760
        %v8139 = vsub.f32 %v8137, %v8138
        %v8140 = vand.u32 %v8139, 4294901760
        %8141 = vmatpush1.msra.mxu0 %v8140
        %8142 = vmatprep.subr.mxu0 0.0
        %v8143 = vand.u32 %v5705, 4294901760
        %v8144 = vsub.f32 %v5705, %v8143
        %v8145 = vand.u32 %v8144, 4294901760
        %v8146 = vsub.f32 %v8144, %v8145
        %v8147 = vand.u32 %v8146, 4294901760
        %8148 = vmatpush1.msra.mxu0 %v8147
        %8149 = vmatprep.subr.mxu0 0.0
        %v8150 = vand.u32 %v5706, 4294901760
        %v8151 = vsub.f32 %v5706, %v8150
        %v8152 = vand.u32 %v8151, 4294901760
        %v8153 = vsub.f32 %v8151, %v8152
        %v8154 = vand.u32 %v8153, 4294901760
        %8155 = vmatpush1.msra.mxu0 %v8154
        %8156 = vmatprep.subr.mxu0 0.0
        %v8157 = vand.u32 %v5707, 4294901760
        %v8158 = vsub.f32 %v5707, %v8157
        %v8159 = vand.u32 %v8158, 4294901760
        %v8160 = vsub.f32 %v8158, %v8159
        %v8161 = vand.u32 %v8160, 4294901760
        %8162 = vmatpush1.msra.mxu0 %v8161
        %8163 = vmatprep.subr.mxu0 0.0
        %v8164 = vand.u32 %v5708, 4294901760
        %v8165 = vsub.f32 %v5708, %v8164
        %v8166 = vand.u32 %v8165, 4294901760
        %v8167 = vsub.f32 %v8165, %v8166
        %v8168 = vand.u32 %v8167, 4294901760
        %8169 = vmatpush1.msra.mxu0 %v8168
        %8170 = vmatprep.subr.mxu0 0.0
        %v8171 = vand.u32 %v5709, 4294901760
        %v8172 = vsub.f32 %v5709, %v8171
        %v8173 = vand.u32 %v8172, 4294901760
        %v8174 = vsub.f32 %v8172, %v8173
        %v8175 = vand.u32 %v8174, 4294901760
        %8176 = vmatpush1.msra.mxu0 %v8175
        %8177 = vmatprep.subr.mxu0 0.0
        %v8178 = vand.u32 %v5710, 4294901760
        %v8179 = vsub.f32 %v5710, %v8178
        %v8180 = vand.u32 %v8179, 4294901760
        %v8181 = vsub.f32 %v8179, %v8180
        %v8182 = vand.u32 %v8181, 4294901760
        %8183 = vmatpush1.msra.mxu0 %v8182
        %8184 = vmatprep.subr.mxu0 0.0
        %v8185 = vand.u32 %v5711, 4294901760
        %v8186 = vsub.f32 %v5711, %v8185
        %v8187 = vand.u32 %v8186, 4294901760
        %v8188 = vsub.f32 %v8186, %v8187
        %v8189 = vand.u32 %v8188, 4294901760
        %8190 = vmatpush1.msra.mxu0 %v8189
        %8191 = vmatprep.subr.mxu0 0.0
        %v8192 = vand.u32 %v5712, 4294901760
        %v8193 = vsub.f32 %v5712, %v8192
        %v8194 = vand.u32 %v8193, 4294901760
        %v8195 = vsub.f32 %v8193, %v8194
        %v8196 = vand.u32 %v8195, 4294901760
        %8197 = vmatpush1.msra.mxu0 %v8196
        %8198 = vmatprep.subr.mxu0 0.0
        %v8199 = vand.u32 %v5713, 4294901760
        %v8200 = vsub.f32 %v5713, %v8199
        %v8201 = vand.u32 %v8200, 4294901760
        %v8202 = vsub.f32 %v8200, %v8201
        %v8203 = vand.u32 %v8202, 4294901760
        %8204 = vmatpush1.msra.mxu0 %v8203
        %8205 = vmatprep.subr.mxu0 0.0
        %v8206 = vand.u32 %v5714, 4294901760
        %v8207 = vsub.f32 %v5714, %v8206
        %v8208 = vand.u32 %v8207, 4294901760
        %v8209 = vsub.f32 %v8207, %v8208
        %v8210 = vand.u32 %v8209, 4294901760
        %8211 = vmatpush1.msra.mxu0 %v8210
        %8212 = vmatprep.subr.mxu0 0.0
        %v8213 = vand.u32 %v5715, 4294901760
        %v8214 = vsub.f32 %v5715, %v8213
        %v8215 = vand.u32 %v8214, 4294901760
        %v8216 = vsub.f32 %v8214, %v8215
        %v8217 = vand.u32 %v8216, 4294901760
        %8218 = vmatpush1.msra.mxu0 %v8217
        %8219 = vmatprep.subr.mxu0 0.0
        %8220 = vmatpush1.msra.mxu0 0.0
        %8221 = vmatprep.subr.mxu0 0.0
        %8222 = vmatpush1.msra.mxu0 0.0
        %8223 = vmatprep.subr.mxu0 0.0
        %8224 = vmatpush1.msra.mxu0 0.0
        %8225 = vmatprep.subr.mxu0 0.0
        %8226 = vmatpush1.msra.mxu0 0.0
        %8227 = vmatprep.subr.mxu0 0.0
        %8228 = vmatpush1.msra.mxu0 0.0
        %8229 = vmatprep.subr.mxu0 0.0
        %8230 = vmatpush1.msra.mxu0 0.0
        %8231 = vmatprep.subr.mxu0 0.0
        %8232 = vmatpush1.msra.mxu0 0.0
        %8233 = vmatprep.subr.mxu0 0.0
        %8234 = vmatpush1.msra.mxu0 0.0
        %8235 = vmatprep.subr.mxu0 0.0
        %8236 = vmatpush1.msra.mxu0 0.0
        %8237 = vmatprep.subr.mxu0 0.0
        %8238 = vmatpush1.msra.mxu0 0.0
        %8239 = vmatprep.subr.mxu0 0.0
        %8240 = vmatpush1.msra.mxu0 0.0
        %8241 = vmatprep.subr.mxu0 0.0
        %8242 = vmatpush1.msra.mxu0 0.0
        %8243 = vmatprep.subr.mxu0 0.0
        %8244 = vmatpush1.msra.mxu0 0.0
        %8245 = vmatprep.subr.mxu0 0.0
        %8246 = vmatpush1.msra.mxu0 0.0
        %8247 = vmatprep.subr.mxu0 0.0
        %8248 = vmatpush1.msra.mxu0 0.0
        %8249 = vmatprep.subr.mxu0 0.0
        %8250 = vmatpush1.msra.mxu0 0.0
        %8251 = vmatprep.mubr.f32.mxu0 0.0
        %v8252 = vand.u32 %v3355, 4294901760
        %8253 = vmatmul.mubr.f32.gmra.mrb[0].mxu0 %v8252
        %v8254 = vpop.f32.mrb[0].mxu0
        %v8255 = vadd.f32 %v7794, %v8254
        %v8256 = vpop.f32.mrb[0].mxu0
        %8257 = vmatprep.mubr.f32.mxu0 0.0
        %v8258 = vand.u32 %v3356, 4294901760
        %8259 = vmatmul.mubr.f32.gmra.mrb[0].mxu0 %v8258
        %v8260 = vpop.f32.mrb[0].mxu0
        %v8261 = vadd.f32 %v7804, %v8260
        %v8262 = vpop.f32.mrb[0].mxu0
        %8263 = vmatprep.mubr.f32.mxu0 0.0
        %v8264 = vand.u32 %v3357, 4294901760
        %8265 = vmatmul.mubr.f32.gmra.mrb[0].mxu0 %v8264
        %v8266 = vpop.f32.mrb[0].mxu0
        %v8267 = vadd.f32 %v7814, %v8266
        %v8268 = vpop.f32.mrb[0].mxu0
        %8269 = vmatprep.mubr.f32.mxu0 0.0
        %v8270 = vand.u32 %v3358, 4294901760
        %8271 = vmatmul.mubr.f32.gmra.mrb[0].mxu0 %v8270
        %v8272 = vpop.f32.mrb[0].mxu0
        %v8273 = vadd.f32 %v7824, %v8272
        %v8274 = vpop.f32.mrb[0].mxu0
        %8275 = vmatprep.mubr.f32.mxu0 0.0
        %v8276 = vand.u32 %v3359, 4294901760
        %8277 = vmatmul.mubr.f32.gmra.mrb[0].mxu0 %v8276
        %v8278 = vpop.f32.mrb[0].mxu0
        %v8279 = vadd.f32 %v7834, %v8278
        %v8280 = vpop.f32.mrb[0].mxu0
        %8281 = vmatprep.mubr.f32.mxu0 0.0
        %v8282 = vand.u32 %v3360, 4294901760
        %8283 = vmatmul.mubr.f32.gmra.mrb[0].mxu0 %v8282
        %v8284 = vpop.f32.mrb[0].mxu0
        %v8285 = vadd.f32 %v7844, %v8284
        %v8286 = vpop.f32.mrb[0].mxu0
        %8287 = vmatprep.mubr.f32.mxu0 0.0
        %v8288 = vand.u32 %v3361, 4294901760
        %8289 = vmatmul.mubr.f32.gmra.mrb[0].mxu0 %v8288
        %v8290 = vpop.f32.mrb[0].mxu0
        %v8291 = vadd.f32 %v7854, %v8290
        %v8292 = vpop.f32.mrb[0].mxu0
        %8293 = vmatprep.mubr.f32.mxu0 0.0
        %v8294 = vand.u32 %v3362, 4294901760
        %8295 = vmatmul.mubr.f32.gmra.mrb[0].mxu0 %v8294
        %v8296 = vpop.f32.mrb[0].mxu0
        %v8297 = vadd.f32 %v7864, %v8296
        %v8298 = vpop.f32.mrb[0].mxu0
        %8299 = vmatprep.mubr.f32.mxu0 0.0
        %v8300 = vand.u32 %v3363, 4294901760
        %8301 = vmatmul.mubr.f32.gmra.mrb[0].mxu0 %v8300
        %v8302 = vpop.f32.mrb[0].mxu0
        %v8303 = vadd.f32 %v7874, %v8302
        %v8304 = vpop.f32.mrb[0].mxu0
        %8305 = vmatprep.mubr.f32.mxu0 0.0
        %v8306 = vand.u32 %v3364, 4294901760
        %8307 = vmatmul.mubr.f32.gmra.mrb[0].mxu0 %v8306
        %v8308 = vpop.f32.mrb[0].mxu0
        %v8309 = vadd.f32 %v7884, %v8308
        %v8310 = vpop.f32.mrb[0].mxu0
        %8311 = vmatprep.mubr.f32.mxu0 0.0
        %v8312 = vand.u32 %v3365, 4294901760
        %8313 = vmatmul.mubr.f32.gmra.mrb[0].mxu0 %v8312
        %v8314 = vpop.f32.mrb[0].mxu0
        %v8315 = vadd.f32 %v7894, %v8314
        %v8316 = vpop.f32.mrb[0].mxu0
        %8317 = vmatprep.mubr.f32.mxu0 0.0
        %v8318 = vand.u32 %v3366, 4294901760
        %8319 = vmatmul.mubr.f32.gmra.mrb[0].mxu0 %v8318
        %v8320 = vpop.f32.mrb[0].mxu0
        %v8321 = vadd.f32 %v7904, %v8320
        %v8322 = vpop.f32.mrb[0].mxu0
        %8323 = vmatprep.mubr.f32.mxu0 0.0
        %v8324 = vand.u32 %v3367, 4294901760
        %8325 = vmatmul.mubr.f32.gmra.mrb[0].mxu0 %v8324
        %v8326 = vpop.f32.mrb[0].mxu0
        %v8327 = vadd.f32 %v7914, %v8326
        %v8328 = vpop.f32.mrb[0].mxu0
        %8329 = vmatprep.mubr.f32.mxu0 0.0
        %v8330 = vand.u32 %v3368, 4294901760
        %8331 = vmatmul.mubr.f32.gmra.mrb[0].mxu0 %v8330
        %v8332 = vpop.f32.mrb[0].mxu0
        %v8333 = vadd.f32 %v7924, %v8332
        %v8334 = vpop.f32.mrb[0].mxu0
        %8335 = vmatprep.mubr.f32.mxu0 0.0
        %v8336 = vand.u32 %v3369, 4294901760
        %8337 = vmatmul.mubr.f32.gmra.mrb[0].mxu0 %v8336
        %v8338 = vpop.f32.mrb[0].mxu0
        %v8339 = vadd.f32 %v7934, %v8338
        %v8340 = vpop.f32.mrb[0].mxu0
        %8341 = vmatprep.mubr.f32.mxu0 0.0
        %v8342 = vand.u32 %v3370, 4294901760
        %8343 = vmatmul.mubr.f32.gmra.mrb[0].mxu0 %v8342
        %v8344 = vpop.f32.mrb[0].mxu0
        %v8345 = vadd.f32 %v7944, %v8344
        %v8346 = vpop.f32.mrb[0].mxu0
        %8347 = vmatprep.mubr.f32.mxu0 0.0
        %v8348 = vand.u32 %v3371, 4294901760
        %8349 = vmatmul.mubr.f32.gmra.mrb[0].mxu0 %v8348
        %v8350 = vpop.f32.mrb[0].mxu0
        %v8351 = vadd.f32 %v7954, %v8350
        %v8352 = vpop.f32.mrb[0].mxu0
        %8353 = vmatprep.mubr.f32.mxu0 0.0
        %v8354 = vand.u32 %v3372, 4294901760
        %8355 = vmatmul.mubr.f32.gmra.mrb[0].mxu0 %v8354
        %v8356 = vpop.f32.mrb[0].mxu0
        %v8357 = vadd.f32 %v7964, %v8356
        %v8358 = vpop.f32.mrb[0].mxu0
        %8359 = vmatprep.mubr.f32.mxu0 0.0
        %v8360 = vand.u32 %v3373, 4294901760
        %8361 = vmatmul.mubr.f32.gmra.mrb[0].mxu0 %v8360
        %v8362 = vpop.f32.mrb[0].mxu0
        %v8363 = vadd.f32 %v7974, %v8362
        %v8364 = vpop.f32.mrb[0].mxu0
        %8365 = vmatprep.mubr.f32.mxu0 0.0
        %v8366 = vand.u32 %v3374, 4294901760
        %8367 = vmatmul.mubr.f32.gmra.mrb[0].mxu0 %v8366
        %v8368 = vpop.f32.mrb[0].mxu0
        %v8369 = vadd.f32 %v7984, %v8368
        %v8370 = vpop.f32.mrb[0].mxu0
        %8371 = vmatprep.mubr.f32.mxu0 0.0
        %v8372 = vand.u32 %v3375, 4294901760
        %8373 = vmatmul.mubr.f32.gmra.mrb[0].mxu0 %v8372
        %v8374 = vpop.f32.mrb[0].mxu0
        %v8375 = vadd.f32 %v7994, %v8374
        %v8376 = vpop.f32.mrb[0].mxu0
        %8377 = vmatprep.mubr.f32.mxu0 0.0
        %v8378 = vand.u32 %v3376, 4294901760
        %8379 = vmatmul.mubr.f32.gmra.mrb[0].mxu0 %v8378
        %v8380 = vpop.f32.mrb[0].mxu0
        %v8381 = vadd.f32 %v8004, %v8380
        %v8382 = vpop.f32.mrb[0].mxu0
        %8383 = vmatprep.mubr.f32.mxu0 0.0
        %v8384 = vand.u32 %v3377, 4294901760
        %8385 = vmatmul.mubr.f32.gmra.mrb[0].mxu0 %v8384
        %v8386 = vpop.f32.mrb[0].mxu0
        %v8387 = vadd.f32 %v8014, %v8386
        %v8388 = vpop.f32.mrb[0].mxu0
        %8389 = vmatprep.mubr.f32.mxu0 0.0
        %v8390 = vand.u32 %v3378, 4294901760
        %8391 = vmatmul.mubr.f32.gmra.mrb[0].mxu0 %v8390
        %v8392 = vpop.f32.mrb[0].mxu0
        %v8393 = vadd.f32 %v8024, %v8392
        %v8394 = vpop.f32.mrb[0].mxu0
        %8395 = vmatprep.mubr.f32.mxu0 0.0
        %v8396 = vand.u32 %v3379, 4294901760
        %8397 = vmatmul.mubr.f32.gmra.mrb[0].mxu0 %v8396
        %v8398 = vpop.f32.mrb[0].mxu0
        %v8399 = vadd.f32 %v8034, %v8398
        %v8400 = vpop.f32.mrb[0].mxu0
        %8401 = vmatprep.mubr.f32.mxu0 0.0
        %v8402 = vand.u32 %v3380, 4294901760
        %8403 = vmatmul.mubr.f32.gmra.mrb[0].mxu0 %v8402
        %v8404 = vpop.f32.mrb[0].mxu0
        %v8405 = vadd.f32 %v8044, %v8404
        %v8406 = vpop.f32.mrb[0].mxu0
        %8407 = vmatprep.mubr.f32.mxu0 0.0
        %v8408 = vand.u32 %v3381, 4294901760
        %8409 = vmatmul.mubr.f32.gmra.mrb[0].mxu0 %v8408
        %v8410 = vpop.f32.mrb[0].mxu0
        %v8411 = vadd.f32 %v8054, %v8410
        %v8412 = vpop.f32.mrb[0].mxu0
        %8413 = vmatprep.mubr.f32.mxu0 0.0
        %v8414 = vand.u32 %v3382, 4294901760
        %8415 = vmatmul.mubr.f32.gmra.mrb[0].mxu0 %v8414
        %v8416 = vpop.f32.mrb[0].mxu0
        %v8417 = vadd.f32 %v8064, %v8416
        %v8418 = vpop.f32.mrb[0].mxu0
        %8419 = vmatprep.mubr.f32.mxu0 0.0
        %v8420 = vand.u32 %v3383, 4294901760
        %8421 = vmatmul.mubr.f32.gmra.mrb[0].mxu0 %v8420
        %v8422 = vpop.f32.mrb[0].mxu0
        %v8423 = vadd.f32 %v8074, %v8422
        %v8424 = vpop.f32.mrb[0].mxu0
        %8425 = vmatprep.mubr.f32.mxu0 0.0
        %v8426 = vand.u32 %v3384, 4294901760
        %8427 = vmatmul.mubr.f32.gmra.mrb[0].mxu0 %v8426
        %v8428 = vpop.f32.mrb[0].mxu0
        %v8429 = vadd.f32 %v8084, %v8428
        %v8430 = vpop.f32.mrb[0].mxu0
        %8431 = vmatprep.mubr.f32.mxu0 0.0
        %v8432 = vand.u32 %v3385, 4294901760
        %8433 = vmatmul.mubr.f32.gmra.mrb[0].mxu0 %v8432
        %v8434 = vpop.f32.mrb[0].mxu0
        %v8435 = vadd.f32 %v8094, %v8434
        %v8436 = vpop.f32.mrb[0].mxu0
        %8437 = vmatprep.mubr.f32.mxu0 0.0
        %v8438 = vand.u32 %v3386, 4294901760
        %8439 = vmatmul.mubr.f32.gmra.mrb[0].mxu0 %v8438
        %v8440 = vpop.f32.mrb[0].mxu0
        %v8441 = vadd.f32 %v8104, %v8440
        %v8442 = vpop.f32.mrb[0].mxu0
        %8443 = vdwg.mxu0
        %8444 = vmatprep.subr.mxu0 0.0
        %v8445 = vand.u32 %v5700, 4294901760
        %v8446 = vsub.f32 %v5700, %v8445
        %8447 = vmatpush1.msra.mxu0 %v8446
        %8448 = vmatprep.subr.mxu0 0.0
        %v8449 = vand.u32 %v5701, 4294901760
        %v8450 = vsub.f32 %v5701, %v8449
        %8451 = vmatpush1.msra.mxu0 %v8450
        %8452 = vmatprep.subr.mxu0 0.0
        %v8453 = vand.u32 %v5702, 4294901760
        %v8454 = vsub.f32 %v5702, %v8453
        %8455 = vmatpush1.msra.mxu0 %v8454
        %8456 = vmatprep.subr.mxu0 0.0
        %v8457 = vand.u32 %v5703, 4294901760
        %v8458 = vsub.f32 %v5703, %v8457
        %8459 = vmatpush1.msra.mxu0 %v8458
        %8460 = vmatprep.subr.mxu0 0.0
        %v8461 = vand.u32 %v5704, 4294901760
        %v8462 = vsub.f32 %v5704, %v8461
        %8463 = vmatpush1.msra.mxu0 %v8462
        %8464 = vmatprep.subr.mxu0 0.0
        %v8465 = vand.u32 %v5705, 4294901760
        %v8466 = vsub.f32 %v5705, %v8465
        %8467 = vmatpush1.msra.mxu0 %v8466
        %8468 = vmatprep.subr.mxu0 0.0
        %v8469 = vand.u32 %v5706, 4294901760
        %v8470 = vsub.f32 %v5706, %v8469
        %8471 = vmatpush1.msra.mxu0 %v8470
        %8472 = vmatprep.subr.mxu0 0.0
        %v8473 = vand.u32 %v5707, 4294901760
        %v8474 = vsub.f32 %v5707, %v8473
        %8475 = vmatpush1.msra.mxu0 %v8474
        %8476 = vmatprep.subr.mxu0 0.0
        %v8477 = vand.u32 %v5708, 4294901760
        %v8478 = vsub.f32 %v5708, %v8477
        %8479 = vmatpush1.msra.mxu0 %v8478
        %8480 = vmatprep.subr.mxu0 0.0
        %v8481 = vand.u32 %v5709, 4294901760
        %v8482 = vsub.f32 %v5709, %v8481
        %8483 = vmatpush1.msra.mxu0 %v8482
        %8484 = vmatprep.subr.mxu0 0.0
        %v8485 = vand.u32 %v5710, 4294901760
        %v8486 = vsub.f32 %v5710, %v8485
        %8487 = vmatpush1.msra.mxu0 %v8486
        %8488 = vmatprep.subr.mxu0 0.0
        %v8489 = vand.u32 %v5711, 4294901760
        %v8490 = vsub.f32 %v5711, %v8489
        %8491 = vmatpush1.msra.mxu0 %v8490
        %8492 = vmatprep.subr.mxu0 0.0
        %v8493 = vand.u32 %v5712, 4294901760
        %v8494 = vsub.f32 %v5712, %v8493
        %8495 = vmatpush1.msra.mxu0 %v8494
        %8496 = vmatprep.subr.mxu0 0.0
        %v8497 = vand.u32 %v5713, 4294901760
        %v8498 = vsub.f32 %v5713, %v8497
        %8499 = vmatpush1.msra.mxu0 %v8498
        %8500 = vmatprep.subr.mxu0 0.0
        %v8501 = vand.u32 %v5714, 4294901760
        %v8502 = vsub.f32 %v5714, %v8501
        %8503 = vmatpush1.msra.mxu0 %v8502
        %8504 = vmatprep.subr.mxu0 0.0
        %v8505 = vand.u32 %v5715, 4294901760
        %v8506 = vsub.f32 %v5715, %v8505
        %8507 = vmatpush1.msra.mxu0 %v8506
        %8508 = vmatprep.subr.mxu0 0.0
        %8509 = vmatpush1.msra.mxu0 0.0
        %8510 = vmatprep.subr.mxu0 0.0
        %8511 = vmatpush1.msra.mxu0 0.0
        %8512 = vmatprep.subr.mxu0 0.0
        %8513 = vmatpush1.msra.mxu0 0.0
        %8514 = vmatprep.subr.mxu0 0.0
        %8515 = vmatpush1.msra.mxu0 0.0
        %8516 = vmatprep.subr.mxu0 0.0
        %8517 = vmatpush1.msra.mxu0 0.0
        %8518 = vmatprep.subr.mxu0 0.0
        %8519 = vmatpush1.msra.mxu0 0.0
        %8520 = vmatprep.subr.mxu0 0.0
        %8521 = vmatpush1.msra.mxu0 0.0
        %8522 = vmatprep.subr.mxu0 0.0
        %8523 = vmatpush1.msra.mxu0 0.0
        %8524 = vmatprep.subr.mxu0 0.0
        %8525 = vmatpush1.msra.mxu0 0.0
        %8526 = vmatprep.subr.mxu0 0.0
        %8527 = vmatpush1.msra.mxu0 0.0
        %8528 = vmatprep.subr.mxu0 0.0
        %8529 = vmatpush1.msra.mxu0 0.0
        %8530 = vmatprep.subr.mxu0 0.0
        %8531 = vmatpush1.msra.mxu0 0.0
        %8532 = vmatprep.subr.mxu0 0.0
        %8533 = vmatpush1.msra.mxu0 0.0
        %8534 = vmatprep.subr.mxu0 0.0
        %8535 = vmatpush1.msra.mxu0 0.0
        %8536 = vmatprep.subr.mxu0 0.0
        %8537 = vmatpush1.msra.mxu0 0.0
        %8538 = vmatprep.subr.mxu0 0.0
        %8539 = vmatpush1.msra.mxu0 0.0
        %8540 = vmatprep.mubr.f32.mxu0 0.0
        %v8541 = vand.u32 %v3355, 4294901760
        %v8542 = vsub.f32 %v3355, %v8541
        %8543 = vmatmul.mubr.f32.gmra.mrb[0].mxu0 %v8542
        %v8544 = vpop.f32.mrb[0].mxu0
        %v8545 = vadd.f32 %v8255, %v8544
        %v8546 = vpop.f32.mrb[0].mxu0
        %8547 = vmatprep.mubr.f32.mxu0 0.0
        %v8548 = vand.u32 %v3356, 4294901760
        %v8549 = vsub.f32 %v3356, %v8548
        %8550 = vmatmul.mubr.f32.gmra.mrb[0].mxu0 %v8549
        %v8551 = vpop.f32.mrb[0].mxu0
        %v8552 = vadd.f32 %v8261, %v8551
        %v8553 = vpop.f32.mrb[0].mxu0
        %8554 = vmatprep.mubr.f32.mxu0 0.0
        %v8555 = vand.u32 %v3357, 4294901760
        %v8556 = vsub.f32 %v3357, %v8555
        %8557 = vmatmul.mubr.f32.gmra.mrb[0].mxu0 %v8556
        %v8558 = vpop.f32.mrb[0].mxu0
        %v8559 = vadd.f32 %v8267, %v8558
        %v8560 = vpop.f32.mrb[0].mxu0
        %8561 = vmatprep.mubr.f32.mxu0 0.0
        %v8562 = vand.u32 %v3358, 4294901760
        %v8563 = vsub.f32 %v3358, %v8562
        %8564 = vmatmul.mubr.f32.gmra.mrb[0].mxu0 %v8563
        %v8565 = vpop.f32.mrb[0].mxu0
        %v8566 = vadd.f32 %v8273, %v8565
        %v8567 = vpop.f32.mrb[0].mxu0
        %8568 = vmatprep.mubr.f32.mxu0 0.0
        %v8569 = vand.u32 %v3359, 4294901760
        %v8570 = vsub.f32 %v3359, %v8569
        %8571 = vmatmul.mubr.f32.gmra.mrb[0].mxu0 %v8570
        %v8572 = vpop.f32.mrb[0].mxu0
        %v8573 = vadd.f32 %v8279, %v8572
        %v8574 = vpop.f32.mrb[0].mxu0
        %8575 = vmatprep.mubr.f32.mxu0 0.0
        %v8576 = vand.u32 %v3360, 4294901760
        %v8577 = vsub.f32 %v3360, %v8576
        %8578 = vmatmul.mubr.f32.gmra.mrb[0].mxu0 %v8577
        %v8579 = vpop.f32.mrb[0].mxu0
        %v8580 = vadd.f32 %v8285, %v8579
        %v8581 = vpop.f32.mrb[0].mxu0
        %8582 = vmatprep.mubr.f32.mxu0 0.0
        %v8583 = vand.u32 %v3361, 4294901760
        %v8584 = vsub.f32 %v3361, %v8583
        %8585 = vmatmul.mubr.f32.gmra.mrb[0].mxu0 %v8584
        %v8586 = vpop.f32.mrb[0].mxu0
        %v8587 = vadd.f32 %v8291, %v8586
        %v8588 = vpop.f32.mrb[0].mxu0
        %8589 = vmatprep.mubr.f32.mxu0 0.0
        %v8590 = vand.u32 %v3362, 4294901760
        %v8591 = vsub.f32 %v3362, %v8590
        %8592 = vmatmul.mubr.f32.gmra.mrb[0].mxu0 %v8591
        %v8593 = vpop.f32.mrb[0].mxu0
        %v8594 = vadd.f32 %v8297, %v8593
        %v8595 = vpop.f32.mrb[0].mxu0
        %8596 = vmatprep.mubr.f32.mxu0 0.0
        %v8597 = vand.u32 %v3363, 4294901760
        %v8598 = vsub.f32 %v3363, %v8597
        %8599 = vmatmul.mubr.f32.gmra.mrb[0].mxu0 %v8598
        %v8600 = vpop.f32.mrb[0].mxu0
        %v8601 = vadd.f32 %v8303, %v8600
        %v8602 = vpop.f32.mrb[0].mxu0
        %8603 = vmatprep.mubr.f32.mxu0 0.0
        %v8604 = vand.u32 %v3364, 4294901760
        %v8605 = vsub.f32 %v3364, %v8604
        %8606 = vmatmul.mubr.f32.gmra.mrb[0].mxu0 %v8605
        %v8607 = vpop.f32.mrb[0].mxu0
        %v8608 = vadd.f32 %v8309, %v8607
        %v8609 = vpop.f32.mrb[0].mxu0
        %8610 = vmatprep.mubr.f32.mxu0 0.0
        %v8611 = vand.u32 %v3365, 4294901760
        %v8612 = vsub.f32 %v3365, %v8611
        %8613 = vmatmul.mubr.f32.gmra.mrb[0].mxu0 %v8612
        %v8614 = vpop.f32.mrb[0].mxu0
        %v8615 = vadd.f32 %v8315, %v8614
        %v8616 = vpop.f32.mrb[0].mxu0
        %8617 = vmatprep.mubr.f32.mxu0 0.0
        %v8618 = vand.u32 %v3366, 4294901760
        %v8619 = vsub.f32 %v3366, %v8618
        %8620 = vmatmul.mubr.f32.gmra.mrb[0].mxu0 %v8619
        %v8621 = vpop.f32.mrb[0].mxu0
        %v8622 = vadd.f32 %v8321, %v8621
        %v8623 = vpop.f32.mrb[0].mxu0
        %8624 = vmatprep.mubr.f32.mxu0 0.0
        %v8625 = vand.u32 %v3367, 4294901760
        %v8626 = vsub.f32 %v3367, %v8625
        %8627 = vmatmul.mubr.f32.gmra.mrb[0].mxu0 %v8626
        %v8628 = vpop.f32.mrb[0].mxu0
        %v8629 = vadd.f32 %v8327, %v8628
        %v8630 = vpop.f32.mrb[0].mxu0
        %8631 = vmatprep.mubr.f32.mxu0 0.0
        %v8632 = vand.u32 %v3368, 4294901760
        %v8633 = vsub.f32 %v3368, %v8632
        %8634 = vmatmul.mubr.f32.gmra.mrb[0].mxu0 %v8633
        %v8635 = vpop.f32.mrb[0].mxu0
        %v8636 = vadd.f32 %v8333, %v8635
        %v8637 = vpop.f32.mrb[0].mxu0
        %8638 = vmatprep.mubr.f32.mxu0 0.0
        %v8639 = vand.u32 %v3369, 4294901760
        %v8640 = vsub.f32 %v3369, %v8639
        %8641 = vmatmul.mubr.f32.gmra.mrb[0].mxu0 %v8640
        %v8642 = vpop.f32.mrb[0].mxu0
        %v8643 = vadd.f32 %v8339, %v8642
        %v8644 = vpop.f32.mrb[0].mxu0
        %8645 = vmatprep.mubr.f32.mxu0 0.0
        %v8646 = vand.u32 %v3370, 4294901760
        %v8647 = vsub.f32 %v3370, %v8646
        %8648 = vmatmul.mubr.f32.gmra.mrb[0].mxu0 %v8647
        %v8649 = vpop.f32.mrb[0].mxu0
        %v8650 = vadd.f32 %v8345, %v8649
        %v8651 = vpop.f32.mrb[0].mxu0
        %8652 = vmatprep.mubr.f32.mxu0 0.0
        %v8653 = vand.u32 %v3371, 4294901760
        %v8654 = vsub.f32 %v3371, %v8653
        %8655 = vmatmul.mubr.f32.gmra.mrb[0].mxu0 %v8654
        %v8656 = vpop.f32.mrb[0].mxu0
        %v8657 = vadd.f32 %v8351, %v8656
        %v8658 = vpop.f32.mrb[0].mxu0
        %8659 = vmatprep.mubr.f32.mxu0 0.0
        %v8660 = vand.u32 %v3372, 4294901760
        %v8661 = vsub.f32 %v3372, %v8660
        %8662 = vmatmul.mubr.f32.gmra.mrb[0].mxu0 %v8661
        %v8663 = vpop.f32.mrb[0].mxu0
        %v8664 = vadd.f32 %v8357, %v8663
        %v8665 = vpop.f32.mrb[0].mxu0
        %8666 = vmatprep.mubr.f32.mxu0 0.0
        %v8667 = vand.u32 %v3373, 4294901760
        %v8668 = vsub.f32 %v3373, %v8667
        %8669 = vmatmul.mubr.f32.gmra.mrb[0].mxu0 %v8668
        %v8670 = vpop.f32.mrb[0].mxu0
        %v8671 = vadd.f32 %v8363, %v8670
        %v8672 = vpop.f32.mrb[0].mxu0
        %8673 = vmatprep.mubr.f32.mxu0 0.0
        %v8674 = vand.u32 %v3374, 4294901760
        %v8675 = vsub.f32 %v3374, %v8674
        %8676 = vmatmul.mubr.f32.gmra.mrb[0].mxu0 %v8675
        %v8677 = vpop.f32.mrb[0].mxu0
        %v8678 = vadd.f32 %v8369, %v8677
        %v8679 = vpop.f32.mrb[0].mxu0
        %8680 = vmatprep.mubr.f32.mxu0 0.0
        %v8681 = vand.u32 %v3375, 4294901760
        %v8682 = vsub.f32 %v3375, %v8681
        %8683 = vmatmul.mubr.f32.gmra.mrb[0].mxu0 %v8682
        %v8684 = vpop.f32.mrb[0].mxu0
        %v8685 = vadd.f32 %v8375, %v8684
        %v8686 = vpop.f32.mrb[0].mxu0
        %8687 = vmatprep.mubr.f32.mxu0 0.0
        %v8688 = vand.u32 %v3376, 4294901760
        %v8689 = vsub.f32 %v3376, %v8688
        %8690 = vmatmul.mubr.f32.gmra.mrb[0].mxu0 %v8689
        %v8691 = vpop.f32.mrb[0].mxu0
        %v8692 = vadd.f32 %v8381, %v8691
        %v8693 = vpop.f32.mrb[0].mxu0
        %8694 = vmatprep.mubr.f32.mxu0 0.0
        %v8695 = vand.u32 %v3377, 4294901760
        %v8696 = vsub.f32 %v3377, %v8695
        %8697 = vmatmul.mubr.f32.gmra.mrb[0].mxu0 %v8696
        %v8698 = vpop.f32.mrb[0].mxu0
        %v8699 = vadd.f32 %v8387, %v8698
        %v8700 = vpop.f32.mrb[0].mxu0
        %8701 = vmatprep.mubr.f32.mxu0 0.0
        %v8702 = vand.u32 %v3378, 4294901760
        %v8703 = vsub.f32 %v3378, %v8702
        %8704 = vmatmul.mubr.f32.gmra.mrb[0].mxu0 %v8703
        %v8705 = vpop.f32.mrb[0].mxu0
        %v8706 = vadd.f32 %v8393, %v8705
        %v8707 = vpop.f32.mrb[0].mxu0
        %8708 = vmatprep.mubr.f32.mxu0 0.0
        %v8709 = vand.u32 %v3379, 4294901760
        %v8710 = vsub.f32 %v3379, %v8709
        %8711 = vmatmul.mubr.f32.gmra.mrb[0].mxu0 %v8710
        %v8712 = vpop.f32.mrb[0].mxu0
        %v8713 = vadd.f32 %v8399, %v8712
        %v8714 = vpop.f32.mrb[0].mxu0
        %8715 = vmatprep.mubr.f32.mxu0 0.0
        %v8716 = vand.u32 %v3380, 4294901760
        %v8717 = vsub.f32 %v3380, %v8716
        %8718 = vmatmul.mubr.f32.gmra.mrb[0].mxu0 %v8717
        %v8719 = vpop.f32.mrb[0].mxu0
        %v8720 = vadd.f32 %v8405, %v8719
        %v8721 = vpop.f32.mrb[0].mxu0
        %8722 = vmatprep.mubr.f32.mxu0 0.0
        %v8723 = vand.u32 %v3381, 4294901760
        %v8724 = vsub.f32 %v3381, %v8723
        %8725 = vmatmul.mubr.f32.gmra.mrb[0].mxu0 %v8724
        %v8726 = vpop.f32.mrb[0].mxu0
        %v8727 = vadd.f32 %v8411, %v8726
        %v8728 = vpop.f32.mrb[0].mxu0
        %8729 = vmatprep.mubr.f32.mxu0 0.0
        %v8730 = vand.u32 %v3382, 4294901760
        %v8731 = vsub.f32 %v3382, %v8730
        %8732 = vmatmul.mubr.f32.gmra.mrb[0].mxu0 %v8731
        %v8733 = vpop.f32.mrb[0].mxu0
        %v8734 = vadd.f32 %v8417, %v8733
        %v8735 = vpop.f32.mrb[0].mxu0
        %8736 = vmatprep.mubr.f32.mxu0 0.0
        %v8737 = vand.u32 %v3383, 4294901760
        %v8738 = vsub.f32 %v3383, %v8737
        %8739 = vmatmul.mubr.f32.gmra.mrb[0].mxu0 %v8738
        %v8740 = vpop.f32.mrb[0].mxu0
        %v8741 = vadd.f32 %v8423, %v8740
        %v8742 = vpop.f32.mrb[0].mxu0
        %8743 = vmatprep.mubr.f32.mxu0 0.0
        %v8744 = vand.u32 %v3384, 4294901760
        %v8745 = vsub.f32 %v3384, %v8744
        %8746 = vmatmul.mubr.f32.gmra.mrb[0].mxu0 %v8745
        %v8747 = vpop.f32.mrb[0].mxu0
        %v8748 = vadd.f32 %v8429, %v8747
        %v8749 = vpop.f32.mrb[0].mxu0
        %8750 = vmatprep.mubr.f32.mxu0 0.0
        %v8751 = vand.u32 %v3385, 4294901760
        %v8752 = vsub.f32 %v3385, %v8751
        %8753 = vmatmul.mubr.f32.gmra.mrb[0].mxu0 %v8752
        %v8754 = vpop.f32.mrb[0].mxu0
        %v8755 = vadd.f32 %v8435, %v8754
        %v8756 = vpop.f32.mrb[0].mxu0
        %8757 = vmatprep.mubr.f32.mxu0 0.0
        %v8758 = vand.u32 %v3386, 4294901760
        %v8759 = vsub.f32 %v3386, %v8758
        %8760 = vmatmul.mubr.f32.gmra.mrb[0].mxu0 %v8759
        %v8761 = vpop.f32.mrb[0].mxu0
        %v8762 = vadd.f32 %v8441, %v8761
        %v8763 = vpop.f32.mrb[0].mxu0
        %8764 = vdwg.mxu0
        %8765 = vmatprep.subr.mxu0 0.0
        %v8766 = vand.u32 %v5700, 4294901760
        %8767 = vmatpush1.msra.mxu0 %v8766
        %8768 = vmatprep.subr.mxu0 0.0
        %v8769 = vand.u32 %v5701, 4294901760
        %8770 = vmatpush1.msra.mxu0 %v8769
        %8771 = vmatprep.subr.mxu0 0.0
        %v8772 = vand.u32 %v5702, 4294901760
        %8773 = vmatpush1.msra.mxu0 %v8772
        %8774 = vmatprep.subr.mxu0 0.0
        %v8775 = vand.u32 %v5703, 4294901760
        %8776 = vmatpush1.msra.mxu0 %v8775
        %8777 = vmatprep.subr.mxu0 0.0
        %v8778 = vand.u32 %v5704, 4294901760
        %8779 = vmatpush1.msra.mxu0 %v8778
        %8780 = vmatprep.subr.mxu0 0.0
        %v8781 = vand.u32 %v5705, 4294901760
        %8782 = vmatpush1.msra.mxu0 %v8781
        %8783 = vmatprep.subr.mxu0 0.0
        %v8784 = vand.u32 %v5706, 4294901760
        %8785 = vmatpush1.msra.mxu0 %v8784
        %8786 = vmatprep.subr.mxu0 0.0
        %v8787 = vand.u32 %v5707, 4294901760
        %8788 = vmatpush1.msra.mxu0 %v8787
        %8789 = vmatprep.subr.mxu0 0.0
        %v8790 = vand.u32 %v5708, 4294901760
        %8791 = vmatpush1.msra.mxu0 %v8790
        %8792 = vmatprep.subr.mxu0 0.0
        %v8793 = vand.u32 %v5709, 4294901760
        %8794 = vmatpush1.msra.mxu0 %v8793
        %8795 = vmatprep.subr.mxu0 0.0
        %v8796 = vand.u32 %v5710, 4294901760
        %8797 = vmatpush1.msra.mxu0 %v8796
        %8798 = vmatprep.subr.mxu0 0.0
        %v8799 = vand.u32 %v5711, 4294901760
        %8800 = vmatpush1.msra.mxu0 %v8799
        %8801 = vmatprep.subr.mxu0 0.0
        %v8802 = vand.u32 %v5712, 4294901760
        %8803 = vmatpush1.msra.mxu0 %v8802
        %8804 = vmatprep.subr.mxu0 0.0
        %v8805 = vand.u32 %v5713, 4294901760
        %8806 = vmatpush1.msra.mxu0 %v8805
        %8807 = vmatprep.subr.mxu0 0.0
        %v8808 = vand.u32 %v5714, 4294901760
        %8809 = vmatpush1.msra.mxu0 %v8808
        %8810 = vmatprep.subr.mxu0 0.0
        %v8811 = vand.u32 %v5715, 4294901760
        %8812 = vmatpush1.msra.mxu0 %v8811
        %8813 = vmatprep.subr.mxu0 0.0
        %8814 = vmatpush1.msra.mxu0 0.0
        %8815 = vmatprep.subr.mxu0 0.0
        %8816 = vmatpush1.msra.mxu0 0.0
        %8817 = vmatprep.subr.mxu0 0.0
        %8818 = vmatpush1.msra.mxu0 0.0
        %8819 = vmatprep.subr.mxu0 0.0
        %8820 = vmatpush1.msra.mxu0 0.0
        %8821 = vmatprep.subr.mxu0 0.0
        %8822 = vmatpush1.msra.mxu0 0.0
        %8823 = vmatprep.subr.mxu0 0.0
        %8824 = vmatpush1.msra.mxu0 0.0
        %8825 = vmatprep.subr.mxu0 0.0
        %8826 = vmatpush1.msra.mxu0 0.0
        %8827 = vmatprep.subr.mxu0 0.0
        %8828 = vmatpush1.msra.mxu0 0.0
        %8829 = vmatprep.subr.mxu0 0.0
        %8830 = vmatpush1.msra.mxu0 0.0
        %8831 = vmatprep.subr.mxu0 0.0
        %8832 = vmatpush1.msra.mxu0 0.0
        %8833 = vmatprep.subr.mxu0 0.0
        %8834 = vmatpush1.msra.mxu0 0.0
        %8835 = vmatprep.subr.mxu0 0.0
        %8836 = vmatpush1.msra.mxu0 0.0
        %8837 = vmatprep.subr.mxu0 0.0
        %8838 = vmatpush1.msra.mxu0 0.0
        %8839 = vmatprep.subr.mxu0 0.0
        %8840 = vmatpush1.msra.mxu0 0.0
        %8841 = vmatprep.subr.mxu0 0.0
        %8842 = vmatpush1.msra.mxu0 0.0
        %8843 = vmatprep.subr.mxu0 0.0
        %8844 = vmatpush1.msra.mxu0 0.0
        %8845 = vmatprep.mubr.f32.mxu0 0.0
        %v8846 = vand.u32 %v3355, 4294901760
        %v8847 = vsub.f32 %v3355, %v8846
        %v8848 = vand.u32 %v8847, 4294901760
        %8849 = vmatmul.mubr.f32.gmra.mrb[0].mxu0 %v8848
        %v8850 = vpop.f32.mrb[0].mxu0
        %v8851 = vadd.f32 %v8545, %v8850
        %v8852 = vpop.f32.mrb[0].mxu0
        %8853 = vmatprep.mubr.f32.mxu0 0.0
        %v8854 = vand.u32 %v3356, 4294901760
        %v8855 = vsub.f32 %v3356, %v8854
        %v8856 = vand.u32 %v8855, 4294901760
        %8857 = vmatmul.mubr.f32.gmra.mrb[0].mxu0 %v8856
        %v8858 = vpop.f32.mrb[0].mxu0
        %v8859 = vadd.f32 %v8552, %v8858
        %v8860 = vpop.f32.mrb[0].mxu0
        %8861 = vmatprep.mubr.f32.mxu0 0.0
        %v8862 = vand.u32 %v3357, 4294901760
        %v8863 = vsub.f32 %v3357, %v8862
        %v8864 = vand.u32 %v8863, 4294901760
        %8865 = vmatmul.mubr.f32.gmra.mrb[0].mxu0 %v8864
        %v8866 = vpop.f32.mrb[0].mxu0
        %v8867 = vadd.f32 %v8559, %v8866
        %v8868 = vpop.f32.mrb[0].mxu0
        %8869 = vmatprep.mubr.f32.mxu0 0.0
        %v8870 = vand.u32 %v3358, 4294901760
        %v8871 = vsub.f32 %v3358, %v8870
        %v8872 = vand.u32 %v8871, 4294901760
        %8873 = vmatmul.mubr.f32.gmra.mrb[0].mxu0 %v8872
        %v8874 = vpop.f32.mrb[0].mxu0
        %v8875 = vadd.f32 %v8566, %v8874
        %v8876 = vpop.f32.mrb[0].mxu0
        %8877 = vmatprep.mubr.f32.mxu0 0.0
        %v8878 = vand.u32 %v3359, 4294901760
        %v8879 = vsub.f32 %v3359, %v8878
        %v8880 = vand.u32 %v8879, 4294901760
        %8881 = vmatmul.mubr.f32.gmra.mrb[0].mxu0 %v8880
        %v8882 = vpop.f32.mrb[0].mxu0
        %v8883 = vadd.f32 %v8573, %v8882
        %v8884 = vpop.f32.mrb[0].mxu0
        %8885 = vmatprep.mubr.f32.mxu0 0.0
        %v8886 = vand.u32 %v3360, 4294901760
        %v8887 = vsub.f32 %v3360, %v8886
        %v8888 = vand.u32 %v8887, 4294901760
        %8889 = vmatmul.mubr.f32.gmra.mrb[0].mxu0 %v8888
        %v8890 = vpop.f32.mrb[0].mxu0
        %v8891 = vadd.f32 %v8580, %v8890
        %v8892 = vpop.f32.mrb[0].mxu0
        %8893 = vmatprep.mubr.f32.mxu0 0.0
        %v8894 = vand.u32 %v3361, 4294901760
        %v8895 = vsub.f32 %v3361, %v8894
        %v8896 = vand.u32 %v8895, 4294901760
        %8897 = vmatmul.mubr.f32.gmra.mrb[0].mxu0 %v8896
        %v8898 = vpop.f32.mrb[0].mxu0
        %v8899 = vadd.f32 %v8587, %v8898
        %v8900 = vpop.f32.mrb[0].mxu0
        %8901 = vmatprep.mubr.f32.mxu0 0.0
        %v8902 = vand.u32 %v3362, 4294901760
        %v8903 = vsub.f32 %v3362, %v8902
        %v8904 = vand.u32 %v8903, 4294901760
        %8905 = vmatmul.mubr.f32.gmra.mrb[0].mxu0 %v8904
        %v8906 = vpop.f32.mrb[0].mxu0
        %v8907 = vadd.f32 %v8594, %v8906
        %v8908 = vpop.f32.mrb[0].mxu0
        %8909 = vmatprep.mubr.f32.mxu0 0.0
        %v8910 = vand.u32 %v3363, 4294901760
        %v8911 = vsub.f32 %v3363, %v8910
        %v8912 = vand.u32 %v8911, 4294901760
        %8913 = vmatmul.mubr.f32.gmra.mrb[0].mxu0 %v8912
        %v8914 = vpop.f32.mrb[0].mxu0
        %v8915 = vadd.f32 %v8601, %v8914
        %v8916 = vpop.f32.mrb[0].mxu0
        %8917 = vmatprep.mubr.f32.mxu0 0.0
        %v8918 = vand.u32 %v3364, 4294901760
        %v8919 = vsub.f32 %v3364, %v8918
        %v8920 = vand.u32 %v8919, 4294901760
        %8921 = vmatmul.mubr.f32.gmra.mrb[0].mxu0 %v8920
        %v8922 = vpop.f32.mrb[0].mxu0
        %v8923 = vadd.f32 %v8608, %v8922
        %v8924 = vpop.f32.mrb[0].mxu0
        %8925 = vmatprep.mubr.f32.mxu0 0.0
        %v8926 = vand.u32 %v3365, 4294901760
        %v8927 = vsub.f32 %v3365, %v8926
        %v8928 = vand.u32 %v8927, 4294901760
        %8929 = vmatmul.mubr.f32.gmra.mrb[0].mxu0 %v8928
        %v8930 = vpop.f32.mrb[0].mxu0
        %v8931 = vadd.f32 %v8615, %v8930
        %v8932 = vpop.f32.mrb[0].mxu0
        %8933 = vmatprep.mubr.f32.mxu0 0.0
        %v8934 = vand.u32 %v3366, 4294901760
        %v8935 = vsub.f32 %v3366, %v8934
        %v8936 = vand.u32 %v8935, 4294901760
        %8937 = vmatmul.mubr.f32.gmra.mrb[0].mxu0 %v8936
        %v8938 = vpop.f32.mrb[0].mxu0
        %v8939 = vadd.f32 %v8622, %v8938
        %v8940 = vpop.f32.mrb[0].mxu0
        %8941 = vmatprep.mubr.f32.mxu0 0.0
        %v8942 = vand.u32 %v3367, 4294901760
        %v8943 = vsub.f32 %v3367, %v8942
        %v8944 = vand.u32 %v8943, 4294901760
        %8945 = vmatmul.mubr.f32.gmra.mrb[0].mxu0 %v8944
        %v8946 = vpop.f32.mrb[0].mxu0
        %v8947 = vadd.f32 %v8629, %v8946
        %v8948 = vpop.f32.mrb[0].mxu0
        %8949 = vmatprep.mubr.f32.mxu0 0.0
        %v8950 = vand.u32 %v3368, 4294901760
        %v8951 = vsub.f32 %v3368, %v8950
        %v8952 = vand.u32 %v8951, 4294901760
        %8953 = vmatmul.mubr.f32.gmra.mrb[0].mxu0 %v8952
        %v8954 = vpop.f32.mrb[0].mxu0
        %v8955 = vadd.f32 %v8636, %v8954
        %v8956 = vpop.f32.mrb[0].mxu0
        %8957 = vmatprep.mubr.f32.mxu0 0.0
        %v8958 = vand.u32 %v3369, 4294901760
        %v8959 = vsub.f32 %v3369, %v8958
        %v8960 = vand.u32 %v8959, 4294901760
        %8961 = vmatmul.mubr.f32.gmra.mrb[0].mxu0 %v8960
        %v8962 = vpop.f32.mrb[0].mxu0
        %v8963 = vadd.f32 %v8643, %v8962
        %v8964 = vpop.f32.mrb[0].mxu0
        %8965 = vmatprep.mubr.f32.mxu0 0.0
        %v8966 = vand.u32 %v3370, 4294901760
        %v8967 = vsub.f32 %v3370, %v8966
        %v8968 = vand.u32 %v8967, 4294901760
        %8969 = vmatmul.mubr.f32.gmra.mrb[0].mxu0 %v8968
        %v8970 = vpop.f32.mrb[0].mxu0
        %v8971 = vadd.f32 %v8650, %v8970
        %v8972 = vpop.f32.mrb[0].mxu0
        %8973 = vmatprep.mubr.f32.mxu0 0.0
        %v8974 = vand.u32 %v3371, 4294901760
        %v8975 = vsub.f32 %v3371, %v8974
        %v8976 = vand.u32 %v8975, 4294901760
        %8977 = vmatmul.mubr.f32.gmra.mrb[0].mxu0 %v8976
        %v8978 = vpop.f32.mrb[0].mxu0
        %v8979 = vadd.f32 %v8657, %v8978
        %v8980 = vpop.f32.mrb[0].mxu0
        %8981 = vmatprep.mubr.f32.mxu0 0.0
        %v8982 = vand.u32 %v3372, 4294901760
        %v8983 = vsub.f32 %v3372, %v8982
        %v8984 = vand.u32 %v8983, 4294901760
        %8985 = vmatmul.mubr.f32.gmra.mrb[0].mxu0 %v8984
        %v8986 = vpop.f32.mrb[0].mxu0
        %v8987 = vadd.f32 %v8664, %v8986
        %v8988 = vpop.f32.mrb[0].mxu0
        %8989 = vmatprep.mubr.f32.mxu0 0.0
        %v8990 = vand.u32 %v3373, 4294901760
        %v8991 = vsub.f32 %v3373, %v8990
        %v8992 = vand.u32 %v8991, 4294901760
        %8993 = vmatmul.mubr.f32.gmra.mrb[0].mxu0 %v8992
        %v8994 = vpop.f32.mrb[0].mxu0
        %v8995 = vadd.f32 %v8671, %v8994
        %v8996 = vpop.f32.mrb[0].mxu0
        %8997 = vmatprep.mubr.f32.mxu0 0.0
        %v8998 = vand.u32 %v3374, 4294901760
        %v8999 = vsub.f32 %v3374, %v8998
        %v9000 = vand.u32 %v8999, 4294901760
        %9001 = vmatmul.mubr.f32.gmra.mrb[0].mxu0 %v9000
        %v9002 = vpop.f32.mrb[0].mxu0
        %v9003 = vadd.f32 %v8678, %v9002
        %v9004 = vpop.f32.mrb[0].mxu0
        %9005 = vmatprep.mubr.f32.mxu0 0.0
        %v9006 = vand.u32 %v3375, 4294901760
        %v9007 = vsub.f32 %v3375, %v9006
        %v9008 = vand.u32 %v9007, 4294901760
        %9009 = vmatmul.mubr.f32.gmra.mrb[0].mxu0 %v9008
        %v9010 = vpop.f32.mrb[0].mxu0
        %v9011 = vadd.f32 %v8685, %v9010
        %v9012 = vpop.f32.mrb[0].mxu0
        %9013 = vmatprep.mubr.f32.mxu0 0.0
        %v9014 = vand.u32 %v3376, 4294901760
        %v9015 = vsub.f32 %v3376, %v9014
        %v9016 = vand.u32 %v9015, 4294901760
        %9017 = vmatmul.mubr.f32.gmra.mrb[0].mxu0 %v9016
        %v9018 = vpop.f32.mrb[0].mxu0
        %v9019 = vadd.f32 %v8692, %v9018
        %v9020 = vpop.f32.mrb[0].mxu0
        %9021 = vmatprep.mubr.f32.mxu0 0.0
        %v9022 = vand.u32 %v3377, 4294901760
        %v9023 = vsub.f32 %v3377, %v9022
        %v9024 = vand.u32 %v9023, 4294901760
        %9025 = vmatmul.mubr.f32.gmra.mrb[0].mxu0 %v9024
        %v9026 = vpop.f32.mrb[0].mxu0
        %v9027 = vadd.f32 %v8699, %v9026
        %v9028 = vpop.f32.mrb[0].mxu0
        %9029 = vmatprep.mubr.f32.mxu0 0.0
        %v9030 = vand.u32 %v3378, 4294901760
        %v9031 = vsub.f32 %v3378, %v9030
        %v9032 = vand.u32 %v9031, 4294901760
        %9033 = vmatmul.mubr.f32.gmra.mrb[0].mxu0 %v9032
        %v9034 = vpop.f32.mrb[0].mxu0
        %v9035 = vadd.f32 %v8706, %v9034
        %v9036 = vpop.f32.mrb[0].mxu0
        %9037 = vmatprep.mubr.f32.mxu0 0.0
        %v9038 = vand.u32 %v3379, 4294901760
        %v9039 = vsub.f32 %v3379, %v9038
        %v9040 = vand.u32 %v9039, 4294901760
        %9041 = vmatmul.mubr.f32.gmra.mrb[0].mxu0 %v9040
        %v9042 = vpop.f32.mrb[0].mxu0
        %v9043 = vadd.f32 %v8713, %v9042
        %v9044 = vpop.f32.mrb[0].mxu0
        %9045 = vmatprep.mubr.f32.mxu0 0.0
        %v9046 = vand.u32 %v3380, 4294901760
        %v9047 = vsub.f32 %v3380, %v9046
        %v9048 = vand.u32 %v9047, 4294901760
        %9049 = vmatmul.mubr.f32.gmra.mrb[0].mxu0 %v9048
        %v9050 = vpop.f32.mrb[0].mxu0
        %v9051 = vadd.f32 %v8720, %v9050
        %v9052 = vpop.f32.mrb[0].mxu0
        %9053 = vmatprep.mubr.f32.mxu0 0.0
        %v9054 = vand.u32 %v3381, 4294901760
        %v9055 = vsub.f32 %v3381, %v9054
        %v9056 = vand.u32 %v9055, 4294901760
        %9057 = vmatmul.mubr.f32.gmra.mrb[0].mxu0 %v9056
        %v9058 = vpop.f32.mrb[0].mxu0
        %v9059 = vadd.f32 %v8727, %v9058
        %v9060 = vpop.f32.mrb[0].mxu0
        %9061 = vmatprep.mubr.f32.mxu0 0.0
        %v9062 = vand.u32 %v3382, 4294901760
        %v9063 = vsub.f32 %v3382, %v9062
        %v9064 = vand.u32 %v9063, 4294901760
        %9065 = vmatmul.mubr.f32.gmra.mrb[0].mxu0 %v9064
        %v9066 = vpop.f32.mrb[0].mxu0
        %v9067 = vadd.f32 %v8734, %v9066
        %v9068 = vpop.f32.mrb[0].mxu0
        %9069 = vmatprep.mubr.f32.mxu0 0.0
        %v9070 = vand.u32 %v3383, 4294901760
        %v9071 = vsub.f32 %v3383, %v9070
        %v9072 = vand.u32 %v9071, 4294901760
        %9073 = vmatmul.mubr.f32.gmra.mrb[0].mxu0 %v9072
        %v9074 = vpop.f32.mrb[0].mxu0
        %v9075 = vadd.f32 %v8741, %v9074
        %v9076 = vpop.f32.mrb[0].mxu0
        %9077 = vmatprep.mubr.f32.mxu0 0.0
        %v9078 = vand.u32 %v3384, 4294901760
        %v9079 = vsub.f32 %v3384, %v9078
        %v9080 = vand.u32 %v9079, 4294901760
        %9081 = vmatmul.mubr.f32.gmra.mrb[0].mxu0 %v9080
        %v9082 = vpop.f32.mrb[0].mxu0
        %v9083 = vadd.f32 %v8748, %v9082
        %v9084 = vpop.f32.mrb[0].mxu0
        %9085 = vmatprep.mubr.f32.mxu0 0.0
        %v9086 = vand.u32 %v3385, 4294901760
        %v9087 = vsub.f32 %v3385, %v9086
        %v9088 = vand.u32 %v9087, 4294901760
        %9089 = vmatmul.mubr.f32.gmra.mrb[0].mxu0 %v9088
        %v9090 = vpop.f32.mrb[0].mxu0
        %v9091 = vadd.f32 %v8755, %v9090
        %v9092 = vpop.f32.mrb[0].mxu0
        %9093 = vmatprep.mubr.f32.mxu0 0.0
        %v9094 = vand.u32 %v3386, 4294901760
        %v9095 = vsub.f32 %v3386, %v9094
        %v9096 = vand.u32 %v9095, 4294901760
        %9097 = vmatmul.mubr.f32.gmra.mrb[0].mxu0 %v9096
        %v9098 = vpop.f32.mrb[0].mxu0
        %v9099 = vadd.f32 %v8762, %v9098
        %v9100 = vpop.f32.mrb[0].mxu0
        %9101 = vdwg.mxu0
        %9102 = vmatprep.subr.mxu0 0.0
        %v9103 = vand.u32 %v5700, 4294901760
        %v9104 = vsub.f32 %v5700, %v9103
        %v9105 = vand.u32 %v9104, 4294901760
        %9106 = vmatpush1.msra.mxu0 %v9105
        %9107 = vmatprep.subr.mxu0 0.0
        %v9108 = vand.u32 %v5701, 4294901760
        %v9109 = vsub.f32 %v5701, %v9108
        %v9110 = vand.u32 %v9109, 4294901760
        %9111 = vmatpush1.msra.mxu0 %v9110
        %9112 = vmatprep.subr.mxu0 0.0
        %v9113 = vand.u32 %v5702, 4294901760
        %v9114 = vsub.f32 %v5702, %v9113
        %v9115 = vand.u32 %v9114, 4294901760
        %9116 = vmatpush1.msra.mxu0 %v9115
        %9117 = vmatprep.subr.mxu0 0.0
        %v9118 = vand.u32 %v5703, 4294901760
        %v9119 = vsub.f32 %v5703, %v9118
        %v9120 = vand.u32 %v9119, 4294901760
        %9121 = vmatpush1.msra.mxu0 %v9120
        %9122 = vmatprep.subr.mxu0 0.0
        %v9123 = vand.u32 %v5704, 4294901760
        %v9124 = vsub.f32 %v5704, %v9123
        %v9125 = vand.u32 %v9124, 4294901760
        %9126 = vmatpush1.msra.mxu0 %v9125
        %9127 = vmatprep.subr.mxu0 0.0
        %v9128 = vand.u32 %v5705, 4294901760
        %v9129 = vsub.f32 %v5705, %v9128
        %v9130 = vand.u32 %v9129, 4294901760
        %9131 = vmatpush1.msra.mxu0 %v9130
        %9132 = vmatprep.subr.mxu0 0.0
        %v9133 = vand.u32 %v5706, 4294901760
        %v9134 = vsub.f32 %v5706, %v9133
        %v9135 = vand.u32 %v9134, 4294901760
        %9136 = vmatpush1.msra.mxu0 %v9135
        %9137 = vmatprep.subr.mxu0 0.0
        %v9138 = vand.u32 %v5707, 4294901760
        %v9139 = vsub.f32 %v5707, %v9138
        %v9140 = vand.u32 %v9139, 4294901760
        %9141 = vmatpush1.msra.mxu0 %v9140
        %9142 = vmatprep.subr.mxu0 0.0
        %v9143 = vand.u32 %v5708, 4294901760
        %v9144 = vsub.f32 %v5708, %v9143
        %v9145 = vand.u32 %v9144, 4294901760
        %9146 = vmatpush1.msra.mxu0 %v9145
        %9147 = vmatprep.subr.mxu0 0.0
        %v9148 = vand.u32 %v5709, 4294901760
        %v9149 = vsub.f32 %v5709, %v9148
        %v9150 = vand.u32 %v9149, 4294901760
        %9151 = vmatpush1.msra.mxu0 %v9150
        %9152 = vmatprep.subr.mxu0 0.0
        %v9153 = vand.u32 %v5710, 4294901760
        %v9154 = vsub.f32 %v5710, %v9153
        %v9155 = vand.u32 %v9154, 4294901760
        %9156 = vmatpush1.msra.mxu0 %v9155
        %9157 = vmatprep.subr.mxu0 0.0
        %v9158 = vand.u32 %v5711, 4294901760
        %v9159 = vsub.f32 %v5711, %v9158
        %v9160 = vand.u32 %v9159, 4294901760
        %9161 = vmatpush1.msra.mxu0 %v9160
        %9162 = vmatprep.subr.mxu0 0.0
        %v9163 = vand.u32 %v5712, 4294901760
        %v9164 = vsub.f32 %v5712, %v9163
        %v9165 = vand.u32 %v9164, 4294901760
        %9166 = vmatpush1.msra.mxu0 %v9165
        %9167 = vmatprep.subr.mxu0 0.0
        %v9168 = vand.u32 %v5713, 4294901760
        %v9169 = vsub.f32 %v5713, %v9168
        %v9170 = vand.u32 %v9169, 4294901760
        %9171 = vmatpush1.msra.mxu0 %v9170
        %9172 = vmatprep.subr.mxu0 0.0
        %v9173 = vand.u32 %v5714, 4294901760
        %v9174 = vsub.f32 %v5714, %v9173
        %v9175 = vand.u32 %v9174, 4294901760
        %9176 = vmatpush1.msra.mxu0 %v9175
        %9177 = vmatprep.subr.mxu0 0.0
        %v9178 = vand.u32 %v5715, 4294901760
        %v9179 = vsub.f32 %v5715, %v9178
        %v9180 = vand.u32 %v9179, 4294901760
        %9181 = vmatpush1.msra.mxu0 %v9180
        %9182 = vmatprep.subr.mxu0 0.0
        %9183 = vmatpush1.msra.mxu0 0.0
        %9184 = vmatprep.subr.mxu0 0.0
        %9185 = vmatpush1.msra.mxu0 0.0
        %9186 = vmatprep.subr.mxu0 0.0
        %9187 = vmatpush1.msra.mxu0 0.0
        %9188 = vmatprep.subr.mxu0 0.0
        %9189 = vmatpush1.msra.mxu0 0.0
        %9190 = vmatprep.subr.mxu0 0.0
        %9191 = vmatpush1.msra.mxu0 0.0
        %9192 = vmatprep.subr.mxu0 0.0
        %9193 = vmatpush1.msra.mxu0 0.0
        %9194 = vmatprep.subr.mxu0 0.0
        %9195 = vmatpush1.msra.mxu0 0.0
        %9196 = vmatprep.subr.mxu0 0.0
        %9197 = vmatpush1.msra.mxu0 0.0
        %9198 = vmatprep.subr.mxu0 0.0
        %9199 = vmatpush1.msra.mxu0 0.0
        %9200 = vmatprep.subr.mxu0 0.0
        %9201 = vmatpush1.msra.mxu0 0.0
        %9202 = vmatprep.subr.mxu0 0.0
        %9203 = vmatpush1.msra.mxu0 0.0
        %9204 = vmatprep.subr.mxu0 0.0
        %9205 = vmatpush1.msra.mxu0 0.0
        %9206 = vmatprep.subr.mxu0 0.0
        %9207 = vmatpush1.msra.mxu0 0.0
        %9208 = vmatprep.subr.mxu0 0.0
        %9209 = vmatpush1.msra.mxu0 0.0
        %9210 = vmatprep.subr.mxu0 0.0
        %9211 = vmatpush1.msra.mxu0 0.0
        %9212 = vmatprep.subr.mxu0 0.0
        %9213 = vmatpush1.msra.mxu0 0.0
        %9214 = vmatprep.mubr.f32.mxu0 0.0
        %v9215 = vand.u32 %v3355, 4294901760
        %9216 = vmatmul.mubr.f32.gmra.mrb[0].mxu0 %v9215
        %v9217 = vpop.f32.mrb[0].mxu0
        %v9218 = vadd.f32 %v8851, %v9217
        %v9219 = vpop.f32.mrb[0].mxu0
        %9220 = vmatprep.mubr.f32.mxu0 0.0
        %v9221 = vand.u32 %v3356, 4294901760
        %9222 = vmatmul.mubr.f32.gmra.mrb[0].mxu0 %v9221
        %v9223 = vpop.f32.mrb[0].mxu0
        %v9224 = vadd.f32 %v8859, %v9223
        %v9225 = vpop.f32.mrb[0].mxu0
        %9226 = vmatprep.mubr.f32.mxu0 0.0
        %v9227 = vand.u32 %v3357, 4294901760
        %9228 = vmatmul.mubr.f32.gmra.mrb[0].mxu0 %v9227
        %v9229 = vpop.f32.mrb[0].mxu0
        %v9230 = vadd.f32 %v8867, %v9229
        %v9231 = vpop.f32.mrb[0].mxu0
        %9232 = vmatprep.mubr.f32.mxu0 0.0
        %v9233 = vand.u32 %v3358, 4294901760
        %9234 = vmatmul.mubr.f32.gmra.mrb[0].mxu0 %v9233
        %v9235 = vpop.f32.mrb[0].mxu0
        %v9236 = vadd.f32 %v8875, %v9235
        %v9237 = vpop.f32.mrb[0].mxu0
        %9238 = vmatprep.mubr.f32.mxu0 0.0
        %v9239 = vand.u32 %v3359, 4294901760
        %9240 = vmatmul.mubr.f32.gmra.mrb[0].mxu0 %v9239
        %v9241 = vpop.f32.mrb[0].mxu0
        %v9242 = vadd.f32 %v8883, %v9241
        %v9243 = vpop.f32.mrb[0].mxu0
        %9244 = vmatprep.mubr.f32.mxu0 0.0
        %v9245 = vand.u32 %v3360, 4294901760
        %9246 = vmatmul.mubr.f32.gmra.mrb[0].mxu0 %v9245
        %v9247 = vpop.f32.mrb[0].mxu0
        %v9248 = vadd.f32 %v8891, %v9247
        %v9249 = vpop.f32.mrb[0].mxu0
        %9250 = vmatprep.mubr.f32.mxu0 0.0
        %v9251 = vand.u32 %v3361, 4294901760
        %9252 = vmatmul.mubr.f32.gmra.mrb[0].mxu0 %v9251
        %v9253 = vpop.f32.mrb[0].mxu0
        %v9254 = vadd.f32 %v8899, %v9253
        %v9255 = vpop.f32.mrb[0].mxu0
        %9256 = vmatprep.mubr.f32.mxu0 0.0
        %v9257 = vand.u32 %v3362, 4294901760
        %9258 = vmatmul.mubr.f32.gmra.mrb[0].mxu0 %v9257
        %v9259 = vpop.f32.mrb[0].mxu0
        %v9260 = vadd.f32 %v8907, %v9259
        %v9261 = vpop.f32.mrb[0].mxu0
        %9262 = vmatprep.mubr.f32.mxu0 0.0
        %v9263 = vand.u32 %v3363, 4294901760
        %9264 = vmatmul.mubr.f32.gmra.mrb[0].mxu0 %v9263
        %v9265 = vpop.f32.mrb[0].mxu0
        %v9266 = vadd.f32 %v8915, %v9265
        %v9267 = vpop.f32.mrb[0].mxu0
        %9268 = vmatprep.mubr.f32.mxu0 0.0
        %v9269 = vand.u32 %v3364, 4294901760
        %9270 = vmatmul.mubr.f32.gmra.mrb[0].mxu0 %v9269
        %v9271 = vpop.f32.mrb[0].mxu0
        %v9272 = vadd.f32 %v8923, %v9271
        %v9273 = vpop.f32.mrb[0].mxu0
        %9274 = vmatprep.mubr.f32.mxu0 0.0
        %v9275 = vand.u32 %v3365, 4294901760
        %9276 = vmatmul.mubr.f32.gmra.mrb[0].mxu0 %v9275
        %v9277 = vpop.f32.mrb[0].mxu0
        %v9278 = vadd.f32 %v8931, %v9277
        %v9279 = vpop.f32.mrb[0].mxu0
        %9280 = vmatprep.mubr.f32.mxu0 0.0
        %v9281 = vand.u32 %v3366, 4294901760
        %9282 = vmatmul.mubr.f32.gmra.mrb[0].mxu0 %v9281
        %v9283 = vpop.f32.mrb[0].mxu0
        %v9284 = vadd.f32 %v8939, %v9283
        %v9285 = vpop.f32.mrb[0].mxu0
        %9286 = vmatprep.mubr.f32.mxu0 0.0
        %v9287 = vand.u32 %v3367, 4294901760
        %9288 = vmatmul.mubr.f32.gmra.mrb[0].mxu0 %v9287
        %v9289 = vpop.f32.mrb[0].mxu0
        %v9290 = vadd.f32 %v8947, %v9289
        %v9291 = vpop.f32.mrb[0].mxu0
        %9292 = vmatprep.mubr.f32.mxu0 0.0
        %v9293 = vand.u32 %v3368, 4294901760
        %9294 = vmatmul.mubr.f32.gmra.mrb[0].mxu0 %v9293
        %v9295 = vpop.f32.mrb[0].mxu0
        %v9296 = vadd.f32 %v8955, %v9295
        %v9297 = vpop.f32.mrb[0].mxu0
        %9298 = vmatprep.mubr.f32.mxu0 0.0
        %v9299 = vand.u32 %v3369, 4294901760
        %9300 = vmatmul.mubr.f32.gmra.mrb[0].mxu0 %v9299
        %v9301 = vpop.f32.mrb[0].mxu0
        %v9302 = vadd.f32 %v8963, %v9301
        %v9303 = vpop.f32.mrb[0].mxu0
        %9304 = vmatprep.mubr.f32.mxu0 0.0
        %v9305 = vand.u32 %v3370, 4294901760
        %9306 = vmatmul.mubr.f32.gmra.mrb[0].mxu0 %v9305
        %v9307 = vpop.f32.mrb[0].mxu0
        %v9308 = vadd.f32 %v8971, %v9307
        %v9309 = vpop.f32.mrb[0].mxu0
        %9310 = vmatprep.mubr.f32.mxu0 0.0
        %v9311 = vand.u32 %v3371, 4294901760
        %9312 = vmatmul.mubr.f32.gmra.mrb[0].mxu0 %v9311
        %v9313 = vpop.f32.mrb[0].mxu0
        %v9314 = vadd.f32 %v8979, %v9313
        %v9315 = vpop.f32.mrb[0].mxu0
        %9316 = vmatprep.mubr.f32.mxu0 0.0
        %v9317 = vand.u32 %v3372, 4294901760
        %9318 = vmatmul.mubr.f32.gmra.mrb[0].mxu0 %v9317
        %v9319 = vpop.f32.mrb[0].mxu0
        %v9320 = vadd.f32 %v8987, %v9319
        %v9321 = vpop.f32.mrb[0].mxu0
        %9322 = vmatprep.mubr.f32.mxu0 0.0
        %v9323 = vand.u32 %v3373, 4294901760
        %9324 = vmatmul.mubr.f32.gmra.mrb[0].mxu0 %v9323
        %v9325 = vpop.f32.mrb[0].mxu0
        %v9326 = vadd.f32 %v8995, %v9325
        %v9327 = vpop.f32.mrb[0].mxu0
        %9328 = vmatprep.mubr.f32.mxu0 0.0
        %v9329 = vand.u32 %v3374, 4294901760
        %9330 = vmatmul.mubr.f32.gmra.mrb[0].mxu0 %v9329
        %v9331 = vpop.f32.mrb[0].mxu0
        %v9332 = vadd.f32 %v9003, %v9331
        %v9333 = vpop.f32.mrb[0].mxu0
        %9334 = vmatprep.mubr.f32.mxu0 0.0
        %v9335 = vand.u32 %v3375, 4294901760
        %9336 = vmatmul.mubr.f32.gmra.mrb[0].mxu0 %v9335
        %v9337 = vpop.f32.mrb[0].mxu0
        %v9338 = vadd.f32 %v9011, %v9337
        %v9339 = vpop.f32.mrb[0].mxu0
        %9340 = vmatprep.mubr.f32.mxu0 0.0
        %v9341 = vand.u32 %v3376, 4294901760
        %9342 = vmatmul.mubr.f32.gmra.mrb[0].mxu0 %v9341
        %v9343 = vpop.f32.mrb[0].mxu0
        %v9344 = vadd.f32 %v9019, %v9343
        %v9345 = vpop.f32.mrb[0].mxu0
        %9346 = vmatprep.mubr.f32.mxu0 0.0
        %v9347 = vand.u32 %v3377, 4294901760
        %9348 = vmatmul.mubr.f32.gmra.mrb[0].mxu0 %v9347
        %v9349 = vpop.f32.mrb[0].mxu0
        %v9350 = vadd.f32 %v9027, %v9349
        %v9351 = vpop.f32.mrb[0].mxu0
        %9352 = vmatprep.mubr.f32.mxu0 0.0
        %v9353 = vand.u32 %v3378, 4294901760
        %9354 = vmatmul.mubr.f32.gmra.mrb[0].mxu0 %v9353
        %v9355 = vpop.f32.mrb[0].mxu0
        %v9356 = vadd.f32 %v9035, %v9355
        %v9357 = vpop.f32.mrb[0].mxu0
        %9358 = vmatprep.mubr.f32.mxu0 0.0
        %v9359 = vand.u32 %v3379, 4294901760
        %9360 = vmatmul.mubr.f32.gmra.mrb[0].mxu0 %v9359
        %v9361 = vpop.f32.mrb[0].mxu0
        %v9362 = vadd.f32 %v9043, %v9361
        %v9363 = vpop.f32.mrb[0].mxu0
        %9364 = vmatprep.mubr.f32.mxu0 0.0
        %v9365 = vand.u32 %v3380, 4294901760
        %9366 = vmatmul.mubr.f32.gmra.mrb[0].mxu0 %v9365
        %v9367 = vpop.f32.mrb[0].mxu0
        %v9368 = vadd.f32 %v9051, %v9367
        %v9369 = vpop.f32.mrb[0].mxu0
        %9370 = vmatprep.mubr.f32.mxu0 0.0
        %v9371 = vand.u32 %v3381, 4294901760
        %9372 = vmatmul.mubr.f32.gmra.mrb[0].mxu0 %v9371
        %v9373 = vpop.f32.mrb[0].mxu0
        %v9374 = vadd.f32 %v9059, %v9373
        %v9375 = vpop.f32.mrb[0].mxu0
        %9376 = vmatprep.mubr.f32.mxu0 0.0
        %v9377 = vand.u32 %v3382, 4294901760
        %9378 = vmatmul.mubr.f32.gmra.mrb[0].mxu0 %v9377
        %v9379 = vpop.f32.mrb[0].mxu0
        %v9380 = vadd.f32 %v9067, %v9379
        %v9381 = vpop.f32.mrb[0].mxu0
        %9382 = vmatprep.mubr.f32.mxu0 0.0
        %v9383 = vand.u32 %v3383, 4294901760
        %9384 = vmatmul.mubr.f32.gmra.mrb[0].mxu0 %v9383
        %v9385 = vpop.f32.mrb[0].mxu0
        %v9386 = vadd.f32 %v9075, %v9385
        %v9387 = vpop.f32.mrb[0].mxu0
        %9388 = vmatprep.mubr.f32.mxu0 0.0
        %v9389 = vand.u32 %v3384, 4294901760
        %9390 = vmatmul.mubr.f32.gmra.mrb[0].mxu0 %v9389
        %v9391 = vpop.f32.mrb[0].mxu0
        %v9392 = vadd.f32 %v9083, %v9391
        %v9393 = vpop.f32.mrb[0].mxu0
        %9394 = vmatprep.mubr.f32.mxu0 0.0
        %v9395 = vand.u32 %v3385, 4294901760
        %9396 = vmatmul.mubr.f32.gmra.mrb[0].mxu0 %v9395
        %v9397 = vpop.f32.mrb[0].mxu0
        %v9398 = vadd.f32 %v9091, %v9397
        %v9399 = vpop.f32.mrb[0].mxu0
        %9400 = vmatprep.mubr.f32.mxu0 0.0
        %v9401 = vand.u32 %v3386, 4294901760
        %9402 = vmatmul.mubr.f32.gmra.mrb[0].mxu0 %v9401
        %v9403 = vpop.f32.mrb[0].mxu0
        %v9404 = vadd.f32 %v9099, %v9403
        %v9405 = vpop.f32.mrb[0].mxu0
        %9406 = vdwg.mxu0
        %9407 = vmatprep.subr.mxu0 0.0
        %v9408 = vand.u32 %v5700, 4294901760
        %9409 = vmatpush1.msra.mxu0 %v9408
        %9410 = vmatprep.subr.mxu0 0.0
        %v9411 = vand.u32 %v5701, 4294901760
        %9412 = vmatpush1.msra.mxu0 %v9411
        %9413 = vmatprep.subr.mxu0 0.0
        %v9414 = vand.u32 %v5702, 4294901760
        %9415 = vmatpush1.msra.mxu0 %v9414
        %9416 = vmatprep.subr.mxu0 0.0
        %v9417 = vand.u32 %v5703, 4294901760
        %9418 = vmatpush1.msra.mxu0 %v9417
        %9419 = vmatprep.subr.mxu0 0.0
        %v9420 = vand.u32 %v5704, 4294901760
        %9421 = vmatpush1.msra.mxu0 %v9420
        %9422 = vmatprep.subr.mxu0 0.0
        %v9423 = vand.u32 %v5705, 4294901760
        %9424 = vmatpush1.msra.mxu0 %v9423
        %9425 = vmatprep.subr.mxu0 0.0
        %v9426 = vand.u32 %v5706, 4294901760
        %9427 = vmatpush1.msra.mxu0 %v9426
        %9428 = vmatprep.subr.mxu0 0.0
        %v9429 = vand.u32 %v5707, 4294901760
        %9430 = vmatpush1.msra.mxu0 %v9429
        %9431 = vmatprep.subr.mxu0 0.0
        %v9432 = vand.u32 %v5708, 4294901760
        %9433 = vmatpush1.msra.mxu0 %v9432
        %9434 = vmatprep.subr.mxu0 0.0
        %v9435 = vand.u32 %v5709, 4294901760
        %9436 = vmatpush1.msra.mxu0 %v9435
        %9437 = vmatprep.subr.mxu0 0.0
        %v9438 = vand.u32 %v5710, 4294901760
        %9439 = vmatpush1.msra.mxu0 %v9438
        %9440 = vmatprep.subr.mxu0 0.0
        %v9441 = vand.u32 %v5711, 4294901760
        %9442 = vmatpush1.msra.mxu0 %v9441
        %9443 = vmatprep.subr.mxu0 0.0
        %v9444 = vand.u32 %v5712, 4294901760
        %9445 = vmatpush1.msra.mxu0 %v9444
        %9446 = vmatprep.subr.mxu0 0.0
        %v9447 = vand.u32 %v5713, 4294901760
        %9448 = vmatpush1.msra.mxu0 %v9447
        %9449 = vmatprep.subr.mxu0 0.0
        %v9450 = vand.u32 %v5714, 4294901760
        %9451 = vmatpush1.msra.mxu0 %v9450
        %9452 = vmatprep.subr.mxu0 0.0
        %v9453 = vand.u32 %v5715, 4294901760
        %9454 = vmatpush1.msra.mxu0 %v9453
        %9455 = vmatprep.subr.mxu0 0.0
        %9456 = vmatpush1.msra.mxu0 0.0
        %9457 = vmatprep.subr.mxu0 0.0
        %9458 = vmatpush1.msra.mxu0 0.0
        %9459 = vmatprep.subr.mxu0 0.0
        %9460 = vmatpush1.msra.mxu0 0.0
        %9461 = vmatprep.subr.mxu0 0.0
        %9462 = vmatpush1.msra.mxu0 0.0
        %9463 = vmatprep.subr.mxu0 0.0
        %9464 = vmatpush1.msra.mxu0 0.0
        %9465 = vmatprep.subr.mxu0 0.0
        %9466 = vmatpush1.msra.mxu0 0.0
        %9467 = vmatprep.subr.mxu0 0.0
        %9468 = vmatpush1.msra.mxu0 0.0
        %9469 = vmatprep.subr.mxu0 0.0
        %9470 = vmatpush1.msra.mxu0 0.0
        %9471 = vmatprep.subr.mxu0 0.0
        %9472 = vmatpush1.msra.mxu0 0.0
        %9473 = vmatprep.subr.mxu0 0.0
        %9474 = vmatpush1.msra.mxu0 0.0
        %9475 = vmatprep.subr.mxu0 0.0
        %9476 = vmatpush1.msra.mxu0 0.0
        %9477 = vmatprep.subr.mxu0 0.0
        %9478 = vmatpush1.msra.mxu0 0.0
        %9479 = vmatprep.subr.mxu0 0.0
        %9480 = vmatpush1.msra.mxu0 0.0
        %9481 = vmatprep.subr.mxu0 0.0
        %9482 = vmatpush1.msra.mxu0 0.0
        %9483 = vmatprep.subr.mxu0 0.0
        %9484 = vmatpush1.msra.mxu0 0.0
        %9485 = vmatprep.subr.mxu0 0.0
        %9486 = vmatpush1.msra.mxu0 0.0
        %9487 = vmatprep.mubr.f32.mxu0 0.0
        %v9488 = vand.u32 %v3355, 4294901760
        %9489 = vmatmul.mubr.f32.gmra.mrb[0].mxu0 %v9488
        %v9490 = vpop.f32.mrb[0].mxu0
        %v9491 = vadd.f32 %v9218, %v9490
        %v9492 = vpop.f32.mrb[0].mxu0
        %9493 = vmatprep.mubr.f32.mxu0 0.0
        %v9494 = vand.u32 %v3356, 4294901760
        %9495 = vmatmul.mubr.f32.gmra.mrb[0].mxu0 %v9494
        %v9496 = vpop.f32.mrb[0].mxu0
        %v9497 = vadd.f32 %v9224, %v9496
        %v9498 = vpop.f32.mrb[0].mxu0
        %9499 = vmatprep.mubr.f32.mxu0 0.0
        %v9500 = vand.u32 %v3357, 4294901760
        %9501 = vmatmul.mubr.f32.gmra.mrb[0].mxu0 %v9500
        %v9502 = vpop.f32.mrb[0].mxu0
        %v9503 = vadd.f32 %v9230, %v9502
        %v9504 = vpop.f32.mrb[0].mxu0
        %9505 = vmatprep.mubr.f32.mxu0 0.0
        %v9506 = vand.u32 %v3358, 4294901760
        %9507 = vmatmul.mubr.f32.gmra.mrb[0].mxu0 %v9506
        %v9508 = vpop.f32.mrb[0].mxu0
        %v9509 = vadd.f32 %v9236, %v9508
        %v9510 = vpop.f32.mrb[0].mxu0
        %9511 = vmatprep.mubr.f32.mxu0 0.0
        %v9512 = vand.u32 %v3359, 4294901760
        %9513 = vmatmul.mubr.f32.gmra.mrb[0].mxu0 %v9512
        %v9514 = vpop.f32.mrb[0].mxu0
        %v9515 = vadd.f32 %v9242, %v9514
        %v9516 = vpop.f32.mrb[0].mxu0
        %9517 = vmatprep.mubr.f32.mxu0 0.0
        %v9518 = vand.u32 %v3360, 4294901760
        %9519 = vmatmul.mubr.f32.gmra.mrb[0].mxu0 %v9518
        %v9520 = vpop.f32.mrb[0].mxu0
        %v9521 = vadd.f32 %v9248, %v9520
        %v9522 = vpop.f32.mrb[0].mxu0
        %9523 = vmatprep.mubr.f32.mxu0 0.0
        %v9524 = vand.u32 %v3361, 4294901760
        %9525 = vmatmul.mubr.f32.gmra.mrb[0].mxu0 %v9524
        %v9526 = vpop.f32.mrb[0].mxu0
        %v9527 = vadd.f32 %v9254, %v9526
        %v9528 = vpop.f32.mrb[0].mxu0
        %9529 = vmatprep.mubr.f32.mxu0 0.0
        %v9530 = vand.u32 %v3362, 4294901760
        %9531 = vmatmul.mubr.f32.gmra.mrb[0].mxu0 %v9530
        %v9532 = vpop.f32.mrb[0].mxu0
        %v9533 = vadd.f32 %v9260, %v9532
        %v9534 = vpop.f32.mrb[0].mxu0
        %9535 = vmatprep.mubr.f32.mxu0 0.0
        %v9536 = vand.u32 %v3363, 4294901760
        %9537 = vmatmul.mubr.f32.gmra.mrb[0].mxu0 %v9536
        %v9538 = vpop.f32.mrb[0].mxu0
        %v9539 = vadd.f32 %v9266, %v9538
        %v9540 = vpop.f32.mrb[0].mxu0
        %9541 = vmatprep.mubr.f32.mxu0 0.0
        %v9542 = vand.u32 %v3364, 4294901760
        %9543 = vmatmul.mubr.f32.gmra.mrb[0].mxu0 %v9542
        %v9544 = vpop.f32.mrb[0].mxu0
        %v9545 = vadd.f32 %v9272, %v9544
        %v9546 = vpop.f32.mrb[0].mxu0
        %9547 = vmatprep.mubr.f32.mxu0 0.0
        %v9548 = vand.u32 %v3365, 4294901760
        %9549 = vmatmul.mubr.f32.gmra.mrb[0].mxu0 %v9548
        %v9550 = vpop.f32.mrb[0].mxu0
        %v9551 = vadd.f32 %v9278, %v9550
        %v9552 = vpop.f32.mrb[0].mxu0
        %9553 = vmatprep.mubr.f32.mxu0 0.0
        %v9554 = vand.u32 %v3366, 4294901760
        %9555 = vmatmul.mubr.f32.gmra.mrb[0].mxu0 %v9554
        %v9556 = vpop.f32.mrb[0].mxu0
        %v9557 = vadd.f32 %v9284, %v9556
        %v9558 = vpop.f32.mrb[0].mxu0
        %9559 = vmatprep.mubr.f32.mxu0 0.0
        %v9560 = vand.u32 %v3367, 4294901760
        %9561 = vmatmul.mubr.f32.gmra.mrb[0].mxu0 %v9560
        %v9562 = vpop.f32.mrb[0].mxu0
        %v9563 = vadd.f32 %v9290, %v9562
        %v9564 = vpop.f32.mrb[0].mxu0
        %9565 = vmatprep.mubr.f32.mxu0 0.0
        %v9566 = vand.u32 %v3368, 4294901760
        %9567 = vmatmul.mubr.f32.gmra.mrb[0].mxu0 %v9566
        %v9568 = vpop.f32.mrb[0].mxu0
        %v9569 = vadd.f32 %v9296, %v9568
        %v9570 = vpop.f32.mrb[0].mxu0
        %9571 = vmatprep.mubr.f32.mxu0 0.0
        %v9572 = vand.u32 %v3369, 4294901760
        %9573 = vmatmul.mubr.f32.gmra.mrb[0].mxu0 %v9572
        %v9574 = vpop.f32.mrb[0].mxu0
        %v9575 = vadd.f32 %v9302, %v9574
        %v9576 = vpop.f32.mrb[0].mxu0
        %9577 = vmatprep.mubr.f32.mxu0 0.0
        %v9578 = vand.u32 %v3370, 4294901760
        %9579 = vmatmul.mubr.f32.gmra.mrb[0].mxu0 %v9578
        %v9580 = vpop.f32.mrb[0].mxu0
        %v9581 = vadd.f32 %v9308, %v9580
        %v9582 = vpop.f32.mrb[0].mxu0
        %9583 = vmatprep.mubr.f32.mxu0 0.0
        %v9584 = vand.u32 %v3371, 4294901760
        %9585 = vmatmul.mubr.f32.gmra.mrb[0].mxu0 %v9584
        %v9586 = vpop.f32.mrb[0].mxu0
        %v9587 = vadd.f32 %v9314, %v9586
        %v9588 = vpop.f32.mrb[0].mxu0
        %9589 = vmatprep.mubr.f32.mxu0 0.0
        %v9590 = vand.u32 %v3372, 4294901760
        %9591 = vmatmul.mubr.f32.gmra.mrb[0].mxu0 %v9590
        %v9592 = vpop.f32.mrb[0].mxu0
        %v9593 = vadd.f32 %v9320, %v9592
        %v9594 = vpop.f32.mrb[0].mxu0
        %9595 = vmatprep.mubr.f32.mxu0 0.0
        %v9596 = vand.u32 %v3373, 4294901760
        %9597 = vmatmul.mubr.f32.gmra.mrb[0].mxu0 %v9596
        %v9598 = vpop.f32.mrb[0].mxu0
        %v9599 = vadd.f32 %v9326, %v9598
        %v9600 = vpop.f32.mrb[0].mxu0
        %9601 = vmatprep.mubr.f32.mxu0 0.0
        %v9602 = vand.u32 %v3374, 4294901760
        %9603 = vmatmul.mubr.f32.gmra.mrb[0].mxu0 %v9602
        %v9604 = vpop.f32.mrb[0].mxu0
        %v9605 = vadd.f32 %v9332, %v9604
        %v9606 = vpop.f32.mrb[0].mxu0
        %9607 = vmatprep.mubr.f32.mxu0 0.0
        %v9608 = vand.u32 %v3375, 4294901760
        %9609 = vmatmul.mubr.f32.gmra.mrb[0].mxu0 %v9608
        %v9610 = vpop.f32.mrb[0].mxu0
        %v9611 = vadd.f32 %v9338, %v9610
        %v9612 = vpop.f32.mrb[0].mxu0
        %9613 = vmatprep.mubr.f32.mxu0 0.0
        %v9614 = vand.u32 %v3376, 4294901760
        %9615 = vmatmul.mubr.f32.gmra.mrb[0].mxu0 %v9614
        %v9616 = vpop.f32.mrb[0].mxu0
        %v9617 = vadd.f32 %v9344, %v9616
        %v9618 = vpop.f32.mrb[0].mxu0
        %9619 = vmatprep.mubr.f32.mxu0 0.0
        %v9620 = vand.u32 %v3377, 4294901760
        %9621 = vmatmul.mubr.f32.gmra.mrb[0].mxu0 %v9620
        %v9622 = vpop.f32.mrb[0].mxu0
        %v9623 = vadd.f32 %v9350, %v9622
        %v9624 = vpop.f32.mrb[0].mxu0
        %9625 = vmatprep.mubr.f32.mxu0 0.0
        %v9626 = vand.u32 %v3378, 4294901760
        %9627 = vmatmul.mubr.f32.gmra.mrb[0].mxu0 %v9626
        %v9628 = vpop.f32.mrb[0].mxu0
        %v9629 = vadd.f32 %v9356, %v9628
        %v9630 = vpop.f32.mrb[0].mxu0
        %9631 = vmatprep.mubr.f32.mxu0 0.0
        %v9632 = vand.u32 %v3379, 4294901760
        %9633 = vmatmul.mubr.f32.gmra.mrb[0].mxu0 %v9632
        %v9634 = vpop.f32.mrb[0].mxu0
        %v9635 = vadd.f32 %v9362, %v9634
        %v9636 = vpop.f32.mrb[0].mxu0
        %9637 = vmatprep.mubr.f32.mxu0 0.0
        %v9638 = vand.u32 %v3380, 4294901760
        %9639 = vmatmul.mubr.f32.gmra.mrb[0].mxu0 %v9638
        %v9640 = vpop.f32.mrb[0].mxu0
        %v9641 = vadd.f32 %v9368, %v9640
        %v9642 = vpop.f32.mrb[0].mxu0
        %9643 = vmatprep.mubr.f32.mxu0 0.0
        %v9644 = vand.u32 %v3381, 4294901760
        %9645 = vmatmul.mubr.f32.gmra.mrb[0].mxu0 %v9644
        %v9646 = vpop.f32.mrb[0].mxu0
        %v9647 = vadd.f32 %v9374, %v9646
        %v9648 = vpop.f32.mrb[0].mxu0
        %9649 = vmatprep.mubr.f32.mxu0 0.0
        %v9650 = vand.u32 %v3382, 4294901760
        %9651 = vmatmul.mubr.f32.gmra.mrb[0].mxu0 %v9650
        %v9652 = vpop.f32.mrb[0].mxu0
        %v9653 = vadd.f32 %v9380, %v9652
        %v9654 = vpop.f32.mrb[0].mxu0
        %9655 = vmatprep.mubr.f32.mxu0 0.0
        %v9656 = vand.u32 %v3383, 4294901760
        %9657 = vmatmul.mubr.f32.gmra.mrb[0].mxu0 %v9656
        %v9658 = vpop.f32.mrb[0].mxu0
        %v9659 = vadd.f32 %v9386, %v9658
        %v9660 = vpop.f32.mrb[0].mxu0
        %9661 = vmatprep.mubr.f32.mxu0 0.0
        %v9662 = vand.u32 %v3384, 4294901760
        %9663 = vmatmul.mubr.f32.gmra.mrb[0].mxu0 %v9662
        %v9664 = vpop.f32.mrb[0].mxu0
        %v9665 = vadd.f32 %v9392, %v9664
        %v9666 = vpop.f32.mrb[0].mxu0
        %9667 = vmatprep.mubr.f32.mxu0 0.0
        %v9668 = vand.u32 %v3385, 4294901760
        %9669 = vmatmul.mubr.f32.gmra.mrb[0].mxu0 %v9668
        %v9670 = vpop.f32.mrb[0].mxu0
        %v9671 = vadd.f32 %v9398, %v9670
        %v9672 = vpop.f32.mrb[0].mxu0
        %9673 = vmatprep.mubr.f32.mxu0 0.0
        %v9674 = vand.u32 %v3386, 4294901760
        %9675 = vmatmul.mubr.f32.gmra.mrb[0].mxu0 %v9674
        %v9676 = vpop.f32.mrb[0].mxu0
        %v9677 = vadd.f32 %v9404, %v9676
        %v9678 = vpop.f32.mrb[0].mxu0
        %9679 = vdwg.mxu0
        %v9680 = vld [vmem:[%s9] sm:$0x1]
        %v9682 = vlaneseq
        %v9683 = vshrl.u32 %v9682, 7
        %v9684 = vsub.s32 0, %v9683
        %v9685 = vrot.slane %v9680, %v9684
        %v9687 = vadd.f32 %v9491, %v9685
        %v9688 = vadd.f32 %v9497, %v9685
        %v9689 = vadd.f32 %v9503, %v9685
        %v9690 = vadd.f32 %v9509, %v9685
        %v9691 = vadd.f32 %v9515, %v9685
        %v9692 = vadd.f32 %v9521, %v9685
        %v9693 = vadd.f32 %v9527, %v9685
        %v9694 = vadd.f32 %v9533, %v9685
        %v9695 = vadd.f32 %v9539, %v9685
        %v9696 = vadd.f32 %v9545, %v9685
        %v9697 = vadd.f32 %v9551, %v9685
        %v9698 = vadd.f32 %v9557, %v9685
        %v9699 = vadd.f32 %v9563, %v9685
        %v9700 = vadd.f32 %v9569, %v9685
        %v9701 = vadd.f32 %v9575, %v9685
        %v9702 = vadd.f32 %v9581, %v9685
        %v9703 = vadd.f32 %v9587, %v9685
        %v9704 = vadd.f32 %v9593, %v9685
        %v9705 = vadd.f32 %v9599, %v9685
        %v9706 = vadd.f32 %v9605, %v9685
        %v9707 = vadd.f32 %v9611, %v9685
        %v9708 = vadd.f32 %v9617, %v9685
        %v9709 = vadd.f32 %v9623, %v9685
        %v9710 = vadd.f32 %v9629, %v9685
        %v9711 = vadd.f32 %v9635, %v9685
        %v9712 = vadd.f32 %v9641, %v9685
        %v9713 = vadd.f32 %v9647, %v9685
        %v9714 = vadd.f32 %v9653, %v9685
        %v9715 = vadd.f32 %v9659, %v9685
        %v9716 = vadd.f32 %v9665, %v9685
        %v9717 = vadd.f32 %v9671, %v9685
        %v9718 = vadd.f32 %v9677, %v9685
        %9719 = vst [vmem:[%s352] sm:$0xff] %v9687
        %9720 = vst [vmem:[%s352 + $0x8] sm:$0xff] %v9688
        %9721 = vst [vmem:[%s352 + $0x10] sm:$0xff] %v9689
        %9722 = vst [vmem:[%s352 + $0x18] sm:$0xff] %v9690
        %9723 = vst [vmem:[%s352 + $0x20] sm:$0xff] %v9691
        %9724 = vst [vmem:[%s352 + $0x28] sm:$0xff] %v9692
        %9725 = vst [vmem:[%s352 + $0x30] sm:$0xff] %v9693
        %9726 = vst [vmem:[%s352 + $0x38] sm:$0xff] %v9694
        %9727 = vst [vmem:[%s352 + $0x40] sm:$0xff] %v9695
        %9728 = vst [vmem:[%s352 + $0x48] sm:$0xff] %v9696
        %9729 = vst [vmem:[%s352 + $0x50] sm:$0xff] %v9697
        %9730 = vst [vmem:[%s352 + $0x58] sm:$0xff] %v9698
        %9731 = vst [vmem:[%s352 + $0x60] sm:$0xff] %v9699
        %9732 = vst [vmem:[%s352 + $0x68] sm:$0xff] %v9700
        %9733 = vst [vmem:[%s352 + $0x70] sm:$0xff] %v9701
        %9734 = vst [vmem:[%s352 + $0x78] sm:$0xff] %v9702
        %9735 = vst [vmem:[%s352 + $0x80] sm:$0xff] %v9703
        %9736 = vst [vmem:[%s352 + $0x88] sm:$0xff] %v9704
        %9737 = vst [vmem:[%s352 + $0x90] sm:$0xff] %v9705
        %9738 = vst [vmem:[%s352 + $0x98] sm:$0xff] %v9706
        %9739 = vst [vmem:[%s352 + $0xa0] sm:$0xff] %v9707
        %9740 = vst [vmem:[%s352 + $0xa8] sm:$0xff] %v9708
        %9741 = vst [vmem:[%s352 + $0xb0] sm:$0xff] %v9709
        %9742 = vst [vmem:[%s352 + $0xb8] sm:$0xff] %v9710
        %9743 = vst [vmem:[%s352 + $0xc0] sm:$0xff] %v9711
        %9744 = vst [vmem:[%s352 + $0xc8] sm:$0xff] %v9712
        %9745 = vst [vmem:[%s352 + $0xd0] sm:$0xff] %v9713
        %9746 = vst [vmem:[%s352 + $0xd8] sm:$0xff] %v9714
        %9747 = vst [vmem:[%s352 + $0xe0] sm:$0xff] %v9715
        %9748 = vst [vmem:[%s352 + $0xe8] sm:$0xff] %v9716
        %9749 = vst [vmem:[%s352 + $0xf0] sm:$0xff] %v9717
        %9750 = vst [vmem:[%s352 + $0xf8] sm:$0xff] %v9718
        %s9751 = sand.u32 %s247, 1
        %s9752 = scalar_lea.sflag [#allocation4], %s9751
        %s9753 = sand.u32 %s247, 1
        %s9754 = smul.addr %s9753, 256
        %s9755 = scalar_lea.vmem [#allocation3], %s9754
        // Predicated region
        $region61: #{tpu_custom_call.1} parent=59 // pred_check
          %p9756 = pneg %p257
        $region62: #{tpu_custom_call.1} parent=59 // pred_check_branch
          %9758 = sbr.rel (%p9756) target = $region64
        $region63: #{tpu_custom_call.1} parent=59 // pred_region
          %s9760 = ssub.s32 4096, 4096
          %9761 = vsyncadd %s9752, %s9760
          %s9762 = smul.addr %s24, 32
          %s9763 = smul.addr %s9762, 128
          %s9764 = scalar_lea.hbm %s10, %s9763
          %s9765 = sshll.u32 %s9755, 4
          %s9766 = int_to_ptr.vmem [resolvable:$true] %s9765
          %9771 = dma.vmem_to_hbm [thread:$0]  %s9766, 4096, %s9764, %s9752, 128, 128, 8
        $region64: #{tpu_custom_call.1} parent=59 // pred_fallthru
          _
      $region60: #{tpu_custom_call.1} parent=5 // pred_fallthru
        _
      %p9772 = scmp.le.s32.totalorder 2, %s19
      // Predicated region
      $region65: #{tpu_custom_call.1} parent=5 // pred_check
        %p9773 = pneg %p9772
      $region66: #{tpu_custom_call.1} parent=5 // pred_check_branch
        %9775 = sbr.rel (%p9773) target = $region68
      $region67: #{tpu_custom_call.1} parent=5 // pred_region
        %s9776 = ssub.s32 %s19, 2
        // Predicated region
        $region69: #{tpu_custom_call.1} parent=67 // pred_check
          %p9777 = pneg %p263
        $region70: #{tpu_custom_call.1} parent=67 // pred_check_branch
          %9779 = sbr.rel (%p9777) target = $region72
        $region71: #{tpu_custom_call.1} parent=67 // pred_region
          %s9780 = sand.u32 %s248, 1
          %s9781 = scalar_lea.sflag [#allocation4], %s9780
          %s9782 = sand.u32 %s248, 1
          %s9783 = smul.addr %s9782, 256
          %s9784 = scalar_lea.vmem [#allocation3], %s9783
          %9785 = dma.done %s9781, 4096
        $region72: #{tpu_custom_call.1} parent=67 // pred_fallthru
          _
      $region68: #{tpu_custom_call.1} parent=5 // pred_fallthru
        _
    $region6: #{tpu_custom_call.1} parent=1 // loop_footer
      %s23 = sadd.s32 1, %s19
    $region7: #{tpu_custom_call.1} parent=1 // loop_footer_branch
      %18 = sbr.rel target = $region3
    $region8: #{tpu_custom_call.1} parent=1 // loop_exit
      _
    %9786 = vsyncpa [#allocation4], 1
    %s9787 = scalar_lea.sflag [#allocation4], 1
    %9788 = vsyncpa %s9787, 1

</llo_original>
